<compile_context>
chip_gen: v6e
topology: v6e:2x2x1
jax: 0.10.0
libtpu: 0.0.40
codegen_flags: <defaults>
</compile_context>

<pallas_src>
import functools

import jax
import jax.numpy as jnp
from jax.experimental import pallas as pl
from jax.experimental.pallas import tpu as pltpu

_LANE = 128        # vreg lane width (last dim)
_SUBLANE = 8       # f32 sublane width
_ROW = 16          # batch-tile granularity (safe for both f32 and bf16 packing)
_MIB = 1024 * 1024


def _round_up(n, m):
    return ((n + m - 1) // m) * m


def _vmem_capacity_bytes():
    """Physical VMEM per TensorCore; conservative fallback if the query fails."""
    try:
        info = pltpu.get_tpu_info()
        cap = getattr(info, "vmem_capacity_bytes", None)
        if cap:
            return int(cap)
    except Exception:  # capability probe only — never masks kernel errors
        pass
    return 64 * _MIB   # v7x per-TC VMEM (smallest generation); v5e/v6e have 128 MiB


def _probe_single_buffer_support():
    """Does BlockSpec accept pipeline_mode=pl.Buffered(1) (single-buffered weights)?"""
    if not hasattr(pl, "Buffered"):
        return False
    try:
        pl.BlockSpec((8, 128), lambda i: (0, 0), pipeline_mode=pl.Buffered(1))
        return True
    except (TypeError, ValueError):
        return False


_SINGLE_BUFFER_OK = _probe_single_buffer_support()
_LOWERING_ERRORS = tuple(
    e for e in (getattr(pltpu, "LoweringException", None), NotImplementedError, ValueError)
    if e is not None
)


# ---------------------------------------------------------------------------
# Pallas kernel: the whole 3-layer MLP hot path (matmuls + bias + ReLU)
# ---------------------------------------------------------------------------
def _mlp_kernel(x_ref, w1_ref, b1_ref, w2_ref, b2_ref, w3_ref, b3_ref, o_ref,
                *, precision):
    x = x_ref[...]

    # layer 1: Linear + ReLU (MXU matmul, f32 accumulate)
    h = jnp.dot(x, w1_ref[...], preferred_element_type=jnp.float32,
                precision=precision) + b1_ref[...]
    h = jnp.maximum(h, 0.0)

    # layer 2: Linear + ReLU
    h = jnp.dot(h.astype(w2_ref.dtype), w2_ref[...],
                preferred_element_type=jnp.float32, precision=precision) + b2_ref[...]
    h = jnp.maximum(h, 0.0)

    # layer 3 (output): Linear, no activation
    o = jnp.dot(h.astype(w3_ref.dtype), w3_ref[...],
                preferred_element_type=jnp.float32, precision=precision) + b3_ref[...]
    o_ref[...] = o.astype(o_ref.dtype)


# ---------------------------------------------------------------------------
# One-time parameter preparation (padding + dtype cast hoisted out of forward)
# ---------------------------------------------------------------------------
def prepare_mlp_params(params, *, use_bf16=False):
    """Pad/cast weights once so mlp_forward only has to touch x per call.

    params: dict with w1 [Din,H], b1 [H] or [1,H], w2 [H,H], b2, w3 [H,Dout], b3.
    """
    w1, b1 = params["w1"], params["b1"]
    w2, b2 = params["w2"], params["b2"]
    w3, b3 = params["w3"], params["b3"]

    din, H = w1.shape
    dout = w3.shape[1]

    compute_dtype = jnp.bfloat16 if use_bf16 else jnp.float32

    # Feature padding: din only to a sublane multiple (full-dim block => no 128
    # lane padding needed on the streamed x operand); H/dout lane-padded so the
    # hidden matmuls and the output store are lane-dense (unmasked vst).
    din_p = _round_up(din, _SUBLANE)
    h_p = _round_up(H, _LANE)
    dout_p = _round_up(dout, _LANE)

    def pad2(a, r, c, dtype):
        a = a.astype(dtype)
        return jnp.pad(a, ((0, r - a.shape[0]), (0, c - a.shape[1])))

    w1_p = pad2(w1, din_p, h_p, compute_dtype)
    w2_p = pad2(w2, h_p, h_p, compute_dtype)
    w3_p = pad2(w3, h_p, dout_p, compute_dtype)
    # Biases stay f32 (bias add / ReLU run on the f32 VPU epilogue).
    b1_p = pad2(b1.reshape(1, -1), 1, h_p, jnp.float32)
    b2_p = pad2(b2.reshape(1, -1), 1, h_p, jnp.float32)
    b3_p = pad2(b3.reshape(1, -1), 1, dout_p, jnp.float32)

    return {
        "_prepared": True,
        "compute_dtype": compute_dtype,
        "dims": (din, H, dout),
        "padded_dims": (din_p, h_p, dout_p),
        "w1": w1_p, "b1": b1_p,
        "w2": w2_p, "b2": b2_p,
        "w3": w3_p, "b3": b3_p,
    }


# ---------------------------------------------------------------------------
# Forward wrapper: tiling, VMEM budgeting, pallas_call
# ---------------------------------------------------------------------------
def mlp_forward(x, params, *, tile_m=None, use_bf16=False, precision=None,
                single_buffer_weights=None):
    """MLP forward via a single fused pallas_call.

    x: [..., input_dim] (any float dtype; cast like the PyTorch module's x.float()).
    params: raw param dict or the output of prepare_mlp_params (preferred: call
            prepare_mlp_params once and reuse so weights aren't re-padded per call).
    """
    if not (isinstance(params, dict) and params.get("_prepared")):
        params = prepare_mlp_params(params, use_bf16=use_bf16)
    p = params

    compute_dtype = p["compute_dtype"]
    out_dtype = compute_dtype          # bf16 out halves writeback; f32 path stays f32
    if precision is None:
        precision = (jax.lax.Precision.HIGHEST if compute_dtype == jnp.float32
                     else jax.lax.Precision.DEFAULT)

    din, H, dout = p["dims"]
    din_p, h_p, dout_p = p["padded_dims"]

    lead_shape = x.shape[:-1]
    x = x.reshape(-1, x.shape[-1]).astype(compute_dtype)
    B = x.shape[0]
    assert x.shape[1] == din, f"expected feature dim {din}, got {x.shape[1]}"

    w_item = jnp.dtype(compute_dtype).itemsize
    out_item = jnp.dtype(out_dtype).itemsize

    # ---- generation-aware VMEM budget ----
    capacity = _vmem_capacity_bytes()
    budget = int(capacity * 0.75)        # 48 MiB on v7x, 96 MiB on v5e/v6e
    limit_cap = int(capacity * 0.875)    # never hand the compiler the full ceiling

    single_buffer = (_SINGLE_BUFFER_OK if single_buffer_weights is None
                     else bool(single_buffer_weights))
    wfactor = 1 if single_buffer else 2
    weight_bytes = (din_p * h_p + h_p * h_p + h_p * dout_p) * w_item * wfactor
    bias_bytes = (2 * h_p + dout_p) * 4 * wfactor

    def tile_bytes(tm):
        io = 2 * tm * (din_p * w_item + dout_p * out_item)   # double-buffered x / out
        act = 2 * tm * h_p * 4                               # f32 hidden activations
        return io + act

    # ---- tile_m: multiple of 16 rows, bounded by the VMEM budget (not a fixed cap) ----
    if tile_m is None:
        tile_m = min(1024, _round_up(B, _ROW))
    tile_m = max(_ROW, _round_up(int(tile_m), _ROW))
    while tile_m > _ROW and weight_bytes + bias_bytes + tile_bytes(tile_m) > budget:
        tile_m = max(_ROW, tile_m - (64 if tile_m > 64 else _ROW))
    # TODO(synk): if hidden_dim grows so w2 alone exceeds VMEM (H >~ 3.5k f32 on v7x),
    # add an "arbitrary" grid axis tiling H with a pl.when-managed f32 accumulator.

    B_p = _round_up(B, tile_m)
    grid = (B_p // tile_m,)

    vmem_needed = weight_bytes + bias_bytes + tile_bytes(tile_m)
    vmem_limit = int(min(max(int(vmem_needed * 1.5), 32 * _MIB), limit_cap))

    # ---- only x needs per-call padding (weights were pre-padded once) ----
    x_p = x
    if B_p != B or din_p != din:
        x_p = jnp.pad(x, ((0, B_p - B), (0, din_p - din)))

    # Advisory cost estimate so XLA can schedule around the call.
    flops = 2 * B_p * (din_p * h_p + h_p * h_p + h_p * dout_p)
    bytes_accessed = (B_p * din_p * w_item
                      + (din_p * h_p + h_p * h_p + h_p * dout_p) * w_item
                      + (2 * h_p + dout_p) * 4
                      + B_p * dout_p * out_item)
    cost = pl.CostEstimate(flops=flops, transcendentals=0,
                           bytes_accessed=bytes_accessed)

    kernel = functools.partial(_mlp_kernel, precision=precision)

    def _weight_spec(shape, single):
        idx = lambda i: (0, 0)
        if single:
            # Constant block index -> a second pipeline buffer is pure VMEM waste.
            return pl.BlockSpec(shape, idx, pipeline_mode=pl.Buffered(1))
        return pl.BlockSpec(shape, idx)

    def _call(single):
        return pl.pallas_call(
            kernel,
            out_shape=jax.ShapeDtypeStruct((B_p, dout_p), out_dtype),
            grid_spec=pltpu.PrefetchScalarGridSpec(
                num_scalar_prefetch=0,
                grid=grid,
                in_specs=[
                    pl.BlockSpec((tile_m, din_p), lambda i: (i, 0)),   # x tile
                    _weight_spec((din_p, h_p), single),
                    _weight_spec((1, h_p), single),
                    _weight_spec((h_p, h_p), single),
                    _weight_spec((1, h_p), single),
                    _weight_spec((h_p, dout_p), single),
                    _weight_spec((1, dout_p), single),
                ],
                out_specs=pl.BlockSpec((tile_m, dout_p), lambda i: (i, 0)),
            ),
            compiler_params=pltpu.CompilerParams(
                # TODO(synk): use pltpu.CORE_PARALLEL on v7x dual-TensorCore parts once
                # the target generation is known; plain "parallel" is safe everywhere.
                dimension_semantics=("parallel",),
                vmem_limit_bytes=vmem_limit,
            ),
            cost_estimate=cost,
        )(x_p, p["w1"], p["b1"], p["w2"], p["b2"], p["w3"], p["b3"])

    if single_buffer:
        try:
            out_p = _call(True)
        except _LOWERING_ERRORS as e:   # narrow, logged fallback (no broad except)
            print(f"[mlp_forward] single-buffered weight specs unsupported "
                  f"({type(e).__name__}: {e}); retrying double-buffered.")
            out_p = _call(False)
    else:
        out_p = _call(False)

    out = out_p[:B, :dout]
    return out.reshape(*lead_shape, dout)


# ---------------------------------------------------------------------------
# Deterministic parameter init (mirrors nn.init.orthogonal_ + zero bias)
# ---------------------------------------------------------------------------
def _orthogonal(key, rows, cols, gain):
    """Orthogonal init a la torch.nn.init.orthogonal_: QR of a Gaussian, sign-fixed."""
    transpose = rows < cols
    shape = (cols, rows) if transpose else (rows, cols)
    a = jax.random.normal(key, shape, dtype=jnp.float32)
    q, r = jnp.linalg.qr(a)
    q = q * jnp.sign(jnp.diagonal(r))[None, :]
    if transpose:
        q = q.T
    return gain * q


def init_mlp_params(key, input_dim, hidden_dim, output_dim,
                    gain=1.0, last_layer_gain=0.01):
    k1, k2, k3 = jax.random.split(key, 3)
    # Stored [in, out] (transpose of PyTorch's [out, in]); orthogonality is
    # preserved under transpose so the init semantics match.
    w1 = _orthogonal(k1, input_dim, hidden_dim, gain)
    w2 = _orthogonal(k2, hidden_dim, hidden_dim, gain)
    w3 = _orthogonal(k3, hidden_dim, output_dim, last_layer_gain)
    return {
        "w1": w1, "b1": jnp.zeros((1, hidden_dim), jnp.float32),
        "w2": w2, "b2": jnp.zeros((1, hidden_dim), jnp.float32),
        "w3": w3, "b3": jnp.zeros((1, output_dim), jnp.float32),
    }


def mlp_reference(x, params, precision=jax.lax.Precision.HIGHEST):
    """Plain-JAX reference for correctness checking."""
    x = x.astype(jnp.float32)
    h = jnp.maximum(jnp.dot(x, params["w1"], precision=precision) + params["b1"], 0.0)
    h = jnp.maximum(jnp.dot(h, params["w2"], precision=precision) + params["b2"], 0.0)
    return jnp.dot(h, params["w3"], precision=precision) + params["b3"]


if __name__ == "__main__":
    key = jax.random.PRNGKey(0)
    k_param, k_x = jax.random.split(key)

    # Shapes consistent with MLP(input_dim, hidden_dim, output_dim, n_layers=2).
    batch, input_dim, hidden_dim, output_dim = 512, 16, 32, 8

    params = init_mlp_params(k_param, input_dim, hidden_dim, output_dim)
    x = jax.random.normal(k_x, (batch, input_dim), dtype=jnp.float32)

    ref = mlp_reference(x, params)

    # f32 path (matches the PyTorch module's numerics); weights prepared once.
    prep_f32 = prepare_mlp_params(params)
    out = jax.block_until_ready(mlp_forward(x, prep_f32))
    assert out.shape == (batch, output_dim)
    assert jnp.allclose(out, ref, atol=1e-5, rtol=1e-5), "f32 mismatch vs reference"

    # Explicit multi-step batch grid (exercises the pipelined tiling path).
    out_tiled = jax.block_until_ready(mlp_forward(x, prep_f32, tile_m=128))
    assert jnp.allclose(out_tiled, ref, atol=1e-5, rtol=1e-5), "tiled mismatch vs reference"

    # bf16 fast path (half the DMA bytes, native MXU rate); looser tolerance.
    prep_bf16 = prepare_mlp_params(params, use_bf16=True)
    out_bf16 = jax.block_until_ready(mlp_forward(x, prep_bf16))
    assert out_bf16.dtype == jnp.bfloat16
    assert jnp.allclose(out_bf16.astype(jnp.float32), ref, atol=5e-2, rtol=5e-2), \
        "bf16 mismatch vs reference"

    print("KERNEL_OK")
</pallas_src>

<mosaic_0001>
module attributes {stable_mosaic.version = 11 : i64} {
  func.func @_mlp_kernel(%arg0: i32, %arg1: memref<512x16xf32, #tpu.memory_space<vmem>>, %arg2: memref<16x128xf32, #tpu.memory_space<vmem>>, %arg3: memref<1x128xf32, #tpu.memory_space<vmem>>, %arg4: memref<128x128xf32, #tpu.memory_space<vmem>>, %arg5: memref<1x128xf32, #tpu.memory_space<vmem>>, %arg6: memref<128x128xf32, #tpu.memory_space<vmem>>, %arg7: memref<1x128xf32, #tpu.memory_space<vmem>>, %arg8: memref<512x128xf32, #tpu.memory_space<vmem>>) attributes {dimension_semantics = [#tpu.dimension_semantics<parallel>], iteration_bounds = array<i64: 1>, scalar_prefetch = 0 : i64, scratch_operands = 0 : i64, tpu.core_type = #tpu.core_type<tc>, window_params = [{transform_indices = @transform_0, window_bounds = array<i64: 512, 16>}, {pipeline_mode = #tpu.pipeline_mode<synchronous>, transform_indices = @transform_1, window_bounds = array<i64: 16, 128>}, {pipeline_mode = #tpu.pipeline_mode<synchronous>, transform_indices = @transform_2, window_bounds = array<i64: 1, 128>}, {pipeline_mode = #tpu.pipeline_mode<synchronous>, transform_indices = @transform_3, window_bounds = array<i64: 128, 128>}, {pipeline_mode = #tpu.pipeline_mode<synchronous>, transform_indices = @transform_4, window_bounds = array<i64: 1, 128>}, {pipeline_mode = #tpu.pipeline_mode<synchronous>, transform_indices = @transform_5, window_bounds = array<i64: 128, 128>}, {pipeline_mode = #tpu.pipeline_mode<synchronous>, transform_indices = @transform_6, window_bounds = array<i64: 1, 128>}, {transform_indices = @transform_7, window_bounds = array<i64: 512, 128>}]} {
    %c0 = arith.constant 0 : index
    %c0_0 = arith.constant 0 : index
    %0 = vector.load %arg1[%c0, %c0_0] : memref<512x16xf32, #tpu.memory_space<vmem>>, vector<512x16xf32>
    %c0_1 = arith.constant 0 : index
    %c0_2 = arith.constant 0 : index
    %1 = vector.load %arg2[%c0_1, %c0_2] : memref<16x128xf32, #tpu.memory_space<vmem>>, vector<16x128xf32>
    %cst = arith.constant dense<0.000000e+00> : vector<512x128xf32>
    %2 = tpu.matmul %0, %1, %cst {dimension_numbers = #tpu.dot_dimension_numbers<[1], [0], [0], [1], [0, 0, 1, 1], [], []>, precision = #tpu.contract_precision<fp32>} : vector<512x16xf32>, vector<16x128xf32>, vector<512x128xf32> -> vector<512x128xf32>
    %c0_3 = arith.constant 0 : index
    %c0_4 = arith.constant 0 : index
    %3 = vector.load %arg3[%c0_3, %c0_4] : memref<1x128xf32, #tpu.memory_space<vmem>>, vector<1x128xf32>
    %4 = vector.broadcast %3 : vector<1x128xf32> to vector<512x128xf32>
    %5 = arith.addf %2, %4 : vector<512x128xf32>
    %cst_5 = arith.constant 0.000000e+00 : f32
    %6 = vector.broadcast %cst_5 : f32 to vector<512x128xf32>
    %7 = arith.maximumf %5, %6 : vector<512x128xf32>
    %c0_6 = arith.constant 0 : index
    %c0_7 = arith.constant 0 : index
    %8 = vector.load %arg4[%c0_6, %c0_7] : memref<128x128xf32, #tpu.memory_space<vmem>>, vector<128x128xf32>
    %cst_8 = arith.constant dense<0.000000e+00> : vector<512x128xf32>
    %9 = tpu.matmul %7, %8, %cst_8 {dimension_numbers = #tpu.dot_dimension_numbers<[1], [0], [0], [1], [0, 0, 1, 1], [], []>, precision = #tpu.contract_precision<fp32>} : vector<512x128xf32>, vector<128x128xf32>, vector<512x128xf32> -> vector<512x128xf32>
    %c0_9 = arith.constant 0 : index
    %c0_10 = arith.constant 0 : index
    %10 = vector.load %arg5[%c0_9, %c0_10] : memref<1x128xf32, #tpu.memory_space<vmem>>, vector<1x128xf32>
    %11 = vector.broadcast %10 : vector<1x128xf32> to vector<512x128xf32>
    %12 = arith.addf %9, %11 : vector<512x128xf32>
    %cst_11 = arith.constant 0.000000e+00 : f32
    %13 = vector.broadcast %cst_11 : f32 to vector<512x128xf32>
    %14 = arith.maximumf %12, %13 : vector<512x128xf32>
    %c0_12 = arith.constant 0 : index
    %c0_13 = arith.constant 0 : index
    %15 = vector.load %arg6[%c0_12, %c0_13] : memref<128x128xf32, #tpu.memory_space<vmem>>, vector<128x128xf32>
    %cst_14 = arith.constant dense<0.000000e+00> : vector<512x128xf32>
    %16 = tpu.matmul %14, %15, %cst_14 {dimension_numbers = #tpu.dot_dimension_numbers<[1], [0], [0], [1], [0, 0, 1, 1], [], []>, precision = #tpu.contract_precision<fp32>} : vector<512x128xf32>, vector<128x128xf32>, vector<512x128xf32> -> vector<512x128xf32>
    %c0_15 = arith.constant 0 : index
    %c0_16 = arith.constant 0 : index
    %17 = vector.load %arg7[%c0_15, %c0_16] : memref<1x128xf32, #tpu.memory_space<vmem>>, vector<1x128xf32>
    %18 = vector.broadcast %17 : vector<1x128xf32> to vector<512x128xf32>
    %19 = arith.addf %16, %18 : vector<512x128xf32>
    %c0_17 = arith.constant 0 : index
    %c0_18 = arith.constant 0 : index
    %20 = vector.load %arg8[%c0_17, %c0_18] : memref<512x128xf32, #tpu.memory_space<vmem>>, vector<512x128xf32>
    tpu.vector_store %arg8[%c0_17, %c0_18], %19 {strides = array<i32>} : memref<512x128xf32, #tpu.memory_space<vmem>>, vector<512x128xf32>,
    return
  }
  func.func @transform_0(%arg0: i32) -> (i32, i32) {
    %c0_i32 = arith.constant 0 : i32
    %c0_i32_0 = arith.constant 0 : i32
    return %arg0, %c0_i32 : i32, i32
  }
  func.func @transform_1(%arg0: i32) -> (i32, i32) {
    %c0_i32 = arith.constant 0 : i32
    %c0_i32_0 = arith.constant 0 : i32
    %c0_i32_1 = arith.constant 0 : i32
    return %c0_i32, %c0_i32_0 : i32, i32
  }
  func.func @transform_2(%arg0: i32) -> (i32, i32) {
    %c0_i32 = arith.constant 0 : i32
    %c0_i32_0 = arith.constant 0 : i32
    %c0_i32_1 = arith.constant 0 : i32
    return %c0_i32, %c0_i32_0 : i32, i32
  }
  func.func @transform_3(%arg0: i32) -> (i32, i32) {
    %c0_i32 = arith.constant 0 : i32
    %c0_i32_0 = arith.constant 0 : i32
    %c0_i32_1 = arith.constant 0 : i32
    return %c0_i32, %c0_i32_0 : i32, i32
  }
  func.func @transform_4(%arg0: i32) -> (i32, i32) {
    %c0_i32 = arith.constant 0 : i32
    %c0_i32_0 = arith.constant 0 : i32
    %c0_i32_1 = arith.constant 0 : i32
    return %c0_i32, %c0_i32_0 : i32, i32
  }
  func.func @transform_5(%arg0: i32) -> (i32, i32) {
    %c0_i32 = arith.constant 0 : i32
    %c0_i32_0 = arith.constant 0 : i32
    %c0_i32_1 = arith.constant 0 : i32
    return %c0_i32, %c0_i32_0 : i32, i32
  }
  func.func @transform_6(%arg0: i32) -> (i32, i32) {
    %c0_i32 = arith.constant 0 : i32
    %c0_i32_0 = arith.constant 0 : i32
    %c0_i32_1 = arith.constant 0 : i32
    return %c0_i32, %c0_i32_0 : i32, i32
  }
  func.func @transform_7(%arg0: i32) -> (i32, i32) {
    %c0_i32 = arith.constant 0 : i32
    %c0_i32_0 = arith.constant 0 : i32
    return %arg0, %c0_i32 : i32, i32
  }
}

</mosaic_0001>

<llo_original>
// kernel: tpu_custom_call.1
$region0: #{tpu_custom_call.1}
  #allocation0 [shape = 'u32[]', space=smem, size = 0x4, offset = 0x4, fixed_abs, tag = 'smem constant byte address 0x4 - core index']
  #allocation1 [shape = 'u32[144,128]{1,0:T(1,128)}', space=vmem, size = 0x12000, scoped, tag = 'internal scratch']
  %s0 = inlined_call_operand.vmem [shape: f32[512,16], index: 0, kind: input, shape index: {}]
  %s1 = inlined_call_operand.vmem [shape: f32[16,128], index: 1, kind: input, shape index: {}]
  %s2 = inlined_call_operand.vmem [shape: f32[1,128], index: 2, kind: input, shape index: {}]
  %s3 = inlined_call_operand.vmem [shape: f32[128,128], index: 3, kind: input, shape index: {}]
  %s4 = inlined_call_operand.vmem [shape: f32[1,128], index: 4, kind: input, shape index: {}]
  %s5 = inlined_call_operand.vmem [shape: f32[128,128], index: 5, kind: input, shape index: {}]
  %s6 = inlined_call_operand.vmem [shape: f32[1,128], index: 6, kind: input, shape index: {}]
  %s7 = inlined_call_operand.hbm [shape: f32[512,128], index: 7, kind: output, shape index: {}]
  %s8 = sld [smem:[#allocation0]]
  $region38: #{tpu_custom_call.1} parent=0
    _
  %s10 = ssub.s32 1, %s8
  %s11 = scalar_select 0, %s10, %s8
  $region1: #{tpu_custom_call.1} parent=0
    #allocation2 [shape = 'u8[262144]{0}', space=vmem, size = 0x40000, scoped, tag = 'output window, operand 0, single buffered']
    #allocation3 [shape = 's32[1]{0}', space=sflag, size = 0x4, scoped, tag = 'scoped memory for tpu_custom_call.1']
    %12 = vsyncpa [#allocation3], 0
    // Predicated region
    $region2: #{tpu_custom_call.1} parent=1 // pred_check
      _
    $region3: #{tpu_custom_call.1} parent=1 // pred_check_branch
      %14 = sbr.rel (0) target = $region5
    $region4: #{tpu_custom_call.1} parent=1 // pred_region
      _
    $region5: #{tpu_custom_call.1} parent=1 // pred_fallthru
      _
    // Predicated region
    $region6: #{tpu_custom_call.1} parent=1 // pred_check
      _
    $region7: #{tpu_custom_call.1} parent=1 // pred_check_branch
      %16 = sbr.rel (0) target = $region9
    $region8: #{tpu_custom_call.1} parent=1 // pred_region
      _
    $region9: #{tpu_custom_call.1} parent=1 // pred_fallthru
      _
    // Predicated region
    $region10: #{tpu_custom_call.1} parent=1 // pred_check
      _
    $region11: #{tpu_custom_call.1} parent=1 // pred_check_branch
      %18 = sbr.rel (0) target = $region13
    $region12: #{tpu_custom_call.1} parent=1 // pred_region
      _
    $region13: #{tpu_custom_call.1} parent=1 // pred_fallthru
      _
    // Predicated region
    $region14: #{tpu_custom_call.1} parent=1 // pred_check
      _
    $region15: #{tpu_custom_call.1} parent=1 // pred_check_branch
      %20 = sbr.rel (0) target = $region17
    $region16: #{tpu_custom_call.1} parent=1 // pred_region
      _
    $region17: #{tpu_custom_call.1} parent=1 // pred_fallthru
      _
    // Predicated region
    $region18: #{tpu_custom_call.1} parent=1 // pred_check
      _
    $region19: #{tpu_custom_call.1} parent=1 // pred_check_branch
      %22 = sbr.rel (0) target = $region21
    $region20: #{tpu_custom_call.1} parent=1 // pred_region
      _
    $region21: #{tpu_custom_call.1} parent=1 // pred_fallthru
      _
    // Predicated region
    $region22: #{tpu_custom_call.1} parent=1 // pred_check
      _
    $region23: #{tpu_custom_call.1} parent=1 // pred_check_branch
      %24 = sbr.rel (0) target = $region25
    $region24: #{tpu_custom_call.1} parent=1 // pred_region
      _
    $region25: #{tpu_custom_call.1} parent=1 // pred_fallthru
      _
    // Predicated region
    $region26: #{tpu_custom_call.1} parent=1 // pred_check
      _
    $region27: #{tpu_custom_call.1} parent=1 // pred_check_branch
      %26 = sbr.rel (0) target = $region29
    $region28: #{tpu_custom_call.1} parent=1 // pred_region
      _
    $region29: #{tpu_custom_call.1} parent=1 // pred_fallthru
      _
    %v27 = vld [vmem:[%s0] sm:$0xff]
    %v28 = vld [vmem:[%s0 + $0x8] sm:$0xff]
    %v29 = vld [vmem:[%s0 + $0x10] sm:$0xff]
    %v30 = vld [vmem:[%s0 + $0x18] sm:$0xff]
    %v31 = vld [vmem:[%s0 + $0x20] sm:$0xff]
    %v32 = vld [vmem:[%s0 + $0x28] sm:$0xff]
    %v33 = vld [vmem:[%s0 + $0x30] sm:$0xff]
    %v34 = vld [vmem:[%s0 + $0x38] sm:$0xff]
    %v35 = vld [vmem:[%s0 + $0x40] sm:$0xff]
    %v36 = vld [vmem:[%s0 + $0x48] sm:$0xff]
    %v37 = vld [vmem:[%s0 + $0x50] sm:$0xff]
    %v38 = vld [vmem:[%s0 + $0x58] sm:$0xff]
    %v39 = vld [vmem:[%s0 + $0x60] sm:$0xff]
    %v40 = vld [vmem:[%s0 + $0x68] sm:$0xff]
    %v41 = vld [vmem:[%s0 + $0x70] sm:$0xff]
    %v42 = vld [vmem:[%s0 + $0x78] sm:$0xff]
    %v43 = vld [vmem:[%s0 + $0x80] sm:$0xff]
    %v44 = vld [vmem:[%s0 + $0x88] sm:$0xff]
    %v45 = vld [vmem:[%s0 + $0x90] sm:$0xff]
    %v46 = vld [vmem:[%s0 + $0x98] sm:$0xff]
    %v47 = vld [vmem:[%s0 + $0xa0] sm:$0xff]
    %v48 = vld [vmem:[%s0 + $0xa8] sm:$0xff]
    %v49 = vld [vmem:[%s0 + $0xb0] sm:$0xff]
    %v50 = vld [vmem:[%s0 + $0xb8] sm:$0xff]
    %v51 = vld [vmem:[%s0 + $0xc0] sm:$0xff]
    %v52 = vld [vmem:[%s0 + $0xc8] sm:$0xff]
    %v53 = vld [vmem:[%s0 + $0xd0] sm:$0xff]
    %v54 = vld [vmem:[%s0 + $0xd8] sm:$0xff]
    %v55 = vld [vmem:[%s0 + $0xe0] sm:$0xff]
    %v56 = vld [vmem:[%s0 + $0xe8] sm:$0xff]
    %v57 = vld [vmem:[%s0 + $0xf0] sm:$0xff]
    %v58 = vld [vmem:[%s0 + $0xf8] sm:$0xff]
    %v59 = vld [vmem:[%s0 + $0x100] sm:$0xff]
    %v60 = vld [vmem:[%s0 + $0x108] sm:$0xff]
    %v61 = vld [vmem:[%s0 + $0x110] sm:$0xff]
    %v62 = vld [vmem:[%s0 + $0x118] sm:$0xff]
    %v63 = vld [vmem:[%s0 + $0x120] sm:$0xff]
    %v64 = vld [vmem:[%s0 + $0x128] sm:$0xff]
    %v65 = vld [vmem:[%s0 + $0x130] sm:$0xff]
    %v66 = vld [vmem:[%s0 + $0x138] sm:$0xff]
    %v67 = vld [vmem:[%s0 + $0x140] sm:$0xff]
    %v68 = vld [vmem:[%s0 + $0x148] sm:$0xff]
    %v69 = vld [vmem:[%s0 + $0x150] sm:$0xff]
    %v70 = vld [vmem:[%s0 + $0x158] sm:$0xff]
    %v71 = vld [vmem:[%s0 + $0x160] sm:$0xff]
    %v72 = vld [vmem:[%s0 + $0x168] sm:$0xff]
    %v73 = vld [vmem:[%s0 + $0x170] sm:$0xff]
    %v74 = vld [vmem:[%s0 + $0x178] sm:$0xff]
    %v75 = vld [vmem:[%s0 + $0x180] sm:$0xff]
    %v76 = vld [vmem:[%s0 + $0x188] sm:$0xff]
    %v77 = vld [vmem:[%s0 + $0x190] sm:$0xff]
    %v78 = vld [vmem:[%s0 + $0x198] sm:$0xff]
    %v79 = vld [vmem:[%s0 + $0x1a0] sm:$0xff]
    %v80 = vld [vmem:[%s0 + $0x1a8] sm:$0xff]
    %v81 = vld [vmem:[%s0 + $0x1b0] sm:$0xff]
    %v82 = vld [vmem:[%s0 + $0x1b8] sm:$0xff]
    %v83 = vld [vmem:[%s0 + $0x1c0] sm:$0xff]
    %v84 = vld [vmem:[%s0 + $0x1c8] sm:$0xff]
    %v85 = vld [vmem:[%s0 + $0x1d0] sm:$0xff]
    %v86 = vld [vmem:[%s0 + $0x1d8] sm:$0xff]
    %v87 = vld [vmem:[%s0 + $0x1e0] sm:$0xff]
    %v88 = vld [vmem:[%s0 + $0x1e8] sm:$0xff]
    %v89 = vld [vmem:[%s0 + $0x1f0] sm:$0xff]
    %v90 = vld [vmem:[%s0 + $0x1f8] sm:$0xff]
    %v91 = vld [vmem:[%s1] sm:$0xff]
    %v92 = vld [vmem:[%s1 + $0x8] sm:$0xff]
    %v93 = vld [vmem:[%s2] sm:$0x1]
    %v95 = vlaneseq
    %v96 = vshrl.u32 %v95, 7
    %v97 = vsub.s32 0, %v96
    %v98 = vrot.slane %v93, %v97
    %vm100 = vcmask 130048
    %v102 = vsel %vm100, %v27, 0
    %v105 = vsel %vm100, %v28, 0
    %v108 = vsel %vm100, %v29, 0
    %v111 = vsel %vm100, %v30, 0
    %v114 = vsel %vm100, %v31, 0
    %v117 = vsel %vm100, %v32, 0
    %v120 = vsel %vm100, %v33, 0
    %v123 = vsel %vm100, %v34, 0
    %v126 = vsel %vm100, %v35, 0
    %v129 = vsel %vm100, %v36, 0
    %v132 = vsel %vm100, %v37, 0
    %v135 = vsel %vm100, %v38, 0
    %v138 = vsel %vm100, %v39, 0
    %v141 = vsel %vm100, %v40, 0
    %v144 = vsel %vm100, %v41, 0
    %v147 = vsel %vm100, %v42, 0
    %v150 = vsel %vm100, %v43, 0
    %v153 = vsel %vm100, %v44, 0
    %v156 = vsel %vm100, %v45, 0
    %v159 = vsel %vm100, %v46, 0
    %v162 = vsel %vm100, %v47, 0
    %v165 = vsel %vm100, %v48, 0
    %v168 = vsel %vm100, %v49, 0
    %v171 = vsel %vm100, %v50, 0
    %v174 = vsel %vm100, %v51, 0
    %v177 = vsel %vm100, %v52, 0
    %v180 = vsel %vm100, %v53, 0
    %v183 = vsel %vm100, %v54, 0
    %v186 = vsel %vm100, %v55, 0
    %v189 = vsel %vm100, %v56, 0
    %v192 = vsel %vm100, %v57, 0
    %v195 = vsel %vm100, %v58, 0
    %v198 = vsel %vm100, %v59, 0
    %v201 = vsel %vm100, %v60, 0
    %v204 = vsel %vm100, %v61, 0
    %v207 = vsel %vm100, %v62, 0
    %v210 = vsel %vm100, %v63, 0
    %v213 = vsel %vm100, %v64, 0
    %v216 = vsel %vm100, %v65, 0
    %v219 = vsel %vm100, %v66, 0
    %v222 = vsel %vm100, %v67, 0
    %v225 = vsel %vm100, %v68, 0
    %v228 = vsel %vm100, %v69, 0
    %v231 = vsel %vm100, %v70, 0
    %v234 = vsel %vm100, %v71, 0
    %v237 = vsel %vm100, %v72, 0
    %v240 = vsel %vm100, %v73, 0
    %v243 = vsel %vm100, %v74, 0
    %v246 = vsel %vm100, %v75, 0
    %v249 = vsel %vm100, %v76, 0
    %v252 = vsel %vm100, %v77, 0
    %v255 = vsel %vm100, %v78, 0
    %v258 = vsel %vm100, %v79, 0
    %v261 = vsel %vm100, %v80, 0
    %v264 = vsel %vm100, %v81, 0
    %v267 = vsel %vm100, %v82, 0
    %v270 = vsel %vm100, %v83, 0
    %v273 = vsel %vm100, %v84, 0
    %v276 = vsel %vm100, %v85, 0
    %v279 = vsel %vm100, %v86, 0
    %v282 = vsel %vm100, %v87, 0
    %v285 = vsel %vm100, %v88, 0
    %v288 = vsel %vm100, %v89, 0
    %v291 = vsel %vm100, %v90, 0
    %293 = vmatprep.subr.mxu0 0.0
    %294 = vmatpush1.msra.mxu0 0.0
    %295 = vmatprep.subr.mxu0 0.0
    %296 = vmatpush1.msra.mxu0 0.0
    %297 = vmatprep.subr.mxu0 0.0
    %298 = vmatpush1.msra.mxu0 0.0
    %299 = vmatprep.subr.mxu0 0.0
    %300 = vmatpush1.msra.mxu0 0.0
    %301 = vmatprep.subr.mxu0 0.0
    %302 = vmatpush1.msra.mxu0 0.0
    %303 = vmatprep.subr.mxu0 0.0
    %304 = vmatpush1.msra.mxu0 0.0
    %305 = vmatprep.subr.mxu0 0.0
    %306 = vmatpush1.msra.mxu0 0.0
    %307 = vmatprep.subr.mxu0 0.0
    %308 = vmatpush1.msra.mxu0 0.0
    %309 = vmatprep.subr.mxu0 0.0
    %310 = vmatpush1.msra.mxu0 0.0
    %311 = vmatprep.subr.mxu0 0.0
    %312 = vmatpush1.msra.mxu0 0.0
    %313 = vmatprep.subr.mxu0 0.0
    %314 = vmatpush1.msra.mxu0 0.0
    %315 = vmatprep.subr.mxu0 0.0
    %316 = vmatpush1.msra.mxu0 0.0
    %317 = vmatprep.subr.mxu0 0.0
    %318 = vmatpush1.msra.mxu0 0.0
    %319 = vmatprep.subr.mxu0 0.0
    %320 = vmatpush1.msra.mxu0 0.0
    %321 = vmatprep.subr.mxu0 0.0
    %v322 = vand.u32 %v92, 4294901760
    %323 = vmatpush1.msra.mxu0 %v322
    %324 = vmatprep.subr.mxu0 0.0
    %v325 = vand.u32 %v91, 4294901760
    %326 = vmatpush1.msra.mxu0 %v325
    %327 = vmatprep.subr.mxu0 0.0
    %328 = vmatpush2.msra.mxu0 0.0
    %329 = vmatprep.subr.mxu0 0.0
    %330 = vmatpush2.msra.mxu0 0.0
    %331 = vmatprep.subr.mxu0 0.0
    %332 = vmatpush2.msra.mxu0 0.0
    %333 = vmatprep.subr.mxu0 0.0
    %334 = vmatpush2.msra.mxu0 0.0
    %335 = vmatprep.subr.mxu0 0.0
    %336 = vmatpush2.msra.mxu0 0.0
    %337 = vmatprep.subr.mxu0 0.0
    %338 = vmatpush2.msra.mxu0 0.0
    %339 = vmatprep.subr.mxu0 0.0
    %340 = vmatpush2.msra.mxu0 0.0
    %341 = vmatprep.subr.mxu0 0.0
    %342 = vmatpush2.msra.mxu0 0.0
    %343 = vmatprep.subr.mxu0 0.0
    %344 = vmatpush2.msra.mxu0 0.0
    %345 = vmatprep.subr.mxu0 0.0
    %346 = vmatpush2.msra.mxu0 0.0
    %347 = vmatprep.subr.mxu0 0.0
    %348 = vmatpush2.msra.mxu0 0.0
    %349 = vmatprep.subr.mxu0 0.0
    %350 = vmatpush2.msra.mxu0 0.0
    %351 = vmatprep.subr.mxu0 0.0
    %352 = vmatpush2.msra.mxu0 0.0
    %353 = vmatprep.subr.mxu0 0.0
    %354 = vmatpush2.msra.mxu0 0.0
    %355 = vmatprep.subr.mxu0 0.0
    %356 = vmatpush2.msra.mxu0 0.0
    %357 = vmatprep.subr.mxu0 0.0
    %358 = vmatpush2.msra.mxu0 0.0
    %359 = vmatprep.mubr.f32.mxu0 0.0
    %v360 = vand.u32 %v102, 4294901760
    %v361 = vsub.f32 %v102, %v360
    %v362 = vand.u32 %v361, 4294901760
    %v363 = vsub.f32 %v361, %v362
    %v364 = vand.u32 %v363, 4294901760
    %365 = vmatmul.mubr.f32.gmra.mxu0 %v364
    %v366 = vpop.f32.mrf.mxu0
    %v367 = vadd.f32 %v98, %v366
    %v368 = vpop.f32.mrf.mxu0
    %369 = vmatprep.mubr.f32.mxu0 0.0
    %v370 = vand.u32 %v105, 4294901760
    %v371 = vsub.f32 %v105, %v370
    %v372 = vand.u32 %v371, 4294901760
    %v373 = vsub.f32 %v371, %v372
    %v374 = vand.u32 %v373, 4294901760
    %375 = vmatmul.mubr.f32.gmra.mxu0 %v374
    %v376 = vpop.f32.mrf.mxu0
    %v377 = vadd.f32 %v98, %v376
    %v378 = vpop.f32.mrf.mxu0
    %379 = vmatprep.mubr.f32.mxu0 0.0
    %v380 = vand.u32 %v108, 4294901760
    %v381 = vsub.f32 %v108, %v380
    %v382 = vand.u32 %v381, 4294901760
    %v383 = vsub.f32 %v381, %v382
    %v384 = vand.u32 %v383, 4294901760
    %385 = vmatmul.mubr.f32.gmra.mxu0 %v384
    %v386 = vpop.f32.mrf.mxu0
    %v387 = vadd.f32 %v98, %v386
    %v388 = vpop.f32.mrf.mxu0
    %389 = vmatprep.mubr.f32.mxu0 0.0
    %v390 = vand.u32 %v111, 4294901760
    %v391 = vsub.f32 %v111, %v390
    %v392 = vand.u32 %v391, 4294901760
    %v393 = vsub.f32 %v391, %v392
    %v394 = vand.u32 %v393, 4294901760
    %395 = vmatmul.mubr.f32.gmra.mxu0 %v394
    %v396 = vpop.f32.mrf.mxu0
    %v397 = vadd.f32 %v98, %v396
    %v398 = vpop.f32.mrf.mxu0
    %399 = vmatprep.mubr.f32.mxu0 0.0
    %v400 = vand.u32 %v114, 4294901760
    %v401 = vsub.f32 %v114, %v400
    %v402 = vand.u32 %v401, 4294901760
    %v403 = vsub.f32 %v401, %v402
    %v404 = vand.u32 %v403, 4294901760
    %405 = vmatmul.mubr.f32.gmra.mxu0 %v404
    %v406 = vpop.f32.mrf.mxu0
    %v407 = vadd.f32 %v98, %v406
    %v408 = vpop.f32.mrf.mxu0
    %409 = vmatprep.mubr.f32.mxu0 0.0
    %v410 = vand.u32 %v117, 4294901760
    %v411 = vsub.f32 %v117, %v410
    %v412 = vand.u32 %v411, 4294901760
    %v413 = vsub.f32 %v411, %v412
    %v414 = vand.u32 %v413, 4294901760
    %415 = vmatmul.mubr.f32.gmra.mxu0 %v414
    %v416 = vpop.f32.mrf.mxu0
    %v417 = vadd.f32 %v98, %v416
    %v418 = vpop.f32.mrf.mxu0
    %419 = vmatprep.mubr.f32.mxu0 0.0
    %v420 = vand.u32 %v120, 4294901760
    %v421 = vsub.f32 %v120, %v420
    %v422 = vand.u32 %v421, 4294901760
    %v423 = vsub.f32 %v421, %v422
    %v424 = vand.u32 %v423, 4294901760
    %425 = vmatmul.mubr.f32.gmra.mxu0 %v424
    %v426 = vpop.f32.mrf.mxu0
    %v427 = vadd.f32 %v98, %v426
    %v428 = vpop.f32.mrf.mxu0
    %429 = vmatprep.mubr.f32.mxu0 0.0
    %v430 = vand.u32 %v123, 4294901760
    %v431 = vsub.f32 %v123, %v430
    %v432 = vand.u32 %v431, 4294901760
    %v433 = vsub.f32 %v431, %v432
    %v434 = vand.u32 %v433, 4294901760
    %435 = vmatmul.mubr.f32.gmra.mxu0 %v434
    %v436 = vpop.f32.mrf.mxu0
    %v437 = vadd.f32 %v98, %v436
    %v438 = vpop.f32.mrf.mxu0
    %439 = vmatprep.mubr.f32.mxu0 0.0
    %v440 = vand.u32 %v126, 4294901760
    %v441 = vsub.f32 %v126, %v440
    %v442 = vand.u32 %v441, 4294901760
    %v443 = vsub.f32 %v441, %v442
    %v444 = vand.u32 %v443, 4294901760
    %445 = vmatmul.mubr.f32.gmra.mxu0 %v444
    %v446 = vpop.f32.mrf.mxu0
    %v447 = vadd.f32 %v98, %v446
    %v448 = vpop.f32.mrf.mxu0
    %449 = vmatprep.mubr.f32.mxu0 0.0
    %v450 = vand.u32 %v129, 4294901760
    %v451 = vsub.f32 %v129, %v450
    %v452 = vand.u32 %v451, 4294901760
    %v453 = vsub.f32 %v451, %v452
    %v454 = vand.u32 %v453, 4294901760
    %455 = vmatmul.mubr.f32.gmra.mxu0 %v454
    %v456 = vpop.f32.mrf.mxu0
    %v457 = vadd.f32 %v98, %v456
    %v458 = vpop.f32.mrf.mxu0
    %459 = vmatprep.mubr.f32.mxu0 0.0
    %v460 = vand.u32 %v132, 4294901760
    %v461 = vsub.f32 %v132, %v460
    %v462 = vand.u32 %v461, 4294901760
    %v463 = vsub.f32 %v461, %v462
    %v464 = vand.u32 %v463, 4294901760
    %465 = vmatmul.mubr.f32.gmra.mxu0 %v464
    %v466 = vpop.f32.mrf.mxu0
    %v467 = vadd.f32 %v98, %v466
    %v468 = vpop.f32.mrf.mxu0
    %469 = vmatprep.mubr.f32.mxu0 0.0
    %v470 = vand.u32 %v135, 4294901760
    %v471 = vsub.f32 %v135, %v470
    %v472 = vand.u32 %v471, 4294901760
    %v473 = vsub.f32 %v471, %v472
    %v474 = vand.u32 %v473, 4294901760
    %475 = vmatmul.mubr.f32.gmra.mxu0 %v474
    %v476 = vpop.f32.mrf.mxu0
    %v477 = vadd.f32 %v98, %v476
    %v478 = vpop.f32.mrf.mxu0
    %479 = vmatprep.mubr.f32.mxu0 0.0
    %v480 = vand.u32 %v138, 4294901760
    %v481 = vsub.f32 %v138, %v480
    %v482 = vand.u32 %v481, 4294901760
    %v483 = vsub.f32 %v481, %v482
    %v484 = vand.u32 %v483, 4294901760
    %485 = vmatmul.mubr.f32.gmra.mxu0 %v484
    %v486 = vpop.f32.mrf.mxu0
    %v487 = vadd.f32 %v98, %v486
    %v488 = vpop.f32.mrf.mxu0
    %489 = vmatprep.mubr.f32.mxu0 0.0
    %v490 = vand.u32 %v141, 4294901760
    %v491 = vsub.f32 %v141, %v490
    %v492 = vand.u32 %v491, 4294901760
    %v493 = vsub.f32 %v491, %v492
    %v494 = vand.u32 %v493, 4294901760
    %495 = vmatmul.mubr.f32.gmra.mxu0 %v494
    %v496 = vpop.f32.mrf.mxu0
    %v497 = vadd.f32 %v98, %v496
    %v498 = vpop.f32.mrf.mxu0
    %499 = vmatprep.mubr.f32.mxu0 0.0
    %v500 = vand.u32 %v144, 4294901760
    %v501 = vsub.f32 %v144, %v500
    %v502 = vand.u32 %v501, 4294901760
    %v503 = vsub.f32 %v501, %v502
    %v504 = vand.u32 %v503, 4294901760
    %505 = vmatmul.mubr.f32.gmra.mxu0 %v504
    %v506 = vpop.f32.mrf.mxu0
    %v507 = vadd.f32 %v98, %v506
    %v508 = vpop.f32.mrf.mxu0
    %509 = vmatprep.mubr.f32.mxu0 0.0
    %v510 = vand.u32 %v147, 4294901760
    %v511 = vsub.f32 %v147, %v510
    %v512 = vand.u32 %v511, 4294901760
    %v513 = vsub.f32 %v511, %v512
    %v514 = vand.u32 %v513, 4294901760
    %515 = vmatmul.mubr.f32.gmra.mxu0 %v514
    %v516 = vpop.f32.mrf.mxu0
    %v517 = vadd.f32 %v98, %v516
    %v518 = vpop.f32.mrf.mxu0
    %519 = vmatprep.mubr.f32.mxu0 0.0
    %v520 = vand.u32 %v150, 4294901760
    %v521 = vsub.f32 %v150, %v520
    %v522 = vand.u32 %v521, 4294901760
    %v523 = vsub.f32 %v521, %v522
    %v524 = vand.u32 %v523, 4294901760
    %525 = vmatmul.mubr.f32.gmra.mxu0 %v524
    %v526 = vpop.f32.mrf.mxu0
    %v527 = vadd.f32 %v98, %v526
    %v528 = vpop.f32.mrf.mxu0
    %529 = vmatprep.mubr.f32.mxu0 0.0
    %v530 = vand.u32 %v153, 4294901760
    %v531 = vsub.f32 %v153, %v530
    %v532 = vand.u32 %v531, 4294901760
    %v533 = vsub.f32 %v531, %v532
    %v534 = vand.u32 %v533, 4294901760
    %535 = vmatmul.mubr.f32.gmra.mxu0 %v534
    %v536 = vpop.f32.mrf.mxu0
    %v537 = vadd.f32 %v98, %v536
    %v538 = vpop.f32.mrf.mxu0
    %539 = vmatprep.mubr.f32.mxu0 0.0
    %v540 = vand.u32 %v156, 4294901760
    %v541 = vsub.f32 %v156, %v540
    %v542 = vand.u32 %v541, 4294901760
    %v543 = vsub.f32 %v541, %v542
    %v544 = vand.u32 %v543, 4294901760
    %545 = vmatmul.mubr.f32.gmra.mxu0 %v544
    %v546 = vpop.f32.mrf.mxu0
    %v547 = vadd.f32 %v98, %v546
    %v548 = vpop.f32.mrf.mxu0
    %549 = vmatprep.mubr.f32.mxu0 0.0
    %v550 = vand.u32 %v159, 4294901760
    %v551 = vsub.f32 %v159, %v550
    %v552 = vand.u32 %v551, 4294901760
    %v553 = vsub.f32 %v551, %v552
    %v554 = vand.u32 %v553, 4294901760
    %555 = vmatmul.mubr.f32.gmra.mxu0 %v554
    %v556 = vpop.f32.mrf.mxu0
    %v557 = vadd.f32 %v98, %v556
    %v558 = vpop.f32.mrf.mxu0
    %559 = vmatprep.mubr.f32.mxu0 0.0
    %v560 = vand.u32 %v162, 4294901760
    %v561 = vsub.f32 %v162, %v560
    %v562 = vand.u32 %v561, 4294901760
    %v563 = vsub.f32 %v561, %v562
    %v564 = vand.u32 %v563, 4294901760
    %565 = vmatmul.mubr.f32.gmra.mxu0 %v564
    %v566 = vpop.f32.mrf.mxu0
    %v567 = vadd.f32 %v98, %v566
    %v568 = vpop.f32.mrf.mxu0
    %569 = vmatprep.mubr.f32.mxu0 0.0
    %v570 = vand.u32 %v165, 4294901760
    %v571 = vsub.f32 %v165, %v570
    %v572 = vand.u32 %v571, 4294901760
    %v573 = vsub.f32 %v571, %v572
    %v574 = vand.u32 %v573, 4294901760
    %575 = vmatmul.mubr.f32.gmra.mxu0 %v574
    %v576 = vpop.f32.mrf.mxu0
    %v577 = vadd.f32 %v98, %v576
    %v578 = vpop.f32.mrf.mxu0
    %579 = vmatprep.mubr.f32.mxu0 0.0
    %v580 = vand.u32 %v168, 4294901760
    %v581 = vsub.f32 %v168, %v580
    %v582 = vand.u32 %v581, 4294901760
    %v583 = vsub.f32 %v581, %v582
    %v584 = vand.u32 %v583, 4294901760
    %585 = vmatmul.mubr.f32.gmra.mxu0 %v584
    %v586 = vpop.f32.mrf.mxu0
    %v587 = vadd.f32 %v98, %v586
    %v588 = vpop.f32.mrf.mxu0
    %589 = vmatprep.mubr.f32.mxu0 0.0
    %v590 = vand.u32 %v171, 4294901760
    %v591 = vsub.f32 %v171, %v590
    %v592 = vand.u32 %v591, 4294901760
    %v593 = vsub.f32 %v591, %v592
    %v594 = vand.u32 %v593, 4294901760
    %595 = vmatmul.mubr.f32.gmra.mxu0 %v594
    %v596 = vpop.f32.mrf.mxu0
    %v597 = vadd.f32 %v98, %v596
    %v598 = vpop.f32.mrf.mxu0
    %599 = vmatprep.mubr.f32.mxu0 0.0
    %v600 = vand.u32 %v174, 4294901760
    %v601 = vsub.f32 %v174, %v600
    %v602 = vand.u32 %v601, 4294901760
    %v603 = vsub.f32 %v601, %v602
    %v604 = vand.u32 %v603, 4294901760
    %605 = vmatmul.mubr.f32.gmra.mxu0 %v604
    %v606 = vpop.f32.mrf.mxu0
    %v607 = vadd.f32 %v98, %v606
    %v608 = vpop.f32.mrf.mxu0
    %609 = vmatprep.mubr.f32.mxu0 0.0
    %v610 = vand.u32 %v177, 4294901760
    %v611 = vsub.f32 %v177, %v610
    %v612 = vand.u32 %v611, 4294901760
    %v613 = vsub.f32 %v611, %v612
    %v614 = vand.u32 %v613, 4294901760
    %615 = vmatmul.mubr.f32.gmra.mxu0 %v614
    %v616 = vpop.f32.mrf.mxu0
    %v617 = vadd.f32 %v98, %v616
    %v618 = vpop.f32.mrf.mxu0
    %619 = vmatprep.mubr.f32.mxu0 0.0
    %v620 = vand.u32 %v180, 4294901760
    %v621 = vsub.f32 %v180, %v620
    %v622 = vand.u32 %v621, 4294901760
    %v623 = vsub.f32 %v621, %v622
    %v624 = vand.u32 %v623, 4294901760
    %625 = vmatmul.mubr.f32.gmra.mxu0 %v624
    %v626 = vpop.f32.mrf.mxu0
    %v627 = vadd.f32 %v98, %v626
    %v628 = vpop.f32.mrf.mxu0
    %629 = vmatprep.mubr.f32.mxu0 0.0
    %v630 = vand.u32 %v183, 4294901760
    %v631 = vsub.f32 %v183, %v630
    %v632 = vand.u32 %v631, 4294901760
    %v633 = vsub.f32 %v631, %v632
    %v634 = vand.u32 %v633, 4294901760
    %635 = vmatmul.mubr.f32.gmra.mxu0 %v634
    %v636 = vpop.f32.mrf.mxu0
    %v637 = vadd.f32 %v98, %v636
    %v638 = vpop.f32.mrf.mxu0
    %639 = vmatprep.mubr.f32.mxu0 0.0
    %v640 = vand.u32 %v186, 4294901760
    %v641 = vsub.f32 %v186, %v640
    %v642 = vand.u32 %v641, 4294901760
    %v643 = vsub.f32 %v641, %v642
    %v644 = vand.u32 %v643, 4294901760
    %645 = vmatmul.mubr.f32.gmra.mxu0 %v644
    %v646 = vpop.f32.mrf.mxu0
    %v647 = vadd.f32 %v98, %v646
    %v648 = vpop.f32.mrf.mxu0
    %649 = vmatprep.mubr.f32.mxu0 0.0
    %v650 = vand.u32 %v189, 4294901760
    %v651 = vsub.f32 %v189, %v650
    %v652 = vand.u32 %v651, 4294901760
    %v653 = vsub.f32 %v651, %v652
    %v654 = vand.u32 %v653, 4294901760
    %655 = vmatmul.mubr.f32.gmra.mxu0 %v654
    %v656 = vpop.f32.mrf.mxu0
    %v657 = vadd.f32 %v98, %v656
    %v658 = vpop.f32.mrf.mxu0
    %659 = vmatprep.mubr.f32.mxu0 0.0
    %v660 = vand.u32 %v192, 4294901760
    %v661 = vsub.f32 %v192, %v660
    %v662 = vand.u32 %v661, 4294901760
    %v663 = vsub.f32 %v661, %v662
    %v664 = vand.u32 %v663, 4294901760
    %665 = vmatmul.mubr.f32.gmra.mxu0 %v664
    %v666 = vpop.f32.mrf.mxu0
    %v667 = vadd.f32 %v98, %v666
    %v668 = vpop.f32.mrf.mxu0
    %669 = vmatprep.mubr.f32.mxu0 0.0
    %v670 = vand.u32 %v195, 4294901760
    %v671 = vsub.f32 %v195, %v670
    %v672 = vand.u32 %v671, 4294901760
    %v673 = vsub.f32 %v671, %v672
    %v674 = vand.u32 %v673, 4294901760
    %675 = vmatmul.mubr.f32.gmra.mxu0 %v674
    %v676 = vpop.f32.mrf.mxu0
    %v677 = vadd.f32 %v98, %v676
    %v678 = vpop.f32.mrf.mxu0
    %679 = vmatprep.mubr.f32.mxu0 0.0
    %v680 = vand.u32 %v198, 4294901760
    %v681 = vsub.f32 %v198, %v680
    %v682 = vand.u32 %v681, 4294901760
    %v683 = vsub.f32 %v681, %v682
    %v684 = vand.u32 %v683, 4294901760
    %685 = vmatmul.mubr.f32.gmra.mxu0 %v684
    %v686 = vpop.f32.mrf.mxu0
    %v687 = vadd.f32 %v98, %v686
    %v688 = vpop.f32.mrf.mxu0
    %689 = vmatprep.mubr.f32.mxu0 0.0
    %v690 = vand.u32 %v201, 4294901760
    %v691 = vsub.f32 %v201, %v690
    %v692 = vand.u32 %v691, 4294901760
    %v693 = vsub.f32 %v691, %v692
    %v694 = vand.u32 %v693, 4294901760
    %695 = vmatmul.mubr.f32.gmra.mxu0 %v694
    %v696 = vpop.f32.mrf.mxu0
    %v697 = vadd.f32 %v98, %v696
    %v698 = vpop.f32.mrf.mxu0
    %699 = vmatprep.mubr.f32.mxu0 0.0
    %v700 = vand.u32 %v204, 4294901760
    %v701 = vsub.f32 %v204, %v700
    %v702 = vand.u32 %v701, 4294901760
    %v703 = vsub.f32 %v701, %v702
    %v704 = vand.u32 %v703, 4294901760
    %705 = vmatmul.mubr.f32.gmra.mxu0 %v704
    %v706 = vpop.f32.mrf.mxu0
    %v707 = vadd.f32 %v98, %v706
    %v708 = vpop.f32.mrf.mxu0
    %709 = vmatprep.mubr.f32.mxu0 0.0
    %v710 = vand.u32 %v207, 4294901760
    %v711 = vsub.f32 %v207, %v710
    %v712 = vand.u32 %v711, 4294901760
    %v713 = vsub.f32 %v711, %v712
    %v714 = vand.u32 %v713, 4294901760
    %715 = vmatmul.mubr.f32.gmra.mxu0 %v714
    %v716 = vpop.f32.mrf.mxu0
    %v717 = vadd.f32 %v98, %v716
    %v718 = vpop.f32.mrf.mxu0
    %719 = vmatprep.mubr.f32.mxu0 0.0
    %v720 = vand.u32 %v210, 4294901760
    %v721 = vsub.f32 %v210, %v720
    %v722 = vand.u32 %v721, 4294901760
    %v723 = vsub.f32 %v721, %v722
    %v724 = vand.u32 %v723, 4294901760
    %725 = vmatmul.mubr.f32.gmra.mxu0 %v724
    %v726 = vpop.f32.mrf.mxu0
    %v727 = vadd.f32 %v98, %v726
    %v728 = vpop.f32.mrf.mxu0
    %729 = vmatprep.mubr.f32.mxu0 0.0
    %v730 = vand.u32 %v213, 4294901760
    %v731 = vsub.f32 %v213, %v730
    %v732 = vand.u32 %v731, 4294901760
    %v733 = vsub.f32 %v731, %v732
    %v734 = vand.u32 %v733, 4294901760
    %735 = vmatmul.mubr.f32.gmra.mxu0 %v734
    %v736 = vpop.f32.mrf.mxu0
    %v737 = vadd.f32 %v98, %v736
    %v738 = vpop.f32.mrf.mxu0
    %739 = vmatprep.mubr.f32.mxu0 0.0
    %v740 = vand.u32 %v216, 4294901760
    %v741 = vsub.f32 %v216, %v740
    %v742 = vand.u32 %v741, 4294901760
    %v743 = vsub.f32 %v741, %v742
    %v744 = vand.u32 %v743, 4294901760
    %745 = vmatmul.mubr.f32.gmra.mxu0 %v744
    %v746 = vpop.f32.mrf.mxu0
    %v747 = vadd.f32 %v98, %v746
    %v748 = vpop.f32.mrf.mxu0
    %749 = vmatprep.mubr.f32.mxu0 0.0
    %v750 = vand.u32 %v219, 4294901760
    %v751 = vsub.f32 %v219, %v750
    %v752 = vand.u32 %v751, 4294901760
    %v753 = vsub.f32 %v751, %v752
    %v754 = vand.u32 %v753, 4294901760
    %755 = vmatmul.mubr.f32.gmra.mxu0 %v754
    %v756 = vpop.f32.mrf.mxu0
    %v757 = vadd.f32 %v98, %v756
    %v758 = vpop.f32.mrf.mxu0
    %759 = vmatprep.mubr.f32.mxu0 0.0
    %v760 = vand.u32 %v222, 4294901760
    %v761 = vsub.f32 %v222, %v760
    %v762 = vand.u32 %v761, 4294901760
    %v763 = vsub.f32 %v761, %v762
    %v764 = vand.u32 %v763, 4294901760
    %765 = vmatmul.mubr.f32.gmra.mxu0 %v764
    %v766 = vpop.f32.mrf.mxu0
    %v767 = vadd.f32 %v98, %v766
    %v768 = vpop.f32.mrf.mxu0
    %769 = vmatprep.mubr.f32.mxu0 0.0
    %v770 = vand.u32 %v225, 4294901760
    %v771 = vsub.f32 %v225, %v770
    %v772 = vand.u32 %v771, 4294901760
    %v773 = vsub.f32 %v771, %v772
    %v774 = vand.u32 %v773, 4294901760
    %775 = vmatmul.mubr.f32.gmra.mxu0 %v774
    %v776 = vpop.f32.mrf.mxu0
    %v777 = vadd.f32 %v98, %v776
    %v778 = vpop.f32.mrf.mxu0
    %779 = vmatprep.mubr.f32.mxu0 0.0
    %v780 = vand.u32 %v228, 4294901760
    %v781 = vsub.f32 %v228, %v780
    %v782 = vand.u32 %v781, 4294901760
    %v783 = vsub.f32 %v781, %v782
    %v784 = vand.u32 %v783, 4294901760
    %785 = vmatmul.mubr.f32.gmra.mxu0 %v784
    %v786 = vpop.f32.mrf.mxu0
    %v787 = vadd.f32 %v98, %v786
    %v788 = vpop.f32.mrf.mxu0
    %789 = vmatprep.mubr.f32.mxu0 0.0
    %v790 = vand.u32 %v231, 4294901760
    %v791 = vsub.f32 %v231, %v790
    %v792 = vand.u32 %v791, 4294901760
    %v793 = vsub.f32 %v791, %v792
    %v794 = vand.u32 %v793, 4294901760
    %795 = vmatmul.mubr.f32.gmra.mxu0 %v794
    %v796 = vpop.f32.mrf.mxu0
    %v797 = vadd.f32 %v98, %v796
    %v798 = vpop.f32.mrf.mxu0
    %799 = vmatprep.mubr.f32.mxu0 0.0
    %v800 = vand.u32 %v234, 4294901760
    %v801 = vsub.f32 %v234, %v800
    %v802 = vand.u32 %v801, 4294901760
    %v803 = vsub.f32 %v801, %v802
    %v804 = vand.u32 %v803, 4294901760
    %805 = vmatmul.mubr.f32.gmra.mxu0 %v804
    %v806 = vpop.f32.mrf.mxu0
    %v807 = vadd.f32 %v98, %v806
    %v808 = vpop.f32.mrf.mxu0
    %809 = vmatprep.mubr.f32.mxu0 0.0
    %v810 = vand.u32 %v237, 4294901760
    %v811 = vsub.f32 %v237, %v810
    %v812 = vand.u32 %v811, 4294901760
    %v813 = vsub.f32 %v811, %v812
    %v814 = vand.u32 %v813, 4294901760
    %815 = vmatmul.mubr.f32.gmra.mxu0 %v814
    %v816 = vpop.f32.mrf.mxu0
    %v817 = vadd.f32 %v98, %v816
    %v818 = vpop.f32.mrf.mxu0
    %819 = vmatprep.mubr.f32.mxu0 0.0
    %v820 = vand.u32 %v240, 4294901760
    %v821 = vsub.f32 %v240, %v820
    %v822 = vand.u32 %v821, 4294901760
    %v823 = vsub.f32 %v821, %v822
    %v824 = vand.u32 %v823, 4294901760
    %825 = vmatmul.mubr.f32.gmra.mxu0 %v824
    %v826 = vpop.f32.mrf.mxu0
    %v827 = vadd.f32 %v98, %v826
    %v828 = vpop.f32.mrf.mxu0
    %829 = vmatprep.mubr.f32.mxu0 0.0
    %v830 = vand.u32 %v243, 4294901760
    %v831 = vsub.f32 %v243, %v830
    %v832 = vand.u32 %v831, 4294901760
    %v833 = vsub.f32 %v831, %v832
    %v834 = vand.u32 %v833, 4294901760
    %835 = vmatmul.mubr.f32.gmra.mxu0 %v834
    %v836 = vpop.f32.mrf.mxu0
    %v837 = vadd.f32 %v98, %v836
    %v838 = vpop.f32.mrf.mxu0
    %839 = vmatprep.mubr.f32.mxu0 0.0
    %v840 = vand.u32 %v246, 4294901760
    %v841 = vsub.f32 %v246, %v840
    %v842 = vand.u32 %v841, 4294901760
    %v843 = vsub.f32 %v841, %v842
    %v844 = vand.u32 %v843, 4294901760
    %845 = vmatmul.mubr.f32.gmra.mxu0 %v844
    %v846 = vpop.f32.mrf.mxu0
    %v847 = vadd.f32 %v98, %v846
    %v848 = vpop.f32.mrf.mxu0
    %849 = vmatprep.mubr.f32.mxu0 0.0
    %v850 = vand.u32 %v249, 4294901760
    %v851 = vsub.f32 %v249, %v850
    %v852 = vand.u32 %v851, 4294901760
    %v853 = vsub.f32 %v851, %v852
    %v854 = vand.u32 %v853, 4294901760
    %855 = vmatmul.mubr.f32.gmra.mxu0 %v854
    %v856 = vpop.f32.mrf.mxu0
    %v857 = vadd.f32 %v98, %v856
    %v858 = vpop.f32.mrf.mxu0
    %859 = vmatprep.mubr.f32.mxu0 0.0
    %v860 = vand.u32 %v252, 4294901760
    %v861 = vsub.f32 %v252, %v860
    %v862 = vand.u32 %v861, 4294901760
    %v863 = vsub.f32 %v861, %v862
    %v864 = vand.u32 %v863, 4294901760
    %865 = vmatmul.mubr.f32.gmra.mxu0 %v864
    %v866 = vpop.f32.mrf.mxu0
    %v867 = vadd.f32 %v98, %v866
    %v868 = vpop.f32.mrf.mxu0
    %869 = vmatprep.mubr.f32.mxu0 0.0
    %v870 = vand.u32 %v255, 4294901760
    %v871 = vsub.f32 %v255, %v870
    %v872 = vand.u32 %v871, 4294901760
    %v873 = vsub.f32 %v871, %v872
    %v874 = vand.u32 %v873, 4294901760
    %875 = vmatmul.mubr.f32.gmra.mxu0 %v874
    %v876 = vpop.f32.mrf.mxu0
    %v877 = vadd.f32 %v98, %v876
    %v878 = vpop.f32.mrf.mxu0
    %879 = vmatprep.mubr.f32.mxu0 0.0
    %v880 = vand.u32 %v258, 4294901760
    %v881 = vsub.f32 %v258, %v880
    %v882 = vand.u32 %v881, 4294901760
    %v883 = vsub.f32 %v881, %v882
    %v884 = vand.u32 %v883, 4294901760
    %885 = vmatmul.mubr.f32.gmra.mxu0 %v884
    %v886 = vpop.f32.mrf.mxu0
    %v887 = vadd.f32 %v98, %v886
    %v888 = vpop.f32.mrf.mxu0
    %889 = vmatprep.mubr.f32.mxu0 0.0
    %v890 = vand.u32 %v261, 4294901760
    %v891 = vsub.f32 %v261, %v890
    %v892 = vand.u32 %v891, 4294901760
    %v893 = vsub.f32 %v891, %v892
    %v894 = vand.u32 %v893, 4294901760
    %895 = vmatmul.mubr.f32.gmra.mxu0 %v894
    %v896 = vpop.f32.mrf.mxu0
    %v897 = vadd.f32 %v98, %v896
    %v898 = vpop.f32.mrf.mxu0
    %899 = vmatprep.mubr.f32.mxu0 0.0
    %v900 = vand.u32 %v264, 4294901760
    %v901 = vsub.f32 %v264, %v900
    %v902 = vand.u32 %v901, 4294901760
    %v903 = vsub.f32 %v901, %v902
    %v904 = vand.u32 %v903, 4294901760
    %905 = vmatmul.mubr.f32.gmra.mxu0 %v904
    %v906 = vpop.f32.mrf.mxu0
    %v907 = vadd.f32 %v98, %v906
    %v908 = vpop.f32.mrf.mxu0
    %909 = vmatprep.mubr.f32.mxu0 0.0
    %v910 = vand.u32 %v267, 4294901760
    %v911 = vsub.f32 %v267, %v910
    %v912 = vand.u32 %v911, 4294901760
    %v913 = vsub.f32 %v911, %v912
    %v914 = vand.u32 %v913, 4294901760
    %915 = vmatmul.mubr.f32.gmra.mxu0 %v914
    %v916 = vpop.f32.mrf.mxu0
    %v917 = vadd.f32 %v98, %v916
    %v918 = vpop.f32.mrf.mxu0
    %919 = vmatprep.mubr.f32.mxu0 0.0
    %v920 = vand.u32 %v270, 4294901760
    %v921 = vsub.f32 %v270, %v920
    %v922 = vand.u32 %v921, 4294901760
    %v923 = vsub.f32 %v921, %v922
    %v924 = vand.u32 %v923, 4294901760
    %925 = vmatmul.mubr.f32.gmra.mxu0 %v924
    %v926 = vpop.f32.mrf.mxu0
    %v927 = vadd.f32 %v98, %v926
    %v928 = vpop.f32.mrf.mxu0
    %929 = vmatprep.mubr.f32.mxu0 0.0
    %v930 = vand.u32 %v273, 4294901760
    %v931 = vsub.f32 %v273, %v930
    %v932 = vand.u32 %v931, 4294901760
    %v933 = vsub.f32 %v931, %v932
    %v934 = vand.u32 %v933, 4294901760
    %935 = vmatmul.mubr.f32.gmra.mxu0 %v934
    %v936 = vpop.f32.mrf.mxu0
    %v937 = vadd.f32 %v98, %v936
    %v938 = vpop.f32.mrf.mxu0
    %939 = vmatprep.mubr.f32.mxu0 0.0
    %v940 = vand.u32 %v276, 4294901760
    %v941 = vsub.f32 %v276, %v940
    %v942 = vand.u32 %v941, 4294901760
    %v943 = vsub.f32 %v941, %v942
    %v944 = vand.u32 %v943, 4294901760
    %945 = vmatmul.mubr.f32.gmra.mxu0 %v944
    %v946 = vpop.f32.mrf.mxu0
    %v947 = vadd.f32 %v98, %v946
    %v948 = vpop.f32.mrf.mxu0
    %949 = vmatprep.mubr.f32.mxu0 0.0
    %v950 = vand.u32 %v279, 4294901760
    %v951 = vsub.f32 %v279, %v950
    %v952 = vand.u32 %v951, 4294901760
    %v953 = vsub.f32 %v951, %v952
    %v954 = vand.u32 %v953, 4294901760
    %955 = vmatmul.mubr.f32.gmra.mxu0 %v954
    %v956 = vpop.f32.mrf.mxu0
    %v957 = vadd.f32 %v98, %v956
    %v958 = vpop.f32.mrf.mxu0
    %959 = vmatprep.mubr.f32.mxu0 0.0
    %v960 = vand.u32 %v282, 4294901760
    %v961 = vsub.f32 %v282, %v960
    %v962 = vand.u32 %v961, 4294901760
    %v963 = vsub.f32 %v961, %v962
    %v964 = vand.u32 %v963, 4294901760
    %965 = vmatmul.mubr.f32.gmra.mxu0 %v964
    %v966 = vpop.f32.mrf.mxu0
    %v967 = vadd.f32 %v98, %v966
    %v968 = vpop.f32.mrf.mxu0
    %969 = vmatprep.mubr.f32.mxu0 0.0
    %v970 = vand.u32 %v285, 4294901760
    %v971 = vsub.f32 %v285, %v970
    %v972 = vand.u32 %v971, 4294901760
    %v973 = vsub.f32 %v971, %v972
    %v974 = vand.u32 %v973, 4294901760
    %975 = vmatmul.mubr.f32.gmra.mxu0 %v974
    %v976 = vpop.f32.mrf.mxu0
    %v977 = vadd.f32 %v98, %v976
    %v978 = vpop.f32.mrf.mxu0
    %979 = vmatprep.mubr.f32.mxu0 0.0
    %v980 = vand.u32 %v288, 4294901760
    %v981 = vsub.f32 %v288, %v980
    %v982 = vand.u32 %v981, 4294901760
    %v983 = vsub.f32 %v981, %v982
    %v984 = vand.u32 %v983, 4294901760
    %985 = vmatmul.mubr.f32.gmra.mxu0 %v984
    %v986 = vpop.f32.mrf.mxu0
    %v987 = vadd.f32 %v98, %v986
    %v988 = vpop.f32.mrf.mxu0
    %989 = vmatprep.mubr.f32.mxu0 0.0
    %v990 = vand.u32 %v291, 4294901760
    %v991 = vsub.f32 %v291, %v990
    %v992 = vand.u32 %v991, 4294901760
    %v993 = vsub.f32 %v991, %v992
    %v994 = vand.u32 %v993, 4294901760
    %995 = vmatmul.mubr.f32.gmra.mxu0 %v994
    %v996 = vpop.f32.mrf.mxu0
    %v997 = vadd.f32 %v98, %v996
    %v998 = vpop.f32.mrf.mxu0
    %999 = vdwg.mxu0
    %1000 = vmatprep.subr.mxu0 0.0
    %1001 = vmatpush1.msra.mxu0 0.0
    %1002 = vmatprep.subr.mxu0 0.0
    %1003 = vmatpush1.msra.mxu0 0.0
    %1004 = vmatprep.subr.mxu0 0.0
    %1005 = vmatpush1.msra.mxu0 0.0
    %1006 = vmatprep.subr.mxu0 0.0
    %1007 = vmatpush1.msra.mxu0 0.0
    %1008 = vmatprep.subr.mxu0 0.0
    %1009 = vmatpush1.msra.mxu0 0.0
    %1010 = vmatprep.subr.mxu0 0.0
    %1011 = vmatpush1.msra.mxu0 0.0
    %1012 = vmatprep.subr.mxu0 0.0
    %1013 = vmatpush1.msra.mxu0 0.0
    %1014 = vmatprep.subr.mxu0 0.0
    %1015 = vmatpush1.msra.mxu0 0.0
    %1016 = vmatprep.subr.mxu0 0.0
    %1017 = vmatpush1.msra.mxu0 0.0
    %1018 = vmatprep.subr.mxu0 0.0
    %1019 = vmatpush1.msra.mxu0 0.0
    %1020 = vmatprep.subr.mxu0 0.0
    %1021 = vmatpush1.msra.mxu0 0.0
    %1022 = vmatprep.subr.mxu0 0.0
    %1023 = vmatpush1.msra.mxu0 0.0
    %1024 = vmatprep.subr.mxu0 0.0
    %1025 = vmatpush1.msra.mxu0 0.0
    %1026 = vmatprep.subr.mxu0 0.0
    %1027 = vmatpush1.msra.mxu0 0.0
    %1028 = vmatprep.subr.mxu0 0.0
    %v1029 = vand.u32 %v92, 4294901760
    %v1030 = vsub.f32 %v92, %v1029
    %v1031 = vand.u32 %v1030, 4294901760
    %v1032 = vsub.f32 %v1030, %v1031
    %v1033 = vand.u32 %v1032, 4294901760
    %1034 = vmatpush1.msra.mxu0 %v1033
    %1035 = vmatprep.subr.mxu0 0.0
    %v1036 = vand.u32 %v91, 4294901760
    %v1037 = vsub.f32 %v91, %v1036
    %v1038 = vand.u32 %v1037, 4294901760
    %v1039 = vsub.f32 %v1037, %v1038
    %v1040 = vand.u32 %v1039, 4294901760
    %1041 = vmatpush1.msra.mxu0 %v1040
    %1042 = vmatprep.subr.mxu0 0.0
    %1043 = vmatpush2.msra.mxu0 0.0
    %1044 = vmatprep.subr.mxu0 0.0
    %1045 = vmatpush2.msra.mxu0 0.0
    %1046 = vmatprep.subr.mxu0 0.0
    %1047 = vmatpush2.msra.mxu0 0.0
    %1048 = vmatprep.subr.mxu0 0.0
    %1049 = vmatpush2.msra.mxu0 0.0
    %1050 = vmatprep.subr.mxu0 0.0
    %1051 = vmatpush2.msra.mxu0 0.0
    %1052 = vmatprep.subr.mxu0 0.0
    %1053 = vmatpush2.msra.mxu0 0.0
    %1054 = vmatprep.subr.mxu0 0.0
    %1055 = vmatpush2.msra.mxu0 0.0
    %1056 = vmatprep.subr.mxu0 0.0
    %1057 = vmatpush2.msra.mxu0 0.0
    %1058 = vmatprep.subr.mxu0 0.0
    %1059 = vmatpush2.msra.mxu0 0.0
    %1060 = vmatprep.subr.mxu0 0.0
    %1061 = vmatpush2.msra.mxu0 0.0
    %1062 = vmatprep.subr.mxu0 0.0
    %1063 = vmatpush2.msra.mxu0 0.0
    %1064 = vmatprep.subr.mxu0 0.0
    %1065 = vmatpush2.msra.mxu0 0.0
    %1066 = vmatprep.subr.mxu0 0.0
    %1067 = vmatpush2.msra.mxu0 0.0
    %1068 = vmatprep.subr.mxu0 0.0
    %1069 = vmatpush2.msra.mxu0 0.0
    %1070 = vmatprep.subr.mxu0 0.0
    %1071 = vmatpush2.msra.mxu0 0.0
    %1072 = vmatprep.subr.mxu0 0.0
    %1073 = vmatpush2.msra.mxu0 0.0
    %1074 = vmatprep.mubr.f32.mxu0 0.0
    %v1075 = vand.u32 %v102, 4294901760
    %1076 = vmatmul.mubr.f32.gmra.mxu0 %v1075
    %v1077 = vpop.f32.mrf.mxu0
    %v1078 = vadd.f32 %v367, %v1077
    %v1079 = vpop.f32.mrf.mxu0
    %1080 = vmatprep.mubr.f32.mxu0 0.0
    %v1081 = vand.u32 %v105, 4294901760
    %1082 = vmatmul.mubr.f32.gmra.mxu0 %v1081
    %v1083 = vpop.f32.mrf.mxu0
    %v1084 = vadd.f32 %v377, %v1083
    %v1085 = vpop.f32.mrf.mxu0
    %1086 = vmatprep.mubr.f32.mxu0 0.0
    %v1087 = vand.u32 %v108, 4294901760
    %1088 = vmatmul.mubr.f32.gmra.mxu0 %v1087
    %v1089 = vpop.f32.mrf.mxu0
    %v1090 = vadd.f32 %v387, %v1089
    %v1091 = vpop.f32.mrf.mxu0
    %1092 = vmatprep.mubr.f32.mxu0 0.0
    %v1093 = vand.u32 %v111, 4294901760
    %1094 = vmatmul.mubr.f32.gmra.mxu0 %v1093
    %v1095 = vpop.f32.mrf.mxu0
    %v1096 = vadd.f32 %v397, %v1095
    %v1097 = vpop.f32.mrf.mxu0
    %1098 = vmatprep.mubr.f32.mxu0 0.0
    %v1099 = vand.u32 %v114, 4294901760
    %1100 = vmatmul.mubr.f32.gmra.mxu0 %v1099
    %v1101 = vpop.f32.mrf.mxu0
    %v1102 = vadd.f32 %v407, %v1101
    %v1103 = vpop.f32.mrf.mxu0
    %1104 = vmatprep.mubr.f32.mxu0 0.0
    %v1105 = vand.u32 %v117, 4294901760
    %1106 = vmatmul.mubr.f32.gmra.mxu0 %v1105
    %v1107 = vpop.f32.mrf.mxu0
    %v1108 = vadd.f32 %v417, %v1107
    %v1109 = vpop.f32.mrf.mxu0
    %1110 = vmatprep.mubr.f32.mxu0 0.0
    %v1111 = vand.u32 %v120, 4294901760
    %1112 = vmatmul.mubr.f32.gmra.mxu0 %v1111
    %v1113 = vpop.f32.mrf.mxu0
    %v1114 = vadd.f32 %v427, %v1113
    %v1115 = vpop.f32.mrf.mxu0
    %1116 = vmatprep.mubr.f32.mxu0 0.0
    %v1117 = vand.u32 %v123, 4294901760
    %1118 = vmatmul.mubr.f32.gmra.mxu0 %v1117
    %v1119 = vpop.f32.mrf.mxu0
    %v1120 = vadd.f32 %v437, %v1119
    %v1121 = vpop.f32.mrf.mxu0
    %1122 = vmatprep.mubr.f32.mxu0 0.0
    %v1123 = vand.u32 %v126, 4294901760
    %1124 = vmatmul.mubr.f32.gmra.mxu0 %v1123
    %v1125 = vpop.f32.mrf.mxu0
    %v1126 = vadd.f32 %v447, %v1125
    %v1127 = vpop.f32.mrf.mxu0
    %1128 = vmatprep.mubr.f32.mxu0 0.0
    %v1129 = vand.u32 %v129, 4294901760
    %1130 = vmatmul.mubr.f32.gmra.mxu0 %v1129
    %v1131 = vpop.f32.mrf.mxu0
    %v1132 = vadd.f32 %v457, %v1131
    %v1133 = vpop.f32.mrf.mxu0
    %1134 = vmatprep.mubr.f32.mxu0 0.0
    %v1135 = vand.u32 %v132, 4294901760
    %1136 = vmatmul.mubr.f32.gmra.mxu0 %v1135
    %v1137 = vpop.f32.mrf.mxu0
    %v1138 = vadd.f32 %v467, %v1137
    %v1139 = vpop.f32.mrf.mxu0
    %1140 = vmatprep.mubr.f32.mxu0 0.0
    %v1141 = vand.u32 %v135, 4294901760
    %1142 = vmatmul.mubr.f32.gmra.mxu0 %v1141
    %v1143 = vpop.f32.mrf.mxu0
    %v1144 = vadd.f32 %v477, %v1143
    %v1145 = vpop.f32.mrf.mxu0
    %1146 = vmatprep.mubr.f32.mxu0 0.0
    %v1147 = vand.u32 %v138, 4294901760
    %1148 = vmatmul.mubr.f32.gmra.mxu0 %v1147
    %v1149 = vpop.f32.mrf.mxu0
    %v1150 = vadd.f32 %v487, %v1149
    %v1151 = vpop.f32.mrf.mxu0
    %1152 = vmatprep.mubr.f32.mxu0 0.0
    %v1153 = vand.u32 %v141, 4294901760
    %1154 = vmatmul.mubr.f32.gmra.mxu0 %v1153
    %v1155 = vpop.f32.mrf.mxu0
    %v1156 = vadd.f32 %v497, %v1155
    %v1157 = vpop.f32.mrf.mxu0
    %1158 = vmatprep.mubr.f32.mxu0 0.0
    %v1159 = vand.u32 %v144, 4294901760
    %1160 = vmatmul.mubr.f32.gmra.mxu0 %v1159
    %v1161 = vpop.f32.mrf.mxu0
    %v1162 = vadd.f32 %v507, %v1161
    %v1163 = vpop.f32.mrf.mxu0
    %1164 = vmatprep.mubr.f32.mxu0 0.0
    %v1165 = vand.u32 %v147, 4294901760
    %1166 = vmatmul.mubr.f32.gmra.mxu0 %v1165
    %v1167 = vpop.f32.mrf.mxu0
    %v1168 = vadd.f32 %v517, %v1167
    %v1169 = vpop.f32.mrf.mxu0
    %1170 = vmatprep.mubr.f32.mxu0 0.0
    %v1171 = vand.u32 %v150, 4294901760
    %1172 = vmatmul.mubr.f32.gmra.mxu0 %v1171
    %v1173 = vpop.f32.mrf.mxu0
    %v1174 = vadd.f32 %v527, %v1173
    %v1175 = vpop.f32.mrf.mxu0
    %1176 = vmatprep.mubr.f32.mxu0 0.0
    %v1177 = vand.u32 %v153, 4294901760
    %1178 = vmatmul.mubr.f32.gmra.mxu0 %v1177
    %v1179 = vpop.f32.mrf.mxu0
    %v1180 = vadd.f32 %v537, %v1179
    %v1181 = vpop.f32.mrf.mxu0
    %1182 = vmatprep.mubr.f32.mxu0 0.0
    %v1183 = vand.u32 %v156, 4294901760
    %1184 = vmatmul.mubr.f32.gmra.mxu0 %v1183
    %v1185 = vpop.f32.mrf.mxu0
    %v1186 = vadd.f32 %v547, %v1185
    %v1187 = vpop.f32.mrf.mxu0
    %1188 = vmatprep.mubr.f32.mxu0 0.0
    %v1189 = vand.u32 %v159, 4294901760
    %1190 = vmatmul.mubr.f32.gmra.mxu0 %v1189
    %v1191 = vpop.f32.mrf.mxu0
    %v1192 = vadd.f32 %v557, %v1191
    %v1193 = vpop.f32.mrf.mxu0
    %1194 = vmatprep.mubr.f32.mxu0 0.0
    %v1195 = vand.u32 %v162, 4294901760
    %1196 = vmatmul.mubr.f32.gmra.mxu0 %v1195
    %v1197 = vpop.f32.mrf.mxu0
    %v1198 = vadd.f32 %v567, %v1197
    %v1199 = vpop.f32.mrf.mxu0
    %1200 = vmatprep.mubr.f32.mxu0 0.0
    %v1201 = vand.u32 %v165, 4294901760
    %1202 = vmatmul.mubr.f32.gmra.mxu0 %v1201
    %v1203 = vpop.f32.mrf.mxu0
    %v1204 = vadd.f32 %v577, %v1203
    %v1205 = vpop.f32.mrf.mxu0
    %1206 = vmatprep.mubr.f32.mxu0 0.0
    %v1207 = vand.u32 %v168, 4294901760
    %1208 = vmatmul.mubr.f32.gmra.mxu0 %v1207
    %v1209 = vpop.f32.mrf.mxu0
    %v1210 = vadd.f32 %v587, %v1209
    %v1211 = vpop.f32.mrf.mxu0
    %1212 = vmatprep.mubr.f32.mxu0 0.0
    %v1213 = vand.u32 %v171, 4294901760
    %1214 = vmatmul.mubr.f32.gmra.mxu0 %v1213
    %v1215 = vpop.f32.mrf.mxu0
    %v1216 = vadd.f32 %v597, %v1215
    %v1217 = vpop.f32.mrf.mxu0
    %1218 = vmatprep.mubr.f32.mxu0 0.0
    %v1219 = vand.u32 %v174, 4294901760
    %1220 = vmatmul.mubr.f32.gmra.mxu0 %v1219
    %v1221 = vpop.f32.mrf.mxu0
    %v1222 = vadd.f32 %v607, %v1221
    %v1223 = vpop.f32.mrf.mxu0
    %1224 = vmatprep.mubr.f32.mxu0 0.0
    %v1225 = vand.u32 %v177, 4294901760
    %1226 = vmatmul.mubr.f32.gmra.mxu0 %v1225
    %v1227 = vpop.f32.mrf.mxu0
    %v1228 = vadd.f32 %v617, %v1227
    %v1229 = vpop.f32.mrf.mxu0
    %1230 = vmatprep.mubr.f32.mxu0 0.0
    %v1231 = vand.u32 %v180, 4294901760
    %1232 = vmatmul.mubr.f32.gmra.mxu0 %v1231
    %v1233 = vpop.f32.mrf.mxu0
    %v1234 = vadd.f32 %v627, %v1233
    %v1235 = vpop.f32.mrf.mxu0
    %1236 = vmatprep.mubr.f32.mxu0 0.0
    %v1237 = vand.u32 %v183, 4294901760
    %1238 = vmatmul.mubr.f32.gmra.mxu0 %v1237
    %v1239 = vpop.f32.mrf.mxu0
    %v1240 = vadd.f32 %v637, %v1239
    %v1241 = vpop.f32.mrf.mxu0
    %1242 = vmatprep.mubr.f32.mxu0 0.0
    %v1243 = vand.u32 %v186, 4294901760
    %1244 = vmatmul.mubr.f32.gmra.mxu0 %v1243
    %v1245 = vpop.f32.mrf.mxu0
    %v1246 = vadd.f32 %v647, %v1245
    %v1247 = vpop.f32.mrf.mxu0
    %1248 = vmatprep.mubr.f32.mxu0 0.0
    %v1249 = vand.u32 %v189, 4294901760
    %1250 = vmatmul.mubr.f32.gmra.mxu0 %v1249
    %v1251 = vpop.f32.mrf.mxu0
    %v1252 = vadd.f32 %v657, %v1251
    %v1253 = vpop.f32.mrf.mxu0
    %1254 = vmatprep.mubr.f32.mxu0 0.0
    %v1255 = vand.u32 %v192, 4294901760
    %1256 = vmatmul.mubr.f32.gmra.mxu0 %v1255
    %v1257 = vpop.f32.mrf.mxu0
    %v1258 = vadd.f32 %v667, %v1257
    %v1259 = vpop.f32.mrf.mxu0
    %1260 = vmatprep.mubr.f32.mxu0 0.0
    %v1261 = vand.u32 %v195, 4294901760
    %1262 = vmatmul.mubr.f32.gmra.mxu0 %v1261
    %v1263 = vpop.f32.mrf.mxu0
    %v1264 = vadd.f32 %v677, %v1263
    %v1265 = vpop.f32.mrf.mxu0
    %1266 = vmatprep.mubr.f32.mxu0 0.0
    %v1267 = vand.u32 %v198, 4294901760
    %1268 = vmatmul.mubr.f32.gmra.mxu0 %v1267
    %v1269 = vpop.f32.mrf.mxu0
    %v1270 = vadd.f32 %v687, %v1269
    %v1271 = vpop.f32.mrf.mxu0
    %1272 = vmatprep.mubr.f32.mxu0 0.0
    %v1273 = vand.u32 %v201, 4294901760
    %1274 = vmatmul.mubr.f32.gmra.mxu0 %v1273
    %v1275 = vpop.f32.mrf.mxu0
    %v1276 = vadd.f32 %v697, %v1275
    %v1277 = vpop.f32.mrf.mxu0
    %1278 = vmatprep.mubr.f32.mxu0 0.0
    %v1279 = vand.u32 %v204, 4294901760
    %1280 = vmatmul.mubr.f32.gmra.mxu0 %v1279
    %v1281 = vpop.f32.mrf.mxu0
    %v1282 = vadd.f32 %v707, %v1281
    %v1283 = vpop.f32.mrf.mxu0
    %1284 = vmatprep.mubr.f32.mxu0 0.0
    %v1285 = vand.u32 %v207, 4294901760
    %1286 = vmatmul.mubr.f32.gmra.mxu0 %v1285
    %v1287 = vpop.f32.mrf.mxu0
    %v1288 = vadd.f32 %v717, %v1287
    %v1289 = vpop.f32.mrf.mxu0
    %1290 = vmatprep.mubr.f32.mxu0 0.0
    %v1291 = vand.u32 %v210, 4294901760
    %1292 = vmatmul.mubr.f32.gmra.mxu0 %v1291
    %v1293 = vpop.f32.mrf.mxu0
    %v1294 = vadd.f32 %v727, %v1293
    %v1295 = vpop.f32.mrf.mxu0
    %1296 = vmatprep.mubr.f32.mxu0 0.0
    %v1297 = vand.u32 %v213, 4294901760
    %1298 = vmatmul.mubr.f32.gmra.mxu0 %v1297
    %v1299 = vpop.f32.mrf.mxu0
    %v1300 = vadd.f32 %v737, %v1299
    %v1301 = vpop.f32.mrf.mxu0
    %1302 = vmatprep.mubr.f32.mxu0 0.0
    %v1303 = vand.u32 %v216, 4294901760
    %1304 = vmatmul.mubr.f32.gmra.mxu0 %v1303
    %v1305 = vpop.f32.mrf.mxu0
    %v1306 = vadd.f32 %v747, %v1305
    %v1307 = vpop.f32.mrf.mxu0
    %1308 = vmatprep.mubr.f32.mxu0 0.0
    %v1309 = vand.u32 %v219, 4294901760
    %1310 = vmatmul.mubr.f32.gmra.mxu0 %v1309
    %v1311 = vpop.f32.mrf.mxu0
    %v1312 = vadd.f32 %v757, %v1311
    %v1313 = vpop.f32.mrf.mxu0
    %1314 = vmatprep.mubr.f32.mxu0 0.0
    %v1315 = vand.u32 %v222, 4294901760
    %1316 = vmatmul.mubr.f32.gmra.mxu0 %v1315
    %v1317 = vpop.f32.mrf.mxu0
    %v1318 = vadd.f32 %v767, %v1317
    %v1319 = vpop.f32.mrf.mxu0
    %1320 = vmatprep.mubr.f32.mxu0 0.0
    %v1321 = vand.u32 %v225, 4294901760
    %1322 = vmatmul.mubr.f32.gmra.mxu0 %v1321
    %v1323 = vpop.f32.mrf.mxu0
    %v1324 = vadd.f32 %v777, %v1323
    %v1325 = vpop.f32.mrf.mxu0
    %1326 = vmatprep.mubr.f32.mxu0 0.0
    %v1327 = vand.u32 %v228, 4294901760
    %1328 = vmatmul.mubr.f32.gmra.mxu0 %v1327
    %v1329 = vpop.f32.mrf.mxu0
    %v1330 = vadd.f32 %v787, %v1329
    %v1331 = vpop.f32.mrf.mxu0
    %1332 = vmatprep.mubr.f32.mxu0 0.0
    %v1333 = vand.u32 %v231, 4294901760
    %1334 = vmatmul.mubr.f32.gmra.mxu0 %v1333
    %v1335 = vpop.f32.mrf.mxu0
    %v1336 = vadd.f32 %v797, %v1335
    %v1337 = vpop.f32.mrf.mxu0
    %1338 = vmatprep.mubr.f32.mxu0 0.0
    %v1339 = vand.u32 %v234, 4294901760
    %1340 = vmatmul.mubr.f32.gmra.mxu0 %v1339
    %v1341 = vpop.f32.mrf.mxu0
    %v1342 = vadd.f32 %v807, %v1341
    %v1343 = vpop.f32.mrf.mxu0
    %1344 = vmatprep.mubr.f32.mxu0 0.0
    %v1345 = vand.u32 %v237, 4294901760
    %1346 = vmatmul.mubr.f32.gmra.mxu0 %v1345
    %v1347 = vpop.f32.mrf.mxu0
    %v1348 = vadd.f32 %v817, %v1347
    %v1349 = vpop.f32.mrf.mxu0
    %1350 = vmatprep.mubr.f32.mxu0 0.0
    %v1351 = vand.u32 %v240, 4294901760
    %1352 = vmatmul.mubr.f32.gmra.mxu0 %v1351
    %v1353 = vpop.f32.mrf.mxu0
    %v1354 = vadd.f32 %v827, %v1353
    %v1355 = vpop.f32.mrf.mxu0
    %1356 = vmatprep.mubr.f32.mxu0 0.0
    %v1357 = vand.u32 %v243, 4294901760
    %1358 = vmatmul.mubr.f32.gmra.mxu0 %v1357
    %v1359 = vpop.f32.mrf.mxu0
    %v1360 = vadd.f32 %v837, %v1359
    %v1361 = vpop.f32.mrf.mxu0
    %1362 = vmatprep.mubr.f32.mxu0 0.0
    %v1363 = vand.u32 %v246, 4294901760
    %1364 = vmatmul.mubr.f32.gmra.mxu0 %v1363
    %v1365 = vpop.f32.mrf.mxu0
    %v1366 = vadd.f32 %v847, %v1365
    %v1367 = vpop.f32.mrf.mxu0
    %1368 = vmatprep.mubr.f32.mxu0 0.0
    %v1369 = vand.u32 %v249, 4294901760
    %1370 = vmatmul.mubr.f32.gmra.mxu0 %v1369
    %v1371 = vpop.f32.mrf.mxu0
    %v1372 = vadd.f32 %v857, %v1371
    %v1373 = vpop.f32.mrf.mxu0
    %1374 = vmatprep.mubr.f32.mxu0 0.0
    %v1375 = vand.u32 %v252, 4294901760
    %1376 = vmatmul.mubr.f32.gmra.mxu0 %v1375
    %v1377 = vpop.f32.mrf.mxu0
    %v1378 = vadd.f32 %v867, %v1377
    %v1379 = vpop.f32.mrf.mxu0
    %1380 = vmatprep.mubr.f32.mxu0 0.0
    %v1381 = vand.u32 %v255, 4294901760
    %1382 = vmatmul.mubr.f32.gmra.mxu0 %v1381
    %v1383 = vpop.f32.mrf.mxu0
    %v1384 = vadd.f32 %v877, %v1383
    %v1385 = vpop.f32.mrf.mxu0
    %1386 = vmatprep.mubr.f32.mxu0 0.0
    %v1387 = vand.u32 %v258, 4294901760
    %1388 = vmatmul.mubr.f32.gmra.mxu0 %v1387
    %v1389 = vpop.f32.mrf.mxu0
    %v1390 = vadd.f32 %v887, %v1389
    %v1391 = vpop.f32.mrf.mxu0
    %1392 = vmatprep.mubr.f32.mxu0 0.0
    %v1393 = vand.u32 %v261, 4294901760
    %1394 = vmatmul.mubr.f32.gmra.mxu0 %v1393
    %v1395 = vpop.f32.mrf.mxu0
    %v1396 = vadd.f32 %v897, %v1395
    %v1397 = vpop.f32.mrf.mxu0
    %1398 = vmatprep.mubr.f32.mxu0 0.0
    %v1399 = vand.u32 %v264, 4294901760
    %1400 = vmatmul.mubr.f32.gmra.mxu0 %v1399
    %v1401 = vpop.f32.mrf.mxu0
    %v1402 = vadd.f32 %v907, %v1401
    %v1403 = vpop.f32.mrf.mxu0
    %1404 = vmatprep.mubr.f32.mxu0 0.0
    %v1405 = vand.u32 %v267, 4294901760
    %1406 = vmatmul.mubr.f32.gmra.mxu0 %v1405
    %v1407 = vpop.f32.mrf.mxu0
    %v1408 = vadd.f32 %v917, %v1407
    %v1409 = vpop.f32.mrf.mxu0
    %1410 = vmatprep.mubr.f32.mxu0 0.0
    %v1411 = vand.u32 %v270, 4294901760
    %1412 = vmatmul.mubr.f32.gmra.mxu0 %v1411
    %v1413 = vpop.f32.mrf.mxu0
    %v1414 = vadd.f32 %v927, %v1413
    %v1415 = vpop.f32.mrf.mxu0
    %1416 = vmatprep.mubr.f32.mxu0 0.0
    %v1417 = vand.u32 %v273, 4294901760
    %1418 = vmatmul.mubr.f32.gmra.mxu0 %v1417
    %v1419 = vpop.f32.mrf.mxu0
    %v1420 = vadd.f32 %v937, %v1419
    %v1421 = vpop.f32.mrf.mxu0
    %1422 = vmatprep.mubr.f32.mxu0 0.0
    %v1423 = vand.u32 %v276, 4294901760
    %1424 = vmatmul.mubr.f32.gmra.mxu0 %v1423
    %v1425 = vpop.f32.mrf.mxu0
    %v1426 = vadd.f32 %v947, %v1425
    %v1427 = vpop.f32.mrf.mxu0
    %1428 = vmatprep.mubr.f32.mxu0 0.0
    %v1429 = vand.u32 %v279, 4294901760
    %1430 = vmatmul.mubr.f32.gmra.mxu0 %v1429
    %v1431 = vpop.f32.mrf.mxu0
    %v1432 = vadd.f32 %v957, %v1431
    %v1433 = vpop.f32.mrf.mxu0
    %1434 = vmatprep.mubr.f32.mxu0 0.0
    %v1435 = vand.u32 %v282, 4294901760
    %1436 = vmatmul.mubr.f32.gmra.mxu0 %v1435
    %v1437 = vpop.f32.mrf.mxu0
    %v1438 = vadd.f32 %v967, %v1437
    %v1439 = vpop.f32.mrf.mxu0
    %1440 = vmatprep.mubr.f32.mxu0 0.0
    %v1441 = vand.u32 %v285, 4294901760
    %1442 = vmatmul.mubr.f32.gmra.mxu0 %v1441
    %v1443 = vpop.f32.mrf.mxu0
    %v1444 = vadd.f32 %v977, %v1443
    %v1445 = vpop.f32.mrf.mxu0
    %1446 = vmatprep.mubr.f32.mxu0 0.0
    %v1447 = vand.u32 %v288, 4294901760
    %1448 = vmatmul.mubr.f32.gmra.mxu0 %v1447
    %v1449 = vpop.f32.mrf.mxu0
    %v1450 = vadd.f32 %v987, %v1449
    %v1451 = vpop.f32.mrf.mxu0
    %1452 = vmatprep.mubr.f32.mxu0 0.0
    %v1453 = vand.u32 %v291, 4294901760
    %1454 = vmatmul.mubr.f32.gmra.mxu0 %v1453
    %v1455 = vpop.f32.mrf.mxu0
    %v1456 = vadd.f32 %v997, %v1455
    %v1457 = vpop.f32.mrf.mxu0
    %1458 = vdwg.mxu0
    %1459 = vmatprep.subr.mxu0 0.0
    %1460 = vmatpush1.msra.mxu0 0.0
    %1461 = vmatprep.subr.mxu0 0.0
    %1462 = vmatpush1.msra.mxu0 0.0
    %1463 = vmatprep.subr.mxu0 0.0
    %1464 = vmatpush1.msra.mxu0 0.0
    %1465 = vmatprep.subr.mxu0 0.0
    %1466 = vmatpush1.msra.mxu0 0.0
    %1467 = vmatprep.subr.mxu0 0.0
    %1468 = vmatpush1.msra.mxu0 0.0
    %1469 = vmatprep.subr.mxu0 0.0
    %1470 = vmatpush1.msra.mxu0 0.0
    %1471 = vmatprep.subr.mxu0 0.0
    %1472 = vmatpush1.msra.mxu0 0.0
    %1473 = vmatprep.subr.mxu0 0.0
    %1474 = vmatpush1.msra.mxu0 0.0
    %1475 = vmatprep.subr.mxu0 0.0
    %1476 = vmatpush1.msra.mxu0 0.0
    %1477 = vmatprep.subr.mxu0 0.0
    %1478 = vmatpush1.msra.mxu0 0.0
    %1479 = vmatprep.subr.mxu0 0.0
    %1480 = vmatpush1.msra.mxu0 0.0
    %1481 = vmatprep.subr.mxu0 0.0
    %1482 = vmatpush1.msra.mxu0 0.0
    %1483 = vmatprep.subr.mxu0 0.0
    %1484 = vmatpush1.msra.mxu0 0.0
    %1485 = vmatprep.subr.mxu0 0.0
    %1486 = vmatpush1.msra.mxu0 0.0
    %1487 = vmatprep.subr.mxu0 0.0
    %v1488 = vand.u32 %v92, 4294901760
    %v1489 = vsub.f32 %v92, %v1488
    %1490 = vmatpush1.msra.mxu0 %v1489
    %1491 = vmatprep.subr.mxu0 0.0
    %v1492 = vand.u32 %v91, 4294901760
    %v1493 = vsub.f32 %v91, %v1492
    %1494 = vmatpush1.msra.mxu0 %v1493
    %1495 = vmatprep.subr.mxu0 0.0
    %1496 = vmatpush2.msra.mxu0 0.0
    %1497 = vmatprep.subr.mxu0 0.0
    %1498 = vmatpush2.msra.mxu0 0.0
    %1499 = vmatprep.subr.mxu0 0.0
    %1500 = vmatpush2.msra.mxu0 0.0
    %1501 = vmatprep.subr.mxu0 0.0
    %1502 = vmatpush2.msra.mxu0 0.0
    %1503 = vmatprep.subr.mxu0 0.0
    %1504 = vmatpush2.msra.mxu0 0.0
    %1505 = vmatprep.subr.mxu0 0.0
    %1506 = vmatpush2.msra.mxu0 0.0
    %1507 = vmatprep.subr.mxu0 0.0
    %1508 = vmatpush2.msra.mxu0 0.0
    %1509 = vmatprep.subr.mxu0 0.0
    %1510 = vmatpush2.msra.mxu0 0.0
    %1511 = vmatprep.subr.mxu0 0.0
    %1512 = vmatpush2.msra.mxu0 0.0
    %1513 = vmatprep.subr.mxu0 0.0
    %1514 = vmatpush2.msra.mxu0 0.0
    %1515 = vmatprep.subr.mxu0 0.0
    %1516 = vmatpush2.msra.mxu0 0.0
    %1517 = vmatprep.subr.mxu0 0.0
    %1518 = vmatpush2.msra.mxu0 0.0
    %1519 = vmatprep.subr.mxu0 0.0
    %1520 = vmatpush2.msra.mxu0 0.0
    %1521 = vmatprep.subr.mxu0 0.0
    %1522 = vmatpush2.msra.mxu0 0.0
    %1523 = vmatprep.subr.mxu0 0.0
    %1524 = vmatpush2.msra.mxu0 0.0
    %1525 = vmatprep.subr.mxu0 0.0
    %1526 = vmatpush2.msra.mxu0 0.0
    %1527 = vmatprep.mubr.f32.mxu0 0.0
    %v1528 = vand.u32 %v102, 4294901760
    %v1529 = vsub.f32 %v102, %v1528
    %1530 = vmatmul.mubr.f32.gmra.mxu0 %v1529
    %v1531 = vpop.f32.mrf.mxu0
    %v1532 = vadd.f32 %v1078, %v1531
    %v1533 = vpop.f32.mrf.mxu0
    %1534 = vmatprep.mubr.f32.mxu0 0.0
    %v1535 = vand.u32 %v105, 4294901760
    %v1536 = vsub.f32 %v105, %v1535
    %1537 = vmatmul.mubr.f32.gmra.mxu0 %v1536
    %v1538 = vpop.f32.mrf.mxu0
    %v1539 = vadd.f32 %v1084, %v1538
    %v1540 = vpop.f32.mrf.mxu0
    %1541 = vmatprep.mubr.f32.mxu0 0.0
    %v1542 = vand.u32 %v108, 4294901760
    %v1543 = vsub.f32 %v108, %v1542
    %1544 = vmatmul.mubr.f32.gmra.mxu0 %v1543
    %v1545 = vpop.f32.mrf.mxu0
    %v1546 = vadd.f32 %v1090, %v1545
    %v1547 = vpop.f32.mrf.mxu0
    %1548 = vmatprep.mubr.f32.mxu0 0.0
    %v1549 = vand.u32 %v111, 4294901760
    %v1550 = vsub.f32 %v111, %v1549
    %1551 = vmatmul.mubr.f32.gmra.mxu0 %v1550
    %v1552 = vpop.f32.mrf.mxu0
    %v1553 = vadd.f32 %v1096, %v1552
    %v1554 = vpop.f32.mrf.mxu0
    %1555 = vmatprep.mubr.f32.mxu0 0.0
    %v1556 = vand.u32 %v114, 4294901760
    %v1557 = vsub.f32 %v114, %v1556
    %1558 = vmatmul.mubr.f32.gmra.mxu0 %v1557
    %v1559 = vpop.f32.mrf.mxu0
    %v1560 = vadd.f32 %v1102, %v1559
    %v1561 = vpop.f32.mrf.mxu0
    %1562 = vmatprep.mubr.f32.mxu0 0.0
    %v1563 = vand.u32 %v117, 4294901760
    %v1564 = vsub.f32 %v117, %v1563
    %1565 = vmatmul.mubr.f32.gmra.mxu0 %v1564
    %v1566 = vpop.f32.mrf.mxu0
    %v1567 = vadd.f32 %v1108, %v1566
    %v1568 = vpop.f32.mrf.mxu0
    %1569 = vmatprep.mubr.f32.mxu0 0.0
    %v1570 = vand.u32 %v120, 4294901760
    %v1571 = vsub.f32 %v120, %v1570
    %1572 = vmatmul.mubr.f32.gmra.mxu0 %v1571
    %v1573 = vpop.f32.mrf.mxu0
    %v1574 = vadd.f32 %v1114, %v1573
    %v1575 = vpop.f32.mrf.mxu0
    %1576 = vmatprep.mubr.f32.mxu0 0.0
    %v1577 = vand.u32 %v123, 4294901760
    %v1578 = vsub.f32 %v123, %v1577
    %1579 = vmatmul.mubr.f32.gmra.mxu0 %v1578
    %v1580 = vpop.f32.mrf.mxu0
    %v1581 = vadd.f32 %v1120, %v1580
    %v1582 = vpop.f32.mrf.mxu0
    %1583 = vmatprep.mubr.f32.mxu0 0.0
    %v1584 = vand.u32 %v126, 4294901760
    %v1585 = vsub.f32 %v126, %v1584
    %1586 = vmatmul.mubr.f32.gmra.mxu0 %v1585
    %v1587 = vpop.f32.mrf.mxu0
    %v1588 = vadd.f32 %v1126, %v1587
    %v1589 = vpop.f32.mrf.mxu0
    %1590 = vmatprep.mubr.f32.mxu0 0.0
    %v1591 = vand.u32 %v129, 4294901760
    %v1592 = vsub.f32 %v129, %v1591
    %1593 = vmatmul.mubr.f32.gmra.mxu0 %v1592
    %v1594 = vpop.f32.mrf.mxu0
    %v1595 = vadd.f32 %v1132, %v1594
    %v1596 = vpop.f32.mrf.mxu0
    %1597 = vmatprep.mubr.f32.mxu0 0.0
    %v1598 = vand.u32 %v132, 4294901760
    %v1599 = vsub.f32 %v132, %v1598
    %1600 = vmatmul.mubr.f32.gmra.mxu0 %v1599
    %v1601 = vpop.f32.mrf.mxu0
    %v1602 = vadd.f32 %v1138, %v1601
    %v1603 = vpop.f32.mrf.mxu0
    %1604 = vmatprep.mubr.f32.mxu0 0.0
    %v1605 = vand.u32 %v135, 4294901760
    %v1606 = vsub.f32 %v135, %v1605
    %1607 = vmatmul.mubr.f32.gmra.mxu0 %v1606
    %v1608 = vpop.f32.mrf.mxu0
    %v1609 = vadd.f32 %v1144, %v1608
    %v1610 = vpop.f32.mrf.mxu0
    %1611 = vmatprep.mubr.f32.mxu0 0.0
    %v1612 = vand.u32 %v138, 4294901760
    %v1613 = vsub.f32 %v138, %v1612
    %1614 = vmatmul.mubr.f32.gmra.mxu0 %v1613
    %v1615 = vpop.f32.mrf.mxu0
    %v1616 = vadd.f32 %v1150, %v1615
    %v1617 = vpop.f32.mrf.mxu0
    %1618 = vmatprep.mubr.f32.mxu0 0.0
    %v1619 = vand.u32 %v141, 4294901760
    %v1620 = vsub.f32 %v141, %v1619
    %1621 = vmatmul.mubr.f32.gmra.mxu0 %v1620
    %v1622 = vpop.f32.mrf.mxu0
    %v1623 = vadd.f32 %v1156, %v1622
    %v1624 = vpop.f32.mrf.mxu0
    %1625 = vmatprep.mubr.f32.mxu0 0.0
    %v1626 = vand.u32 %v144, 4294901760
    %v1627 = vsub.f32 %v144, %v1626
    %1628 = vmatmul.mubr.f32.gmra.mxu0 %v1627
    %v1629 = vpop.f32.mrf.mxu0
    %v1630 = vadd.f32 %v1162, %v1629
    %v1631 = vpop.f32.mrf.mxu0
    %1632 = vmatprep.mubr.f32.mxu0 0.0
    %v1633 = vand.u32 %v147, 4294901760
    %v1634 = vsub.f32 %v147, %v1633
    %1635 = vmatmul.mubr.f32.gmra.mxu0 %v1634
    %v1636 = vpop.f32.mrf.mxu0
    %v1637 = vadd.f32 %v1168, %v1636
    %v1638 = vpop.f32.mrf.mxu0
    %1639 = vmatprep.mubr.f32.mxu0 0.0
    %v1640 = vand.u32 %v150, 4294901760
    %v1641 = vsub.f32 %v150, %v1640
    %1642 = vmatmul.mubr.f32.gmra.mxu0 %v1641
    %v1643 = vpop.f32.mrf.mxu0
    %v1644 = vadd.f32 %v1174, %v1643
    %v1645 = vpop.f32.mrf.mxu0
    %1646 = vmatprep.mubr.f32.mxu0 0.0
    %v1647 = vand.u32 %v153, 4294901760
    %v1648 = vsub.f32 %v153, %v1647
    %1649 = vmatmul.mubr.f32.gmra.mxu0 %v1648
    %v1650 = vpop.f32.mrf.mxu0
    %v1651 = vadd.f32 %v1180, %v1650
    %v1652 = vpop.f32.mrf.mxu0
    %1653 = vmatprep.mubr.f32.mxu0 0.0
    %v1654 = vand.u32 %v156, 4294901760
    %v1655 = vsub.f32 %v156, %v1654
    %1656 = vmatmul.mubr.f32.gmra.mxu0 %v1655
    %v1657 = vpop.f32.mrf.mxu0
    %v1658 = vadd.f32 %v1186, %v1657
    %v1659 = vpop.f32.mrf.mxu0
    %1660 = vmatprep.mubr.f32.mxu0 0.0
    %v1661 = vand.u32 %v159, 4294901760
    %v1662 = vsub.f32 %v159, %v1661
    %1663 = vmatmul.mubr.f32.gmra.mxu0 %v1662
    %v1664 = vpop.f32.mrf.mxu0
    %v1665 = vadd.f32 %v1192, %v1664
    %v1666 = vpop.f32.mrf.mxu0
    %1667 = vmatprep.mubr.f32.mxu0 0.0
    %v1668 = vand.u32 %v162, 4294901760
    %v1669 = vsub.f32 %v162, %v1668
    %1670 = vmatmul.mubr.f32.gmra.mxu0 %v1669
    %v1671 = vpop.f32.mrf.mxu0
    %v1672 = vadd.f32 %v1198, %v1671
    %v1673 = vpop.f32.mrf.mxu0
    %1674 = vmatprep.mubr.f32.mxu0 0.0
    %v1675 = vand.u32 %v165, 4294901760
    %v1676 = vsub.f32 %v165, %v1675
    %1677 = vmatmul.mubr.f32.gmra.mxu0 %v1676
    %v1678 = vpop.f32.mrf.mxu0
    %v1679 = vadd.f32 %v1204, %v1678
    %v1680 = vpop.f32.mrf.mxu0
    %1681 = vmatprep.mubr.f32.mxu0 0.0
    %v1682 = vand.u32 %v168, 4294901760
    %v1683 = vsub.f32 %v168, %v1682
    %1684 = vmatmul.mubr.f32.gmra.mxu0 %v1683
    %v1685 = vpop.f32.mrf.mxu0
    %v1686 = vadd.f32 %v1210, %v1685
    %v1687 = vpop.f32.mrf.mxu0
    %1688 = vmatprep.mubr.f32.mxu0 0.0
    %v1689 = vand.u32 %v171, 4294901760
    %v1690 = vsub.f32 %v171, %v1689
    %1691 = vmatmul.mubr.f32.gmra.mxu0 %v1690
    %v1692 = vpop.f32.mrf.mxu0
    %v1693 = vadd.f32 %v1216, %v1692
    %v1694 = vpop.f32.mrf.mxu0
    %1695 = vmatprep.mubr.f32.mxu0 0.0
    %v1696 = vand.u32 %v174, 4294901760
    %v1697 = vsub.f32 %v174, %v1696
    %1698 = vmatmul.mubr.f32.gmra.mxu0 %v1697
    %v1699 = vpop.f32.mrf.mxu0
    %v1700 = vadd.f32 %v1222, %v1699
    %v1701 = vpop.f32.mrf.mxu0
    %1702 = vmatprep.mubr.f32.mxu0 0.0
    %v1703 = vand.u32 %v177, 4294901760
    %v1704 = vsub.f32 %v177, %v1703
    %1705 = vmatmul.mubr.f32.gmra.mxu0 %v1704
    %v1706 = vpop.f32.mrf.mxu0
    %v1707 = vadd.f32 %v1228, %v1706
    %v1708 = vpop.f32.mrf.mxu0
    %1709 = vmatprep.mubr.f32.mxu0 0.0
    %v1710 = vand.u32 %v180, 4294901760
    %v1711 = vsub.f32 %v180, %v1710
    %1712 = vmatmul.mubr.f32.gmra.mxu0 %v1711
    %v1713 = vpop.f32.mrf.mxu0
    %v1714 = vadd.f32 %v1234, %v1713
    %v1715 = vpop.f32.mrf.mxu0
    %1716 = vmatprep.mubr.f32.mxu0 0.0
    %v1717 = vand.u32 %v183, 4294901760
    %v1718 = vsub.f32 %v183, %v1717
    %1719 = vmatmul.mubr.f32.gmra.mxu0 %v1718
    %v1720 = vpop.f32.mrf.mxu0
    %v1721 = vadd.f32 %v1240, %v1720
    %v1722 = vpop.f32.mrf.mxu0
    %1723 = vmatprep.mubr.f32.mxu0 0.0
    %v1724 = vand.u32 %v186, 4294901760
    %v1725 = vsub.f32 %v186, %v1724
    %1726 = vmatmul.mubr.f32.gmra.mxu0 %v1725
    %v1727 = vpop.f32.mrf.mxu0
    %v1728 = vadd.f32 %v1246, %v1727
    %v1729 = vpop.f32.mrf.mxu0
    %1730 = vmatprep.mubr.f32.mxu0 0.0
    %v1731 = vand.u32 %v189, 4294901760
    %v1732 = vsub.f32 %v189, %v1731
    %1733 = vmatmul.mubr.f32.gmra.mxu0 %v1732
    %v1734 = vpop.f32.mrf.mxu0
    %v1735 = vadd.f32 %v1252, %v1734
    %v1736 = vpop.f32.mrf.mxu0
    %1737 = vmatprep.mubr.f32.mxu0 0.0
    %v1738 = vand.u32 %v192, 4294901760
    %v1739 = vsub.f32 %v192, %v1738
    %1740 = vmatmul.mubr.f32.gmra.mxu0 %v1739
    %v1741 = vpop.f32.mrf.mxu0
    %v1742 = vadd.f32 %v1258, %v1741
    %v1743 = vpop.f32.mrf.mxu0
    %1744 = vmatprep.mubr.f32.mxu0 0.0
    %v1745 = vand.u32 %v195, 4294901760
    %v1746 = vsub.f32 %v195, %v1745
    %1747 = vmatmul.mubr.f32.gmra.mxu0 %v1746
    %v1748 = vpop.f32.mrf.mxu0
    %v1749 = vadd.f32 %v1264, %v1748
    %v1750 = vpop.f32.mrf.mxu0
    %1751 = vmatprep.mubr.f32.mxu0 0.0
    %v1752 = vand.u32 %v198, 4294901760
    %v1753 = vsub.f32 %v198, %v1752
    %1754 = vmatmul.mubr.f32.gmra.mxu0 %v1753
    %v1755 = vpop.f32.mrf.mxu0
    %v1756 = vadd.f32 %v1270, %v1755
    %v1757 = vpop.f32.mrf.mxu0
    %1758 = vmatprep.mubr.f32.mxu0 0.0
    %v1759 = vand.u32 %v201, 4294901760
    %v1760 = vsub.f32 %v201, %v1759
    %1761 = vmatmul.mubr.f32.gmra.mxu0 %v1760
    %v1762 = vpop.f32.mrf.mxu0
    %v1763 = vadd.f32 %v1276, %v1762
    %v1764 = vpop.f32.mrf.mxu0
    %1765 = vmatprep.mubr.f32.mxu0 0.0
    %v1766 = vand.u32 %v204, 4294901760
    %v1767 = vsub.f32 %v204, %v1766
    %1768 = vmatmul.mubr.f32.gmra.mxu0 %v1767
    %v1769 = vpop.f32.mrf.mxu0
    %v1770 = vadd.f32 %v1282, %v1769
    %v1771 = vpop.f32.mrf.mxu0
    %1772 = vmatprep.mubr.f32.mxu0 0.0
    %v1773 = vand.u32 %v207, 4294901760
    %v1774 = vsub.f32 %v207, %v1773
    %1775 = vmatmul.mubr.f32.gmra.mxu0 %v1774
    %v1776 = vpop.f32.mrf.mxu0
    %v1777 = vadd.f32 %v1288, %v1776
    %v1778 = vpop.f32.mrf.mxu0
    %1779 = vmatprep.mubr.f32.mxu0 0.0
    %v1780 = vand.u32 %v210, 4294901760
    %v1781 = vsub.f32 %v210, %v1780
    %1782 = vmatmul.mubr.f32.gmra.mxu0 %v1781
    %v1783 = vpop.f32.mrf.mxu0
    %v1784 = vadd.f32 %v1294, %v1783
    %v1785 = vpop.f32.mrf.mxu0
    %1786 = vmatprep.mubr.f32.mxu0 0.0
    %v1787 = vand.u32 %v213, 4294901760
    %v1788 = vsub.f32 %v213, %v1787
    %1789 = vmatmul.mubr.f32.gmra.mxu0 %v1788
    %v1790 = vpop.f32.mrf.mxu0
    %v1791 = vadd.f32 %v1300, %v1790
    %v1792 = vpop.f32.mrf.mxu0
    %1793 = vmatprep.mubr.f32.mxu0 0.0
    %v1794 = vand.u32 %v216, 4294901760
    %v1795 = vsub.f32 %v216, %v1794
    %1796 = vmatmul.mubr.f32.gmra.mxu0 %v1795
    %v1797 = vpop.f32.mrf.mxu0
    %v1798 = vadd.f32 %v1306, %v1797
    %v1799 = vpop.f32.mrf.mxu0
    %1800 = vmatprep.mubr.f32.mxu0 0.0
    %v1801 = vand.u32 %v219, 4294901760
    %v1802 = vsub.f32 %v219, %v1801
    %1803 = vmatmul.mubr.f32.gmra.mxu0 %v1802
    %v1804 = vpop.f32.mrf.mxu0
    %v1805 = vadd.f32 %v1312, %v1804
    %v1806 = vpop.f32.mrf.mxu0
    %1807 = vmatprep.mubr.f32.mxu0 0.0
    %v1808 = vand.u32 %v222, 4294901760
    %v1809 = vsub.f32 %v222, %v1808
    %1810 = vmatmul.mubr.f32.gmra.mxu0 %v1809
    %v1811 = vpop.f32.mrf.mxu0
    %v1812 = vadd.f32 %v1318, %v1811
    %v1813 = vpop.f32.mrf.mxu0
    %1814 = vmatprep.mubr.f32.mxu0 0.0
    %v1815 = vand.u32 %v225, 4294901760
    %v1816 = vsub.f32 %v225, %v1815
    %1817 = vmatmul.mubr.f32.gmra.mxu0 %v1816
    %v1818 = vpop.f32.mrf.mxu0
    %v1819 = vadd.f32 %v1324, %v1818
    %v1820 = vpop.f32.mrf.mxu0
    %1821 = vmatprep.mubr.f32.mxu0 0.0
    %v1822 = vand.u32 %v228, 4294901760
    %v1823 = vsub.f32 %v228, %v1822
    %1824 = vmatmul.mubr.f32.gmra.mxu0 %v1823
    %v1825 = vpop.f32.mrf.mxu0
    %v1826 = vadd.f32 %v1330, %v1825
    %v1827 = vpop.f32.mrf.mxu0
    %1828 = vmatprep.mubr.f32.mxu0 0.0
    %v1829 = vand.u32 %v231, 4294901760
    %v1830 = vsub.f32 %v231, %v1829
    %1831 = vmatmul.mubr.f32.gmra.mxu0 %v1830
    %v1832 = vpop.f32.mrf.mxu0
    %v1833 = vadd.f32 %v1336, %v1832
    %v1834 = vpop.f32.mrf.mxu0
    %1835 = vmatprep.mubr.f32.mxu0 0.0
    %v1836 = vand.u32 %v234, 4294901760
    %v1837 = vsub.f32 %v234, %v1836
    %1838 = vmatmul.mubr.f32.gmra.mxu0 %v1837
    %v1839 = vpop.f32.mrf.mxu0
    %v1840 = vadd.f32 %v1342, %v1839
    %v1841 = vpop.f32.mrf.mxu0
    %1842 = vmatprep.mubr.f32.mxu0 0.0
    %v1843 = vand.u32 %v237, 4294901760
    %v1844 = vsub.f32 %v237, %v1843
    %1845 = vmatmul.mubr.f32.gmra.mxu0 %v1844
    %v1846 = vpop.f32.mrf.mxu0
    %v1847 = vadd.f32 %v1348, %v1846
    %v1848 = vpop.f32.mrf.mxu0
    %1849 = vmatprep.mubr.f32.mxu0 0.0
    %v1850 = vand.u32 %v240, 4294901760
    %v1851 = vsub.f32 %v240, %v1850
    %1852 = vmatmul.mubr.f32.gmra.mxu0 %v1851
    %v1853 = vpop.f32.mrf.mxu0
    %v1854 = vadd.f32 %v1354, %v1853
    %v1855 = vpop.f32.mrf.mxu0
    %1856 = vmatprep.mubr.f32.mxu0 0.0
    %v1857 = vand.u32 %v243, 4294901760
    %v1858 = vsub.f32 %v243, %v1857
    %1859 = vmatmul.mubr.f32.gmra.mxu0 %v1858
    %v1860 = vpop.f32.mrf.mxu0
    %v1861 = vadd.f32 %v1360, %v1860
    %v1862 = vpop.f32.mrf.mxu0
    %1863 = vmatprep.mubr.f32.mxu0 0.0
    %v1864 = vand.u32 %v246, 4294901760
    %v1865 = vsub.f32 %v246, %v1864
    %1866 = vmatmul.mubr.f32.gmra.mxu0 %v1865
    %v1867 = vpop.f32.mrf.mxu0
    %v1868 = vadd.f32 %v1366, %v1867
    %v1869 = vpop.f32.mrf.mxu0
    %1870 = vmatprep.mubr.f32.mxu0 0.0
    %v1871 = vand.u32 %v249, 4294901760
    %v1872 = vsub.f32 %v249, %v1871
    %1873 = vmatmul.mubr.f32.gmra.mxu0 %v1872
    %v1874 = vpop.f32.mrf.mxu0
    %v1875 = vadd.f32 %v1372, %v1874
    %v1876 = vpop.f32.mrf.mxu0
    %1877 = vmatprep.mubr.f32.mxu0 0.0
    %v1878 = vand.u32 %v252, 4294901760
    %v1879 = vsub.f32 %v252, %v1878
    %1880 = vmatmul.mubr.f32.gmra.mxu0 %v1879
    %v1881 = vpop.f32.mrf.mxu0
    %v1882 = vadd.f32 %v1378, %v1881
    %v1883 = vpop.f32.mrf.mxu0
    %1884 = vmatprep.mubr.f32.mxu0 0.0
    %v1885 = vand.u32 %v255, 4294901760
    %v1886 = vsub.f32 %v255, %v1885
    %1887 = vmatmul.mubr.f32.gmra.mxu0 %v1886
    %v1888 = vpop.f32.mrf.mxu0
    %v1889 = vadd.f32 %v1384, %v1888
    %v1890 = vpop.f32.mrf.mxu0
    %1891 = vmatprep.mubr.f32.mxu0 0.0
    %v1892 = vand.u32 %v258, 4294901760
    %v1893 = vsub.f32 %v258, %v1892
    %1894 = vmatmul.mubr.f32.gmra.mxu0 %v1893
    %v1895 = vpop.f32.mrf.mxu0
    %v1896 = vadd.f32 %v1390, %v1895
    %v1897 = vpop.f32.mrf.mxu0
    %1898 = vmatprep.mubr.f32.mxu0 0.0
    %v1899 = vand.u32 %v261, 4294901760
    %v1900 = vsub.f32 %v261, %v1899
    %1901 = vmatmul.mubr.f32.gmra.mxu0 %v1900
    %v1902 = vpop.f32.mrf.mxu0
    %v1903 = vadd.f32 %v1396, %v1902
    %v1904 = vpop.f32.mrf.mxu0
    %1905 = vmatprep.mubr.f32.mxu0 0.0
    %v1906 = vand.u32 %v264, 4294901760
    %v1907 = vsub.f32 %v264, %v1906
    %1908 = vmatmul.mubr.f32.gmra.mxu0 %v1907
    %v1909 = vpop.f32.mrf.mxu0
    %v1910 = vadd.f32 %v1402, %v1909
    %v1911 = vpop.f32.mrf.mxu0
    %1912 = vmatprep.mubr.f32.mxu0 0.0
    %v1913 = vand.u32 %v267, 4294901760
    %v1914 = vsub.f32 %v267, %v1913
    %1915 = vmatmul.mubr.f32.gmra.mxu0 %v1914
    %v1916 = vpop.f32.mrf.mxu0
    %v1917 = vadd.f32 %v1408, %v1916
    %v1918 = vpop.f32.mrf.mxu0
    %1919 = vmatprep.mubr.f32.mxu0 0.0
    %v1920 = vand.u32 %v270, 4294901760
    %v1921 = vsub.f32 %v270, %v1920
    %1922 = vmatmul.mubr.f32.gmra.mxu0 %v1921
    %v1923 = vpop.f32.mrf.mxu0
    %v1924 = vadd.f32 %v1414, %v1923
    %v1925 = vpop.f32.mrf.mxu0
    %1926 = vmatprep.mubr.f32.mxu0 0.0
    %v1927 = vand.u32 %v273, 4294901760
    %v1928 = vsub.f32 %v273, %v1927
    %1929 = vmatmul.mubr.f32.gmra.mxu0 %v1928
    %v1930 = vpop.f32.mrf.mxu0
    %v1931 = vadd.f32 %v1420, %v1930
    %v1932 = vpop.f32.mrf.mxu0
    %1933 = vmatprep.mubr.f32.mxu0 0.0
    %v1934 = vand.u32 %v276, 4294901760
    %v1935 = vsub.f32 %v276, %v1934
    %1936 = vmatmul.mubr.f32.gmra.mxu0 %v1935
    %v1937 = vpop.f32.mrf.mxu0
    %v1938 = vadd.f32 %v1426, %v1937
    %v1939 = vpop.f32.mrf.mxu0
    %1940 = vmatprep.mubr.f32.mxu0 0.0
    %v1941 = vand.u32 %v279, 4294901760
    %v1942 = vsub.f32 %v279, %v1941
    %1943 = vmatmul.mubr.f32.gmra.mxu0 %v1942
    %v1944 = vpop.f32.mrf.mxu0
    %v1945 = vadd.f32 %v1432, %v1944
    %v1946 = vpop.f32.mrf.mxu0
    %1947 = vmatprep.mubr.f32.mxu0 0.0
    %v1948 = vand.u32 %v282, 4294901760
    %v1949 = vsub.f32 %v282, %v1948
    %1950 = vmatmul.mubr.f32.gmra.mxu0 %v1949
    %v1951 = vpop.f32.mrf.mxu0
    %v1952 = vadd.f32 %v1438, %v1951
    %v1953 = vpop.f32.mrf.mxu0
    %1954 = vmatprep.mubr.f32.mxu0 0.0
    %v1955 = vand.u32 %v285, 4294901760
    %v1956 = vsub.f32 %v285, %v1955
    %1957 = vmatmul.mubr.f32.gmra.mxu0 %v1956
    %v1958 = vpop.f32.mrf.mxu0
    %v1959 = vadd.f32 %v1444, %v1958
    %v1960 = vpop.f32.mrf.mxu0
    %1961 = vmatprep.mubr.f32.mxu0 0.0
    %v1962 = vand.u32 %v288, 4294901760
    %v1963 = vsub.f32 %v288, %v1962
    %1964 = vmatmul.mubr.f32.gmra.mxu0 %v1963
    %v1965 = vpop.f32.mrf.mxu0
    %v1966 = vadd.f32 %v1450, %v1965
    %v1967 = vpop.f32.mrf.mxu0
    %1968 = vmatprep.mubr.f32.mxu0 0.0
    %v1969 = vand.u32 %v291, 4294901760
    %v1970 = vsub.f32 %v291, %v1969
    %1971 = vmatmul.mubr.f32.gmra.mxu0 %v1970
    %v1972 = vpop.f32.mrf.mxu0
    %v1973 = vadd.f32 %v1456, %v1972
    %v1974 = vpop.f32.mrf.mxu0
    %1975 = vdwg.mxu0
    %1976 = vmatprep.subr.mxu0 0.0
    %1977 = vmatpush1.msra.mxu0 0.0
    %1978 = vmatprep.subr.mxu0 0.0
    %1979 = vmatpush1.msra.mxu0 0.0
    %1980 = vmatprep.subr.mxu0 0.0
    %1981 = vmatpush1.msra.mxu0 0.0
    %1982 = vmatprep.subr.mxu0 0.0
    %1983 = vmatpush1.msra.mxu0 0.0
    %1984 = vmatprep.subr.mxu0 0.0
    %1985 = vmatpush1.msra.mxu0 0.0
    %1986 = vmatprep.subr.mxu0 0.0
    %1987 = vmatpush1.msra.mxu0 0.0
    %1988 = vmatprep.subr.mxu0 0.0
    %1989 = vmatpush1.msra.mxu0 0.0
    %1990 = vmatprep.subr.mxu0 0.0
    %1991 = vmatpush1.msra.mxu0 0.0
    %1992 = vmatprep.subr.mxu0 0.0
    %1993 = vmatpush1.msra.mxu0 0.0
    %1994 = vmatprep.subr.mxu0 0.0
    %1995 = vmatpush1.msra.mxu0 0.0
    %1996 = vmatprep.subr.mxu0 0.0
    %1997 = vmatpush1.msra.mxu0 0.0
    %1998 = vmatprep.subr.mxu0 0.0
    %1999 = vmatpush1.msra.mxu0 0.0
    %2000 = vmatprep.subr.mxu0 0.0
    %2001 = vmatpush1.msra.mxu0 0.0
    %2002 = vmatprep.subr.mxu0 0.0
    %2003 = vmatpush1.msra.mxu0 0.0
    %2004 = vmatprep.subr.mxu0 0.0
    %v2005 = vand.u32 %v92, 4294901760
    %2006 = vmatpush1.msra.mxu0 %v2005
    %2007 = vmatprep.subr.mxu0 0.0
    %v2008 = vand.u32 %v91, 4294901760
    %2009 = vmatpush1.msra.mxu0 %v2008
    %2010 = vmatprep.subr.mxu0 0.0
    %2011 = vmatpush2.msra.mxu0 0.0
    %2012 = vmatprep.subr.mxu0 0.0
    %2013 = vmatpush2.msra.mxu0 0.0
    %2014 = vmatprep.subr.mxu0 0.0
    %2015 = vmatpush2.msra.mxu0 0.0
    %2016 = vmatprep.subr.mxu0 0.0
    %2017 = vmatpush2.msra.mxu0 0.0
    %2018 = vmatprep.subr.mxu0 0.0
    %2019 = vmatpush2.msra.mxu0 0.0
    %2020 = vmatprep.subr.mxu0 0.0
    %2021 = vmatpush2.msra.mxu0 0.0
    %2022 = vmatprep.subr.mxu0 0.0
    %2023 = vmatpush2.msra.mxu0 0.0
    %2024 = vmatprep.subr.mxu0 0.0
    %2025 = vmatpush2.msra.mxu0 0.0
    %2026 = vmatprep.subr.mxu0 0.0
    %2027 = vmatpush2.msra.mxu0 0.0
    %2028 = vmatprep.subr.mxu0 0.0
    %2029 = vmatpush2.msra.mxu0 0.0
    %2030 = vmatprep.subr.mxu0 0.0
    %2031 = vmatpush2.msra.mxu0 0.0
    %2032 = vmatprep.subr.mxu0 0.0
    %2033 = vmatpush2.msra.mxu0 0.0
    %2034 = vmatprep.subr.mxu0 0.0
    %2035 = vmatpush2.msra.mxu0 0.0
    %2036 = vmatprep.subr.mxu0 0.0
    %2037 = vmatpush2.msra.mxu0 0.0
    %2038 = vmatprep.subr.mxu0 0.0
    %2039 = vmatpush2.msra.mxu0 0.0
    %2040 = vmatprep.subr.mxu0 0.0
    %2041 = vmatpush2.msra.mxu0 0.0
    %2042 = vmatprep.mubr.f32.mxu0 0.0
    %v2043 = vand.u32 %v102, 4294901760
    %v2044 = vsub.f32 %v102, %v2043
    %v2045 = vand.u32 %v2044, 4294901760
    %2046 = vmatmul.mubr.f32.gmra.mxu0 %v2045
    %v2047 = vpop.f32.mrf.mxu0
    %v2048 = vadd.f32 %v1532, %v2047
    %v2049 = vpop.f32.mrf.mxu0
    %2050 = vmatprep.mubr.f32.mxu0 0.0
    %v2051 = vand.u32 %v105, 4294901760
    %v2052 = vsub.f32 %v105, %v2051
    %v2053 = vand.u32 %v2052, 4294901760
    %2054 = vmatmul.mubr.f32.gmra.mxu0 %v2053
    %v2055 = vpop.f32.mrf.mxu0
    %v2056 = vadd.f32 %v1539, %v2055
    %v2057 = vpop.f32.mrf.mxu0
    %2058 = vmatprep.mubr.f32.mxu0 0.0
    %v2059 = vand.u32 %v108, 4294901760
    %v2060 = vsub.f32 %v108, %v2059
    %v2061 = vand.u32 %v2060, 4294901760
    %2062 = vmatmul.mubr.f32.gmra.mxu0 %v2061
    %v2063 = vpop.f32.mrf.mxu0
    %v2064 = vadd.f32 %v1546, %v2063
    %v2065 = vpop.f32.mrf.mxu0
    %2066 = vmatprep.mubr.f32.mxu0 0.0
    %v2067 = vand.u32 %v111, 4294901760
    %v2068 = vsub.f32 %v111, %v2067
    %v2069 = vand.u32 %v2068, 4294901760
    %2070 = vmatmul.mubr.f32.gmra.mxu0 %v2069
    %v2071 = vpop.f32.mrf.mxu0
    %v2072 = vadd.f32 %v1553, %v2071
    %v2073 = vpop.f32.mrf.mxu0
    %2074 = vmatprep.mubr.f32.mxu0 0.0
    %v2075 = vand.u32 %v114, 4294901760
    %v2076 = vsub.f32 %v114, %v2075
    %v2077 = vand.u32 %v2076, 4294901760
    %2078 = vmatmul.mubr.f32.gmra.mxu0 %v2077
    %v2079 = vpop.f32.mrf.mxu0
    %v2080 = vadd.f32 %v1560, %v2079
    %v2081 = vpop.f32.mrf.mxu0
    %2082 = vmatprep.mubr.f32.mxu0 0.0
    %v2083 = vand.u32 %v117, 4294901760
    %v2084 = vsub.f32 %v117, %v2083
    %v2085 = vand.u32 %v2084, 4294901760
    %2086 = vmatmul.mubr.f32.gmra.mxu0 %v2085
    %v2087 = vpop.f32.mrf.mxu0
    %v2088 = vadd.f32 %v1567, %v2087
    %v2089 = vpop.f32.mrf.mxu0
    %2090 = vmatprep.mubr.f32.mxu0 0.0
    %v2091 = vand.u32 %v120, 4294901760
    %v2092 = vsub.f32 %v120, %v2091
    %v2093 = vand.u32 %v2092, 4294901760
    %2094 = vmatmul.mubr.f32.gmra.mxu0 %v2093
    %v2095 = vpop.f32.mrf.mxu0
    %v2096 = vadd.f32 %v1574, %v2095
    %v2097 = vpop.f32.mrf.mxu0
    %2098 = vmatprep.mubr.f32.mxu0 0.0
    %v2099 = vand.u32 %v123, 4294901760
    %v2100 = vsub.f32 %v123, %v2099
    %v2101 = vand.u32 %v2100, 4294901760
    %2102 = vmatmul.mubr.f32.gmra.mxu0 %v2101
    %v2103 = vpop.f32.mrf.mxu0
    %v2104 = vadd.f32 %v1581, %v2103
    %v2105 = vpop.f32.mrf.mxu0
    %2106 = vmatprep.mubr.f32.mxu0 0.0
    %v2107 = vand.u32 %v126, 4294901760
    %v2108 = vsub.f32 %v126, %v2107
    %v2109 = vand.u32 %v2108, 4294901760
    %2110 = vmatmul.mubr.f32.gmra.mxu0 %v2109
    %v2111 = vpop.f32.mrf.mxu0
    %v2112 = vadd.f32 %v1588, %v2111
    %v2113 = vpop.f32.mrf.mxu0
    %2114 = vmatprep.mubr.f32.mxu0 0.0
    %v2115 = vand.u32 %v129, 4294901760
    %v2116 = vsub.f32 %v129, %v2115
    %v2117 = vand.u32 %v2116, 4294901760
    %2118 = vmatmul.mubr.f32.gmra.mxu0 %v2117
    %v2119 = vpop.f32.mrf.mxu0
    %v2120 = vadd.f32 %v1595, %v2119
    %v2121 = vpop.f32.mrf.mxu0
    %2122 = vmatprep.mubr.f32.mxu0 0.0
    %v2123 = vand.u32 %v132, 4294901760
    %v2124 = vsub.f32 %v132, %v2123
    %v2125 = vand.u32 %v2124, 4294901760
    %2126 = vmatmul.mubr.f32.gmra.mxu0 %v2125
    %v2127 = vpop.f32.mrf.mxu0
    %v2128 = vadd.f32 %v1602, %v2127
    %v2129 = vpop.f32.mrf.mxu0
    %2130 = vmatprep.mubr.f32.mxu0 0.0
    %v2131 = vand.u32 %v135, 4294901760
    %v2132 = vsub.f32 %v135, %v2131
    %v2133 = vand.u32 %v2132, 4294901760
    %2134 = vmatmul.mubr.f32.gmra.mxu0 %v2133
    %v2135 = vpop.f32.mrf.mxu0
    %v2136 = vadd.f32 %v1609, %v2135
    %v2137 = vpop.f32.mrf.mxu0
    %2138 = vmatprep.mubr.f32.mxu0 0.0
    %v2139 = vand.u32 %v138, 4294901760
    %v2140 = vsub.f32 %v138, %v2139
    %v2141 = vand.u32 %v2140, 4294901760
    %2142 = vmatmul.mubr.f32.gmra.mxu0 %v2141
    %v2143 = vpop.f32.mrf.mxu0
    %v2144 = vadd.f32 %v1616, %v2143
    %v2145 = vpop.f32.mrf.mxu0
    %2146 = vmatprep.mubr.f32.mxu0 0.0
    %v2147 = vand.u32 %v141, 4294901760
    %v2148 = vsub.f32 %v141, %v2147
    %v2149 = vand.u32 %v2148, 4294901760
    %2150 = vmatmul.mubr.f32.gmra.mxu0 %v2149
    %v2151 = vpop.f32.mrf.mxu0
    %v2152 = vadd.f32 %v1623, %v2151
    %v2153 = vpop.f32.mrf.mxu0
    %2154 = vmatprep.mubr.f32.mxu0 0.0
    %v2155 = vand.u32 %v144, 4294901760
    %v2156 = vsub.f32 %v144, %v2155
    %v2157 = vand.u32 %v2156, 4294901760
    %2158 = vmatmul.mubr.f32.gmra.mxu0 %v2157
    %v2159 = vpop.f32.mrf.mxu0
    %v2160 = vadd.f32 %v1630, %v2159
    %v2161 = vpop.f32.mrf.mxu0
    %2162 = vmatprep.mubr.f32.mxu0 0.0
    %v2163 = vand.u32 %v147, 4294901760
    %v2164 = vsub.f32 %v147, %v2163
    %v2165 = vand.u32 %v2164, 4294901760
    %2166 = vmatmul.mubr.f32.gmra.mxu0 %v2165
    %v2167 = vpop.f32.mrf.mxu0
    %v2168 = vadd.f32 %v1637, %v2167
    %v2169 = vpop.f32.mrf.mxu0
    %2170 = vmatprep.mubr.f32.mxu0 0.0
    %v2171 = vand.u32 %v150, 4294901760
    %v2172 = vsub.f32 %v150, %v2171
    %v2173 = vand.u32 %v2172, 4294901760
    %2174 = vmatmul.mubr.f32.gmra.mxu0 %v2173
    %v2175 = vpop.f32.mrf.mxu0
    %v2176 = vadd.f32 %v1644, %v2175
    %v2177 = vpop.f32.mrf.mxu0
    %2178 = vmatprep.mubr.f32.mxu0 0.0
    %v2179 = vand.u32 %v153, 4294901760
    %v2180 = vsub.f32 %v153, %v2179
    %v2181 = vand.u32 %v2180, 4294901760
    %2182 = vmatmul.mubr.f32.gmra.mxu0 %v2181
    %v2183 = vpop.f32.mrf.mxu0
    %v2184 = vadd.f32 %v1651, %v2183
    %v2185 = vpop.f32.mrf.mxu0
    %2186 = vmatprep.mubr.f32.mxu0 0.0
    %v2187 = vand.u32 %v156, 4294901760
    %v2188 = vsub.f32 %v156, %v2187
    %v2189 = vand.u32 %v2188, 4294901760
    %2190 = vmatmul.mubr.f32.gmra.mxu0 %v2189
    %v2191 = vpop.f32.mrf.mxu0
    %v2192 = vadd.f32 %v1658, %v2191
    %v2193 = vpop.f32.mrf.mxu0
    %2194 = vmatprep.mubr.f32.mxu0 0.0
    %v2195 = vand.u32 %v159, 4294901760
    %v2196 = vsub.f32 %v159, %v2195
    %v2197 = vand.u32 %v2196, 4294901760
    %2198 = vmatmul.mubr.f32.gmra.mxu0 %v2197
    %v2199 = vpop.f32.mrf.mxu0
    %v2200 = vadd.f32 %v1665, %v2199
    %v2201 = vpop.f32.mrf.mxu0
    %2202 = vmatprep.mubr.f32.mxu0 0.0
    %v2203 = vand.u32 %v162, 4294901760
    %v2204 = vsub.f32 %v162, %v2203
    %v2205 = vand.u32 %v2204, 4294901760
    %2206 = vmatmul.mubr.f32.gmra.mxu0 %v2205
    %v2207 = vpop.f32.mrf.mxu0
    %v2208 = vadd.f32 %v1672, %v2207
    %v2209 = vpop.f32.mrf.mxu0
    %2210 = vmatprep.mubr.f32.mxu0 0.0
    %v2211 = vand.u32 %v165, 4294901760
    %v2212 = vsub.f32 %v165, %v2211
    %v2213 = vand.u32 %v2212, 4294901760
    %2214 = vmatmul.mubr.f32.gmra.mxu0 %v2213
    %v2215 = vpop.f32.mrf.mxu0
    %v2216 = vadd.f32 %v1679, %v2215
    %v2217 = vpop.f32.mrf.mxu0
    %2218 = vmatprep.mubr.f32.mxu0 0.0
    %v2219 = vand.u32 %v168, 4294901760
    %v2220 = vsub.f32 %v168, %v2219
    %v2221 = vand.u32 %v2220, 4294901760
    %2222 = vmatmul.mubr.f32.gmra.mxu0 %v2221
    %v2223 = vpop.f32.mrf.mxu0
    %v2224 = vadd.f32 %v1686, %v2223
    %v2225 = vpop.f32.mrf.mxu0
    %2226 = vmatprep.mubr.f32.mxu0 0.0
    %v2227 = vand.u32 %v171, 4294901760
    %v2228 = vsub.f32 %v171, %v2227
    %v2229 = vand.u32 %v2228, 4294901760
    %2230 = vmatmul.mubr.f32.gmra.mxu0 %v2229
    %v2231 = vpop.f32.mrf.mxu0
    %v2232 = vadd.f32 %v1693, %v2231
    %v2233 = vpop.f32.mrf.mxu0
    %2234 = vmatprep.mubr.f32.mxu0 0.0
    %v2235 = vand.u32 %v174, 4294901760
    %v2236 = vsub.f32 %v174, %v2235
    %v2237 = vand.u32 %v2236, 4294901760
    %2238 = vmatmul.mubr.f32.gmra.mxu0 %v2237
    %v2239 = vpop.f32.mrf.mxu0
    %v2240 = vadd.f32 %v1700, %v2239
    %v2241 = vpop.f32.mrf.mxu0
    %2242 = vmatprep.mubr.f32.mxu0 0.0
    %v2243 = vand.u32 %v177, 4294901760
    %v2244 = vsub.f32 %v177, %v2243
    %v2245 = vand.u32 %v2244, 4294901760
    %2246 = vmatmul.mubr.f32.gmra.mxu0 %v2245
    %v2247 = vpop.f32.mrf.mxu0
    %v2248 = vadd.f32 %v1707, %v2247
    %v2249 = vpop.f32.mrf.mxu0
    %2250 = vmatprep.mubr.f32.mxu0 0.0
    %v2251 = vand.u32 %v180, 4294901760
    %v2252 = vsub.f32 %v180, %v2251
    %v2253 = vand.u32 %v2252, 4294901760
    %2254 = vmatmul.mubr.f32.gmra.mxu0 %v2253
    %v2255 = vpop.f32.mrf.mxu0
    %v2256 = vadd.f32 %v1714, %v2255
    %v2257 = vpop.f32.mrf.mxu0
    %2258 = vmatprep.mubr.f32.mxu0 0.0
    %v2259 = vand.u32 %v183, 4294901760
    %v2260 = vsub.f32 %v183, %v2259
    %v2261 = vand.u32 %v2260, 4294901760
    %2262 = vmatmul.mubr.f32.gmra.mxu0 %v2261
    %v2263 = vpop.f32.mrf.mxu0
    %v2264 = vadd.f32 %v1721, %v2263
    %v2265 = vpop.f32.mrf.mxu0
    %2266 = vmatprep.mubr.f32.mxu0 0.0
    %v2267 = vand.u32 %v186, 4294901760
    %v2268 = vsub.f32 %v186, %v2267
    %v2269 = vand.u32 %v2268, 4294901760
    %2270 = vmatmul.mubr.f32.gmra.mxu0 %v2269
    %v2271 = vpop.f32.mrf.mxu0
    %v2272 = vadd.f32 %v1728, %v2271
    %v2273 = vpop.f32.mrf.mxu0
    %2274 = vmatprep.mubr.f32.mxu0 0.0
    %v2275 = vand.u32 %v189, 4294901760
    %v2276 = vsub.f32 %v189, %v2275
    %v2277 = vand.u32 %v2276, 4294901760
    %2278 = vmatmul.mubr.f32.gmra.mxu0 %v2277
    %v2279 = vpop.f32.mrf.mxu0
    %v2280 = vadd.f32 %v1735, %v2279
    %v2281 = vpop.f32.mrf.mxu0
    %2282 = vmatprep.mubr.f32.mxu0 0.0
    %v2283 = vand.u32 %v192, 4294901760
    %v2284 = vsub.f32 %v192, %v2283
    %v2285 = vand.u32 %v2284, 4294901760
    %2286 = vmatmul.mubr.f32.gmra.mxu0 %v2285
    %v2287 = vpop.f32.mrf.mxu0
    %v2288 = vadd.f32 %v1742, %v2287
    %v2289 = vpop.f32.mrf.mxu0
    %2290 = vmatprep.mubr.f32.mxu0 0.0
    %v2291 = vand.u32 %v195, 4294901760
    %v2292 = vsub.f32 %v195, %v2291
    %v2293 = vand.u32 %v2292, 4294901760
    %2294 = vmatmul.mubr.f32.gmra.mxu0 %v2293
    %v2295 = vpop.f32.mrf.mxu0
    %v2296 = vadd.f32 %v1749, %v2295
    %v2297 = vpop.f32.mrf.mxu0
    %2298 = vmatprep.mubr.f32.mxu0 0.0
    %v2299 = vand.u32 %v198, 4294901760
    %v2300 = vsub.f32 %v198, %v2299
    %v2301 = vand.u32 %v2300, 4294901760
    %2302 = vmatmul.mubr.f32.gmra.mxu0 %v2301
    %v2303 = vpop.f32.mrf.mxu0
    %v2304 = vadd.f32 %v1756, %v2303
    %v2305 = vpop.f32.mrf.mxu0
    %2306 = vmatprep.mubr.f32.mxu0 0.0
    %v2307 = vand.u32 %v201, 4294901760
    %v2308 = vsub.f32 %v201, %v2307
    %v2309 = vand.u32 %v2308, 4294901760
    %2310 = vmatmul.mubr.f32.gmra.mxu0 %v2309
    %v2311 = vpop.f32.mrf.mxu0
    %v2312 = vadd.f32 %v1763, %v2311
    %v2313 = vpop.f32.mrf.mxu0
    %2314 = vmatprep.mubr.f32.mxu0 0.0
    %v2315 = vand.u32 %v204, 4294901760
    %v2316 = vsub.f32 %v204, %v2315
    %v2317 = vand.u32 %v2316, 4294901760
    %2318 = vmatmul.mubr.f32.gmra.mxu0 %v2317
    %v2319 = vpop.f32.mrf.mxu0
    %v2320 = vadd.f32 %v1770, %v2319
    %v2321 = vpop.f32.mrf.mxu0
    %2322 = vmatprep.mubr.f32.mxu0 0.0
    %v2323 = vand.u32 %v207, 4294901760
    %v2324 = vsub.f32 %v207, %v2323
    %v2325 = vand.u32 %v2324, 4294901760
    %2326 = vmatmul.mubr.f32.gmra.mxu0 %v2325
    %v2327 = vpop.f32.mrf.mxu0
    %v2328 = vadd.f32 %v1777, %v2327
    %v2329 = vpop.f32.mrf.mxu0
    %2330 = vmatprep.mubr.f32.mxu0 0.0
    %v2331 = vand.u32 %v210, 4294901760
    %v2332 = vsub.f32 %v210, %v2331
    %v2333 = vand.u32 %v2332, 4294901760
    %2334 = vmatmul.mubr.f32.gmra.mxu0 %v2333
    %v2335 = vpop.f32.mrf.mxu0
    %v2336 = vadd.f32 %v1784, %v2335
    %v2337 = vpop.f32.mrf.mxu0
    %2338 = vmatprep.mubr.f32.mxu0 0.0
    %v2339 = vand.u32 %v213, 4294901760
    %v2340 = vsub.f32 %v213, %v2339
    %v2341 = vand.u32 %v2340, 4294901760
    %2342 = vmatmul.mubr.f32.gmra.mxu0 %v2341
    %v2343 = vpop.f32.mrf.mxu0
    %v2344 = vadd.f32 %v1791, %v2343
    %v2345 = vpop.f32.mrf.mxu0
    %2346 = vmatprep.mubr.f32.mxu0 0.0
    %v2347 = vand.u32 %v216, 4294901760
    %v2348 = vsub.f32 %v216, %v2347
    %v2349 = vand.u32 %v2348, 4294901760
    %2350 = vmatmul.mubr.f32.gmra.mxu0 %v2349
    %v2351 = vpop.f32.mrf.mxu0
    %v2352 = vadd.f32 %v1798, %v2351
    %v2353 = vpop.f32.mrf.mxu0
    %2354 = vmatprep.mubr.f32.mxu0 0.0
    %v2355 = vand.u32 %v219, 4294901760
    %v2356 = vsub.f32 %v219, %v2355
    %v2357 = vand.u32 %v2356, 4294901760
    %2358 = vmatmul.mubr.f32.gmra.mxu0 %v2357
    %v2359 = vpop.f32.mrf.mxu0
    %v2360 = vadd.f32 %v1805, %v2359
    %v2361 = vpop.f32.mrf.mxu0
    %2362 = vmatprep.mubr.f32.mxu0 0.0
    %v2363 = vand.u32 %v222, 4294901760
    %v2364 = vsub.f32 %v222, %v2363
    %v2365 = vand.u32 %v2364, 4294901760
    %2366 = vmatmul.mubr.f32.gmra.mxu0 %v2365
    %v2367 = vpop.f32.mrf.mxu0
    %v2368 = vadd.f32 %v1812, %v2367
    %v2369 = vpop.f32.mrf.mxu0
    %2370 = vmatprep.mubr.f32.mxu0 0.0
    %v2371 = vand.u32 %v225, 4294901760
    %v2372 = vsub.f32 %v225, %v2371
    %v2373 = vand.u32 %v2372, 4294901760
    %2374 = vmatmul.mubr.f32.gmra.mxu0 %v2373
    %v2375 = vpop.f32.mrf.mxu0
    %v2376 = vadd.f32 %v1819, %v2375
    %v2377 = vpop.f32.mrf.mxu0
    %2378 = vmatprep.mubr.f32.mxu0 0.0
    %v2379 = vand.u32 %v228, 4294901760
    %v2380 = vsub.f32 %v228, %v2379
    %v2381 = vand.u32 %v2380, 4294901760
    %2382 = vmatmul.mubr.f32.gmra.mxu0 %v2381
    %v2383 = vpop.f32.mrf.mxu0
    %v2384 = vadd.f32 %v1826, %v2383
    %v2385 = vpop.f32.mrf.mxu0
    %2386 = vmatprep.mubr.f32.mxu0 0.0
    %v2387 = vand.u32 %v231, 4294901760
    %v2388 = vsub.f32 %v231, %v2387
    %v2389 = vand.u32 %v2388, 4294901760
    %2390 = vmatmul.mubr.f32.gmra.mxu0 %v2389
    %v2391 = vpop.f32.mrf.mxu0
    %v2392 = vadd.f32 %v1833, %v2391
    %v2393 = vpop.f32.mrf.mxu0
    %2394 = vmatprep.mubr.f32.mxu0 0.0
    %v2395 = vand.u32 %v234, 4294901760
    %v2396 = vsub.f32 %v234, %v2395
    %v2397 = vand.u32 %v2396, 4294901760
    %2398 = vmatmul.mubr.f32.gmra.mxu0 %v2397
    %v2399 = vpop.f32.mrf.mxu0
    %v2400 = vadd.f32 %v1840, %v2399
    %v2401 = vpop.f32.mrf.mxu0
    %2402 = vmatprep.mubr.f32.mxu0 0.0
    %v2403 = vand.u32 %v237, 4294901760
    %v2404 = vsub.f32 %v237, %v2403
    %v2405 = vand.u32 %v2404, 4294901760
    %2406 = vmatmul.mubr.f32.gmra.mxu0 %v2405
    %v2407 = vpop.f32.mrf.mxu0
    %v2408 = vadd.f32 %v1847, %v2407
    %v2409 = vpop.f32.mrf.mxu0
    %2410 = vmatprep.mubr.f32.mxu0 0.0
    %v2411 = vand.u32 %v240, 4294901760
    %v2412 = vsub.f32 %v240, %v2411
    %v2413 = vand.u32 %v2412, 4294901760
    %2414 = vmatmul.mubr.f32.gmra.mxu0 %v2413
    %v2415 = vpop.f32.mrf.mxu0
    %v2416 = vadd.f32 %v1854, %v2415
    %v2417 = vpop.f32.mrf.mxu0
    %2418 = vmatprep.mubr.f32.mxu0 0.0
    %v2419 = vand.u32 %v243, 4294901760
    %v2420 = vsub.f32 %v243, %v2419
    %v2421 = vand.u32 %v2420, 4294901760
    %2422 = vmatmul.mubr.f32.gmra.mxu0 %v2421
    %v2423 = vpop.f32.mrf.mxu0
    %v2424 = vadd.f32 %v1861, %v2423
    %v2425 = vpop.f32.mrf.mxu0
    %2426 = vmatprep.mubr.f32.mxu0 0.0
    %v2427 = vand.u32 %v246, 4294901760
    %v2428 = vsub.f32 %v246, %v2427
    %v2429 = vand.u32 %v2428, 4294901760
    %2430 = vmatmul.mubr.f32.gmra.mxu0 %v2429
    %v2431 = vpop.f32.mrf.mxu0
    %v2432 = vadd.f32 %v1868, %v2431
    %v2433 = vpop.f32.mrf.mxu0
    %2434 = vmatprep.mubr.f32.mxu0 0.0
    %v2435 = vand.u32 %v249, 4294901760
    %v2436 = vsub.f32 %v249, %v2435
    %v2437 = vand.u32 %v2436, 4294901760
    %2438 = vmatmul.mubr.f32.gmra.mxu0 %v2437
    %v2439 = vpop.f32.mrf.mxu0
    %v2440 = vadd.f32 %v1875, %v2439
    %v2441 = vpop.f32.mrf.mxu0
    %2442 = vmatprep.mubr.f32.mxu0 0.0
    %v2443 = vand.u32 %v252, 4294901760
    %v2444 = vsub.f32 %v252, %v2443
    %v2445 = vand.u32 %v2444, 4294901760
    %2446 = vmatmul.mubr.f32.gmra.mxu0 %v2445
    %v2447 = vpop.f32.mrf.mxu0
    %v2448 = vadd.f32 %v1882, %v2447
    %v2449 = vpop.f32.mrf.mxu0
    %2450 = vmatprep.mubr.f32.mxu0 0.0
    %v2451 = vand.u32 %v255, 4294901760
    %v2452 = vsub.f32 %v255, %v2451
    %v2453 = vand.u32 %v2452, 4294901760
    %2454 = vmatmul.mubr.f32.gmra.mxu0 %v2453
    %v2455 = vpop.f32.mrf.mxu0
    %v2456 = vadd.f32 %v1889, %v2455
    %v2457 = vpop.f32.mrf.mxu0
    %2458 = vmatprep.mubr.f32.mxu0 0.0
    %v2459 = vand.u32 %v258, 4294901760
    %v2460 = vsub.f32 %v258, %v2459
    %v2461 = vand.u32 %v2460, 4294901760
    %2462 = vmatmul.mubr.f32.gmra.mxu0 %v2461
    %v2463 = vpop.f32.mrf.mxu0
    %v2464 = vadd.f32 %v1896, %v2463
    %v2465 = vpop.f32.mrf.mxu0
    %2466 = vmatprep.mubr.f32.mxu0 0.0
    %v2467 = vand.u32 %v261, 4294901760
    %v2468 = vsub.f32 %v261, %v2467
    %v2469 = vand.u32 %v2468, 4294901760
    %2470 = vmatmul.mubr.f32.gmra.mxu0 %v2469
    %v2471 = vpop.f32.mrf.mxu0
    %v2472 = vadd.f32 %v1903, %v2471
    %v2473 = vpop.f32.mrf.mxu0
    %2474 = vmatprep.mubr.f32.mxu0 0.0
    %v2475 = vand.u32 %v264, 4294901760
    %v2476 = vsub.f32 %v264, %v2475
    %v2477 = vand.u32 %v2476, 4294901760
    %2478 = vmatmul.mubr.f32.gmra.mxu0 %v2477
    %v2479 = vpop.f32.mrf.mxu0
    %v2480 = vadd.f32 %v1910, %v2479
    %v2481 = vpop.f32.mrf.mxu0
    %2482 = vmatprep.mubr.f32.mxu0 0.0
    %v2483 = vand.u32 %v267, 4294901760
    %v2484 = vsub.f32 %v267, %v2483
    %v2485 = vand.u32 %v2484, 4294901760
    %2486 = vmatmul.mubr.f32.gmra.mxu0 %v2485
    %v2487 = vpop.f32.mrf.mxu0
    %v2488 = vadd.f32 %v1917, %v2487
    %v2489 = vpop.f32.mrf.mxu0
    %2490 = vmatprep.mubr.f32.mxu0 0.0
    %v2491 = vand.u32 %v270, 4294901760
    %v2492 = vsub.f32 %v270, %v2491
    %v2493 = vand.u32 %v2492, 4294901760
    %2494 = vmatmul.mubr.f32.gmra.mxu0 %v2493
    %v2495 = vpop.f32.mrf.mxu0
    %v2496 = vadd.f32 %v1924, %v2495
    %v2497 = vpop.f32.mrf.mxu0
    %2498 = vmatprep.mubr.f32.mxu0 0.0
    %v2499 = vand.u32 %v273, 4294901760
    %v2500 = vsub.f32 %v273, %v2499
    %v2501 = vand.u32 %v2500, 4294901760
    %2502 = vmatmul.mubr.f32.gmra.mxu0 %v2501
    %v2503 = vpop.f32.mrf.mxu0
    %v2504 = vadd.f32 %v1931, %v2503
    %v2505 = vpop.f32.mrf.mxu0
    %2506 = vmatprep.mubr.f32.mxu0 0.0
    %v2507 = vand.u32 %v276, 4294901760
    %v2508 = vsub.f32 %v276, %v2507
    %v2509 = vand.u32 %v2508, 4294901760
    %2510 = vmatmul.mubr.f32.gmra.mxu0 %v2509
    %v2511 = vpop.f32.mrf.mxu0
    %v2512 = vadd.f32 %v1938, %v2511
    %v2513 = vpop.f32.mrf.mxu0
    %2514 = vmatprep.mubr.f32.mxu0 0.0
    %v2515 = vand.u32 %v279, 4294901760
    %v2516 = vsub.f32 %v279, %v2515
    %v2517 = vand.u32 %v2516, 4294901760
    %2518 = vmatmul.mubr.f32.gmra.mxu0 %v2517
    %v2519 = vpop.f32.mrf.mxu0
    %v2520 = vadd.f32 %v1945, %v2519
    %v2521 = vpop.f32.mrf.mxu0
    %2522 = vmatprep.mubr.f32.mxu0 0.0
    %v2523 = vand.u32 %v282, 4294901760
    %v2524 = vsub.f32 %v282, %v2523
    %v2525 = vand.u32 %v2524, 4294901760
    %2526 = vmatmul.mubr.f32.gmra.mxu0 %v2525
    %v2527 = vpop.f32.mrf.mxu0
    %v2528 = vadd.f32 %v1952, %v2527
    %v2529 = vpop.f32.mrf.mxu0
    %2530 = vmatprep.mubr.f32.mxu0 0.0
    %v2531 = vand.u32 %v285, 4294901760
    %v2532 = vsub.f32 %v285, %v2531
    %v2533 = vand.u32 %v2532, 4294901760
    %2534 = vmatmul.mubr.f32.gmra.mxu0 %v2533
    %v2535 = vpop.f32.mrf.mxu0
    %v2536 = vadd.f32 %v1959, %v2535
    %v2537 = vpop.f32.mrf.mxu0
    %2538 = vmatprep.mubr.f32.mxu0 0.0
    %v2539 = vand.u32 %v288, 4294901760
    %v2540 = vsub.f32 %v288, %v2539
    %v2541 = vand.u32 %v2540, 4294901760
    %2542 = vmatmul.mubr.f32.gmra.mxu0 %v2541
    %v2543 = vpop.f32.mrf.mxu0
    %v2544 = vadd.f32 %v1966, %v2543
    %v2545 = vpop.f32.mrf.mxu0
    %2546 = vmatprep.mubr.f32.mxu0 0.0
    %v2547 = vand.u32 %v291, 4294901760
    %v2548 = vsub.f32 %v291, %v2547
    %v2549 = vand.u32 %v2548, 4294901760
    %2550 = vmatmul.mubr.f32.gmra.mxu0 %v2549
    %v2551 = vpop.f32.mrf.mxu0
    %v2552 = vadd.f32 %v1973, %v2551
    %v2553 = vpop.f32.mrf.mxu0
    %2554 = vdwg.mxu0
    %2555 = vmatprep.subr.mxu0 0.0
    %2556 = vmatpush1.msra.mxu0 0.0
    %2557 = vmatprep.subr.mxu0 0.0
    %2558 = vmatpush1.msra.mxu0 0.0
    %2559 = vmatprep.subr.mxu0 0.0
    %2560 = vmatpush1.msra.mxu0 0.0
    %2561 = vmatprep.subr.mxu0 0.0
    %2562 = vmatpush1.msra.mxu0 0.0
    %2563 = vmatprep.subr.mxu0 0.0
    %2564 = vmatpush1.msra.mxu0 0.0
    %2565 = vmatprep.subr.mxu0 0.0
    %2566 = vmatpush1.msra.mxu0 0.0
    %2567 = vmatprep.subr.mxu0 0.0
    %2568 = vmatpush1.msra.mxu0 0.0
    %2569 = vmatprep.subr.mxu0 0.0
    %2570 = vmatpush1.msra.mxu0 0.0
    %2571 = vmatprep.subr.mxu0 0.0
    %2572 = vmatpush1.msra.mxu0 0.0
    %2573 = vmatprep.subr.mxu0 0.0
    %2574 = vmatpush1.msra.mxu0 0.0
    %2575 = vmatprep.subr.mxu0 0.0
    %2576 = vmatpush1.msra.mxu0 0.0
    %2577 = vmatprep.subr.mxu0 0.0
    %2578 = vmatpush1.msra.mxu0 0.0
    %2579 = vmatprep.subr.mxu0 0.0
    %2580 = vmatpush1.msra.mxu0 0.0
    %2581 = vmatprep.subr.mxu0 0.0
    %2582 = vmatpush1.msra.mxu0 0.0
    %2583 = vmatprep.subr.mxu0 0.0
    %v2584 = vand.u32 %v92, 4294901760
    %v2585 = vsub.f32 %v92, %v2584
    %v2586 = vand.u32 %v2585, 4294901760
    %2587 = vmatpush1.msra.mxu0 %v2586
    %2588 = vmatprep.subr.mxu0 0.0
    %v2589 = vand.u32 %v91, 4294901760
    %v2590 = vsub.f32 %v91, %v2589
    %v2591 = vand.u32 %v2590, 4294901760
    %2592 = vmatpush1.msra.mxu0 %v2591
    %2593 = vmatprep.subr.mxu0 0.0
    %2594 = vmatpush2.msra.mxu0 0.0
    %2595 = vmatprep.subr.mxu0 0.0
    %2596 = vmatpush2.msra.mxu0 0.0
    %2597 = vmatprep.subr.mxu0 0.0
    %2598 = vmatpush2.msra.mxu0 0.0
    %2599 = vmatprep.subr.mxu0 0.0
    %2600 = vmatpush2.msra.mxu0 0.0
    %2601 = vmatprep.subr.mxu0 0.0
    %2602 = vmatpush2.msra.mxu0 0.0
    %2603 = vmatprep.subr.mxu0 0.0
    %2604 = vmatpush2.msra.mxu0 0.0
    %2605 = vmatprep.subr.mxu0 0.0
    %2606 = vmatpush2.msra.mxu0 0.0
    %2607 = vmatprep.subr.mxu0 0.0
    %2608 = vmatpush2.msra.mxu0 0.0
    %2609 = vmatprep.subr.mxu0 0.0
    %2610 = vmatpush2.msra.mxu0 0.0
    %2611 = vmatprep.subr.mxu0 0.0
    %2612 = vmatpush2.msra.mxu0 0.0
    %2613 = vmatprep.subr.mxu0 0.0
    %2614 = vmatpush2.msra.mxu0 0.0
    %2615 = vmatprep.subr.mxu0 0.0
    %2616 = vmatpush2.msra.mxu0 0.0
    %2617 = vmatprep.subr.mxu0 0.0
    %2618 = vmatpush2.msra.mxu0 0.0
    %2619 = vmatprep.subr.mxu0 0.0
    %2620 = vmatpush2.msra.mxu0 0.0
    %2621 = vmatprep.subr.mxu0 0.0
    %2622 = vmatpush2.msra.mxu0 0.0
    %2623 = vmatprep.subr.mxu0 0.0
    %2624 = vmatpush2.msra.mxu0 0.0
    %2625 = vmatprep.mubr.f32.mxu0 0.0
    %v2626 = vand.u32 %v102, 4294901760
    %2627 = vmatmul.mubr.f32.gmra.mxu0 %v2626
    %v2628 = vpop.f32.mrf.mxu0
    %v2629 = vadd.f32 %v2048, %v2628
    %v2630 = vpop.f32.mrf.mxu0
    %2631 = vmatprep.mubr.f32.mxu0 0.0
    %v2632 = vand.u32 %v105, 4294901760
    %2633 = vmatmul.mubr.f32.gmra.mxu0 %v2632
    %v2634 = vpop.f32.mrf.mxu0
    %v2635 = vadd.f32 %v2056, %v2634
    %v2636 = vpop.f32.mrf.mxu0
    %2637 = vmatprep.mubr.f32.mxu0 0.0
    %v2638 = vand.u32 %v108, 4294901760
    %2639 = vmatmul.mubr.f32.gmra.mxu0 %v2638
    %v2640 = vpop.f32.mrf.mxu0
    %v2641 = vadd.f32 %v2064, %v2640
    %v2642 = vpop.f32.mrf.mxu0
    %2643 = vmatprep.mubr.f32.mxu0 0.0
    %v2644 = vand.u32 %v111, 4294901760
    %2645 = vmatmul.mubr.f32.gmra.mxu0 %v2644
    %v2646 = vpop.f32.mrf.mxu0
    %v2647 = vadd.f32 %v2072, %v2646
    %v2648 = vpop.f32.mrf.mxu0
    %2649 = vmatprep.mubr.f32.mxu0 0.0
    %v2650 = vand.u32 %v114, 4294901760
    %2651 = vmatmul.mubr.f32.gmra.mxu0 %v2650
    %v2652 = vpop.f32.mrf.mxu0
    %v2653 = vadd.f32 %v2080, %v2652
    %v2654 = vpop.f32.mrf.mxu0
    %2655 = vmatprep.mubr.f32.mxu0 0.0
    %v2656 = vand.u32 %v117, 4294901760
    %2657 = vmatmul.mubr.f32.gmra.mxu0 %v2656
    %v2658 = vpop.f32.mrf.mxu0
    %v2659 = vadd.f32 %v2088, %v2658
    %v2660 = vpop.f32.mrf.mxu0
    %2661 = vmatprep.mubr.f32.mxu0 0.0
    %v2662 = vand.u32 %v120, 4294901760
    %2663 = vmatmul.mubr.f32.gmra.mxu0 %v2662
    %v2664 = vpop.f32.mrf.mxu0
    %v2665 = vadd.f32 %v2096, %v2664
    %v2666 = vpop.f32.mrf.mxu0
    %2667 = vmatprep.mubr.f32.mxu0 0.0
    %v2668 = vand.u32 %v123, 4294901760
    %2669 = vmatmul.mubr.f32.gmra.mxu0 %v2668
    %v2670 = vpop.f32.mrf.mxu0
    %v2671 = vadd.f32 %v2104, %v2670
    %v2672 = vpop.f32.mrf.mxu0
    %2673 = vmatprep.mubr.f32.mxu0 0.0
    %v2674 = vand.u32 %v126, 4294901760
    %2675 = vmatmul.mubr.f32.gmra.mxu0 %v2674
    %v2676 = vpop.f32.mrf.mxu0
    %v2677 = vadd.f32 %v2112, %v2676
    %v2678 = vpop.f32.mrf.mxu0
    %2679 = vmatprep.mubr.f32.mxu0 0.0
    %v2680 = vand.u32 %v129, 4294901760
    %2681 = vmatmul.mubr.f32.gmra.mxu0 %v2680
    %v2682 = vpop.f32.mrf.mxu0
    %v2683 = vadd.f32 %v2120, %v2682
    %v2684 = vpop.f32.mrf.mxu0
    %2685 = vmatprep.mubr.f32.mxu0 0.0
    %v2686 = vand.u32 %v132, 4294901760
    %2687 = vmatmul.mubr.f32.gmra.mxu0 %v2686
    %v2688 = vpop.f32.mrf.mxu0
    %v2689 = vadd.f32 %v2128, %v2688
    %v2690 = vpop.f32.mrf.mxu0
    %2691 = vmatprep.mubr.f32.mxu0 0.0
    %v2692 = vand.u32 %v135, 4294901760
    %2693 = vmatmul.mubr.f32.gmra.mxu0 %v2692
    %v2694 = vpop.f32.mrf.mxu0
    %v2695 = vadd.f32 %v2136, %v2694
    %v2696 = vpop.f32.mrf.mxu0
    %2697 = vmatprep.mubr.f32.mxu0 0.0
    %v2698 = vand.u32 %v138, 4294901760
    %2699 = vmatmul.mubr.f32.gmra.mxu0 %v2698
    %v2700 = vpop.f32.mrf.mxu0
    %v2701 = vadd.f32 %v2144, %v2700
    %v2702 = vpop.f32.mrf.mxu0
    %2703 = vmatprep.mubr.f32.mxu0 0.0
    %v2704 = vand.u32 %v141, 4294901760
    %2705 = vmatmul.mubr.f32.gmra.mxu0 %v2704
    %v2706 = vpop.f32.mrf.mxu0
    %v2707 = vadd.f32 %v2152, %v2706
    %v2708 = vpop.f32.mrf.mxu0
    %2709 = vmatprep.mubr.f32.mxu0 0.0
    %v2710 = vand.u32 %v144, 4294901760
    %2711 = vmatmul.mubr.f32.gmra.mxu0 %v2710
    %v2712 = vpop.f32.mrf.mxu0
    %v2713 = vadd.f32 %v2160, %v2712
    %v2714 = vpop.f32.mrf.mxu0
    %2715 = vmatprep.mubr.f32.mxu0 0.0
    %v2716 = vand.u32 %v147, 4294901760
    %2717 = vmatmul.mubr.f32.gmra.mxu0 %v2716
    %v2718 = vpop.f32.mrf.mxu0
    %v2719 = vadd.f32 %v2168, %v2718
    %v2720 = vpop.f32.mrf.mxu0
    %2721 = vmatprep.mubr.f32.mxu0 0.0
    %v2722 = vand.u32 %v150, 4294901760
    %2723 = vmatmul.mubr.f32.gmra.mxu0 %v2722
    %v2724 = vpop.f32.mrf.mxu0
    %v2725 = vadd.f32 %v2176, %v2724
    %v2726 = vpop.f32.mrf.mxu0
    %2727 = vmatprep.mubr.f32.mxu0 0.0
    %v2728 = vand.u32 %v153, 4294901760
    %2729 = vmatmul.mubr.f32.gmra.mxu0 %v2728
    %v2730 = vpop.f32.mrf.mxu0
    %v2731 = vadd.f32 %v2184, %v2730
    %v2732 = vpop.f32.mrf.mxu0
    %2733 = vmatprep.mubr.f32.mxu0 0.0
    %v2734 = vand.u32 %v156, 4294901760
    %2735 = vmatmul.mubr.f32.gmra.mxu0 %v2734
    %v2736 = vpop.f32.mrf.mxu0
    %v2737 = vadd.f32 %v2192, %v2736
    %v2738 = vpop.f32.mrf.mxu0
    %2739 = vmatprep.mubr.f32.mxu0 0.0
    %v2740 = vand.u32 %v159, 4294901760
    %2741 = vmatmul.mubr.f32.gmra.mxu0 %v2740
    %v2742 = vpop.f32.mrf.mxu0
    %v2743 = vadd.f32 %v2200, %v2742
    %v2744 = vpop.f32.mrf.mxu0
    %2745 = vmatprep.mubr.f32.mxu0 0.0
    %v2746 = vand.u32 %v162, 4294901760
    %2747 = vmatmul.mubr.f32.gmra.mxu0 %v2746
    %v2748 = vpop.f32.mrf.mxu0
    %v2749 = vadd.f32 %v2208, %v2748
    %v2750 = vpop.f32.mrf.mxu0
    %2751 = vmatprep.mubr.f32.mxu0 0.0
    %v2752 = vand.u32 %v165, 4294901760
    %2753 = vmatmul.mubr.f32.gmra.mxu0 %v2752
    %v2754 = vpop.f32.mrf.mxu0
    %v2755 = vadd.f32 %v2216, %v2754
    %v2756 = vpop.f32.mrf.mxu0
    %2757 = vmatprep.mubr.f32.mxu0 0.0
    %v2758 = vand.u32 %v168, 4294901760
    %2759 = vmatmul.mubr.f32.gmra.mxu0 %v2758
    %v2760 = vpop.f32.mrf.mxu0
    %v2761 = vadd.f32 %v2224, %v2760
    %v2762 = vpop.f32.mrf.mxu0
    %2763 = vmatprep.mubr.f32.mxu0 0.0
    %v2764 = vand.u32 %v171, 4294901760
    %2765 = vmatmul.mubr.f32.gmra.mxu0 %v2764
    %v2766 = vpop.f32.mrf.mxu0
    %v2767 = vadd.f32 %v2232, %v2766
    %v2768 = vpop.f32.mrf.mxu0
    %2769 = vmatprep.mubr.f32.mxu0 0.0
    %v2770 = vand.u32 %v174, 4294901760
    %2771 = vmatmul.mubr.f32.gmra.mxu0 %v2770
    %v2772 = vpop.f32.mrf.mxu0
    %v2773 = vadd.f32 %v2240, %v2772
    %v2774 = vpop.f32.mrf.mxu0
    %2775 = vmatprep.mubr.f32.mxu0 0.0
    %v2776 = vand.u32 %v177, 4294901760
    %2777 = vmatmul.mubr.f32.gmra.mxu0 %v2776
    %v2778 = vpop.f32.mrf.mxu0
    %v2779 = vadd.f32 %v2248, %v2778
    %v2780 = vpop.f32.mrf.mxu0
    %2781 = vmatprep.mubr.f32.mxu0 0.0
    %v2782 = vand.u32 %v180, 4294901760
    %2783 = vmatmul.mubr.f32.gmra.mxu0 %v2782
    %v2784 = vpop.f32.mrf.mxu0
    %v2785 = vadd.f32 %v2256, %v2784
    %v2786 = vpop.f32.mrf.mxu0
    %2787 = vmatprep.mubr.f32.mxu0 0.0
    %v2788 = vand.u32 %v183, 4294901760
    %2789 = vmatmul.mubr.f32.gmra.mxu0 %v2788
    %v2790 = vpop.f32.mrf.mxu0
    %v2791 = vadd.f32 %v2264, %v2790
    %v2792 = vpop.f32.mrf.mxu0
    %2793 = vmatprep.mubr.f32.mxu0 0.0
    %v2794 = vand.u32 %v186, 4294901760
    %2795 = vmatmul.mubr.f32.gmra.mxu0 %v2794
    %v2796 = vpop.f32.mrf.mxu0
    %v2797 = vadd.f32 %v2272, %v2796
    %v2798 = vpop.f32.mrf.mxu0
    %2799 = vmatprep.mubr.f32.mxu0 0.0
    %v2800 = vand.u32 %v189, 4294901760
    %2801 = vmatmul.mubr.f32.gmra.mxu0 %v2800
    %v2802 = vpop.f32.mrf.mxu0
    %v2803 = vadd.f32 %v2280, %v2802
    %v2804 = vpop.f32.mrf.mxu0
    %2805 = vmatprep.mubr.f32.mxu0 0.0
    %v2806 = vand.u32 %v192, 4294901760
    %2807 = vmatmul.mubr.f32.gmra.mxu0 %v2806
    %v2808 = vpop.f32.mrf.mxu0
    %v2809 = vadd.f32 %v2288, %v2808
    %v2810 = vpop.f32.mrf.mxu0
    %2811 = vmatprep.mubr.f32.mxu0 0.0
    %v2812 = vand.u32 %v195, 4294901760
    %2813 = vmatmul.mubr.f32.gmra.mxu0 %v2812
    %v2814 = vpop.f32.mrf.mxu0
    %v2815 = vadd.f32 %v2296, %v2814
    %v2816 = vpop.f32.mrf.mxu0
    %2817 = vmatprep.mubr.f32.mxu0 0.0
    %v2818 = vand.u32 %v198, 4294901760
    %2819 = vmatmul.mubr.f32.gmra.mxu0 %v2818
    %v2820 = vpop.f32.mrf.mxu0
    %v2821 = vadd.f32 %v2304, %v2820
    %v2822 = vpop.f32.mrf.mxu0
    %2823 = vmatprep.mubr.f32.mxu0 0.0
    %v2824 = vand.u32 %v201, 4294901760
    %2825 = vmatmul.mubr.f32.gmra.mxu0 %v2824
    %v2826 = vpop.f32.mrf.mxu0
    %v2827 = vadd.f32 %v2312, %v2826
    %v2828 = vpop.f32.mrf.mxu0
    %2829 = vmatprep.mubr.f32.mxu0 0.0
    %v2830 = vand.u32 %v204, 4294901760
    %2831 = vmatmul.mubr.f32.gmra.mxu0 %v2830
    %v2832 = vpop.f32.mrf.mxu0
    %v2833 = vadd.f32 %v2320, %v2832
    %v2834 = vpop.f32.mrf.mxu0
    %2835 = vmatprep.mubr.f32.mxu0 0.0
    %v2836 = vand.u32 %v207, 4294901760
    %2837 = vmatmul.mubr.f32.gmra.mxu0 %v2836
    %v2838 = vpop.f32.mrf.mxu0
    %v2839 = vadd.f32 %v2328, %v2838
    %v2840 = vpop.f32.mrf.mxu0
    %2841 = vmatprep.mubr.f32.mxu0 0.0
    %v2842 = vand.u32 %v210, 4294901760
    %2843 = vmatmul.mubr.f32.gmra.mxu0 %v2842
    %v2844 = vpop.f32.mrf.mxu0
    %v2845 = vadd.f32 %v2336, %v2844
    %v2846 = vpop.f32.mrf.mxu0
    %2847 = vmatprep.mubr.f32.mxu0 0.0
    %v2848 = vand.u32 %v213, 4294901760
    %2849 = vmatmul.mubr.f32.gmra.mxu0 %v2848
    %v2850 = vpop.f32.mrf.mxu0
    %v2851 = vadd.f32 %v2344, %v2850
    %v2852 = vpop.f32.mrf.mxu0
    %2853 = vmatprep.mubr.f32.mxu0 0.0
    %v2854 = vand.u32 %v216, 4294901760
    %2855 = vmatmul.mubr.f32.gmra.mxu0 %v2854
    %v2856 = vpop.f32.mrf.mxu0
    %v2857 = vadd.f32 %v2352, %v2856
    %v2858 = vpop.f32.mrf.mxu0
    %2859 = vmatprep.mubr.f32.mxu0 0.0
    %v2860 = vand.u32 %v219, 4294901760
    %2861 = vmatmul.mubr.f32.gmra.mxu0 %v2860
    %v2862 = vpop.f32.mrf.mxu0
    %v2863 = vadd.f32 %v2360, %v2862
    %v2864 = vpop.f32.mrf.mxu0
    %2865 = vmatprep.mubr.f32.mxu0 0.0
    %v2866 = vand.u32 %v222, 4294901760
    %2867 = vmatmul.mubr.f32.gmra.mxu0 %v2866
    %v2868 = vpop.f32.mrf.mxu0
    %v2869 = vadd.f32 %v2368, %v2868
    %v2870 = vpop.f32.mrf.mxu0
    %2871 = vmatprep.mubr.f32.mxu0 0.0
    %v2872 = vand.u32 %v225, 4294901760
    %2873 = vmatmul.mubr.f32.gmra.mxu0 %v2872
    %v2874 = vpop.f32.mrf.mxu0
    %v2875 = vadd.f32 %v2376, %v2874
    %v2876 = vpop.f32.mrf.mxu0
    %2877 = vmatprep.mubr.f32.mxu0 0.0
    %v2878 = vand.u32 %v228, 4294901760
    %2879 = vmatmul.mubr.f32.gmra.mxu0 %v2878
    %v2880 = vpop.f32.mrf.mxu0
    %v2881 = vadd.f32 %v2384, %v2880
    %v2882 = vpop.f32.mrf.mxu0
    %2883 = vmatprep.mubr.f32.mxu0 0.0
    %v2884 = vand.u32 %v231, 4294901760
    %2885 = vmatmul.mubr.f32.gmra.mxu0 %v2884
    %v2886 = vpop.f32.mrf.mxu0
    %v2887 = vadd.f32 %v2392, %v2886
    %v2888 = vpop.f32.mrf.mxu0
    %2889 = vmatprep.mubr.f32.mxu0 0.0
    %v2890 = vand.u32 %v234, 4294901760
    %2891 = vmatmul.mubr.f32.gmra.mxu0 %v2890
    %v2892 = vpop.f32.mrf.mxu0
    %v2893 = vadd.f32 %v2400, %v2892
    %v2894 = vpop.f32.mrf.mxu0
    %2895 = vmatprep.mubr.f32.mxu0 0.0
    %v2896 = vand.u32 %v237, 4294901760
    %2897 = vmatmul.mubr.f32.gmra.mxu0 %v2896
    %v2898 = vpop.f32.mrf.mxu0
    %v2899 = vadd.f32 %v2408, %v2898
    %v2900 = vpop.f32.mrf.mxu0
    %2901 = vmatprep.mubr.f32.mxu0 0.0
    %v2902 = vand.u32 %v240, 4294901760
    %2903 = vmatmul.mubr.f32.gmra.mxu0 %v2902
    %v2904 = vpop.f32.mrf.mxu0
    %v2905 = vadd.f32 %v2416, %v2904
    %v2906 = vpop.f32.mrf.mxu0
    %2907 = vmatprep.mubr.f32.mxu0 0.0
    %v2908 = vand.u32 %v243, 4294901760
    %2909 = vmatmul.mubr.f32.gmra.mxu0 %v2908
    %v2910 = vpop.f32.mrf.mxu0
    %v2911 = vadd.f32 %v2424, %v2910
    %v2912 = vpop.f32.mrf.mxu0
    %2913 = vmatprep.mubr.f32.mxu0 0.0
    %v2914 = vand.u32 %v246, 4294901760
    %2915 = vmatmul.mubr.f32.gmra.mxu0 %v2914
    %v2916 = vpop.f32.mrf.mxu0
    %v2917 = vadd.f32 %v2432, %v2916
    %v2918 = vpop.f32.mrf.mxu0
    %2919 = vmatprep.mubr.f32.mxu0 0.0
    %v2920 = vand.u32 %v249, 4294901760
    %2921 = vmatmul.mubr.f32.gmra.mxu0 %v2920
    %v2922 = vpop.f32.mrf.mxu0
    %v2923 = vadd.f32 %v2440, %v2922
    %v2924 = vpop.f32.mrf.mxu0
    %2925 = vmatprep.mubr.f32.mxu0 0.0
    %v2926 = vand.u32 %v252, 4294901760
    %2927 = vmatmul.mubr.f32.gmra.mxu0 %v2926
    %v2928 = vpop.f32.mrf.mxu0
    %v2929 = vadd.f32 %v2448, %v2928
    %v2930 = vpop.f32.mrf.mxu0
    %2931 = vmatprep.mubr.f32.mxu0 0.0
    %v2932 = vand.u32 %v255, 4294901760
    %2933 = vmatmul.mubr.f32.gmra.mxu0 %v2932
    %v2934 = vpop.f32.mrf.mxu0
    %v2935 = vadd.f32 %v2456, %v2934
    %v2936 = vpop.f32.mrf.mxu0
    %2937 = vmatprep.mubr.f32.mxu0 0.0
    %v2938 = vand.u32 %v258, 4294901760
    %2939 = vmatmul.mubr.f32.gmra.mxu0 %v2938
    %v2940 = vpop.f32.mrf.mxu0
    %v2941 = vadd.f32 %v2464, %v2940
    %v2942 = vpop.f32.mrf.mxu0
    %2943 = vmatprep.mubr.f32.mxu0 0.0
    %v2944 = vand.u32 %v261, 4294901760
    %2945 = vmatmul.mubr.f32.gmra.mxu0 %v2944
    %v2946 = vpop.f32.mrf.mxu0
    %v2947 = vadd.f32 %v2472, %v2946
    %v2948 = vpop.f32.mrf.mxu0
    %2949 = vmatprep.mubr.f32.mxu0 0.0
    %v2950 = vand.u32 %v264, 4294901760
    %2951 = vmatmul.mubr.f32.gmra.mxu0 %v2950
    %v2952 = vpop.f32.mrf.mxu0
    %v2953 = vadd.f32 %v2480, %v2952
    %v2954 = vpop.f32.mrf.mxu0
    %2955 = vmatprep.mubr.f32.mxu0 0.0
    %v2956 = vand.u32 %v267, 4294901760
    %2957 = vmatmul.mubr.f32.gmra.mxu0 %v2956
    %v2958 = vpop.f32.mrf.mxu0
    %v2959 = vadd.f32 %v2488, %v2958
    %v2960 = vpop.f32.mrf.mxu0
    %2961 = vmatprep.mubr.f32.mxu0 0.0
    %v2962 = vand.u32 %v270, 4294901760
    %2963 = vmatmul.mubr.f32.gmra.mxu0 %v2962
    %v2964 = vpop.f32.mrf.mxu0
    %v2965 = vadd.f32 %v2496, %v2964
    %v2966 = vpop.f32.mrf.mxu0
    %2967 = vmatprep.mubr.f32.mxu0 0.0
    %v2968 = vand.u32 %v273, 4294901760
    %2969 = vmatmul.mubr.f32.gmra.mxu0 %v2968
    %v2970 = vpop.f32.mrf.mxu0
    %v2971 = vadd.f32 %v2504, %v2970
    %v2972 = vpop.f32.mrf.mxu0
    %2973 = vmatprep.mubr.f32.mxu0 0.0
    %v2974 = vand.u32 %v276, 4294901760
    %2975 = vmatmul.mubr.f32.gmra.mxu0 %v2974
    %v2976 = vpop.f32.mrf.mxu0
    %v2977 = vadd.f32 %v2512, %v2976
    %v2978 = vpop.f32.mrf.mxu0
    %2979 = vmatprep.mubr.f32.mxu0 0.0
    %v2980 = vand.u32 %v279, 4294901760
    %2981 = vmatmul.mubr.f32.gmra.mxu0 %v2980
    %v2982 = vpop.f32.mrf.mxu0
    %v2983 = vadd.f32 %v2520, %v2982
    %v2984 = vpop.f32.mrf.mxu0
    %2985 = vmatprep.mubr.f32.mxu0 0.0
    %v2986 = vand.u32 %v282, 4294901760
    %2987 = vmatmul.mubr.f32.gmra.mxu0 %v2986
    %v2988 = vpop.f32.mrf.mxu0
    %v2989 = vadd.f32 %v2528, %v2988
    %v2990 = vpop.f32.mrf.mxu0
    %2991 = vmatprep.mubr.f32.mxu0 0.0
    %v2992 = vand.u32 %v285, 4294901760
    %2993 = vmatmul.mubr.f32.gmra.mxu0 %v2992
    %v2994 = vpop.f32.mrf.mxu0
    %v2995 = vadd.f32 %v2536, %v2994
    %v2996 = vpop.f32.mrf.mxu0
    %2997 = vmatprep.mubr.f32.mxu0 0.0
    %v2998 = vand.u32 %v288, 4294901760
    %2999 = vmatmul.mubr.f32.gmra.mxu0 %v2998
    %v3000 = vpop.f32.mrf.mxu0
    %v3001 = vadd.f32 %v2544, %v3000
    %v3002 = vpop.f32.mrf.mxu0
    %3003 = vmatprep.mubr.f32.mxu0 0.0
    %v3004 = vand.u32 %v291, 4294901760
    %3005 = vmatmul.mubr.f32.gmra.mxu0 %v3004
    %v3006 = vpop.f32.mrf.mxu0
    %v3007 = vadd.f32 %v2552, %v3006
    %v3008 = vpop.f32.mrf.mxu0
    %3009 = vdwg.mxu0
    %3010 = vmatprep.subr.mxu0 0.0
    %3011 = vmatpush1.msra.mxu0 0.0
    %3012 = vmatprep.subr.mxu0 0.0
    %3013 = vmatpush1.msra.mxu0 0.0
    %3014 = vmatprep.subr.mxu0 0.0
    %3015 = vmatpush1.msra.mxu0 0.0
    %3016 = vmatprep.subr.mxu0 0.0
    %3017 = vmatpush1.msra.mxu0 0.0
    %3018 = vmatprep.subr.mxu0 0.0
    %3019 = vmatpush1.msra.mxu0 0.0
    %3020 = vmatprep.subr.mxu0 0.0
    %3021 = vmatpush1.msra.mxu0 0.0
    %3022 = vmatprep.subr.mxu0 0.0
    %3023 = vmatpush1.msra.mxu0 0.0
    %3024 = vmatprep.subr.mxu0 0.0
    %3025 = vmatpush1.msra.mxu0 0.0
    %3026 = vmatprep.subr.mxu0 0.0
    %3027 = vmatpush1.msra.mxu0 0.0
    %3028 = vmatprep.subr.mxu0 0.0
    %3029 = vmatpush1.msra.mxu0 0.0
    %3030 = vmatprep.subr.mxu0 0.0
    %3031 = vmatpush1.msra.mxu0 0.0
    %3032 = vmatprep.subr.mxu0 0.0
    %3033 = vmatpush1.msra.mxu0 0.0
    %3034 = vmatprep.subr.mxu0 0.0
    %3035 = vmatpush1.msra.mxu0 0.0
    %3036 = vmatprep.subr.mxu0 0.0
    %3037 = vmatpush1.msra.mxu0 0.0
    %3038 = vmatprep.subr.mxu0 0.0
    %v3039 = vand.u32 %v92, 4294901760
    %3040 = vmatpush1.msra.mxu0 %v3039
    %3041 = vmatprep.subr.mxu0 0.0
    %v3042 = vand.u32 %v91, 4294901760
    %3043 = vmatpush1.msra.mxu0 %v3042
    %3044 = vmatprep.subr.mxu0 0.0
    %3045 = vmatpush2.msra.mxu0 0.0
    %3046 = vmatprep.subr.mxu0 0.0
    %3047 = vmatpush2.msra.mxu0 0.0
    %3048 = vmatprep.subr.mxu0 0.0
    %3049 = vmatpush2.msra.mxu0 0.0
    %3050 = vmatprep.subr.mxu0 0.0
    %3051 = vmatpush2.msra.mxu0 0.0
    %3052 = vmatprep.subr.mxu0 0.0
    %3053 = vmatpush2.msra.mxu0 0.0
    %3054 = vmatprep.subr.mxu0 0.0
    %3055 = vmatpush2.msra.mxu0 0.0
    %3056 = vmatprep.subr.mxu0 0.0
    %3057 = vmatpush2.msra.mxu0 0.0
    %3058 = vmatprep.subr.mxu0 0.0
    %3059 = vmatpush2.msra.mxu0 0.0
    %3060 = vmatprep.subr.mxu0 0.0
    %3061 = vmatpush2.msra.mxu0 0.0
    %3062 = vmatprep.subr.mxu0 0.0
    %3063 = vmatpush2.msra.mxu0 0.0
    %3064 = vmatprep.subr.mxu0 0.0
    %3065 = vmatpush2.msra.mxu0 0.0
    %3066 = vmatprep.subr.mxu0 0.0
    %3067 = vmatpush2.msra.mxu0 0.0
    %3068 = vmatprep.subr.mxu0 0.0
    %3069 = vmatpush2.msra.mxu0 0.0
    %3070 = vmatprep.subr.mxu0 0.0
    %3071 = vmatpush2.msra.mxu0 0.0
    %3072 = vmatprep.subr.mxu0 0.0
    %3073 = vmatpush2.msra.mxu0 0.0
    %3074 = vmatprep.subr.mxu0 0.0
    %3075 = vmatpush2.msra.mxu0 0.0
    %3076 = vmatprep.mubr.f32.mxu0 0.0
    %v3077 = vand.u32 %v102, 4294901760
    %3078 = vmatmul.mubr.f32.gmra.mxu0 %v3077
    %v3079 = vpop.f32.mrf.mxu0
    %v3080 = vadd.f32 %v2629, %v3079
    %v3081 = vpop.f32.mrf.mxu0
    %3082 = vmatprep.mubr.f32.mxu0 0.0
    %v3083 = vand.u32 %v105, 4294901760
    %3084 = vmatmul.mubr.f32.gmra.mxu0 %v3083
    %v3085 = vpop.f32.mrf.mxu0
    %v3086 = vadd.f32 %v2635, %v3085
    %v3087 = vpop.f32.mrf.mxu0
    %3088 = vmatprep.mubr.f32.mxu0 0.0
    %v3089 = vand.u32 %v108, 4294901760
    %3090 = vmatmul.mubr.f32.gmra.mxu0 %v3089
    %v3091 = vpop.f32.mrf.mxu0
    %v3092 = vadd.f32 %v2641, %v3091
    %v3093 = vpop.f32.mrf.mxu0
    %3094 = vmatprep.mubr.f32.mxu0 0.0
    %v3095 = vand.u32 %v111, 4294901760
    %3096 = vmatmul.mubr.f32.gmra.mxu0 %v3095
    %v3097 = vpop.f32.mrf.mxu0
    %v3098 = vadd.f32 %v2647, %v3097
    %v3099 = vpop.f32.mrf.mxu0
    %3100 = vmatprep.mubr.f32.mxu0 0.0
    %v3101 = vand.u32 %v114, 4294901760
    %3102 = vmatmul.mubr.f32.gmra.mxu0 %v3101
    %v3103 = vpop.f32.mrf.mxu0
    %v3104 = vadd.f32 %v2653, %v3103
    %v3105 = vpop.f32.mrf.mxu0
    %3106 = vmatprep.mubr.f32.mxu0 0.0
    %v3107 = vand.u32 %v117, 4294901760
    %3108 = vmatmul.mubr.f32.gmra.mxu0 %v3107
    %v3109 = vpop.f32.mrf.mxu0
    %v3110 = vadd.f32 %v2659, %v3109
    %v3111 = vpop.f32.mrf.mxu0
    %3112 = vmatprep.mubr.f32.mxu0 0.0
    %v3113 = vand.u32 %v120, 4294901760
    %3114 = vmatmul.mubr.f32.gmra.mxu0 %v3113
    %v3115 = vpop.f32.mrf.mxu0
    %v3116 = vadd.f32 %v2665, %v3115
    %v3117 = vpop.f32.mrf.mxu0
    %3118 = vmatprep.mubr.f32.mxu0 0.0
    %v3119 = vand.u32 %v123, 4294901760
    %3120 = vmatmul.mubr.f32.gmra.mxu0 %v3119
    %v3121 = vpop.f32.mrf.mxu0
    %v3122 = vadd.f32 %v2671, %v3121
    %v3123 = vpop.f32.mrf.mxu0
    %3124 = vmatprep.mubr.f32.mxu0 0.0
    %v3125 = vand.u32 %v126, 4294901760
    %3126 = vmatmul.mubr.f32.gmra.mxu0 %v3125
    %v3127 = vpop.f32.mrf.mxu0
    %v3128 = vadd.f32 %v2677, %v3127
    %v3129 = vpop.f32.mrf.mxu0
    %3130 = vmatprep.mubr.f32.mxu0 0.0
    %v3131 = vand.u32 %v129, 4294901760
    %3132 = vmatmul.mubr.f32.gmra.mxu0 %v3131
    %v3133 = vpop.f32.mrf.mxu0
    %v3134 = vadd.f32 %v2683, %v3133
    %v3135 = vpop.f32.mrf.mxu0
    %3136 = vmatprep.mubr.f32.mxu0 0.0
    %v3137 = vand.u32 %v132, 4294901760
    %3138 = vmatmul.mubr.f32.gmra.mxu0 %v3137
    %v3139 = vpop.f32.mrf.mxu0
    %v3140 = vadd.f32 %v2689, %v3139
    %v3141 = vpop.f32.mrf.mxu0
    %3142 = vmatprep.mubr.f32.mxu0 0.0
    %v3143 = vand.u32 %v135, 4294901760
    %3144 = vmatmul.mubr.f32.gmra.mxu0 %v3143
    %v3145 = vpop.f32.mrf.mxu0
    %v3146 = vadd.f32 %v2695, %v3145
    %v3147 = vpop.f32.mrf.mxu0
    %3148 = vmatprep.mubr.f32.mxu0 0.0
    %v3149 = vand.u32 %v138, 4294901760
    %3150 = vmatmul.mubr.f32.gmra.mxu0 %v3149
    %v3151 = vpop.f32.mrf.mxu0
    %v3152 = vadd.f32 %v2701, %v3151
    %v3153 = vpop.f32.mrf.mxu0
    %3154 = vmatprep.mubr.f32.mxu0 0.0
    %v3155 = vand.u32 %v141, 4294901760
    %3156 = vmatmul.mubr.f32.gmra.mxu0 %v3155
    %v3157 = vpop.f32.mrf.mxu0
    %v3158 = vadd.f32 %v2707, %v3157
    %v3159 = vpop.f32.mrf.mxu0
    %3160 = vmatprep.mubr.f32.mxu0 0.0
    %v3161 = vand.u32 %v144, 4294901760
    %3162 = vmatmul.mubr.f32.gmra.mxu0 %v3161
    %v3163 = vpop.f32.mrf.mxu0
    %v3164 = vadd.f32 %v2713, %v3163
    %v3165 = vpop.f32.mrf.mxu0
    %3166 = vmatprep.mubr.f32.mxu0 0.0
    %v3167 = vand.u32 %v147, 4294901760
    %3168 = vmatmul.mubr.f32.gmra.mxu0 %v3167
    %v3169 = vpop.f32.mrf.mxu0
    %v3170 = vadd.f32 %v2719, %v3169
    %v3171 = vpop.f32.mrf.mxu0
    %3172 = vmatprep.mubr.f32.mxu0 0.0
    %v3173 = vand.u32 %v150, 4294901760
    %3174 = vmatmul.mubr.f32.gmra.mxu0 %v3173
    %v3175 = vpop.f32.mrf.mxu0
    %v3176 = vadd.f32 %v2725, %v3175
    %v3177 = vpop.f32.mrf.mxu0
    %3178 = vmatprep.mubr.f32.mxu0 0.0
    %v3179 = vand.u32 %v153, 4294901760
    %3180 = vmatmul.mubr.f32.gmra.mxu0 %v3179
    %v3181 = vpop.f32.mrf.mxu0
    %v3182 = vadd.f32 %v2731, %v3181
    %v3183 = vpop.f32.mrf.mxu0
    %3184 = vmatprep.mubr.f32.mxu0 0.0
    %v3185 = vand.u32 %v156, 4294901760
    %3186 = vmatmul.mubr.f32.gmra.mxu0 %v3185
    %v3187 = vpop.f32.mrf.mxu0
    %v3188 = vadd.f32 %v2737, %v3187
    %v3189 = vpop.f32.mrf.mxu0
    %3190 = vmatprep.mubr.f32.mxu0 0.0
    %v3191 = vand.u32 %v159, 4294901760
    %3192 = vmatmul.mubr.f32.gmra.mxu0 %v3191
    %v3193 = vpop.f32.mrf.mxu0
    %v3194 = vadd.f32 %v2743, %v3193
    %v3195 = vpop.f32.mrf.mxu0
    %3196 = vmatprep.mubr.f32.mxu0 0.0
    %v3197 = vand.u32 %v162, 4294901760
    %3198 = vmatmul.mubr.f32.gmra.mxu0 %v3197
    %v3199 = vpop.f32.mrf.mxu0
    %v3200 = vadd.f32 %v2749, %v3199
    %v3201 = vpop.f32.mrf.mxu0
    %3202 = vmatprep.mubr.f32.mxu0 0.0
    %v3203 = vand.u32 %v165, 4294901760
    %3204 = vmatmul.mubr.f32.gmra.mxu0 %v3203
    %v3205 = vpop.f32.mrf.mxu0
    %v3206 = vadd.f32 %v2755, %v3205
    %v3207 = vpop.f32.mrf.mxu0
    %3208 = vmatprep.mubr.f32.mxu0 0.0
    %v3209 = vand.u32 %v168, 4294901760
    %3210 = vmatmul.mubr.f32.gmra.mxu0 %v3209
    %v3211 = vpop.f32.mrf.mxu0
    %v3212 = vadd.f32 %v2761, %v3211
    %v3213 = vpop.f32.mrf.mxu0
    %3214 = vmatprep.mubr.f32.mxu0 0.0
    %v3215 = vand.u32 %v171, 4294901760
    %3216 = vmatmul.mubr.f32.gmra.mxu0 %v3215
    %v3217 = vpop.f32.mrf.mxu0
    %v3218 = vadd.f32 %v2767, %v3217
    %v3219 = vpop.f32.mrf.mxu0
    %3220 = vmatprep.mubr.f32.mxu0 0.0
    %v3221 = vand.u32 %v174, 4294901760
    %3222 = vmatmul.mubr.f32.gmra.mxu0 %v3221
    %v3223 = vpop.f32.mrf.mxu0
    %v3224 = vadd.f32 %v2773, %v3223
    %v3225 = vpop.f32.mrf.mxu0
    %3226 = vmatprep.mubr.f32.mxu0 0.0
    %v3227 = vand.u32 %v177, 4294901760
    %3228 = vmatmul.mubr.f32.gmra.mxu0 %v3227
    %v3229 = vpop.f32.mrf.mxu0
    %v3230 = vadd.f32 %v2779, %v3229
    %v3231 = vpop.f32.mrf.mxu0
    %3232 = vmatprep.mubr.f32.mxu0 0.0
    %v3233 = vand.u32 %v180, 4294901760
    %3234 = vmatmul.mubr.f32.gmra.mxu0 %v3233
    %v3235 = vpop.f32.mrf.mxu0
    %v3236 = vadd.f32 %v2785, %v3235
    %v3237 = vpop.f32.mrf.mxu0
    %3238 = vmatprep.mubr.f32.mxu0 0.0
    %v3239 = vand.u32 %v183, 4294901760
    %3240 = vmatmul.mubr.f32.gmra.mxu0 %v3239
    %v3241 = vpop.f32.mrf.mxu0
    %v3242 = vadd.f32 %v2791, %v3241
    %v3243 = vpop.f32.mrf.mxu0
    %3244 = vmatprep.mubr.f32.mxu0 0.0
    %v3245 = vand.u32 %v186, 4294901760
    %3246 = vmatmul.mubr.f32.gmra.mxu0 %v3245
    %v3247 = vpop.f32.mrf.mxu0
    %v3248 = vadd.f32 %v2797, %v3247
    %v3249 = vpop.f32.mrf.mxu0
    %3250 = vmatprep.mubr.f32.mxu0 0.0
    %v3251 = vand.u32 %v189, 4294901760
    %3252 = vmatmul.mubr.f32.gmra.mxu0 %v3251
    %v3253 = vpop.f32.mrf.mxu0
    %v3254 = vadd.f32 %v2803, %v3253
    %v3255 = vpop.f32.mrf.mxu0
    %3256 = vmatprep.mubr.f32.mxu0 0.0
    %v3257 = vand.u32 %v192, 4294901760
    %3258 = vmatmul.mubr.f32.gmra.mxu0 %v3257
    %v3259 = vpop.f32.mrf.mxu0
    %v3260 = vadd.f32 %v2809, %v3259
    %v3261 = vpop.f32.mrf.mxu0
    %3262 = vmatprep.mubr.f32.mxu0 0.0
    %v3263 = vand.u32 %v195, 4294901760
    %3264 = vmatmul.mubr.f32.gmra.mxu0 %v3263
    %v3265 = vpop.f32.mrf.mxu0
    %v3266 = vadd.f32 %v2815, %v3265
    %v3267 = vpop.f32.mrf.mxu0
    %3268 = vmatprep.mubr.f32.mxu0 0.0
    %v3269 = vand.u32 %v198, 4294901760
    %3270 = vmatmul.mubr.f32.gmra.mxu0 %v3269
    %v3271 = vpop.f32.mrf.mxu0
    %v3272 = vadd.f32 %v2821, %v3271
    %v3273 = vpop.f32.mrf.mxu0
    %3274 = vmatprep.mubr.f32.mxu0 0.0
    %v3275 = vand.u32 %v201, 4294901760
    %3276 = vmatmul.mubr.f32.gmra.mxu0 %v3275
    %v3277 = vpop.f32.mrf.mxu0
    %v3278 = vadd.f32 %v2827, %v3277
    %v3279 = vpop.f32.mrf.mxu0
    %3280 = vmatprep.mubr.f32.mxu0 0.0
    %v3281 = vand.u32 %v204, 4294901760
    %3282 = vmatmul.mubr.f32.gmra.mxu0 %v3281
    %v3283 = vpop.f32.mrf.mxu0
    %v3284 = vadd.f32 %v2833, %v3283
    %v3285 = vpop.f32.mrf.mxu0
    %3286 = vmatprep.mubr.f32.mxu0 0.0
    %v3287 = vand.u32 %v207, 4294901760
    %3288 = vmatmul.mubr.f32.gmra.mxu0 %v3287
    %v3289 = vpop.f32.mrf.mxu0
    %v3290 = vadd.f32 %v2839, %v3289
    %v3291 = vpop.f32.mrf.mxu0
    %3292 = vmatprep.mubr.f32.mxu0 0.0
    %v3293 = vand.u32 %v210, 4294901760
    %3294 = vmatmul.mubr.f32.gmra.mxu0 %v3293
    %v3295 = vpop.f32.mrf.mxu0
    %v3296 = vadd.f32 %v2845, %v3295
    %v3297 = vpop.f32.mrf.mxu0
    %3298 = vmatprep.mubr.f32.mxu0 0.0
    %v3299 = vand.u32 %v213, 4294901760
    %3300 = vmatmul.mubr.f32.gmra.mxu0 %v3299
    %v3301 = vpop.f32.mrf.mxu0
    %v3302 = vadd.f32 %v2851, %v3301
    %v3303 = vpop.f32.mrf.mxu0
    %3304 = vmatprep.mubr.f32.mxu0 0.0
    %v3305 = vand.u32 %v216, 4294901760
    %3306 = vmatmul.mubr.f32.gmra.mxu0 %v3305
    %v3307 = vpop.f32.mrf.mxu0
    %v3308 = vadd.f32 %v2857, %v3307
    %v3309 = vpop.f32.mrf.mxu0
    %3310 = vmatprep.mubr.f32.mxu0 0.0
    %v3311 = vand.u32 %v219, 4294901760
    %3312 = vmatmul.mubr.f32.gmra.mxu0 %v3311
    %v3313 = vpop.f32.mrf.mxu0
    %v3314 = vadd.f32 %v2863, %v3313
    %v3315 = vpop.f32.mrf.mxu0
    %3316 = vmatprep.mubr.f32.mxu0 0.0
    %v3317 = vand.u32 %v222, 4294901760
    %3318 = vmatmul.mubr.f32.gmra.mxu0 %v3317
    %v3319 = vpop.f32.mrf.mxu0
    %v3320 = vadd.f32 %v2869, %v3319
    %v3321 = vpop.f32.mrf.mxu0
    %3322 = vmatprep.mubr.f32.mxu0 0.0
    %v3323 = vand.u32 %v225, 4294901760
    %3324 = vmatmul.mubr.f32.gmra.mxu0 %v3323
    %v3325 = vpop.f32.mrf.mxu0
    %v3326 = vadd.f32 %v2875, %v3325
    %v3327 = vpop.f32.mrf.mxu0
    %3328 = vmatprep.mubr.f32.mxu0 0.0
    %v3329 = vand.u32 %v228, 4294901760
    %3330 = vmatmul.mubr.f32.gmra.mxu0 %v3329
    %v3331 = vpop.f32.mrf.mxu0
    %v3332 = vadd.f32 %v2881, %v3331
    %v3333 = vpop.f32.mrf.mxu0
    %3334 = vmatprep.mubr.f32.mxu0 0.0
    %v3335 = vand.u32 %v231, 4294901760
    %3336 = vmatmul.mubr.f32.gmra.mxu0 %v3335
    %v3337 = vpop.f32.mrf.mxu0
    %v3338 = vadd.f32 %v2887, %v3337
    %v3339 = vpop.f32.mrf.mxu0
    %3340 = vmatprep.mubr.f32.mxu0 0.0
    %v3341 = vand.u32 %v234, 4294901760
    %3342 = vmatmul.mubr.f32.gmra.mxu0 %v3341
    %v3343 = vpop.f32.mrf.mxu0
    %v3344 = vadd.f32 %v2893, %v3343
    %v3345 = vpop.f32.mrf.mxu0
    %3346 = vmatprep.mubr.f32.mxu0 0.0
    %v3347 = vand.u32 %v237, 4294901760
    %3348 = vmatmul.mubr.f32.gmra.mxu0 %v3347
    %v3349 = vpop.f32.mrf.mxu0
    %v3350 = vadd.f32 %v2899, %v3349
    %v3351 = vpop.f32.mrf.mxu0
    %3352 = vmatprep.mubr.f32.mxu0 0.0
    %v3353 = vand.u32 %v240, 4294901760
    %3354 = vmatmul.mubr.f32.gmra.mxu0 %v3353
    %v3355 = vpop.f32.mrf.mxu0
    %v3356 = vadd.f32 %v2905, %v3355
    %v3357 = vpop.f32.mrf.mxu0
    %3358 = vmatprep.mubr.f32.mxu0 0.0
    %v3359 = vand.u32 %v243, 4294901760
    %3360 = vmatmul.mubr.f32.gmra.mxu0 %v3359
    %v3361 = vpop.f32.mrf.mxu0
    %v3362 = vadd.f32 %v2911, %v3361
    %v3363 = vpop.f32.mrf.mxu0
    %3364 = vmatprep.mubr.f32.mxu0 0.0
    %v3365 = vand.u32 %v246, 4294901760
    %3366 = vmatmul.mubr.f32.gmra.mxu0 %v3365
    %v3367 = vpop.f32.mrf.mxu0
    %v3368 = vadd.f32 %v2917, %v3367
    %v3369 = vpop.f32.mrf.mxu0
    %3370 = vmatprep.mubr.f32.mxu0 0.0
    %v3371 = vand.u32 %v249, 4294901760
    %3372 = vmatmul.mubr.f32.gmra.mxu0 %v3371
    %v3373 = vpop.f32.mrf.mxu0
    %v3374 = vadd.f32 %v2923, %v3373
    %v3375 = vpop.f32.mrf.mxu0
    %3376 = vmatprep.mubr.f32.mxu0 0.0
    %v3377 = vand.u32 %v252, 4294901760
    %3378 = vmatmul.mubr.f32.gmra.mxu0 %v3377
    %v3379 = vpop.f32.mrf.mxu0
    %v3380 = vadd.f32 %v2929, %v3379
    %v3381 = vpop.f32.mrf.mxu0
    %3382 = vmatprep.mubr.f32.mxu0 0.0
    %v3383 = vand.u32 %v255, 4294901760
    %3384 = vmatmul.mubr.f32.gmra.mxu0 %v3383
    %v3385 = vpop.f32.mrf.mxu0
    %v3386 = vadd.f32 %v2935, %v3385
    %v3387 = vpop.f32.mrf.mxu0
    %3388 = vmatprep.mubr.f32.mxu0 0.0
    %v3389 = vand.u32 %v258, 4294901760
    %3390 = vmatmul.mubr.f32.gmra.mxu0 %v3389
    %v3391 = vpop.f32.mrf.mxu0
    %v3392 = vadd.f32 %v2941, %v3391
    %v3393 = vpop.f32.mrf.mxu0
    %3394 = vmatprep.mubr.f32.mxu0 0.0
    %v3395 = vand.u32 %v261, 4294901760
    %3396 = vmatmul.mubr.f32.gmra.mxu0 %v3395
    %v3397 = vpop.f32.mrf.mxu0
    %v3398 = vadd.f32 %v2947, %v3397
    %v3399 = vpop.f32.mrf.mxu0
    %3400 = vmatprep.mubr.f32.mxu0 0.0
    %v3401 = vand.u32 %v264, 4294901760
    %3402 = vmatmul.mubr.f32.gmra.mxu0 %v3401
    %v3403 = vpop.f32.mrf.mxu0
    %v3404 = vadd.f32 %v2953, %v3403
    %v3405 = vpop.f32.mrf.mxu0
    %3406 = vmatprep.mubr.f32.mxu0 0.0
    %v3407 = vand.u32 %v267, 4294901760
    %3408 = vmatmul.mubr.f32.gmra.mxu0 %v3407
    %v3409 = vpop.f32.mrf.mxu0
    %v3410 = vadd.f32 %v2959, %v3409
    %v3411 = vpop.f32.mrf.mxu0
    %3412 = vmatprep.mubr.f32.mxu0 0.0
    %v3413 = vand.u32 %v270, 4294901760
    %3414 = vmatmul.mubr.f32.gmra.mxu0 %v3413
    %v3415 = vpop.f32.mrf.mxu0
    %v3416 = vadd.f32 %v2965, %v3415
    %v3417 = vpop.f32.mrf.mxu0
    %3418 = vmatprep.mubr.f32.mxu0 0.0
    %v3419 = vand.u32 %v273, 4294901760
    %3420 = vmatmul.mubr.f32.gmra.mxu0 %v3419
    %v3421 = vpop.f32.mrf.mxu0
    %v3422 = vadd.f32 %v2971, %v3421
    %v3423 = vpop.f32.mrf.mxu0
    %3424 = vmatprep.mubr.f32.mxu0 0.0
    %v3425 = vand.u32 %v276, 4294901760
    %3426 = vmatmul.mubr.f32.gmra.mxu0 %v3425
    %v3427 = vpop.f32.mrf.mxu0
    %v3428 = vadd.f32 %v2977, %v3427
    %v3429 = vpop.f32.mrf.mxu0
    %3430 = vmatprep.mubr.f32.mxu0 0.0
    %v3431 = vand.u32 %v279, 4294901760
    %3432 = vmatmul.mubr.f32.gmra.mxu0 %v3431
    %v3433 = vpop.f32.mrf.mxu0
    %v3434 = vadd.f32 %v2983, %v3433
    %v3435 = vpop.f32.mrf.mxu0
    %3436 = vmatprep.mubr.f32.mxu0 0.0
    %v3437 = vand.u32 %v282, 4294901760
    %3438 = vmatmul.mubr.f32.gmra.mxu0 %v3437
    %v3439 = vpop.f32.mrf.mxu0
    %v3440 = vadd.f32 %v2989, %v3439
    %v3441 = vpop.f32.mrf.mxu0
    %3442 = vmatprep.mubr.f32.mxu0 0.0
    %v3443 = vand.u32 %v285, 4294901760
    %3444 = vmatmul.mubr.f32.gmra.mxu0 %v3443
    %v3445 = vpop.f32.mrf.mxu0
    %v3446 = vadd.f32 %v2995, %v3445
    %v3447 = vpop.f32.mrf.mxu0
    %3448 = vmatprep.mubr.f32.mxu0 0.0
    %v3449 = vand.u32 %v288, 4294901760
    %3450 = vmatmul.mubr.f32.gmra.mxu0 %v3449
    %v3451 = vpop.f32.mrf.mxu0
    %v3452 = vadd.f32 %v3001, %v3451
    %v3453 = vpop.f32.mrf.mxu0
    %3454 = vmatprep.mubr.f32.mxu0 0.0
    %v3455 = vand.u32 %v291, 4294901760
    %3456 = vmatmul.mubr.f32.gmra.mxu0 %v3455
    %v3457 = vpop.f32.mrf.mxu0
    %v3458 = vadd.f32 %v3007, %v3457
    %v3459 = vpop.f32.mrf.mxu0
    %3460 = vdwg.mxu0
    %v3461 = vmax.f32 %v3080, 0.0
    %v3462 = vmax.f32 %v3086, 0.0
    %v3463 = vmax.f32 %v3092, 0.0
    %v3464 = vmax.f32 %v3098, 0.0
    %v3465 = vmax.f32 %v3104, 0.0
    %v3466 = vmax.f32 %v3110, 0.0
    %v3467 = vmax.f32 %v3116, 0.0
    %v3468 = vmax.f32 %v3122, 0.0
    %v3469 = vmax.f32 %v3128, 0.0
    %v3470 = vmax.f32 %v3134, 0.0
    %v3471 = vmax.f32 %v3140, 0.0
    %v3472 = vmax.f32 %v3146, 0.0
    %v3473 = vmax.f32 %v3152, 0.0
    %v3474 = vmax.f32 %v3158, 0.0
    %v3475 = vmax.f32 %v3164, 0.0
    %v3476 = vmax.f32 %v3170, 0.0
    %v3477 = vmax.f32 %v3176, 0.0
    %v3478 = vmax.f32 %v3182, 0.0
    %v3479 = vmax.f32 %v3188, 0.0
    %v3480 = vmax.f32 %v3194, 0.0
    %v3481 = vmax.f32 %v3200, 0.0
    %v3482 = vmax.f32 %v3206, 0.0
    %v3483 = vmax.f32 %v3212, 0.0
    %v3484 = vmax.f32 %v3218, 0.0
    %v3485 = vmax.f32 %v3224, 0.0
    %v3486 = vmax.f32 %v3230, 0.0
    %v3487 = vmax.f32 %v3236, 0.0
    %v3488 = vmax.f32 %v3242, 0.0
    %v3489 = vmax.f32 %v3248, 0.0
    %v3490 = vmax.f32 %v3254, 0.0
    %v3491 = vmax.f32 %v3260, 0.0
    %v3492 = vmax.f32 %v3266, 0.0
    %v3493 = vmax.f32 %v3272, 0.0
    %v3494 = vmax.f32 %v3278, 0.0
    %v3495 = vmax.f32 %v3284, 0.0
    %v3496 = vmax.f32 %v3290, 0.0
    %v3497 = vmax.f32 %v3296, 0.0
    %v3498 = vmax.f32 %v3302, 0.0
    %v3499 = vmax.f32 %v3308, 0.0
    %v3500 = vmax.f32 %v3314, 0.0
    %v3501 = vmax.f32 %v3320, 0.0
    %v3502 = vmax.f32 %v3326, 0.0
    %v3503 = vmax.f32 %v3332, 0.0
    %v3504 = vmax.f32 %v3338, 0.0
    %v3505 = vmax.f32 %v3344, 0.0
    %v3506 = vmax.f32 %v3350, 0.0
    %v3507 = vmax.f32 %v3356, 0.0
    %v3508 = vmax.f32 %v3362, 0.0
    %v3509 = vmax.f32 %v3368, 0.0
    %v3510 = vmax.f32 %v3374, 0.0
    %v3511 = vmax.f32 %v3380, 0.0
    %v3512 = vmax.f32 %v3386, 0.0
    %v3513 = vmax.f32 %v3392, 0.0
    %v3514 = vmax.f32 %v3398, 0.0
    %v3515 = vmax.f32 %v3404, 0.0
    %v3516 = vmax.f32 %v3410, 0.0
    %v3517 = vmax.f32 %v3416, 0.0
    %v3518 = vmax.f32 %v3422, 0.0
    %v3519 = vmax.f32 %v3428, 0.0
    %v3520 = vmax.f32 %v3434, 0.0
    %v3521 = vmax.f32 %v3440, 0.0
    %v3522 = vmax.f32 %v3446, 0.0
    %v3523 = vmax.f32 %v3452, 0.0
    %v3524 = vmax.f32 %v3458, 0.0
    %v3525 = vld [vmem:[%s3] sm:$0xff]
    %v3526 = vld [vmem:[%s3 + $0x8] sm:$0xff]
    %v3527 = vld [vmem:[%s3 + $0x10] sm:$0xff]
    %v3528 = vld [vmem:[%s3 + $0x18] sm:$0xff]
    %v3529 = vld [vmem:[%s3 + $0x20] sm:$0xff]
    %v3530 = vld [vmem:[%s3 + $0x28] sm:$0xff]
    %v3531 = vld [vmem:[%s3 + $0x30] sm:$0xff]
    %v3532 = vld [vmem:[%s3 + $0x38] sm:$0xff]
    %v3533 = vld [vmem:[%s3 + $0x40] sm:$0xff]
    %v3534 = vld [vmem:[%s3 + $0x48] sm:$0xff]
    %v3535 = vld [vmem:[%s3 + $0x50] sm:$0xff]
    %v3536 = vld [vmem:[%s3 + $0x58] sm:$0xff]
    %v3537 = vld [vmem:[%s3 + $0x60] sm:$0xff]
    %v3538 = vld [vmem:[%s3 + $0x68] sm:$0xff]
    %v3539 = vld [vmem:[%s3 + $0x70] sm:$0xff]
    %v3540 = vld [vmem:[%s3 + $0x78] sm:$0xff]
    %v3541 = vld [vmem:[%s4] sm:$0x1]
    %v3543 = vlaneseq
    %v3544 = vshrl.u32 %v3543, 7
    %v3545 = vsub.s32 0, %v3544
    %v3546 = vrot.slane %v3541, %v3545
    %3548 = vmatprep.subr.mxu0 0.0
    %v3549 = vand.u32 %v3540, 4294901760
    %3550 = vmatpush1.msra.mxu0 %v3549
    %3551 = vmatprep.subr.mxu0 0.0
    %v3552 = vand.u32 %v3539, 4294901760
    %3553 = vmatpush1.msra.mxu0 %v3552
    %3554 = vmatprep.subr.mxu0 0.0
    %v3555 = vand.u32 %v3538, 4294901760
    %3556 = vmatpush1.msra.mxu0 %v3555
    %3557 = vmatprep.subr.mxu0 0.0
    %v3558 = vand.u32 %v3537, 4294901760
    %3559 = vmatpush1.msra.mxu0 %v3558
    %3560 = vmatprep.subr.mxu0 0.0
    %v3561 = vand.u32 %v3536, 4294901760
    %3562 = vmatpush1.msra.mxu0 %v3561
    %3563 = vmatprep.subr.mxu0 0.0
    %v3564 = vand.u32 %v3535, 4294901760
    %3565 = vmatpush1.msra.mxu0 %v3564
    %3566 = vmatprep.subr.mxu0 0.0
    %v3567 = vand.u32 %v3534, 4294901760
    %3568 = vmatpush1.msra.mxu0 %v3567
    %3569 = vmatprep.subr.mxu0 0.0
    %v3570 = vand.u32 %v3533, 4294901760
    %3571 = vmatpush1.msra.mxu0 %v3570
    %3572 = vmatprep.subr.mxu0 0.0
    %v3573 = vand.u32 %v3532, 4294901760
    %3574 = vmatpush1.msra.mxu0 %v3573
    %3575 = vmatprep.subr.mxu0 0.0
    %v3576 = vand.u32 %v3531, 4294901760
    %3577 = vmatpush1.msra.mxu0 %v3576
    %3578 = vmatprep.subr.mxu0 0.0
    %v3579 = vand.u32 %v3530, 4294901760
    %3580 = vmatpush1.msra.mxu0 %v3579
    %3581 = vmatprep.subr.mxu0 0.0
    %v3582 = vand.u32 %v3529, 4294901760
    %3583 = vmatpush1.msra.mxu0 %v3582
    %3584 = vmatprep.subr.mxu0 0.0
    %v3585 = vand.u32 %v3528, 4294901760
    %3586 = vmatpush1.msra.mxu0 %v3585
    %3587 = vmatprep.subr.mxu0 0.0
    %v3588 = vand.u32 %v3527, 4294901760
    %3589 = vmatpush1.msra.mxu0 %v3588
    %3590 = vmatprep.subr.mxu0 0.0
    %v3591 = vand.u32 %v3526, 4294901760
    %3592 = vmatpush1.msra.mxu0 %v3591
    %3593 = vmatprep.subr.mxu0 0.0
    %v3594 = vand.u32 %v3525, 4294901760
    %3595 = vmatpush1.msra.mxu0 %v3594
    %3596 = vmatprep.subr.mxu0 0.0
    %3597 = vmatpush2.msra.mxu0 0.0
    %3598 = vmatprep.subr.mxu0 0.0
    %3599 = vmatpush2.msra.mxu0 0.0
    %3600 = vmatprep.subr.mxu0 0.0
    %3601 = vmatpush2.msra.mxu0 0.0
    %3602 = vmatprep.subr.mxu0 0.0
    %3603 = vmatpush2.msra.mxu0 0.0
    %3604 = vmatprep.subr.mxu0 0.0
    %3605 = vmatpush2.msra.mxu0 0.0
    %3606 = vmatprep.subr.mxu0 0.0
    %3607 = vmatpush2.msra.mxu0 0.0
    %3608 = vmatprep.subr.mxu0 0.0
    %3609 = vmatpush2.msra.mxu0 0.0
    %3610 = vmatprep.subr.mxu0 0.0
    %3611 = vmatpush2.msra.mxu0 0.0
    %3612 = vmatprep.subr.mxu0 0.0
    %3613 = vmatpush2.msra.mxu0 0.0
    %3614 = vmatprep.subr.mxu0 0.0
    %3615 = vmatpush2.msra.mxu0 0.0
    %3616 = vmatprep.subr.mxu0 0.0
    %3617 = vmatpush2.msra.mxu0 0.0
    %3618 = vmatprep.subr.mxu0 0.0
    %3619 = vmatpush2.msra.mxu0 0.0
    %3620 = vmatprep.subr.mxu0 0.0
    %3621 = vmatpush2.msra.mxu0 0.0
    %3622 = vmatprep.subr.mxu0 0.0
    %3623 = vmatpush2.msra.mxu0 0.0
    %3624 = vmatprep.subr.mxu0 0.0
    %3625 = vmatpush2.msra.mxu0 0.0
    %3626 = vmatprep.subr.mxu0 0.0
    %3627 = vmatpush2.msra.mxu0 0.0
    %3628 = vmatprep.mubr.f32.mxu0 0.0
    %v3629 = vand.u32 %v3461, 4294901760
    %v3630 = vsub.f32 %v3461, %v3629
    %v3631 = vand.u32 %v3630, 4294901760
    %v3632 = vsub.f32 %v3630, %v3631
    %v3633 = vand.u32 %v3632, 4294901760
    %3634 = vmatmul.mubr.f32.gmra.mxu0 %v3633
    %v3635 = vpop.f32.mrf.mxu0
    %v3636 = vadd.f32 %v3546, %v3635
    %v3637 = vpop.f32.mrf.mxu0
    %3638 = vmatprep.mubr.f32.mxu0 0.0
    %v3639 = vand.u32 %v3462, 4294901760
    %v3640 = vsub.f32 %v3462, %v3639
    %v3641 = vand.u32 %v3640, 4294901760
    %v3642 = vsub.f32 %v3640, %v3641
    %v3643 = vand.u32 %v3642, 4294901760
    %3644 = vmatmul.mubr.f32.gmra.mxu0 %v3643
    %v3645 = vpop.f32.mrf.mxu0
    %v3646 = vadd.f32 %v3546, %v3645
    %v3647 = vpop.f32.mrf.mxu0
    %3648 = vmatprep.mubr.f32.mxu0 0.0
    %v3649 = vand.u32 %v3463, 4294901760
    %v3650 = vsub.f32 %v3463, %v3649
    %v3651 = vand.u32 %v3650, 4294901760
    %v3652 = vsub.f32 %v3650, %v3651
    %v3653 = vand.u32 %v3652, 4294901760
    %3654 = vmatmul.mubr.f32.gmra.mxu0 %v3653
    %v3655 = vpop.f32.mrf.mxu0
    %v3656 = vadd.f32 %v3546, %v3655
    %v3657 = vpop.f32.mrf.mxu0
    %3658 = vmatprep.mubr.f32.mxu0 0.0
    %v3659 = vand.u32 %v3464, 4294901760
    %v3660 = vsub.f32 %v3464, %v3659
    %v3661 = vand.u32 %v3660, 4294901760
    %v3662 = vsub.f32 %v3660, %v3661
    %v3663 = vand.u32 %v3662, 4294901760
    %3664 = vmatmul.mubr.f32.gmra.mxu0 %v3663
    %v3665 = vpop.f32.mrf.mxu0
    %v3666 = vadd.f32 %v3546, %v3665
    %v3667 = vpop.f32.mrf.mxu0
    %3668 = vmatprep.mubr.f32.mxu0 0.0
    %v3669 = vand.u32 %v3465, 4294901760
    %v3670 = vsub.f32 %v3465, %v3669
    %v3671 = vand.u32 %v3670, 4294901760
    %v3672 = vsub.f32 %v3670, %v3671
    %v3673 = vand.u32 %v3672, 4294901760
    %3674 = vmatmul.mubr.f32.gmra.mxu0 %v3673
    %v3675 = vpop.f32.mrf.mxu0
    %v3676 = vadd.f32 %v3546, %v3675
    %v3677 = vpop.f32.mrf.mxu0
    %3678 = vmatprep.mubr.f32.mxu0 0.0
    %v3679 = vand.u32 %v3466, 4294901760
    %v3680 = vsub.f32 %v3466, %v3679
    %v3681 = vand.u32 %v3680, 4294901760
    %v3682 = vsub.f32 %v3680, %v3681
    %v3683 = vand.u32 %v3682, 4294901760
    %3684 = vmatmul.mubr.f32.gmra.mxu0 %v3683
    %v3685 = vpop.f32.mrf.mxu0
    %v3686 = vadd.f32 %v3546, %v3685
    %v3687 = vpop.f32.mrf.mxu0
    %3688 = vmatprep.mubr.f32.mxu0 0.0
    %v3689 = vand.u32 %v3467, 4294901760
    %v3690 = vsub.f32 %v3467, %v3689
    %v3691 = vand.u32 %v3690, 4294901760
    %v3692 = vsub.f32 %v3690, %v3691
    %v3693 = vand.u32 %v3692, 4294901760
    %3694 = vmatmul.mubr.f32.gmra.mxu0 %v3693
    %v3695 = vpop.f32.mrf.mxu0
    %v3696 = vadd.f32 %v3546, %v3695
    %v3697 = vpop.f32.mrf.mxu0
    %3698 = vmatprep.mubr.f32.mxu0 0.0
    %v3699 = vand.u32 %v3468, 4294901760
    %v3700 = vsub.f32 %v3468, %v3699
    %v3701 = vand.u32 %v3700, 4294901760
    %v3702 = vsub.f32 %v3700, %v3701
    %v3703 = vand.u32 %v3702, 4294901760
    %3704 = vmatmul.mubr.f32.gmra.mxu0 %v3703
    %v3705 = vpop.f32.mrf.mxu0
    %v3706 = vadd.f32 %v3546, %v3705
    %v3707 = vpop.f32.mrf.mxu0
    %3708 = vmatprep.mubr.f32.mxu0 0.0
    %v3709 = vand.u32 %v3469, 4294901760
    %v3710 = vsub.f32 %v3469, %v3709
    %v3711 = vand.u32 %v3710, 4294901760
    %v3712 = vsub.f32 %v3710, %v3711
    %v3713 = vand.u32 %v3712, 4294901760
    %3714 = vmatmul.mubr.f32.gmra.mxu0 %v3713
    %v3715 = vpop.f32.mrf.mxu0
    %v3716 = vadd.f32 %v3546, %v3715
    %v3717 = vpop.f32.mrf.mxu0
    %3718 = vmatprep.mubr.f32.mxu0 0.0
    %v3719 = vand.u32 %v3470, 4294901760
    %v3720 = vsub.f32 %v3470, %v3719
    %v3721 = vand.u32 %v3720, 4294901760
    %v3722 = vsub.f32 %v3720, %v3721
    %v3723 = vand.u32 %v3722, 4294901760
    %3724 = vmatmul.mubr.f32.gmra.mxu0 %v3723
    %v3725 = vpop.f32.mrf.mxu0
    %v3726 = vadd.f32 %v3546, %v3725
    %v3727 = vpop.f32.mrf.mxu0
    %3728 = vmatprep.mubr.f32.mxu0 0.0
    %v3729 = vand.u32 %v3471, 4294901760
    %v3730 = vsub.f32 %v3471, %v3729
    %v3731 = vand.u32 %v3730, 4294901760
    %v3732 = vsub.f32 %v3730, %v3731
    %v3733 = vand.u32 %v3732, 4294901760
    %3734 = vmatmul.mubr.f32.gmra.mxu0 %v3733
    %v3735 = vpop.f32.mrf.mxu0
    %v3736 = vadd.f32 %v3546, %v3735
    %v3737 = vpop.f32.mrf.mxu0
    %3738 = vmatprep.mubr.f32.mxu0 0.0
    %v3739 = vand.u32 %v3472, 4294901760
    %v3740 = vsub.f32 %v3472, %v3739
    %v3741 = vand.u32 %v3740, 4294901760
    %v3742 = vsub.f32 %v3740, %v3741
    %v3743 = vand.u32 %v3742, 4294901760
    %3744 = vmatmul.mubr.f32.gmra.mxu0 %v3743
    %v3745 = vpop.f32.mrf.mxu0
    %v3746 = vadd.f32 %v3546, %v3745
    %v3747 = vpop.f32.mrf.mxu0
    %3748 = vmatprep.mubr.f32.mxu0 0.0
    %v3749 = vand.u32 %v3473, 4294901760
    %v3750 = vsub.f32 %v3473, %v3749
    %v3751 = vand.u32 %v3750, 4294901760
    %v3752 = vsub.f32 %v3750, %v3751
    %v3753 = vand.u32 %v3752, 4294901760
    %3754 = vmatmul.mubr.f32.gmra.mxu0 %v3753
    %v3755 = vpop.f32.mrf.mxu0
    %v3756 = vadd.f32 %v3546, %v3755
    %v3757 = vpop.f32.mrf.mxu0
    %3758 = vmatprep.mubr.f32.mxu0 0.0
    %v3759 = vand.u32 %v3474, 4294901760
    %v3760 = vsub.f32 %v3474, %v3759
    %v3761 = vand.u32 %v3760, 4294901760
    %v3762 = vsub.f32 %v3760, %v3761
    %v3763 = vand.u32 %v3762, 4294901760
    %3764 = vmatmul.mubr.f32.gmra.mxu0 %v3763
    %v3765 = vpop.f32.mrf.mxu0
    %v3766 = vadd.f32 %v3546, %v3765
    %v3767 = vpop.f32.mrf.mxu0
    %3768 = vmatprep.mubr.f32.mxu0 0.0
    %v3769 = vand.u32 %v3475, 4294901760
    %v3770 = vsub.f32 %v3475, %v3769
    %v3771 = vand.u32 %v3770, 4294901760
    %v3772 = vsub.f32 %v3770, %v3771
    %v3773 = vand.u32 %v3772, 4294901760
    %3774 = vmatmul.mubr.f32.gmra.mxu0 %v3773
    %v3775 = vpop.f32.mrf.mxu0
    %v3776 = vadd.f32 %v3546, %v3775
    %v3777 = vpop.f32.mrf.mxu0
    %3778 = vmatprep.mubr.f32.mxu0 0.0
    %v3779 = vand.u32 %v3476, 4294901760
    %v3780 = vsub.f32 %v3476, %v3779
    %v3781 = vand.u32 %v3780, 4294901760
    %v3782 = vsub.f32 %v3780, %v3781
    %v3783 = vand.u32 %v3782, 4294901760
    %3784 = vmatmul.mubr.f32.gmra.mxu0 %v3783
    %v3785 = vpop.f32.mrf.mxu0
    %v3786 = vadd.f32 %v3546, %v3785
    %v3787 = vpop.f32.mrf.mxu0
    %3788 = vmatprep.mubr.f32.mxu0 0.0
    %v3789 = vand.u32 %v3477, 4294901760
    %v3790 = vsub.f32 %v3477, %v3789
    %v3791 = vand.u32 %v3790, 4294901760
    %v3792 = vsub.f32 %v3790, %v3791
    %v3793 = vand.u32 %v3792, 4294901760
    %3794 = vmatmul.mubr.f32.gmra.mxu0 %v3793
    %v3795 = vpop.f32.mrf.mxu0
    %v3796 = vadd.f32 %v3546, %v3795
    %v3797 = vpop.f32.mrf.mxu0
    %3798 = vmatprep.mubr.f32.mxu0 0.0
    %v3799 = vand.u32 %v3478, 4294901760
    %v3800 = vsub.f32 %v3478, %v3799
    %v3801 = vand.u32 %v3800, 4294901760
    %v3802 = vsub.f32 %v3800, %v3801
    %v3803 = vand.u32 %v3802, 4294901760
    %3804 = vmatmul.mubr.f32.gmra.mxu0 %v3803
    %v3805 = vpop.f32.mrf.mxu0
    %v3806 = vadd.f32 %v3546, %v3805
    %v3807 = vpop.f32.mrf.mxu0
    %3808 = vmatprep.mubr.f32.mxu0 0.0
    %v3809 = vand.u32 %v3479, 4294901760
    %v3810 = vsub.f32 %v3479, %v3809
    %v3811 = vand.u32 %v3810, 4294901760
    %v3812 = vsub.f32 %v3810, %v3811
    %v3813 = vand.u32 %v3812, 4294901760
    %3814 = vmatmul.mubr.f32.gmra.mxu0 %v3813
    %v3815 = vpop.f32.mrf.mxu0
    %v3816 = vadd.f32 %v3546, %v3815
    %v3817 = vpop.f32.mrf.mxu0
    %3818 = vmatprep.mubr.f32.mxu0 0.0
    %v3819 = vand.u32 %v3480, 4294901760
    %v3820 = vsub.f32 %v3480, %v3819
    %v3821 = vand.u32 %v3820, 4294901760
    %v3822 = vsub.f32 %v3820, %v3821
    %v3823 = vand.u32 %v3822, 4294901760
    %3824 = vmatmul.mubr.f32.gmra.mxu0 %v3823
    %v3825 = vpop.f32.mrf.mxu0
    %v3826 = vadd.f32 %v3546, %v3825
    %v3827 = vpop.f32.mrf.mxu0
    %3828 = vmatprep.mubr.f32.mxu0 0.0
    %v3829 = vand.u32 %v3481, 4294901760
    %v3830 = vsub.f32 %v3481, %v3829
    %v3831 = vand.u32 %v3830, 4294901760
    %v3832 = vsub.f32 %v3830, %v3831
    %v3833 = vand.u32 %v3832, 4294901760
    %3834 = vmatmul.mubr.f32.gmra.mxu0 %v3833
    %v3835 = vpop.f32.mrf.mxu0
    %v3836 = vadd.f32 %v3546, %v3835
    %v3837 = vpop.f32.mrf.mxu0
    %3838 = vmatprep.mubr.f32.mxu0 0.0
    %v3839 = vand.u32 %v3482, 4294901760
    %v3840 = vsub.f32 %v3482, %v3839
    %v3841 = vand.u32 %v3840, 4294901760
    %v3842 = vsub.f32 %v3840, %v3841
    %v3843 = vand.u32 %v3842, 4294901760
    %3844 = vmatmul.mubr.f32.gmra.mxu0 %v3843
    %v3845 = vpop.f32.mrf.mxu0
    %v3846 = vadd.f32 %v3546, %v3845
    %v3847 = vpop.f32.mrf.mxu0
    %3848 = vmatprep.mubr.f32.mxu0 0.0
    %v3849 = vand.u32 %v3483, 4294901760
    %v3850 = vsub.f32 %v3483, %v3849
    %v3851 = vand.u32 %v3850, 4294901760
    %v3852 = vsub.f32 %v3850, %v3851
    %v3853 = vand.u32 %v3852, 4294901760
    %3854 = vmatmul.mubr.f32.gmra.mxu0 %v3853
    %v3855 = vpop.f32.mrf.mxu0
    %v3856 = vadd.f32 %v3546, %v3855
    %v3857 = vpop.f32.mrf.mxu0
    %3858 = vmatprep.mubr.f32.mxu0 0.0
    %v3859 = vand.u32 %v3484, 4294901760
    %v3860 = vsub.f32 %v3484, %v3859
    %v3861 = vand.u32 %v3860, 4294901760
    %v3862 = vsub.f32 %v3860, %v3861
    %v3863 = vand.u32 %v3862, 4294901760
    %3864 = vmatmul.mubr.f32.gmra.mxu0 %v3863
    %v3865 = vpop.f32.mrf.mxu0
    %v3866 = vadd.f32 %v3546, %v3865
    %v3867 = vpop.f32.mrf.mxu0
    %3868 = vmatprep.mubr.f32.mxu0 0.0
    %v3869 = vand.u32 %v3485, 4294901760
    %v3870 = vsub.f32 %v3485, %v3869
    %v3871 = vand.u32 %v3870, 4294901760
    %v3872 = vsub.f32 %v3870, %v3871
    %v3873 = vand.u32 %v3872, 4294901760
    %3874 = vmatmul.mubr.f32.gmra.mxu0 %v3873
    %v3875 = vpop.f32.mrf.mxu0
    %v3876 = vadd.f32 %v3546, %v3875
    %v3877 = vpop.f32.mrf.mxu0
    %3878 = vmatprep.mubr.f32.mxu0 0.0
    %v3879 = vand.u32 %v3486, 4294901760
    %v3880 = vsub.f32 %v3486, %v3879
    %v3881 = vand.u32 %v3880, 4294901760
    %v3882 = vsub.f32 %v3880, %v3881
    %v3883 = vand.u32 %v3882, 4294901760
    %3884 = vmatmul.mubr.f32.gmra.mxu0 %v3883
    %v3885 = vpop.f32.mrf.mxu0
    %v3886 = vadd.f32 %v3546, %v3885
    %v3887 = vpop.f32.mrf.mxu0
    %3888 = vmatprep.mubr.f32.mxu0 0.0
    %v3889 = vand.u32 %v3487, 4294901760
    %v3890 = vsub.f32 %v3487, %v3889
    %v3891 = vand.u32 %v3890, 4294901760
    %v3892 = vsub.f32 %v3890, %v3891
    %v3893 = vand.u32 %v3892, 4294901760
    %3894 = vmatmul.mubr.f32.gmra.mxu0 %v3893
    %v3895 = vpop.f32.mrf.mxu0
    %v3896 = vadd.f32 %v3546, %v3895
    %v3897 = vpop.f32.mrf.mxu0
    %3898 = vmatprep.mubr.f32.mxu0 0.0
    %v3899 = vand.u32 %v3488, 4294901760
    %v3900 = vsub.f32 %v3488, %v3899
    %v3901 = vand.u32 %v3900, 4294901760
    %v3902 = vsub.f32 %v3900, %v3901
    %v3903 = vand.u32 %v3902, 4294901760
    %3904 = vmatmul.mubr.f32.gmra.mxu0 %v3903
    %v3905 = vpop.f32.mrf.mxu0
    %v3906 = vadd.f32 %v3546, %v3905
    %v3907 = vpop.f32.mrf.mxu0
    %3908 = vmatprep.mubr.f32.mxu0 0.0
    %v3909 = vand.u32 %v3489, 4294901760
    %v3910 = vsub.f32 %v3489, %v3909
    %v3911 = vand.u32 %v3910, 4294901760
    %v3912 = vsub.f32 %v3910, %v3911
    %v3913 = vand.u32 %v3912, 4294901760
    %3914 = vmatmul.mubr.f32.gmra.mxu0 %v3913
    %v3915 = vpop.f32.mrf.mxu0
    %v3916 = vadd.f32 %v3546, %v3915
    %v3917 = vpop.f32.mrf.mxu0
    %3918 = vmatprep.mubr.f32.mxu0 0.0
    %v3919 = vand.u32 %v3490, 4294901760
    %v3920 = vsub.f32 %v3490, %v3919
    %v3921 = vand.u32 %v3920, 4294901760
    %v3922 = vsub.f32 %v3920, %v3921
    %v3923 = vand.u32 %v3922, 4294901760
    %3924 = vmatmul.mubr.f32.gmra.mxu0 %v3923
    %v3925 = vpop.f32.mrf.mxu0
    %v3926 = vadd.f32 %v3546, %v3925
    %v3927 = vpop.f32.mrf.mxu0
    %3928 = vmatprep.mubr.f32.mxu0 0.0
    %v3929 = vand.u32 %v3491, 4294901760
    %v3930 = vsub.f32 %v3491, %v3929
    %v3931 = vand.u32 %v3930, 4294901760
    %v3932 = vsub.f32 %v3930, %v3931
    %v3933 = vand.u32 %v3932, 4294901760
    %3934 = vmatmul.mubr.f32.gmra.mxu0 %v3933
    %v3935 = vpop.f32.mrf.mxu0
    %v3936 = vadd.f32 %v3546, %v3935
    %v3937 = vpop.f32.mrf.mxu0
    %3938 = vmatprep.mubr.f32.mxu0 0.0
    %v3939 = vand.u32 %v3492, 4294901760
    %v3940 = vsub.f32 %v3492, %v3939
    %v3941 = vand.u32 %v3940, 4294901760
    %v3942 = vsub.f32 %v3940, %v3941
    %v3943 = vand.u32 %v3942, 4294901760
    %3944 = vmatmul.mubr.f32.gmra.mxu0 %v3943
    %v3945 = vpop.f32.mrf.mxu0
    %v3946 = vadd.f32 %v3546, %v3945
    %v3947 = vpop.f32.mrf.mxu0
    %3948 = vmatprep.mubr.f32.mxu0 0.0
    %v3949 = vand.u32 %v3493, 4294901760
    %v3950 = vsub.f32 %v3493, %v3949
    %v3951 = vand.u32 %v3950, 4294901760
    %v3952 = vsub.f32 %v3950, %v3951
    %v3953 = vand.u32 %v3952, 4294901760
    %3954 = vmatmul.mubr.f32.gmra.mxu0 %v3953
    %v3955 = vpop.f32.mrf.mxu0
    %v3956 = vadd.f32 %v3546, %v3955
    %v3957 = vpop.f32.mrf.mxu0
    %3958 = vmatprep.mubr.f32.mxu0 0.0
    %v3959 = vand.u32 %v3494, 4294901760
    %v3960 = vsub.f32 %v3494, %v3959
    %v3961 = vand.u32 %v3960, 4294901760
    %v3962 = vsub.f32 %v3960, %v3961
    %v3963 = vand.u32 %v3962, 4294901760
    %3964 = vmatmul.mubr.f32.gmra.mxu0 %v3963
    %v3965 = vpop.f32.mrf.mxu0
    %v3966 = vadd.f32 %v3546, %v3965
    %v3967 = vpop.f32.mrf.mxu0
    %3968 = vmatprep.mubr.f32.mxu0 0.0
    %v3969 = vand.u32 %v3495, 4294901760
    %v3970 = vsub.f32 %v3495, %v3969
    %v3971 = vand.u32 %v3970, 4294901760
    %v3972 = vsub.f32 %v3970, %v3971
    %v3973 = vand.u32 %v3972, 4294901760
    %3974 = vmatmul.mubr.f32.gmra.mxu0 %v3973
    %v3975 = vpop.f32.mrf.mxu0
    %v3976 = vadd.f32 %v3546, %v3975
    %v3977 = vpop.f32.mrf.mxu0
    %3978 = vmatprep.mubr.f32.mxu0 0.0
    %v3979 = vand.u32 %v3496, 4294901760
    %v3980 = vsub.f32 %v3496, %v3979
    %v3981 = vand.u32 %v3980, 4294901760
    %v3982 = vsub.f32 %v3980, %v3981
    %v3983 = vand.u32 %v3982, 4294901760
    %3984 = vmatmul.mubr.f32.gmra.mxu0 %v3983
    %v3985 = vpop.f32.mrf.mxu0
    %v3986 = vadd.f32 %v3546, %v3985
    %v3987 = vpop.f32.mrf.mxu0
    %3988 = vmatprep.mubr.f32.mxu0 0.0
    %v3989 = vand.u32 %v3497, 4294901760
    %v3990 = vsub.f32 %v3497, %v3989
    %v3991 = vand.u32 %v3990, 4294901760
    %v3992 = vsub.f32 %v3990, %v3991
    %v3993 = vand.u32 %v3992, 4294901760
    %3994 = vmatmul.mubr.f32.gmra.mxu0 %v3993
    %v3995 = vpop.f32.mrf.mxu0
    %v3996 = vadd.f32 %v3546, %v3995
    %v3997 = vpop.f32.mrf.mxu0
    %3998 = vmatprep.mubr.f32.mxu0 0.0
    %v3999 = vand.u32 %v3498, 4294901760
    %v4000 = vsub.f32 %v3498, %v3999
    %v4001 = vand.u32 %v4000, 4294901760
    %v4002 = vsub.f32 %v4000, %v4001
    %v4003 = vand.u32 %v4002, 4294901760
    %4004 = vmatmul.mubr.f32.gmra.mxu0 %v4003
    %v4005 = vpop.f32.mrf.mxu0
    %v4006 = vadd.f32 %v3546, %v4005
    %v4007 = vpop.f32.mrf.mxu0
    %4008 = vmatprep.mubr.f32.mxu0 0.0
    %v4009 = vand.u32 %v3499, 4294901760
    %v4010 = vsub.f32 %v3499, %v4009
    %v4011 = vand.u32 %v4010, 4294901760
    %v4012 = vsub.f32 %v4010, %v4011
    %v4013 = vand.u32 %v4012, 4294901760
    %4014 = vmatmul.mubr.f32.gmra.mxu0 %v4013
    %v4015 = vpop.f32.mrf.mxu0
    %v4016 = vadd.f32 %v3546, %v4015
    %v4017 = vpop.f32.mrf.mxu0
    %4018 = vmatprep.mubr.f32.mxu0 0.0
    %v4019 = vand.u32 %v3500, 4294901760
    %v4020 = vsub.f32 %v3500, %v4019
    %v4021 = vand.u32 %v4020, 4294901760
    %v4022 = vsub.f32 %v4020, %v4021
    %v4023 = vand.u32 %v4022, 4294901760
    %4024 = vmatmul.mubr.f32.gmra.mxu0 %v4023
    %v4025 = vpop.f32.mrf.mxu0
    %v4026 = vadd.f32 %v3546, %v4025
    %v4027 = vpop.f32.mrf.mxu0
    %4028 = vmatprep.mubr.f32.mxu0 0.0
    %v4029 = vand.u32 %v3501, 4294901760
    %v4030 = vsub.f32 %v3501, %v4029
    %v4031 = vand.u32 %v4030, 4294901760
    %v4032 = vsub.f32 %v4030, %v4031
    %v4033 = vand.u32 %v4032, 4294901760
    %4034 = vmatmul.mubr.f32.gmra.mxu0 %v4033
    %v4035 = vpop.f32.mrf.mxu0
    %v4036 = vadd.f32 %v3546, %v4035
    %v4037 = vpop.f32.mrf.mxu0
    %4038 = vmatprep.mubr.f32.mxu0 0.0
    %v4039 = vand.u32 %v3502, 4294901760
    %v4040 = vsub.f32 %v3502, %v4039
    %v4041 = vand.u32 %v4040, 4294901760
    %v4042 = vsub.f32 %v4040, %v4041
    %v4043 = vand.u32 %v4042, 4294901760
    %4044 = vmatmul.mubr.f32.gmra.mxu0 %v4043
    %v4045 = vpop.f32.mrf.mxu0
    %v4046 = vadd.f32 %v3546, %v4045
    %v4047 = vpop.f32.mrf.mxu0
    %4048 = vmatprep.mubr.f32.mxu0 0.0
    %v4049 = vand.u32 %v3503, 4294901760
    %v4050 = vsub.f32 %v3503, %v4049
    %v4051 = vand.u32 %v4050, 4294901760
    %v4052 = vsub.f32 %v4050, %v4051
    %v4053 = vand.u32 %v4052, 4294901760
    %4054 = vmatmul.mubr.f32.gmra.mxu0 %v4053
    %v4055 = vpop.f32.mrf.mxu0
    %v4056 = vadd.f32 %v3546, %v4055
    %v4057 = vpop.f32.mrf.mxu0
    %4058 = vmatprep.mubr.f32.mxu0 0.0
    %v4059 = vand.u32 %v3504, 4294901760
    %v4060 = vsub.f32 %v3504, %v4059
    %v4061 = vand.u32 %v4060, 4294901760
    %v4062 = vsub.f32 %v4060, %v4061
    %v4063 = vand.u32 %v4062, 4294901760
    %4064 = vmatmul.mubr.f32.gmra.mxu0 %v4063
    %v4065 = vpop.f32.mrf.mxu0
    %v4066 = vadd.f32 %v3546, %v4065
    %v4067 = vpop.f32.mrf.mxu0
    %4068 = vmatprep.mubr.f32.mxu0 0.0
    %v4069 = vand.u32 %v3505, 4294901760
    %v4070 = vsub.f32 %v3505, %v4069
    %v4071 = vand.u32 %v4070, 4294901760
    %v4072 = vsub.f32 %v4070, %v4071
    %v4073 = vand.u32 %v4072, 4294901760
    %4074 = vmatmul.mubr.f32.gmra.mxu0 %v4073
    %v4075 = vpop.f32.mrf.mxu0
    %v4076 = vadd.f32 %v3546, %v4075
    %v4077 = vpop.f32.mrf.mxu0
    %4078 = vmatprep.mubr.f32.mxu0 0.0
    %v4079 = vand.u32 %v3506, 4294901760
    %v4080 = vsub.f32 %v3506, %v4079
    %v4081 = vand.u32 %v4080, 4294901760
    %v4082 = vsub.f32 %v4080, %v4081
    %v4083 = vand.u32 %v4082, 4294901760
    %4084 = vmatmul.mubr.f32.gmra.mxu0 %v4083
    %v4085 = vpop.f32.mrf.mxu0
    %v4086 = vadd.f32 %v3546, %v4085
    %v4087 = vpop.f32.mrf.mxu0
    %4088 = vmatprep.mubr.f32.mxu0 0.0
    %v4089 = vand.u32 %v3507, 4294901760
    %v4090 = vsub.f32 %v3507, %v4089
    %v4091 = vand.u32 %v4090, 4294901760
    %v4092 = vsub.f32 %v4090, %v4091
    %v4093 = vand.u32 %v4092, 4294901760
    %4094 = vmatmul.mubr.f32.gmra.mxu0 %v4093
    %v4095 = vpop.f32.mrf.mxu0
    %v4096 = vadd.f32 %v3546, %v4095
    %v4097 = vpop.f32.mrf.mxu0
    %4098 = vmatprep.mubr.f32.mxu0 0.0
    %v4099 = vand.u32 %v3508, 4294901760
    %v4100 = vsub.f32 %v3508, %v4099
    %v4101 = vand.u32 %v4100, 4294901760
    %v4102 = vsub.f32 %v4100, %v4101
    %v4103 = vand.u32 %v4102, 4294901760
    %4104 = vmatmul.mubr.f32.gmra.mxu0 %v4103
    %v4105 = vpop.f32.mrf.mxu0
    %v4106 = vadd.f32 %v3546, %v4105
    %v4107 = vpop.f32.mrf.mxu0
    %4108 = vmatprep.mubr.f32.mxu0 0.0
    %v4109 = vand.u32 %v3509, 4294901760
    %v4110 = vsub.f32 %v3509, %v4109
    %v4111 = vand.u32 %v4110, 4294901760
    %v4112 = vsub.f32 %v4110, %v4111
    %v4113 = vand.u32 %v4112, 4294901760
    %4114 = vmatmul.mubr.f32.gmra.mxu0 %v4113
    %v4115 = vpop.f32.mrf.mxu0
    %v4116 = vadd.f32 %v3546, %v4115
    %v4117 = vpop.f32.mrf.mxu0
    %4118 = vmatprep.mubr.f32.mxu0 0.0
    %v4119 = vand.u32 %v3510, 4294901760
    %v4120 = vsub.f32 %v3510, %v4119
    %v4121 = vand.u32 %v4120, 4294901760
    %v4122 = vsub.f32 %v4120, %v4121
    %v4123 = vand.u32 %v4122, 4294901760
    %4124 = vmatmul.mubr.f32.gmra.mxu0 %v4123
    %v4125 = vpop.f32.mrf.mxu0
    %v4126 = vadd.f32 %v3546, %v4125
    %v4127 = vpop.f32.mrf.mxu0
    %4128 = vmatprep.mubr.f32.mxu0 0.0
    %v4129 = vand.u32 %v3511, 4294901760
    %v4130 = vsub.f32 %v3511, %v4129
    %v4131 = vand.u32 %v4130, 4294901760
    %v4132 = vsub.f32 %v4130, %v4131
    %v4133 = vand.u32 %v4132, 4294901760
    %4134 = vmatmul.mubr.f32.gmra.mxu0 %v4133
    %v4135 = vpop.f32.mrf.mxu0
    %v4136 = vadd.f32 %v3546, %v4135
    %v4137 = vpop.f32.mrf.mxu0
    %4138 = vmatprep.mubr.f32.mxu0 0.0
    %v4139 = vand.u32 %v3512, 4294901760
    %v4140 = vsub.f32 %v3512, %v4139
    %v4141 = vand.u32 %v4140, 4294901760
    %v4142 = vsub.f32 %v4140, %v4141
    %v4143 = vand.u32 %v4142, 4294901760
    %4144 = vmatmul.mubr.f32.gmra.mxu0 %v4143
    %v4145 = vpop.f32.mrf.mxu0
    %v4146 = vadd.f32 %v3546, %v4145
    %v4147 = vpop.f32.mrf.mxu0
    %4148 = vmatprep.mubr.f32.mxu0 0.0
    %v4149 = vand.u32 %v3513, 4294901760
    %v4150 = vsub.f32 %v3513, %v4149
    %v4151 = vand.u32 %v4150, 4294901760
    %v4152 = vsub.f32 %v4150, %v4151
    %v4153 = vand.u32 %v4152, 4294901760
    %4154 = vmatmul.mubr.f32.gmra.mxu0 %v4153
    %v4155 = vpop.f32.mrf.mxu0
    %v4156 = vadd.f32 %v3546, %v4155
    %v4157 = vpop.f32.mrf.mxu0
    %4158 = vmatprep.mubr.f32.mxu0 0.0
    %v4159 = vand.u32 %v3514, 4294901760
    %v4160 = vsub.f32 %v3514, %v4159
    %v4161 = vand.u32 %v4160, 4294901760
    %v4162 = vsub.f32 %v4160, %v4161
    %v4163 = vand.u32 %v4162, 4294901760
    %4164 = vmatmul.mubr.f32.gmra.mxu0 %v4163
    %v4165 = vpop.f32.mrf.mxu0
    %v4166 = vadd.f32 %v3546, %v4165
    %v4167 = vpop.f32.mrf.mxu0
    %4168 = vmatprep.mubr.f32.mxu0 0.0
    %v4169 = vand.u32 %v3515, 4294901760
    %v4170 = vsub.f32 %v3515, %v4169
    %v4171 = vand.u32 %v4170, 4294901760
    %v4172 = vsub.f32 %v4170, %v4171
    %v4173 = vand.u32 %v4172, 4294901760
    %4174 = vmatmul.mubr.f32.gmra.mxu0 %v4173
    %v4175 = vpop.f32.mrf.mxu0
    %v4176 = vadd.f32 %v3546, %v4175
    %v4177 = vpop.f32.mrf.mxu0
    %4178 = vmatprep.mubr.f32.mxu0 0.0
    %v4179 = vand.u32 %v3516, 4294901760
    %v4180 = vsub.f32 %v3516, %v4179
    %v4181 = vand.u32 %v4180, 4294901760
    %v4182 = vsub.f32 %v4180, %v4181
    %v4183 = vand.u32 %v4182, 4294901760
    %4184 = vmatmul.mubr.f32.gmra.mxu0 %v4183
    %v4185 = vpop.f32.mrf.mxu0
    %v4186 = vadd.f32 %v3546, %v4185
    %v4187 = vpop.f32.mrf.mxu0
    %4188 = vmatprep.mubr.f32.mxu0 0.0
    %v4189 = vand.u32 %v3517, 4294901760
    %v4190 = vsub.f32 %v3517, %v4189
    %v4191 = vand.u32 %v4190, 4294901760
    %v4192 = vsub.f32 %v4190, %v4191
    %v4193 = vand.u32 %v4192, 4294901760
    %4194 = vmatmul.mubr.f32.gmra.mxu0 %v4193
    %v4195 = vpop.f32.mrf.mxu0
    %v4196 = vadd.f32 %v3546, %v4195
    %v4197 = vpop.f32.mrf.mxu0
    %4198 = vmatprep.mubr.f32.mxu0 0.0
    %v4199 = vand.u32 %v3518, 4294901760
    %v4200 = vsub.f32 %v3518, %v4199
    %v4201 = vand.u32 %v4200, 4294901760
    %v4202 = vsub.f32 %v4200, %v4201
    %v4203 = vand.u32 %v4202, 4294901760
    %4204 = vmatmul.mubr.f32.gmra.mxu0 %v4203
    %v4205 = vpop.f32.mrf.mxu0
    %v4206 = vadd.f32 %v3546, %v4205
    %v4207 = vpop.f32.mrf.mxu0
    %4208 = vmatprep.mubr.f32.mxu0 0.0
    %v4209 = vand.u32 %v3519, 4294901760
    %v4210 = vsub.f32 %v3519, %v4209
    %v4211 = vand.u32 %v4210, 4294901760
    %v4212 = vsub.f32 %v4210, %v4211
    %v4213 = vand.u32 %v4212, 4294901760
    %4214 = vmatmul.mubr.f32.gmra.mxu0 %v4213
    %v4215 = vpop.f32.mrf.mxu0
    %v4216 = vadd.f32 %v3546, %v4215
    %v4217 = vpop.f32.mrf.mxu0
    %4218 = vmatprep.mubr.f32.mxu0 0.0
    %v4219 = vand.u32 %v3520, 4294901760
    %v4220 = vsub.f32 %v3520, %v4219
    %v4221 = vand.u32 %v4220, 4294901760
    %v4222 = vsub.f32 %v4220, %v4221
    %v4223 = vand.u32 %v4222, 4294901760
    %4224 = vmatmul.mubr.f32.gmra.mxu0 %v4223
    %v4225 = vpop.f32.mrf.mxu0
    %v4226 = vadd.f32 %v3546, %v4225
    %v4227 = vpop.f32.mrf.mxu0
    %4228 = vmatprep.mubr.f32.mxu0 0.0
    %v4229 = vand.u32 %v3521, 4294901760
    %v4230 = vsub.f32 %v3521, %v4229
    %v4231 = vand.u32 %v4230, 4294901760
    %v4232 = vsub.f32 %v4230, %v4231
    %v4233 = vand.u32 %v4232, 4294901760
    %4234 = vmatmul.mubr.f32.gmra.mxu0 %v4233
    %v4235 = vpop.f32.mrf.mxu0
    %v4236 = vadd.f32 %v3546, %v4235
    %v4237 = vpop.f32.mrf.mxu0
    %4238 = vmatprep.mubr.f32.mxu0 0.0
    %v4239 = vand.u32 %v3522, 4294901760
    %v4240 = vsub.f32 %v3522, %v4239
    %v4241 = vand.u32 %v4240, 4294901760
    %v4242 = vsub.f32 %v4240, %v4241
    %v4243 = vand.u32 %v4242, 4294901760
    %4244 = vmatmul.mubr.f32.gmra.mxu0 %v4243
    %v4245 = vpop.f32.mrf.mxu0
    %v4246 = vadd.f32 %v3546, %v4245
    %v4247 = vpop.f32.mrf.mxu0
    %4248 = vmatprep.mubr.f32.mxu0 0.0
    %v4249 = vand.u32 %v3523, 4294901760
    %v4250 = vsub.f32 %v3523, %v4249
    %v4251 = vand.u32 %v4250, 4294901760
    %v4252 = vsub.f32 %v4250, %v4251
    %v4253 = vand.u32 %v4252, 4294901760
    %4254 = vmatmul.mubr.f32.gmra.mxu0 %v4253
    %v4255 = vpop.f32.mrf.mxu0
    %v4256 = vadd.f32 %v3546, %v4255
    %v4257 = vpop.f32.mrf.mxu0
    %4258 = vmatprep.mubr.f32.mxu0 0.0
    %v4259 = vand.u32 %v3524, 4294901760
    %v4260 = vsub.f32 %v3524, %v4259
    %v4261 = vand.u32 %v4260, 4294901760
    %v4262 = vsub.f32 %v4260, %v4261
    %v4263 = vand.u32 %v4262, 4294901760
    %4264 = vmatmul.mubr.f32.gmra.mxu0 %v4263
    %v4265 = vpop.f32.mrf.mxu0
    %v4266 = vadd.f32 %v3546, %v4265
    %v4267 = vpop.f32.mrf.mxu0
    %4268 = vdwg.mxu0
    %4269 = vmatprep.subr.mxu0 0.0
    %v4270 = vand.u32 %v3540, 4294901760
    %v4271 = vsub.f32 %v3540, %v4270
    %v4272 = vand.u32 %v4271, 4294901760
    %v4273 = vsub.f32 %v4271, %v4272
    %v4274 = vand.u32 %v4273, 4294901760
    %4275 = vmatpush1.msra.mxu0 %v4274
    %4276 = vmatprep.subr.mxu0 0.0
    %v4277 = vand.u32 %v3539, 4294901760
    %v4278 = vsub.f32 %v3539, %v4277
    %v4279 = vand.u32 %v4278, 4294901760
    %v4280 = vsub.f32 %v4278, %v4279
    %v4281 = vand.u32 %v4280, 4294901760
    %4282 = vmatpush1.msra.mxu0 %v4281
    %4283 = vmatprep.subr.mxu0 0.0
    %v4284 = vand.u32 %v3538, 4294901760
    %v4285 = vsub.f32 %v3538, %v4284
    %v4286 = vand.u32 %v4285, 4294901760
    %v4287 = vsub.f32 %v4285, %v4286
    %v4288 = vand.u32 %v4287, 4294901760
    %4289 = vmatpush1.msra.mxu0 %v4288
    %4290 = vmatprep.subr.mxu0 0.0
    %v4291 = vand.u32 %v3537, 4294901760
    %v4292 = vsub.f32 %v3537, %v4291
    %v4293 = vand.u32 %v4292, 4294901760
    %v4294 = vsub.f32 %v4292, %v4293
    %v4295 = vand.u32 %v4294, 4294901760
    %4296 = vmatpush1.msra.mxu0 %v4295
    %4297 = vmatprep.subr.mxu0 0.0
    %v4298 = vand.u32 %v3536, 4294901760
    %v4299 = vsub.f32 %v3536, %v4298
    %v4300 = vand.u32 %v4299, 4294901760
    %v4301 = vsub.f32 %v4299, %v4300
    %v4302 = vand.u32 %v4301, 4294901760
    %4303 = vmatpush1.msra.mxu0 %v4302
    %4304 = vmatprep.subr.mxu0 0.0
    %v4305 = vand.u32 %v3535, 4294901760
    %v4306 = vsub.f32 %v3535, %v4305
    %v4307 = vand.u32 %v4306, 4294901760
    %v4308 = vsub.f32 %v4306, %v4307
    %v4309 = vand.u32 %v4308, 4294901760
    %4310 = vmatpush1.msra.mxu0 %v4309
    %4311 = vmatprep.subr.mxu0 0.0
    %v4312 = vand.u32 %v3534, 4294901760
    %v4313 = vsub.f32 %v3534, %v4312
    %v4314 = vand.u32 %v4313, 4294901760
    %v4315 = vsub.f32 %v4313, %v4314
    %v4316 = vand.u32 %v4315, 4294901760
    %4317 = vmatpush1.msra.mxu0 %v4316
    %4318 = vmatprep.subr.mxu0 0.0
    %v4319 = vand.u32 %v3533, 4294901760
    %v4320 = vsub.f32 %v3533, %v4319
    %v4321 = vand.u32 %v4320, 4294901760
    %v4322 = vsub.f32 %v4320, %v4321
    %v4323 = vand.u32 %v4322, 4294901760
    %4324 = vmatpush1.msra.mxu0 %v4323
    %4325 = vmatprep.subr.mxu0 0.0
    %v4326 = vand.u32 %v3532, 4294901760
    %v4327 = vsub.f32 %v3532, %v4326
    %v4328 = vand.u32 %v4327, 4294901760
    %v4329 = vsub.f32 %v4327, %v4328
    %v4330 = vand.u32 %v4329, 4294901760
    %4331 = vmatpush1.msra.mxu0 %v4330
    %4332 = vmatprep.subr.mxu0 0.0
    %v4333 = vand.u32 %v3531, 4294901760
    %v4334 = vsub.f32 %v3531, %v4333
    %v4335 = vand.u32 %v4334, 4294901760
    %v4336 = vsub.f32 %v4334, %v4335
    %v4337 = vand.u32 %v4336, 4294901760
    %4338 = vmatpush1.msra.mxu0 %v4337
    %4339 = vmatprep.subr.mxu0 0.0
    %v4340 = vand.u32 %v3530, 4294901760
    %v4341 = vsub.f32 %v3530, %v4340
    %v4342 = vand.u32 %v4341, 4294901760
    %v4343 = vsub.f32 %v4341, %v4342
    %v4344 = vand.u32 %v4343, 4294901760
    %4345 = vmatpush1.msra.mxu0 %v4344
    %4346 = vmatprep.subr.mxu0 0.0
    %v4347 = vand.u32 %v3529, 4294901760
    %v4348 = vsub.f32 %v3529, %v4347
    %v4349 = vand.u32 %v4348, 4294901760
    %v4350 = vsub.f32 %v4348, %v4349
    %v4351 = vand.u32 %v4350, 4294901760
    %4352 = vmatpush1.msra.mxu0 %v4351
    %4353 = vmatprep.subr.mxu0 0.0
    %v4354 = vand.u32 %v3528, 4294901760
    %v4355 = vsub.f32 %v3528, %v4354
    %v4356 = vand.u32 %v4355, 4294901760
    %v4357 = vsub.f32 %v4355, %v4356
    %v4358 = vand.u32 %v4357, 4294901760
    %4359 = vmatpush1.msra.mxu0 %v4358
    %4360 = vmatprep.subr.mxu0 0.0
    %v4361 = vand.u32 %v3527, 4294901760
    %v4362 = vsub.f32 %v3527, %v4361
    %v4363 = vand.u32 %v4362, 4294901760
    %v4364 = vsub.f32 %v4362, %v4363
    %v4365 = vand.u32 %v4364, 4294901760
    %4366 = vmatpush1.msra.mxu0 %v4365
    %4367 = vmatprep.subr.mxu0 0.0
    %v4368 = vand.u32 %v3526, 4294901760
    %v4369 = vsub.f32 %v3526, %v4368
    %v4370 = vand.u32 %v4369, 4294901760
    %v4371 = vsub.f32 %v4369, %v4370
    %v4372 = vand.u32 %v4371, 4294901760
    %4373 = vmatpush1.msra.mxu0 %v4372
    %4374 = vmatprep.subr.mxu0 0.0
    %v4375 = vand.u32 %v3525, 4294901760
    %v4376 = vsub.f32 %v3525, %v4375
    %v4377 = vand.u32 %v4376, 4294901760
    %v4378 = vsub.f32 %v4376, %v4377
    %v4379 = vand.u32 %v4378, 4294901760
    %4380 = vmatpush1.msra.mxu0 %v4379
    %4381 = vmatprep.subr.mxu0 0.0
    %4382 = vmatpush2.msra.mxu0 0.0
    %4383 = vmatprep.subr.mxu0 0.0
    %4384 = vmatpush2.msra.mxu0 0.0
    %4385 = vmatprep.subr.mxu0 0.0
    %4386 = vmatpush2.msra.mxu0 0.0
    %4387 = vmatprep.subr.mxu0 0.0
    %4388 = vmatpush2.msra.mxu0 0.0
    %4389 = vmatprep.subr.mxu0 0.0
    %4390 = vmatpush2.msra.mxu0 0.0
    %4391 = vmatprep.subr.mxu0 0.0
    %4392 = vmatpush2.msra.mxu0 0.0
    %4393 = vmatprep.subr.mxu0 0.0
    %4394 = vmatpush2.msra.mxu0 0.0
    %4395 = vmatprep.subr.mxu0 0.0
    %4396 = vmatpush2.msra.mxu0 0.0
    %4397 = vmatprep.subr.mxu0 0.0
    %4398 = vmatpush2.msra.mxu0 0.0
    %4399 = vmatprep.subr.mxu0 0.0
    %4400 = vmatpush2.msra.mxu0 0.0
    %4401 = vmatprep.subr.mxu0 0.0
    %4402 = vmatpush2.msra.mxu0 0.0
    %4403 = vmatprep.subr.mxu0 0.0
    %4404 = vmatpush2.msra.mxu0 0.0
    %4405 = vmatprep.subr.mxu0 0.0
    %4406 = vmatpush2.msra.mxu0 0.0
    %4407 = vmatprep.subr.mxu0 0.0
    %4408 = vmatpush2.msra.mxu0 0.0
    %4409 = vmatprep.subr.mxu0 0.0
    %4410 = vmatpush2.msra.mxu0 0.0
    %4411 = vmatprep.subr.mxu0 0.0
    %4412 = vmatpush2.msra.mxu0 0.0
    %4413 = vmatprep.mubr.f32.mxu0 0.0
    %v4414 = vand.u32 %v3461, 4294901760
    %4415 = vmatmul.mubr.f32.gmra.mxu0 %v4414
    %v4416 = vpop.f32.mrf.mxu0
    %v4417 = vadd.f32 %v3636, %v4416
    %v4418 = vpop.f32.mrf.mxu0
    %4419 = vmatprep.mubr.f32.mxu0 0.0
    %v4420 = vand.u32 %v3462, 4294901760
    %4421 = vmatmul.mubr.f32.gmra.mxu0 %v4420
    %v4422 = vpop.f32.mrf.mxu0
    %v4423 = vadd.f32 %v3646, %v4422
    %v4424 = vpop.f32.mrf.mxu0
    %4425 = vmatprep.mubr.f32.mxu0 0.0
    %v4426 = vand.u32 %v3463, 4294901760
    %4427 = vmatmul.mubr.f32.gmra.mxu0 %v4426
    %v4428 = vpop.f32.mrf.mxu0
    %v4429 = vadd.f32 %v3656, %v4428
    %v4430 = vpop.f32.mrf.mxu0
    %4431 = vmatprep.mubr.f32.mxu0 0.0
    %v4432 = vand.u32 %v3464, 4294901760
    %4433 = vmatmul.mubr.f32.gmra.mxu0 %v4432
    %v4434 = vpop.f32.mrf.mxu0
    %v4435 = vadd.f32 %v3666, %v4434
    %v4436 = vpop.f32.mrf.mxu0
    %4437 = vmatprep.mubr.f32.mxu0 0.0
    %v4438 = vand.u32 %v3465, 4294901760
    %4439 = vmatmul.mubr.f32.gmra.mxu0 %v4438
    %v4440 = vpop.f32.mrf.mxu0
    %v4441 = vadd.f32 %v3676, %v4440
    %v4442 = vpop.f32.mrf.mxu0
    %4443 = vmatprep.mubr.f32.mxu0 0.0
    %v4444 = vand.u32 %v3466, 4294901760
    %4445 = vmatmul.mubr.f32.gmra.mxu0 %v4444
    %v4446 = vpop.f32.mrf.mxu0
    %v4447 = vadd.f32 %v3686, %v4446
    %v4448 = vpop.f32.mrf.mxu0
    %4449 = vmatprep.mubr.f32.mxu0 0.0
    %v4450 = vand.u32 %v3467, 4294901760
    %4451 = vmatmul.mubr.f32.gmra.mxu0 %v4450
    %v4452 = vpop.f32.mrf.mxu0
    %v4453 = vadd.f32 %v3696, %v4452
    %v4454 = vpop.f32.mrf.mxu0
    %4455 = vmatprep.mubr.f32.mxu0 0.0
    %v4456 = vand.u32 %v3468, 4294901760
    %4457 = vmatmul.mubr.f32.gmra.mxu0 %v4456
    %v4458 = vpop.f32.mrf.mxu0
    %v4459 = vadd.f32 %v3706, %v4458
    %v4460 = vpop.f32.mrf.mxu0
    %4461 = vmatprep.mubr.f32.mxu0 0.0
    %v4462 = vand.u32 %v3469, 4294901760
    %4463 = vmatmul.mubr.f32.gmra.mxu0 %v4462
    %v4464 = vpop.f32.mrf.mxu0
    %v4465 = vadd.f32 %v3716, %v4464
    %v4466 = vpop.f32.mrf.mxu0
    %4467 = vmatprep.mubr.f32.mxu0 0.0
    %v4468 = vand.u32 %v3470, 4294901760
    %4469 = vmatmul.mubr.f32.gmra.mxu0 %v4468
    %v4470 = vpop.f32.mrf.mxu0
    %v4471 = vadd.f32 %v3726, %v4470
    %v4472 = vpop.f32.mrf.mxu0
    %4473 = vmatprep.mubr.f32.mxu0 0.0
    %v4474 = vand.u32 %v3471, 4294901760
    %4475 = vmatmul.mubr.f32.gmra.mxu0 %v4474
    %v4476 = vpop.f32.mrf.mxu0
    %v4477 = vadd.f32 %v3736, %v4476
    %v4478 = vpop.f32.mrf.mxu0
    %4479 = vmatprep.mubr.f32.mxu0 0.0
    %v4480 = vand.u32 %v3472, 4294901760
    %4481 = vmatmul.mubr.f32.gmra.mxu0 %v4480
    %v4482 = vpop.f32.mrf.mxu0
    %v4483 = vadd.f32 %v3746, %v4482
    %v4484 = vpop.f32.mrf.mxu0
    %4485 = vmatprep.mubr.f32.mxu0 0.0
    %v4486 = vand.u32 %v3473, 4294901760
    %4487 = vmatmul.mubr.f32.gmra.mxu0 %v4486
    %v4488 = vpop.f32.mrf.mxu0
    %v4489 = vadd.f32 %v3756, %v4488
    %v4490 = vpop.f32.mrf.mxu0
    %4491 = vmatprep.mubr.f32.mxu0 0.0
    %v4492 = vand.u32 %v3474, 4294901760
    %4493 = vmatmul.mubr.f32.gmra.mxu0 %v4492
    %v4494 = vpop.f32.mrf.mxu0
    %v4495 = vadd.f32 %v3766, %v4494
    %v4496 = vpop.f32.mrf.mxu0
    %4497 = vmatprep.mubr.f32.mxu0 0.0
    %v4498 = vand.u32 %v3475, 4294901760
    %4499 = vmatmul.mubr.f32.gmra.mxu0 %v4498
    %v4500 = vpop.f32.mrf.mxu0
    %v4501 = vadd.f32 %v3776, %v4500
    %v4502 = vpop.f32.mrf.mxu0
    %4503 = vmatprep.mubr.f32.mxu0 0.0
    %v4504 = vand.u32 %v3476, 4294901760
    %4505 = vmatmul.mubr.f32.gmra.mxu0 %v4504
    %v4506 = vpop.f32.mrf.mxu0
    %v4507 = vadd.f32 %v3786, %v4506
    %v4508 = vpop.f32.mrf.mxu0
    %4509 = vmatprep.mubr.f32.mxu0 0.0
    %v4510 = vand.u32 %v3477, 4294901760
    %4511 = vmatmul.mubr.f32.gmra.mxu0 %v4510
    %v4512 = vpop.f32.mrf.mxu0
    %v4513 = vadd.f32 %v3796, %v4512
    %v4514 = vpop.f32.mrf.mxu0
    %4515 = vmatprep.mubr.f32.mxu0 0.0
    %v4516 = vand.u32 %v3478, 4294901760
    %4517 = vmatmul.mubr.f32.gmra.mxu0 %v4516
    %v4518 = vpop.f32.mrf.mxu0
    %v4519 = vadd.f32 %v3806, %v4518
    %v4520 = vpop.f32.mrf.mxu0
    %4521 = vmatprep.mubr.f32.mxu0 0.0
    %v4522 = vand.u32 %v3479, 4294901760
    %4523 = vmatmul.mubr.f32.gmra.mxu0 %v4522
    %v4524 = vpop.f32.mrf.mxu0
    %v4525 = vadd.f32 %v3816, %v4524
    %v4526 = vpop.f32.mrf.mxu0
    %4527 = vmatprep.mubr.f32.mxu0 0.0
    %v4528 = vand.u32 %v3480, 4294901760
    %4529 = vmatmul.mubr.f32.gmra.mxu0 %v4528
    %v4530 = vpop.f32.mrf.mxu0
    %v4531 = vadd.f32 %v3826, %v4530
    %v4532 = vpop.f32.mrf.mxu0
    %4533 = vmatprep.mubr.f32.mxu0 0.0
    %v4534 = vand.u32 %v3481, 4294901760
    %4535 = vmatmul.mubr.f32.gmra.mxu0 %v4534
    %v4536 = vpop.f32.mrf.mxu0
    %v4537 = vadd.f32 %v3836, %v4536
    %v4538 = vpop.f32.mrf.mxu0
    %4539 = vmatprep.mubr.f32.mxu0 0.0
    %v4540 = vand.u32 %v3482, 4294901760
    %4541 = vmatmul.mubr.f32.gmra.mxu0 %v4540
    %v4542 = vpop.f32.mrf.mxu0
    %v4543 = vadd.f32 %v3846, %v4542
    %v4544 = vpop.f32.mrf.mxu0
    %4545 = vmatprep.mubr.f32.mxu0 0.0
    %v4546 = vand.u32 %v3483, 4294901760
    %4547 = vmatmul.mubr.f32.gmra.mxu0 %v4546
    %v4548 = vpop.f32.mrf.mxu0
    %v4549 = vadd.f32 %v3856, %v4548
    %v4550 = vpop.f32.mrf.mxu0
    %4551 = vmatprep.mubr.f32.mxu0 0.0
    %v4552 = vand.u32 %v3484, 4294901760
    %4553 = vmatmul.mubr.f32.gmra.mxu0 %v4552
    %v4554 = vpop.f32.mrf.mxu0
    %v4555 = vadd.f32 %v3866, %v4554
    %v4556 = vpop.f32.mrf.mxu0
    %4557 = vmatprep.mubr.f32.mxu0 0.0
    %v4558 = vand.u32 %v3485, 4294901760
    %4559 = vmatmul.mubr.f32.gmra.mxu0 %v4558
    %v4560 = vpop.f32.mrf.mxu0
    %v4561 = vadd.f32 %v3876, %v4560
    %v4562 = vpop.f32.mrf.mxu0
    %4563 = vmatprep.mubr.f32.mxu0 0.0
    %v4564 = vand.u32 %v3486, 4294901760
    %4565 = vmatmul.mubr.f32.gmra.mxu0 %v4564
    %v4566 = vpop.f32.mrf.mxu0
    %v4567 = vadd.f32 %v3886, %v4566
    %v4568 = vpop.f32.mrf.mxu0
    %4569 = vmatprep.mubr.f32.mxu0 0.0
    %v4570 = vand.u32 %v3487, 4294901760
    %4571 = vmatmul.mubr.f32.gmra.mxu0 %v4570
    %v4572 = vpop.f32.mrf.mxu0
    %v4573 = vadd.f32 %v3896, %v4572
    %v4574 = vpop.f32.mrf.mxu0
    %4575 = vmatprep.mubr.f32.mxu0 0.0
    %v4576 = vand.u32 %v3488, 4294901760
    %4577 = vmatmul.mubr.f32.gmra.mxu0 %v4576
    %v4578 = vpop.f32.mrf.mxu0
    %v4579 = vadd.f32 %v3906, %v4578
    %v4580 = vpop.f32.mrf.mxu0
    %4581 = vmatprep.mubr.f32.mxu0 0.0
    %v4582 = vand.u32 %v3489, 4294901760
    %4583 = vmatmul.mubr.f32.gmra.mxu0 %v4582
    %v4584 = vpop.f32.mrf.mxu0
    %v4585 = vadd.f32 %v3916, %v4584
    %v4586 = vpop.f32.mrf.mxu0
    %4587 = vmatprep.mubr.f32.mxu0 0.0
    %v4588 = vand.u32 %v3490, 4294901760
    %4589 = vmatmul.mubr.f32.gmra.mxu0 %v4588
    %v4590 = vpop.f32.mrf.mxu0
    %v4591 = vadd.f32 %v3926, %v4590
    %v4592 = vpop.f32.mrf.mxu0
    %4593 = vmatprep.mubr.f32.mxu0 0.0
    %v4594 = vand.u32 %v3491, 4294901760
    %4595 = vmatmul.mubr.f32.gmra.mxu0 %v4594
    %v4596 = vpop.f32.mrf.mxu0
    %v4597 = vadd.f32 %v3936, %v4596
    %v4598 = vpop.f32.mrf.mxu0
    %4599 = vmatprep.mubr.f32.mxu0 0.0
    %v4600 = vand.u32 %v3492, 4294901760
    %4601 = vmatmul.mubr.f32.gmra.mxu0 %v4600
    %v4602 = vpop.f32.mrf.mxu0
    %v4603 = vadd.f32 %v3946, %v4602
    %v4604 = vpop.f32.mrf.mxu0
    %4605 = vmatprep.mubr.f32.mxu0 0.0
    %v4606 = vand.u32 %v3493, 4294901760
    %4607 = vmatmul.mubr.f32.gmra.mxu0 %v4606
    %v4608 = vpop.f32.mrf.mxu0
    %v4609 = vadd.f32 %v3956, %v4608
    %v4610 = vpop.f32.mrf.mxu0
    %4611 = vmatprep.mubr.f32.mxu0 0.0
    %v4612 = vand.u32 %v3494, 4294901760
    %4613 = vmatmul.mubr.f32.gmra.mxu0 %v4612
    %v4614 = vpop.f32.mrf.mxu0
    %v4615 = vadd.f32 %v3966, %v4614
    %v4616 = vpop.f32.mrf.mxu0
    %4617 = vmatprep.mubr.f32.mxu0 0.0
    %v4618 = vand.u32 %v3495, 4294901760
    %4619 = vmatmul.mubr.f32.gmra.mxu0 %v4618
    %v4620 = vpop.f32.mrf.mxu0
    %v4621 = vadd.f32 %v3976, %v4620
    %v4622 = vpop.f32.mrf.mxu0
    %4623 = vmatprep.mubr.f32.mxu0 0.0
    %v4624 = vand.u32 %v3496, 4294901760
    %4625 = vmatmul.mubr.f32.gmra.mxu0 %v4624
    %v4626 = vpop.f32.mrf.mxu0
    %v4627 = vadd.f32 %v3986, %v4626
    %v4628 = vpop.f32.mrf.mxu0
    %4629 = vmatprep.mubr.f32.mxu0 0.0
    %v4630 = vand.u32 %v3497, 4294901760
    %4631 = vmatmul.mubr.f32.gmra.mxu0 %v4630
    %v4632 = vpop.f32.mrf.mxu0
    %v4633 = vadd.f32 %v3996, %v4632
    %v4634 = vpop.f32.mrf.mxu0
    %4635 = vmatprep.mubr.f32.mxu0 0.0
    %v4636 = vand.u32 %v3498, 4294901760
    %4637 = vmatmul.mubr.f32.gmra.mxu0 %v4636
    %v4638 = vpop.f32.mrf.mxu0
    %v4639 = vadd.f32 %v4006, %v4638
    %v4640 = vpop.f32.mrf.mxu0
    %4641 = vmatprep.mubr.f32.mxu0 0.0
    %v4642 = vand.u32 %v3499, 4294901760
    %4643 = vmatmul.mubr.f32.gmra.mxu0 %v4642
    %v4644 = vpop.f32.mrf.mxu0
    %v4645 = vadd.f32 %v4016, %v4644
    %v4646 = vpop.f32.mrf.mxu0
    %4647 = vmatprep.mubr.f32.mxu0 0.0
    %v4648 = vand.u32 %v3500, 4294901760
    %4649 = vmatmul.mubr.f32.gmra.mxu0 %v4648
    %v4650 = vpop.f32.mrf.mxu0
    %v4651 = vadd.f32 %v4026, %v4650
    %v4652 = vpop.f32.mrf.mxu0
    %4653 = vmatprep.mubr.f32.mxu0 0.0
    %v4654 = vand.u32 %v3501, 4294901760
    %4655 = vmatmul.mubr.f32.gmra.mxu0 %v4654
    %v4656 = vpop.f32.mrf.mxu0
    %v4657 = vadd.f32 %v4036, %v4656
    %v4658 = vpop.f32.mrf.mxu0
    %4659 = vmatprep.mubr.f32.mxu0 0.0
    %v4660 = vand.u32 %v3502, 4294901760
    %4661 = vmatmul.mubr.f32.gmra.mxu0 %v4660
    %v4662 = vpop.f32.mrf.mxu0
    %v4663 = vadd.f32 %v4046, %v4662
    %v4664 = vpop.f32.mrf.mxu0
    %4665 = vmatprep.mubr.f32.mxu0 0.0
    %v4666 = vand.u32 %v3503, 4294901760
    %4667 = vmatmul.mubr.f32.gmra.mxu0 %v4666
    %v4668 = vpop.f32.mrf.mxu0
    %v4669 = vadd.f32 %v4056, %v4668
    %v4670 = vpop.f32.mrf.mxu0
    %4671 = vmatprep.mubr.f32.mxu0 0.0
    %v4672 = vand.u32 %v3504, 4294901760
    %4673 = vmatmul.mubr.f32.gmra.mxu0 %v4672
    %v4674 = vpop.f32.mrf.mxu0
    %v4675 = vadd.f32 %v4066, %v4674
    %v4676 = vpop.f32.mrf.mxu0
    %4677 = vmatprep.mubr.f32.mxu0 0.0
    %v4678 = vand.u32 %v3505, 4294901760
    %4679 = vmatmul.mubr.f32.gmra.mxu0 %v4678
    %v4680 = vpop.f32.mrf.mxu0
    %v4681 = vadd.f32 %v4076, %v4680
    %v4682 = vpop.f32.mrf.mxu0
    %4683 = vmatprep.mubr.f32.mxu0 0.0
    %v4684 = vand.u32 %v3506, 4294901760
    %4685 = vmatmul.mubr.f32.gmra.mxu0 %v4684
    %v4686 = vpop.f32.mrf.mxu0
    %v4687 = vadd.f32 %v4086, %v4686
    %v4688 = vpop.f32.mrf.mxu0
    %4689 = vmatprep.mubr.f32.mxu0 0.0
    %v4690 = vand.u32 %v3507, 4294901760
    %4691 = vmatmul.mubr.f32.gmra.mxu0 %v4690
    %v4692 = vpop.f32.mrf.mxu0
    %v4693 = vadd.f32 %v4096, %v4692
    %v4694 = vpop.f32.mrf.mxu0
    %4695 = vmatprep.mubr.f32.mxu0 0.0
    %v4696 = vand.u32 %v3508, 4294901760
    %4697 = vmatmul.mubr.f32.gmra.mxu0 %v4696
    %v4698 = vpop.f32.mrf.mxu0
    %v4699 = vadd.f32 %v4106, %v4698
    %v4700 = vpop.f32.mrf.mxu0
    %4701 = vmatprep.mubr.f32.mxu0 0.0
    %v4702 = vand.u32 %v3509, 4294901760
    %4703 = vmatmul.mubr.f32.gmra.mxu0 %v4702
    %v4704 = vpop.f32.mrf.mxu0
    %v4705 = vadd.f32 %v4116, %v4704
    %v4706 = vpop.f32.mrf.mxu0
    %4707 = vmatprep.mubr.f32.mxu0 0.0
    %v4708 = vand.u32 %v3510, 4294901760
    %4709 = vmatmul.mubr.f32.gmra.mxu0 %v4708
    %v4710 = vpop.f32.mrf.mxu0
    %v4711 = vadd.f32 %v4126, %v4710
    %v4712 = vpop.f32.mrf.mxu0
    %4713 = vmatprep.mubr.f32.mxu0 0.0
    %v4714 = vand.u32 %v3511, 4294901760
    %4715 = vmatmul.mubr.f32.gmra.mxu0 %v4714
    %v4716 = vpop.f32.mrf.mxu0
    %v4717 = vadd.f32 %v4136, %v4716
    %v4718 = vpop.f32.mrf.mxu0
    %4719 = vmatprep.mubr.f32.mxu0 0.0
    %v4720 = vand.u32 %v3512, 4294901760
    %4721 = vmatmul.mubr.f32.gmra.mxu0 %v4720
    %v4722 = vpop.f32.mrf.mxu0
    %v4723 = vadd.f32 %v4146, %v4722
    %v4724 = vpop.f32.mrf.mxu0
    %4725 = vmatprep.mubr.f32.mxu0 0.0
    %v4726 = vand.u32 %v3513, 4294901760
    %4727 = vmatmul.mubr.f32.gmra.mxu0 %v4726
    %v4728 = vpop.f32.mrf.mxu0
    %v4729 = vadd.f32 %v4156, %v4728
    %v4730 = vpop.f32.mrf.mxu0
    %4731 = vmatprep.mubr.f32.mxu0 0.0
    %v4732 = vand.u32 %v3514, 4294901760
    %4733 = vmatmul.mubr.f32.gmra.mxu0 %v4732
    %v4734 = vpop.f32.mrf.mxu0
    %v4735 = vadd.f32 %v4166, %v4734
    %v4736 = vpop.f32.mrf.mxu0
    %4737 = vmatprep.mubr.f32.mxu0 0.0
    %v4738 = vand.u32 %v3515, 4294901760
    %4739 = vmatmul.mubr.f32.gmra.mxu0 %v4738
    %v4740 = vpop.f32.mrf.mxu0
    %v4741 = vadd.f32 %v4176, %v4740
    %v4742 = vpop.f32.mrf.mxu0
    %4743 = vmatprep.mubr.f32.mxu0 0.0
    %v4744 = vand.u32 %v3516, 4294901760
    %4745 = vmatmul.mubr.f32.gmra.mxu0 %v4744
    %v4746 = vpop.f32.mrf.mxu0
    %v4747 = vadd.f32 %v4186, %v4746
    %v4748 = vpop.f32.mrf.mxu0
    %4749 = vmatprep.mubr.f32.mxu0 0.0
    %v4750 = vand.u32 %v3517, 4294901760
    %4751 = vmatmul.mubr.f32.gmra.mxu0 %v4750
    %v4752 = vpop.f32.mrf.mxu0
    %v4753 = vadd.f32 %v4196, %v4752
    %v4754 = vpop.f32.mrf.mxu0
    %4755 = vmatprep.mubr.f32.mxu0 0.0
    %v4756 = vand.u32 %v3518, 4294901760
    %4757 = vmatmul.mubr.f32.gmra.mxu0 %v4756
    %v4758 = vpop.f32.mrf.mxu0
    %v4759 = vadd.f32 %v4206, %v4758
    %v4760 = vpop.f32.mrf.mxu0
    %4761 = vmatprep.mubr.f32.mxu0 0.0
    %v4762 = vand.u32 %v3519, 4294901760
    %4763 = vmatmul.mubr.f32.gmra.mxu0 %v4762
    %v4764 = vpop.f32.mrf.mxu0
    %v4765 = vadd.f32 %v4216, %v4764
    %v4766 = vpop.f32.mrf.mxu0
    %4767 = vmatprep.mubr.f32.mxu0 0.0
    %v4768 = vand.u32 %v3520, 4294901760
    %4769 = vmatmul.mubr.f32.gmra.mxu0 %v4768
    %v4770 = vpop.f32.mrf.mxu0
    %v4771 = vadd.f32 %v4226, %v4770
    %v4772 = vpop.f32.mrf.mxu0
    %4773 = vmatprep.mubr.f32.mxu0 0.0
    %v4774 = vand.u32 %v3521, 4294901760
    %4775 = vmatmul.mubr.f32.gmra.mxu0 %v4774
    %v4776 = vpop.f32.mrf.mxu0
    %v4777 = vadd.f32 %v4236, %v4776
    %v4778 = vpop.f32.mrf.mxu0
    %4779 = vmatprep.mubr.f32.mxu0 0.0
    %v4780 = vand.u32 %v3522, 4294901760
    %4781 = vmatmul.mubr.f32.gmra.mxu0 %v4780
    %v4782 = vpop.f32.mrf.mxu0
    %v4783 = vadd.f32 %v4246, %v4782
    %v4784 = vpop.f32.mrf.mxu0
    %4785 = vmatprep.mubr.f32.mxu0 0.0
    %v4786 = vand.u32 %v3523, 4294901760
    %4787 = vmatmul.mubr.f32.gmra.mxu0 %v4786
    %v4788 = vpop.f32.mrf.mxu0
    %v4789 = vadd.f32 %v4256, %v4788
    %v4790 = vpop.f32.mrf.mxu0
    %4791 = vmatprep.mubr.f32.mxu0 0.0
    %v4792 = vand.u32 %v3524, 4294901760
    %4793 = vmatmul.mubr.f32.gmra.mxu0 %v4792
    %v4794 = vpop.f32.mrf.mxu0
    %v4795 = vadd.f32 %v4266, %v4794
    %v4796 = vpop.f32.mrf.mxu0
    %4797 = vdwg.mxu0
    %4798 = vmatprep.subr.mxu0 0.0
    %v4799 = vand.u32 %v3540, 4294901760
    %v4800 = vsub.f32 %v3540, %v4799
    %4801 = vmatpush1.msra.mxu0 %v4800
    %4802 = vmatprep.subr.mxu0 0.0
    %v4803 = vand.u32 %v3539, 4294901760
    %v4804 = vsub.f32 %v3539, %v4803
    %4805 = vmatpush1.msra.mxu0 %v4804
    %4806 = vmatprep.subr.mxu0 0.0
    %v4807 = vand.u32 %v3538, 4294901760
    %v4808 = vsub.f32 %v3538, %v4807
    %4809 = vmatpush1.msra.mxu0 %v4808
    %4810 = vmatprep.subr.mxu0 0.0
    %v4811 = vand.u32 %v3537, 4294901760
    %v4812 = vsub.f32 %v3537, %v4811
    %4813 = vmatpush1.msra.mxu0 %v4812
    %4814 = vmatprep.subr.mxu0 0.0
    %v4815 = vand.u32 %v3536, 4294901760
    %v4816 = vsub.f32 %v3536, %v4815
    %4817 = vmatpush1.msra.mxu0 %v4816
    %4818 = vmatprep.subr.mxu0 0.0
    %v4819 = vand.u32 %v3535, 4294901760
    %v4820 = vsub.f32 %v3535, %v4819
    %4821 = vmatpush1.msra.mxu0 %v4820
    %4822 = vmatprep.subr.mxu0 0.0
    %v4823 = vand.u32 %v3534, 4294901760
    %v4824 = vsub.f32 %v3534, %v4823
    %4825 = vmatpush1.msra.mxu0 %v4824
    %4826 = vmatprep.subr.mxu0 0.0
    %v4827 = vand.u32 %v3533, 4294901760
    %v4828 = vsub.f32 %v3533, %v4827
    %4829 = vmatpush1.msra.mxu0 %v4828
    %4830 = vmatprep.subr.mxu0 0.0
    %v4831 = vand.u32 %v3532, 4294901760
    %v4832 = vsub.f32 %v3532, %v4831
    %4833 = vmatpush1.msra.mxu0 %v4832
    %4834 = vmatprep.subr.mxu0 0.0
    %v4835 = vand.u32 %v3531, 4294901760
    %v4836 = vsub.f32 %v3531, %v4835
    %4837 = vmatpush1.msra.mxu0 %v4836
    %4838 = vmatprep.subr.mxu0 0.0
    %v4839 = vand.u32 %v3530, 4294901760
    %v4840 = vsub.f32 %v3530, %v4839
    %4841 = vmatpush1.msra.mxu0 %v4840
    %4842 = vmatprep.subr.mxu0 0.0
    %v4843 = vand.u32 %v3529, 4294901760
    %v4844 = vsub.f32 %v3529, %v4843
    %4845 = vmatpush1.msra.mxu0 %v4844
    %4846 = vmatprep.subr.mxu0 0.0
    %v4847 = vand.u32 %v3528, 4294901760
    %v4848 = vsub.f32 %v3528, %v4847
    %4849 = vmatpush1.msra.mxu0 %v4848
    %4850 = vmatprep.subr.mxu0 0.0
    %v4851 = vand.u32 %v3527, 4294901760
    %v4852 = vsub.f32 %v3527, %v4851
    %4853 = vmatpush1.msra.mxu0 %v4852
    %4854 = vmatprep.subr.mxu0 0.0
    %v4855 = vand.u32 %v3526, 4294901760
    %v4856 = vsub.f32 %v3526, %v4855
    %4857 = vmatpush1.msra.mxu0 %v4856
    %4858 = vmatprep.subr.mxu0 0.0
    %v4859 = vand.u32 %v3525, 4294901760
    %v4860 = vsub.f32 %v3525, %v4859
    %4861 = vmatpush1.msra.mxu0 %v4860
    %4862 = vmatprep.subr.mxu0 0.0
    %4863 = vmatpush2.msra.mxu0 0.0
    %4864 = vmatprep.subr.mxu0 0.0
    %4865 = vmatpush2.msra.mxu0 0.0
    %4866 = vmatprep.subr.mxu0 0.0
    %4867 = vmatpush2.msra.mxu0 0.0
    %4868 = vmatprep.subr.mxu0 0.0
    %4869 = vmatpush2.msra.mxu0 0.0
    %4870 = vmatprep.subr.mxu0 0.0
    %4871 = vmatpush2.msra.mxu0 0.0
    %4872 = vmatprep.subr.mxu0 0.0
    %4873 = vmatpush2.msra.mxu0 0.0
    %4874 = vmatprep.subr.mxu0 0.0
    %4875 = vmatpush2.msra.mxu0 0.0
    %4876 = vmatprep.subr.mxu0 0.0
    %4877 = vmatpush2.msra.mxu0 0.0
    %4878 = vmatprep.subr.mxu0 0.0
    %4879 = vmatpush2.msra.mxu0 0.0
    %4880 = vmatprep.subr.mxu0 0.0
    %4881 = vmatpush2.msra.mxu0 0.0
    %4882 = vmatprep.subr.mxu0 0.0
    %4883 = vmatpush2.msra.mxu0 0.0
    %4884 = vmatprep.subr.mxu0 0.0
    %4885 = vmatpush2.msra.mxu0 0.0
    %4886 = vmatprep.subr.mxu0 0.0
    %4887 = vmatpush2.msra.mxu0 0.0
    %4888 = vmatprep.subr.mxu0 0.0
    %4889 = vmatpush2.msra.mxu0 0.0
    %4890 = vmatprep.subr.mxu0 0.0
    %4891 = vmatpush2.msra.mxu0 0.0
    %4892 = vmatprep.subr.mxu0 0.0
    %4893 = vmatpush2.msra.mxu0 0.0
    %4894 = vmatprep.mubr.f32.mxu0 0.0
    %v4895 = vand.u32 %v3461, 4294901760
    %v4896 = vsub.f32 %v3461, %v4895
    %4897 = vmatmul.mubr.f32.gmra.mxu0 %v4896
    %v4898 = vpop.f32.mrf.mxu0
    %v4899 = vadd.f32 %v4417, %v4898
    %v4900 = vpop.f32.mrf.mxu0
    %4901 = vmatprep.mubr.f32.mxu0 0.0
    %v4902 = vand.u32 %v3462, 4294901760
    %v4903 = vsub.f32 %v3462, %v4902
    %4904 = vmatmul.mubr.f32.gmra.mxu0 %v4903
    %v4905 = vpop.f32.mrf.mxu0
    %v4906 = vadd.f32 %v4423, %v4905
    %v4907 = vpop.f32.mrf.mxu0
    %4908 = vmatprep.mubr.f32.mxu0 0.0
    %v4909 = vand.u32 %v3463, 4294901760
    %v4910 = vsub.f32 %v3463, %v4909
    %4911 = vmatmul.mubr.f32.gmra.mxu0 %v4910
    %v4912 = vpop.f32.mrf.mxu0
    %v4913 = vadd.f32 %v4429, %v4912
    %v4914 = vpop.f32.mrf.mxu0
    %4915 = vmatprep.mubr.f32.mxu0 0.0
    %v4916 = vand.u32 %v3464, 4294901760
    %v4917 = vsub.f32 %v3464, %v4916
    %4918 = vmatmul.mubr.f32.gmra.mxu0 %v4917
    %v4919 = vpop.f32.mrf.mxu0
    %v4920 = vadd.f32 %v4435, %v4919
    %v4921 = vpop.f32.mrf.mxu0
    %4922 = vmatprep.mubr.f32.mxu0 0.0
    %v4923 = vand.u32 %v3465, 4294901760
    %v4924 = vsub.f32 %v3465, %v4923
    %4925 = vmatmul.mubr.f32.gmra.mxu0 %v4924
    %v4926 = vpop.f32.mrf.mxu0
    %v4927 = vadd.f32 %v4441, %v4926
    %v4928 = vpop.f32.mrf.mxu0
    %4929 = vmatprep.mubr.f32.mxu0 0.0
    %v4930 = vand.u32 %v3466, 4294901760
    %v4931 = vsub.f32 %v3466, %v4930
    %4932 = vmatmul.mubr.f32.gmra.mxu0 %v4931
    %v4933 = vpop.f32.mrf.mxu0
    %v4934 = vadd.f32 %v4447, %v4933
    %v4935 = vpop.f32.mrf.mxu0
    %4936 = vmatprep.mubr.f32.mxu0 0.0
    %v4937 = vand.u32 %v3467, 4294901760
    %v4938 = vsub.f32 %v3467, %v4937
    %4939 = vmatmul.mubr.f32.gmra.mxu0 %v4938
    %v4940 = vpop.f32.mrf.mxu0
    %v4941 = vadd.f32 %v4453, %v4940
    %v4942 = vpop.f32.mrf.mxu0
    %4943 = vmatprep.mubr.f32.mxu0 0.0
    %v4944 = vand.u32 %v3468, 4294901760
    %v4945 = vsub.f32 %v3468, %v4944
    %4946 = vmatmul.mubr.f32.gmra.mxu0 %v4945
    %v4947 = vpop.f32.mrf.mxu0
    %v4948 = vadd.f32 %v4459, %v4947
    %v4949 = vpop.f32.mrf.mxu0
    %4950 = vmatprep.mubr.f32.mxu0 0.0
    %v4951 = vand.u32 %v3469, 4294901760
    %v4952 = vsub.f32 %v3469, %v4951
    %4953 = vmatmul.mubr.f32.gmra.mxu0 %v4952
    %v4954 = vpop.f32.mrf.mxu0
    %v4955 = vadd.f32 %v4465, %v4954
    %v4956 = vpop.f32.mrf.mxu0
    %4957 = vmatprep.mubr.f32.mxu0 0.0
    %v4958 = vand.u32 %v3470, 4294901760
    %v4959 = vsub.f32 %v3470, %v4958
    %4960 = vmatmul.mubr.f32.gmra.mxu0 %v4959
    %v4961 = vpop.f32.mrf.mxu0
    %v4962 = vadd.f32 %v4471, %v4961
    %v4963 = vpop.f32.mrf.mxu0
    %4964 = vmatprep.mubr.f32.mxu0 0.0
    %v4965 = vand.u32 %v3471, 4294901760
    %v4966 = vsub.f32 %v3471, %v4965
    %4967 = vmatmul.mubr.f32.gmra.mxu0 %v4966
    %v4968 = vpop.f32.mrf.mxu0
    %v4969 = vadd.f32 %v4477, %v4968
    %v4970 = vpop.f32.mrf.mxu0
    %4971 = vmatprep.mubr.f32.mxu0 0.0
    %v4972 = vand.u32 %v3472, 4294901760
    %v4973 = vsub.f32 %v3472, %v4972
    %4974 = vmatmul.mubr.f32.gmra.mxu0 %v4973
    %v4975 = vpop.f32.mrf.mxu0
    %v4976 = vadd.f32 %v4483, %v4975
    %v4977 = vpop.f32.mrf.mxu0
    %4978 = vmatprep.mubr.f32.mxu0 0.0
    %v4979 = vand.u32 %v3473, 4294901760
    %v4980 = vsub.f32 %v3473, %v4979
    %4981 = vmatmul.mubr.f32.gmra.mxu0 %v4980
    %v4982 = vpop.f32.mrf.mxu0
    %v4983 = vadd.f32 %v4489, %v4982
    %v4984 = vpop.f32.mrf.mxu0
    %4985 = vmatprep.mubr.f32.mxu0 0.0
    %v4986 = vand.u32 %v3474, 4294901760
    %v4987 = vsub.f32 %v3474, %v4986
    %4988 = vmatmul.mubr.f32.gmra.mxu0 %v4987
    %v4989 = vpop.f32.mrf.mxu0
    %v4990 = vadd.f32 %v4495, %v4989
    %v4991 = vpop.f32.mrf.mxu0
    %4992 = vmatprep.mubr.f32.mxu0 0.0
    %v4993 = vand.u32 %v3475, 4294901760
    %v4994 = vsub.f32 %v3475, %v4993
    %4995 = vmatmul.mubr.f32.gmra.mxu0 %v4994
    %v4996 = vpop.f32.mrf.mxu0
    %v4997 = vadd.f32 %v4501, %v4996
    %v4998 = vpop.f32.mrf.mxu0
    %4999 = vmatprep.mubr.f32.mxu0 0.0
    %v5000 = vand.u32 %v3476, 4294901760
    %v5001 = vsub.f32 %v3476, %v5000
    %5002 = vmatmul.mubr.f32.gmra.mxu0 %v5001
    %v5003 = vpop.f32.mrf.mxu0
    %v5004 = vadd.f32 %v4507, %v5003
    %v5005 = vpop.f32.mrf.mxu0
    %5006 = vmatprep.mubr.f32.mxu0 0.0
    %v5007 = vand.u32 %v3477, 4294901760
    %v5008 = vsub.f32 %v3477, %v5007
    %5009 = vmatmul.mubr.f32.gmra.mxu0 %v5008
    %v5010 = vpop.f32.mrf.mxu0
    %v5011 = vadd.f32 %v4513, %v5010
    %v5012 = vpop.f32.mrf.mxu0
    %5013 = vmatprep.mubr.f32.mxu0 0.0
    %v5014 = vand.u32 %v3478, 4294901760
    %v5015 = vsub.f32 %v3478, %v5014
    %5016 = vmatmul.mubr.f32.gmra.mxu0 %v5015
    %v5017 = vpop.f32.mrf.mxu0
    %v5018 = vadd.f32 %v4519, %v5017
    %v5019 = vpop.f32.mrf.mxu0
    %5020 = vmatprep.mubr.f32.mxu0 0.0
    %v5021 = vand.u32 %v3479, 4294901760
    %v5022 = vsub.f32 %v3479, %v5021
    %5023 = vmatmul.mubr.f32.gmra.mxu0 %v5022
    %v5024 = vpop.f32.mrf.mxu0
    %v5025 = vadd.f32 %v4525, %v5024
    %v5026 = vpop.f32.mrf.mxu0
    %5027 = vmatprep.mubr.f32.mxu0 0.0
    %v5028 = vand.u32 %v3480, 4294901760
    %v5029 = vsub.f32 %v3480, %v5028
    %5030 = vmatmul.mubr.f32.gmra.mxu0 %v5029
    %v5031 = vpop.f32.mrf.mxu0
    %v5032 = vadd.f32 %v4531, %v5031
    %v5033 = vpop.f32.mrf.mxu0
    %5034 = vmatprep.mubr.f32.mxu0 0.0
    %v5035 = vand.u32 %v3481, 4294901760
    %v5036 = vsub.f32 %v3481, %v5035
    %5037 = vmatmul.mubr.f32.gmra.mxu0 %v5036
    %v5038 = vpop.f32.mrf.mxu0
    %v5039 = vadd.f32 %v4537, %v5038
    %v5040 = vpop.f32.mrf.mxu0
    %5041 = vmatprep.mubr.f32.mxu0 0.0
    %v5042 = vand.u32 %v3482, 4294901760
    %v5043 = vsub.f32 %v3482, %v5042
    %5044 = vmatmul.mubr.f32.gmra.mxu0 %v5043
    %v5045 = vpop.f32.mrf.mxu0
    %v5046 = vadd.f32 %v4543, %v5045
    %v5047 = vpop.f32.mrf.mxu0
    %5048 = vmatprep.mubr.f32.mxu0 0.0
    %v5049 = vand.u32 %v3483, 4294901760
    %v5050 = vsub.f32 %v3483, %v5049
    %5051 = vmatmul.mubr.f32.gmra.mxu0 %v5050
    %v5052 = vpop.f32.mrf.mxu0
    %v5053 = vadd.f32 %v4549, %v5052
    %v5054 = vpop.f32.mrf.mxu0
    %5055 = vmatprep.mubr.f32.mxu0 0.0
    %v5056 = vand.u32 %v3484, 4294901760
    %v5057 = vsub.f32 %v3484, %v5056
    %5058 = vmatmul.mubr.f32.gmra.mxu0 %v5057
    %v5059 = vpop.f32.mrf.mxu0
    %v5060 = vadd.f32 %v4555, %v5059
    %v5061 = vpop.f32.mrf.mxu0
    %5062 = vmatprep.mubr.f32.mxu0 0.0
    %v5063 = vand.u32 %v3485, 4294901760
    %v5064 = vsub.f32 %v3485, %v5063
    %5065 = vmatmul.mubr.f32.gmra.mxu0 %v5064
    %v5066 = vpop.f32.mrf.mxu0
    %v5067 = vadd.f32 %v4561, %v5066
    %v5068 = vpop.f32.mrf.mxu0
    %5069 = vmatprep.mubr.f32.mxu0 0.0
    %v5070 = vand.u32 %v3486, 4294901760
    %v5071 = vsub.f32 %v3486, %v5070
    %5072 = vmatmul.mubr.f32.gmra.mxu0 %v5071
    %v5073 = vpop.f32.mrf.mxu0
    %v5074 = vadd.f32 %v4567, %v5073
    %v5075 = vpop.f32.mrf.mxu0
    %5076 = vmatprep.mubr.f32.mxu0 0.0
    %v5077 = vand.u32 %v3487, 4294901760
    %v5078 = vsub.f32 %v3487, %v5077
    %5079 = vmatmul.mubr.f32.gmra.mxu0 %v5078
    %v5080 = vpop.f32.mrf.mxu0
    %v5081 = vadd.f32 %v4573, %v5080
    %v5082 = vpop.f32.mrf.mxu0
    %5083 = vmatprep.mubr.f32.mxu0 0.0
    %v5084 = vand.u32 %v3488, 4294901760
    %v5085 = vsub.f32 %v3488, %v5084
    %5086 = vmatmul.mubr.f32.gmra.mxu0 %v5085
    %v5087 = vpop.f32.mrf.mxu0
    %v5088 = vadd.f32 %v4579, %v5087
    %v5089 = vpop.f32.mrf.mxu0
    %5090 = vmatprep.mubr.f32.mxu0 0.0
    %v5091 = vand.u32 %v3489, 4294901760
    %v5092 = vsub.f32 %v3489, %v5091
    %5093 = vmatmul.mubr.f32.gmra.mxu0 %v5092
    %v5094 = vpop.f32.mrf.mxu0
    %v5095 = vadd.f32 %v4585, %v5094
    %v5096 = vpop.f32.mrf.mxu0
    %5097 = vmatprep.mubr.f32.mxu0 0.0
    %v5098 = vand.u32 %v3490, 4294901760
    %v5099 = vsub.f32 %v3490, %v5098
    %5100 = vmatmul.mubr.f32.gmra.mxu0 %v5099
    %v5101 = vpop.f32.mrf.mxu0
    %v5102 = vadd.f32 %v4591, %v5101
    %v5103 = vpop.f32.mrf.mxu0
    %5104 = vmatprep.mubr.f32.mxu0 0.0
    %v5105 = vand.u32 %v3491, 4294901760
    %v5106 = vsub.f32 %v3491, %v5105
    %5107 = vmatmul.mubr.f32.gmra.mxu0 %v5106
    %v5108 = vpop.f32.mrf.mxu0
    %v5109 = vadd.f32 %v4597, %v5108
    %v5110 = vpop.f32.mrf.mxu0
    %5111 = vmatprep.mubr.f32.mxu0 0.0
    %v5112 = vand.u32 %v3492, 4294901760
    %v5113 = vsub.f32 %v3492, %v5112
    %5114 = vmatmul.mubr.f32.gmra.mxu0 %v5113
    %v5115 = vpop.f32.mrf.mxu0
    %v5116 = vadd.f32 %v4603, %v5115
    %v5117 = vpop.f32.mrf.mxu0
    %5118 = vmatprep.mubr.f32.mxu0 0.0
    %v5119 = vand.u32 %v3493, 4294901760
    %v5120 = vsub.f32 %v3493, %v5119
    %5121 = vmatmul.mubr.f32.gmra.mxu0 %v5120
    %v5122 = vpop.f32.mrf.mxu0
    %v5123 = vadd.f32 %v4609, %v5122
    %v5124 = vpop.f32.mrf.mxu0
    %5125 = vmatprep.mubr.f32.mxu0 0.0
    %v5126 = vand.u32 %v3494, 4294901760
    %v5127 = vsub.f32 %v3494, %v5126
    %5128 = vmatmul.mubr.f32.gmra.mxu0 %v5127
    %v5129 = vpop.f32.mrf.mxu0
    %v5130 = vadd.f32 %v4615, %v5129
    %v5131 = vpop.f32.mrf.mxu0
    %5132 = vmatprep.mubr.f32.mxu0 0.0
    %v5133 = vand.u32 %v3495, 4294901760
    %v5134 = vsub.f32 %v3495, %v5133
    %5135 = vmatmul.mubr.f32.gmra.mxu0 %v5134
    %v5136 = vpop.f32.mrf.mxu0
    %v5137 = vadd.f32 %v4621, %v5136
    %v5138 = vpop.f32.mrf.mxu0
    %5139 = vmatprep.mubr.f32.mxu0 0.0
    %v5140 = vand.u32 %v3496, 4294901760
    %v5141 = vsub.f32 %v3496, %v5140
    %5142 = vmatmul.mubr.f32.gmra.mxu0 %v5141
    %v5143 = vpop.f32.mrf.mxu0
    %v5144 = vadd.f32 %v4627, %v5143
    %v5145 = vpop.f32.mrf.mxu0
    %5146 = vmatprep.mubr.f32.mxu0 0.0
    %v5147 = vand.u32 %v3497, 4294901760
    %v5148 = vsub.f32 %v3497, %v5147
    %5149 = vmatmul.mubr.f32.gmra.mxu0 %v5148
    %v5150 = vpop.f32.mrf.mxu0
    %v5151 = vadd.f32 %v4633, %v5150
    %v5152 = vpop.f32.mrf.mxu0
    %5153 = vmatprep.mubr.f32.mxu0 0.0
    %v5154 = vand.u32 %v3498, 4294901760
    %v5155 = vsub.f32 %v3498, %v5154
    %5156 = vmatmul.mubr.f32.gmra.mxu0 %v5155
    %v5157 = vpop.f32.mrf.mxu0
    %v5158 = vadd.f32 %v4639, %v5157
    %v5159 = vpop.f32.mrf.mxu0
    %5160 = vmatprep.mubr.f32.mxu0 0.0
    %v5161 = vand.u32 %v3499, 4294901760
    %v5162 = vsub.f32 %v3499, %v5161
    %5163 = vmatmul.mubr.f32.gmra.mxu0 %v5162
    %v5164 = vpop.f32.mrf.mxu0
    %v5165 = vadd.f32 %v4645, %v5164
    %v5166 = vpop.f32.mrf.mxu0
    %5167 = vmatprep.mubr.f32.mxu0 0.0
    %v5168 = vand.u32 %v3500, 4294901760
    %v5169 = vsub.f32 %v3500, %v5168
    %5170 = vmatmul.mubr.f32.gmra.mxu0 %v5169
    %v5171 = vpop.f32.mrf.mxu0
    %v5172 = vadd.f32 %v4651, %v5171
    %v5173 = vpop.f32.mrf.mxu0
    %5174 = vmatprep.mubr.f32.mxu0 0.0
    %v5175 = vand.u32 %v3501, 4294901760
    %v5176 = vsub.f32 %v3501, %v5175
    %5177 = vmatmul.mubr.f32.gmra.mxu0 %v5176
    %v5178 = vpop.f32.mrf.mxu0
    %v5179 = vadd.f32 %v4657, %v5178
    %v5180 = vpop.f32.mrf.mxu0
    %5181 = vmatprep.mubr.f32.mxu0 0.0
    %v5182 = vand.u32 %v3502, 4294901760
    %v5183 = vsub.f32 %v3502, %v5182
    %5184 = vmatmul.mubr.f32.gmra.mxu0 %v5183
    %v5185 = vpop.f32.mrf.mxu0
    %v5186 = vadd.f32 %v4663, %v5185
    %v5187 = vpop.f32.mrf.mxu0
    %5188 = vmatprep.mubr.f32.mxu0 0.0
    %v5189 = vand.u32 %v3503, 4294901760
    %v5190 = vsub.f32 %v3503, %v5189
    %5191 = vmatmul.mubr.f32.gmra.mxu0 %v5190
    %v5192 = vpop.f32.mrf.mxu0
    %v5193 = vadd.f32 %v4669, %v5192
    %v5194 = vpop.f32.mrf.mxu0
    %5195 = vmatprep.mubr.f32.mxu0 0.0
    %v5196 = vand.u32 %v3504, 4294901760
    %v5197 = vsub.f32 %v3504, %v5196
    %5198 = vmatmul.mubr.f32.gmra.mxu0 %v5197
    %v5199 = vpop.f32.mrf.mxu0
    %v5200 = vadd.f32 %v4675, %v5199
    %v5201 = vpop.f32.mrf.mxu0
    %5202 = vmatprep.mubr.f32.mxu0 0.0
    %v5203 = vand.u32 %v3505, 4294901760
    %v5204 = vsub.f32 %v3505, %v5203
    %5205 = vmatmul.mubr.f32.gmra.mxu0 %v5204
    %v5206 = vpop.f32.mrf.mxu0
    %v5207 = vadd.f32 %v4681, %v5206
    %v5208 = vpop.f32.mrf.mxu0
    %5209 = vmatprep.mubr.f32.mxu0 0.0
    %v5210 = vand.u32 %v3506, 4294901760
    %v5211 = vsub.f32 %v3506, %v5210
    %5212 = vmatmul.mubr.f32.gmra.mxu0 %v5211
    %v5213 = vpop.f32.mrf.mxu0
    %v5214 = vadd.f32 %v4687, %v5213
    %v5215 = vpop.f32.mrf.mxu0
    %5216 = vmatprep.mubr.f32.mxu0 0.0
    %v5217 = vand.u32 %v3507, 4294901760
    %v5218 = vsub.f32 %v3507, %v5217
    %5219 = vmatmul.mubr.f32.gmra.mxu0 %v5218
    %v5220 = vpop.f32.mrf.mxu0
    %v5221 = vadd.f32 %v4693, %v5220
    %v5222 = vpop.f32.mrf.mxu0
    %5223 = vmatprep.mubr.f32.mxu0 0.0
    %v5224 = vand.u32 %v3508, 4294901760
    %v5225 = vsub.f32 %v3508, %v5224
    %5226 = vmatmul.mubr.f32.gmra.mxu0 %v5225
    %v5227 = vpop.f32.mrf.mxu0
    %v5228 = vadd.f32 %v4699, %v5227
    %v5229 = vpop.f32.mrf.mxu0
    %5230 = vmatprep.mubr.f32.mxu0 0.0
    %v5231 = vand.u32 %v3509, 4294901760
    %v5232 = vsub.f32 %v3509, %v5231
    %5233 = vmatmul.mubr.f32.gmra.mxu0 %v5232
    %v5234 = vpop.f32.mrf.mxu0
    %v5235 = vadd.f32 %v4705, %v5234
    %v5236 = vpop.f32.mrf.mxu0
    %5237 = vmatprep.mubr.f32.mxu0 0.0
    %v5238 = vand.u32 %v3510, 4294901760
    %v5239 = vsub.f32 %v3510, %v5238
    %5240 = vmatmul.mubr.f32.gmra.mxu0 %v5239
    %v5241 = vpop.f32.mrf.mxu0
    %v5242 = vadd.f32 %v4711, %v5241
    %v5243 = vpop.f32.mrf.mxu0
    %5244 = vmatprep.mubr.f32.mxu0 0.0
    %v5245 = vand.u32 %v3511, 4294901760
    %v5246 = vsub.f32 %v3511, %v5245
    %5247 = vmatmul.mubr.f32.gmra.mxu0 %v5246
    %v5248 = vpop.f32.mrf.mxu0
    %v5249 = vadd.f32 %v4717, %v5248
    %v5250 = vpop.f32.mrf.mxu0
    %5251 = vmatprep.mubr.f32.mxu0 0.0
    %v5252 = vand.u32 %v3512, 4294901760
    %v5253 = vsub.f32 %v3512, %v5252
    %5254 = vmatmul.mubr.f32.gmra.mxu0 %v5253
    %v5255 = vpop.f32.mrf.mxu0
    %v5256 = vadd.f32 %v4723, %v5255
    %v5257 = vpop.f32.mrf.mxu0
    %5258 = vmatprep.mubr.f32.mxu0 0.0
    %v5259 = vand.u32 %v3513, 4294901760
    %v5260 = vsub.f32 %v3513, %v5259
    %5261 = vmatmul.mubr.f32.gmra.mxu0 %v5260
    %v5262 = vpop.f32.mrf.mxu0
    %v5263 = vadd.f32 %v4729, %v5262
    %v5264 = vpop.f32.mrf.mxu0
    %5265 = vmatprep.mubr.f32.mxu0 0.0
    %v5266 = vand.u32 %v3514, 4294901760
    %v5267 = vsub.f32 %v3514, %v5266
    %5268 = vmatmul.mubr.f32.gmra.mxu0 %v5267
    %v5269 = vpop.f32.mrf.mxu0
    %v5270 = vadd.f32 %v4735, %v5269
    %v5271 = vpop.f32.mrf.mxu0
    %5272 = vmatprep.mubr.f32.mxu0 0.0
    %v5273 = vand.u32 %v3515, 4294901760
    %v5274 = vsub.f32 %v3515, %v5273
    %5275 = vmatmul.mubr.f32.gmra.mxu0 %v5274
    %v5276 = vpop.f32.mrf.mxu0
    %v5277 = vadd.f32 %v4741, %v5276
    %v5278 = vpop.f32.mrf.mxu0
    %5279 = vmatprep.mubr.f32.mxu0 0.0
    %v5280 = vand.u32 %v3516, 4294901760
    %v5281 = vsub.f32 %v3516, %v5280
    %5282 = vmatmul.mubr.f32.gmra.mxu0 %v5281
    %v5283 = vpop.f32.mrf.mxu0
    %v5284 = vadd.f32 %v4747, %v5283
    %v5285 = vpop.f32.mrf.mxu0
    %5286 = vmatprep.mubr.f32.mxu0 0.0
    %v5287 = vand.u32 %v3517, 4294901760
    %v5288 = vsub.f32 %v3517, %v5287
    %5289 = vmatmul.mubr.f32.gmra.mxu0 %v5288
    %v5290 = vpop.f32.mrf.mxu0
    %v5291 = vadd.f32 %v4753, %v5290
    %v5292 = vpop.f32.mrf.mxu0
    %5293 = vmatprep.mubr.f32.mxu0 0.0
    %v5294 = vand.u32 %v3518, 4294901760
    %v5295 = vsub.f32 %v3518, %v5294
    %5296 = vmatmul.mubr.f32.gmra.mxu0 %v5295
    %v5297 = vpop.f32.mrf.mxu0
    %v5298 = vadd.f32 %v4759, %v5297
    %v5299 = vpop.f32.mrf.mxu0
    %5300 = vmatprep.mubr.f32.mxu0 0.0
    %v5301 = vand.u32 %v3519, 4294901760
    %v5302 = vsub.f32 %v3519, %v5301
    %5303 = vmatmul.mubr.f32.gmra.mxu0 %v5302
    %v5304 = vpop.f32.mrf.mxu0
    %v5305 = vadd.f32 %v4765, %v5304
    %v5306 = vpop.f32.mrf.mxu0
    %5307 = vmatprep.mubr.f32.mxu0 0.0
    %v5308 = vand.u32 %v3520, 4294901760
    %v5309 = vsub.f32 %v3520, %v5308
    %5310 = vmatmul.mubr.f32.gmra.mxu0 %v5309
    %v5311 = vpop.f32.mrf.mxu0
    %v5312 = vadd.f32 %v4771, %v5311
    %v5313 = vpop.f32.mrf.mxu0
    %5314 = vmatprep.mubr.f32.mxu0 0.0
    %v5315 = vand.u32 %v3521, 4294901760
    %v5316 = vsub.f32 %v3521, %v5315
    %5317 = vmatmul.mubr.f32.gmra.mxu0 %v5316
    %v5318 = vpop.f32.mrf.mxu0
    %v5319 = vadd.f32 %v4777, %v5318
    %v5320 = vpop.f32.mrf.mxu0
    %5321 = vmatprep.mubr.f32.mxu0 0.0
    %v5322 = vand.u32 %v3522, 4294901760
    %v5323 = vsub.f32 %v3522, %v5322
    %5324 = vmatmul.mubr.f32.gmra.mxu0 %v5323
    %v5325 = vpop.f32.mrf.mxu0
    %v5326 = vadd.f32 %v4783, %v5325
    %v5327 = vpop.f32.mrf.mxu0
    %5328 = vmatprep.mubr.f32.mxu0 0.0
    %v5329 = vand.u32 %v3523, 4294901760
    %v5330 = vsub.f32 %v3523, %v5329
    %5331 = vmatmul.mubr.f32.gmra.mxu0 %v5330
    %v5332 = vpop.f32.mrf.mxu0
    %v5333 = vadd.f32 %v4789, %v5332
    %v5334 = vpop.f32.mrf.mxu0
    %5335 = vmatprep.mubr.f32.mxu0 0.0
    %v5336 = vand.u32 %v3524, 4294901760
    %v5337 = vsub.f32 %v3524, %v5336
    %5338 = vmatmul.mubr.f32.gmra.mxu0 %v5337
    %v5339 = vpop.f32.mrf.mxu0
    %v5340 = vadd.f32 %v4795, %v5339
    %v5341 = vpop.f32.mrf.mxu0
    %5342 = vdwg.mxu0
    %5343 = vmatprep.subr.mxu0 0.0
    %v5344 = vand.u32 %v3540, 4294901760
    %5345 = vmatpush1.msra.mxu0 %v5344
    %5346 = vmatprep.subr.mxu0 0.0
    %v5347 = vand.u32 %v3539, 4294901760
    %5348 = vmatpush1.msra.mxu0 %v5347
    %5349 = vmatprep.subr.mxu0 0.0
    %v5350 = vand.u32 %v3538, 4294901760
    %5351 = vmatpush1.msra.mxu0 %v5350
    %5352 = vmatprep.subr.mxu0 0.0
    %v5353 = vand.u32 %v3537, 4294901760
    %5354 = vmatpush1.msra.mxu0 %v5353
    %5355 = vmatprep.subr.mxu0 0.0
    %v5356 = vand.u32 %v3536, 4294901760
    %5357 = vmatpush1.msra.mxu0 %v5356
    %5358 = vmatprep.subr.mxu0 0.0
    %v5359 = vand.u32 %v3535, 4294901760
    %5360 = vmatpush1.msra.mxu0 %v5359
    %5361 = vmatprep.subr.mxu0 0.0
    %v5362 = vand.u32 %v3534, 4294901760
    %5363 = vmatpush1.msra.mxu0 %v5362
    %5364 = vmatprep.subr.mxu0 0.0
    %v5365 = vand.u32 %v3533, 4294901760
    %5366 = vmatpush1.msra.mxu0 %v5365
    %5367 = vmatprep.subr.mxu0 0.0
    %v5368 = vand.u32 %v3532, 4294901760
    %5369 = vmatpush1.msra.mxu0 %v5368
    %5370 = vmatprep.subr.mxu0 0.0
    %v5371 = vand.u32 %v3531, 4294901760
    %5372 = vmatpush1.msra.mxu0 %v5371
    %5373 = vmatprep.subr.mxu0 0.0
    %v5374 = vand.u32 %v3530, 4294901760
    %5375 = vmatpush1.msra.mxu0 %v5374
    %5376 = vmatprep.subr.mxu0 0.0
    %v5377 = vand.u32 %v3529, 4294901760
    %5378 = vmatpush1.msra.mxu0 %v5377
    %5379 = vmatprep.subr.mxu0 0.0
    %v5380 = vand.u32 %v3528, 4294901760
    %5381 = vmatpush1.msra.mxu0 %v5380
    %5382 = vmatprep.subr.mxu0 0.0
    %v5383 = vand.u32 %v3527, 4294901760
    %5384 = vmatpush1.msra.mxu0 %v5383
    %5385 = vmatprep.subr.mxu0 0.0
    %v5386 = vand.u32 %v3526, 4294901760
    %5387 = vmatpush1.msra.mxu0 %v5386
    %5388 = vmatprep.subr.mxu0 0.0
    %v5389 = vand.u32 %v3525, 4294901760
    %5390 = vmatpush1.msra.mxu0 %v5389
    %5391 = vmatprep.subr.mxu0 0.0
    %5392 = vmatpush2.msra.mxu0 0.0
    %5393 = vmatprep.subr.mxu0 0.0
    %5394 = vmatpush2.msra.mxu0 0.0
    %5395 = vmatprep.subr.mxu0 0.0
    %5396 = vmatpush2.msra.mxu0 0.0
    %5397 = vmatprep.subr.mxu0 0.0
    %5398 = vmatpush2.msra.mxu0 0.0
    %5399 = vmatprep.subr.mxu0 0.0
    %5400 = vmatpush2.msra.mxu0 0.0
    %5401 = vmatprep.subr.mxu0 0.0
    %5402 = vmatpush2.msra.mxu0 0.0
    %5403 = vmatprep.subr.mxu0 0.0
    %5404 = vmatpush2.msra.mxu0 0.0
    %5405 = vmatprep.subr.mxu0 0.0
    %5406 = vmatpush2.msra.mxu0 0.0
    %5407 = vmatprep.subr.mxu0 0.0
    %5408 = vmatpush2.msra.mxu0 0.0
    %5409 = vmatprep.subr.mxu0 0.0
    %5410 = vmatpush2.msra.mxu0 0.0
    %5411 = vmatprep.subr.mxu0 0.0
    %5412 = vmatpush2.msra.mxu0 0.0
    %5413 = vmatprep.subr.mxu0 0.0
    %5414 = vmatpush2.msra.mxu0 0.0
    %5415 = vmatprep.subr.mxu0 0.0
    %5416 = vmatpush2.msra.mxu0 0.0
    %5417 = vmatprep.subr.mxu0 0.0
    %5418 = vmatpush2.msra.mxu0 0.0
    %5419 = vmatprep.subr.mxu0 0.0
    %5420 = vmatpush2.msra.mxu0 0.0
    %5421 = vmatprep.subr.mxu0 0.0
    %5422 = vmatpush2.msra.mxu0 0.0
    %5423 = vmatprep.mubr.f32.mxu0 0.0
    %v5424 = vand.u32 %v3461, 4294901760
    %v5425 = vsub.f32 %v3461, %v5424
    %v5426 = vand.u32 %v5425, 4294901760
    %5427 = vmatmul.mubr.f32.gmra.mxu0 %v5426
    %v5428 = vpop.f32.mrf.mxu0
    %v5429 = vadd.f32 %v4899, %v5428
    %v5430 = vpop.f32.mrf.mxu0
    %5431 = vmatprep.mubr.f32.mxu0 0.0
    %v5432 = vand.u32 %v3462, 4294901760
    %v5433 = vsub.f32 %v3462, %v5432
    %v5434 = vand.u32 %v5433, 4294901760
    %5435 = vmatmul.mubr.f32.gmra.mxu0 %v5434
    %v5436 = vpop.f32.mrf.mxu0
    %v5437 = vadd.f32 %v4906, %v5436
    %v5438 = vpop.f32.mrf.mxu0
    %5439 = vmatprep.mubr.f32.mxu0 0.0
    %v5440 = vand.u32 %v3463, 4294901760
    %v5441 = vsub.f32 %v3463, %v5440
    %v5442 = vand.u32 %v5441, 4294901760
    %5443 = vmatmul.mubr.f32.gmra.mxu0 %v5442
    %v5444 = vpop.f32.mrf.mxu0
    %v5445 = vadd.f32 %v4913, %v5444
    %v5446 = vpop.f32.mrf.mxu0
    %5447 = vmatprep.mubr.f32.mxu0 0.0
    %v5448 = vand.u32 %v3464, 4294901760
    %v5449 = vsub.f32 %v3464, %v5448
    %v5450 = vand.u32 %v5449, 4294901760
    %5451 = vmatmul.mubr.f32.gmra.mxu0 %v5450
    %v5452 = vpop.f32.mrf.mxu0
    %v5453 = vadd.f32 %v4920, %v5452
    %v5454 = vpop.f32.mrf.mxu0
    %5455 = vmatprep.mubr.f32.mxu0 0.0
    %v5456 = vand.u32 %v3465, 4294901760
    %v5457 = vsub.f32 %v3465, %v5456
    %v5458 = vand.u32 %v5457, 4294901760
    %5459 = vmatmul.mubr.f32.gmra.mxu0 %v5458
    %v5460 = vpop.f32.mrf.mxu0
    %v5461 = vadd.f32 %v4927, %v5460
    %v5462 = vpop.f32.mrf.mxu0
    %5463 = vmatprep.mubr.f32.mxu0 0.0
    %v5464 = vand.u32 %v3466, 4294901760
    %v5465 = vsub.f32 %v3466, %v5464
    %v5466 = vand.u32 %v5465, 4294901760
    %5467 = vmatmul.mubr.f32.gmra.mxu0 %v5466
    %v5468 = vpop.f32.mrf.mxu0
    %v5469 = vadd.f32 %v4934, %v5468
    %v5470 = vpop.f32.mrf.mxu0
    %5471 = vmatprep.mubr.f32.mxu0 0.0
    %v5472 = vand.u32 %v3467, 4294901760
    %v5473 = vsub.f32 %v3467, %v5472
    %v5474 = vand.u32 %v5473, 4294901760
    %5475 = vmatmul.mubr.f32.gmra.mxu0 %v5474
    %v5476 = vpop.f32.mrf.mxu0
    %v5477 = vadd.f32 %v4941, %v5476
    %v5478 = vpop.f32.mrf.mxu0
    %5479 = vmatprep.mubr.f32.mxu0 0.0
    %v5480 = vand.u32 %v3468, 4294901760
    %v5481 = vsub.f32 %v3468, %v5480
    %v5482 = vand.u32 %v5481, 4294901760
    %5483 = vmatmul.mubr.f32.gmra.mxu0 %v5482
    %v5484 = vpop.f32.mrf.mxu0
    %v5485 = vadd.f32 %v4948, %v5484
    %v5486 = vpop.f32.mrf.mxu0
    %5487 = vmatprep.mubr.f32.mxu0 0.0
    %v5488 = vand.u32 %v3469, 4294901760
    %v5489 = vsub.f32 %v3469, %v5488
    %v5490 = vand.u32 %v5489, 4294901760
    %5491 = vmatmul.mubr.f32.gmra.mxu0 %v5490
    %v5492 = vpop.f32.mrf.mxu0
    %v5493 = vadd.f32 %v4955, %v5492
    %v5494 = vpop.f32.mrf.mxu0
    %5495 = vmatprep.mubr.f32.mxu0 0.0
    %v5496 = vand.u32 %v3470, 4294901760
    %v5497 = vsub.f32 %v3470, %v5496
    %v5498 = vand.u32 %v5497, 4294901760
    %5499 = vmatmul.mubr.f32.gmra.mxu0 %v5498
    %v5500 = vpop.f32.mrf.mxu0
    %v5501 = vadd.f32 %v4962, %v5500
    %v5502 = vpop.f32.mrf.mxu0
    %5503 = vmatprep.mubr.f32.mxu0 0.0
    %v5504 = vand.u32 %v3471, 4294901760
    %v5505 = vsub.f32 %v3471, %v5504
    %v5506 = vand.u32 %v5505, 4294901760
    %5507 = vmatmul.mubr.f32.gmra.mxu0 %v5506
    %v5508 = vpop.f32.mrf.mxu0
    %v5509 = vadd.f32 %v4969, %v5508
    %v5510 = vpop.f32.mrf.mxu0
    %5511 = vmatprep.mubr.f32.mxu0 0.0
    %v5512 = vand.u32 %v3472, 4294901760
    %v5513 = vsub.f32 %v3472, %v5512
    %v5514 = vand.u32 %v5513, 4294901760
    %5515 = vmatmul.mubr.f32.gmra.mxu0 %v5514
    %v5516 = vpop.f32.mrf.mxu0
    %v5517 = vadd.f32 %v4976, %v5516
    %v5518 = vpop.f32.mrf.mxu0
    %5519 = vmatprep.mubr.f32.mxu0 0.0
    %v5520 = vand.u32 %v3473, 4294901760
    %v5521 = vsub.f32 %v3473, %v5520
    %v5522 = vand.u32 %v5521, 4294901760
    %5523 = vmatmul.mubr.f32.gmra.mxu0 %v5522
    %v5524 = vpop.f32.mrf.mxu0
    %v5525 = vadd.f32 %v4983, %v5524
    %v5526 = vpop.f32.mrf.mxu0
    %5527 = vmatprep.mubr.f32.mxu0 0.0
    %v5528 = vand.u32 %v3474, 4294901760
    %v5529 = vsub.f32 %v3474, %v5528
    %v5530 = vand.u32 %v5529, 4294901760
    %5531 = vmatmul.mubr.f32.gmra.mxu0 %v5530
    %v5532 = vpop.f32.mrf.mxu0
    %v5533 = vadd.f32 %v4990, %v5532
    %v5534 = vpop.f32.mrf.mxu0
    %5535 = vmatprep.mubr.f32.mxu0 0.0
    %v5536 = vand.u32 %v3475, 4294901760
    %v5537 = vsub.f32 %v3475, %v5536
    %v5538 = vand.u32 %v5537, 4294901760
    %5539 = vmatmul.mubr.f32.gmra.mxu0 %v5538
    %v5540 = vpop.f32.mrf.mxu0
    %v5541 = vadd.f32 %v4997, %v5540
    %v5542 = vpop.f32.mrf.mxu0
    %5543 = vmatprep.mubr.f32.mxu0 0.0
    %v5544 = vand.u32 %v3476, 4294901760
    %v5545 = vsub.f32 %v3476, %v5544
    %v5546 = vand.u32 %v5545, 4294901760
    %5547 = vmatmul.mubr.f32.gmra.mxu0 %v5546
    %v5548 = vpop.f32.mrf.mxu0
    %v5549 = vadd.f32 %v5004, %v5548
    %v5550 = vpop.f32.mrf.mxu0
    %5551 = vmatprep.mubr.f32.mxu0 0.0
    %v5552 = vand.u32 %v3477, 4294901760
    %v5553 = vsub.f32 %v3477, %v5552
    %v5554 = vand.u32 %v5553, 4294901760
    %5555 = vmatmul.mubr.f32.gmra.mxu0 %v5554
    %v5556 = vpop.f32.mrf.mxu0
    %v5557 = vadd.f32 %v5011, %v5556
    %v5558 = vpop.f32.mrf.mxu0
    %5559 = vmatprep.mubr.f32.mxu0 0.0
    %v5560 = vand.u32 %v3478, 4294901760
    %v5561 = vsub.f32 %v3478, %v5560
    %v5562 = vand.u32 %v5561, 4294901760
    %5563 = vmatmul.mubr.f32.gmra.mxu0 %v5562
    %v5564 = vpop.f32.mrf.mxu0
    %v5565 = vadd.f32 %v5018, %v5564
    %v5566 = vpop.f32.mrf.mxu0
    %5567 = vmatprep.mubr.f32.mxu0 0.0
    %v5568 = vand.u32 %v3479, 4294901760
    %v5569 = vsub.f32 %v3479, %v5568
    %v5570 = vand.u32 %v5569, 4294901760
    %5571 = vmatmul.mubr.f32.gmra.mxu0 %v5570
    %v5572 = vpop.f32.mrf.mxu0
    %v5573 = vadd.f32 %v5025, %v5572
    %v5574 = vpop.f32.mrf.mxu0
    %5575 = vmatprep.mubr.f32.mxu0 0.0
    %v5576 = vand.u32 %v3480, 4294901760
    %v5577 = vsub.f32 %v3480, %v5576
    %v5578 = vand.u32 %v5577, 4294901760
    %5579 = vmatmul.mubr.f32.gmra.mxu0 %v5578
    %v5580 = vpop.f32.mrf.mxu0
    %v5581 = vadd.f32 %v5032, %v5580
    %v5582 = vpop.f32.mrf.mxu0
    %5583 = vmatprep.mubr.f32.mxu0 0.0
    %v5584 = vand.u32 %v3481, 4294901760
    %v5585 = vsub.f32 %v3481, %v5584
    %v5586 = vand.u32 %v5585, 4294901760
    %5587 = vmatmul.mubr.f32.gmra.mxu0 %v5586
    %v5588 = vpop.f32.mrf.mxu0
    %v5589 = vadd.f32 %v5039, %v5588
    %v5590 = vpop.f32.mrf.mxu0
    %5591 = vmatprep.mubr.f32.mxu0 0.0
    %v5592 = vand.u32 %v3482, 4294901760
    %v5593 = vsub.f32 %v3482, %v5592
    %v5594 = vand.u32 %v5593, 4294901760
    %5595 = vmatmul.mubr.f32.gmra.mxu0 %v5594
    %v5596 = vpop.f32.mrf.mxu0
    %v5597 = vadd.f32 %v5046, %v5596
    %v5598 = vpop.f32.mrf.mxu0
    %5599 = vmatprep.mubr.f32.mxu0 0.0
    %v5600 = vand.u32 %v3483, 4294901760
    %v5601 = vsub.f32 %v3483, %v5600
    %v5602 = vand.u32 %v5601, 4294901760
    %5603 = vmatmul.mubr.f32.gmra.mxu0 %v5602
    %v5604 = vpop.f32.mrf.mxu0
    %v5605 = vadd.f32 %v5053, %v5604
    %v5606 = vpop.f32.mrf.mxu0
    %5607 = vmatprep.mubr.f32.mxu0 0.0
    %v5608 = vand.u32 %v3484, 4294901760
    %v5609 = vsub.f32 %v3484, %v5608
    %v5610 = vand.u32 %v5609, 4294901760
    %5611 = vmatmul.mubr.f32.gmra.mxu0 %v5610
    %v5612 = vpop.f32.mrf.mxu0
    %v5613 = vadd.f32 %v5060, %v5612
    %v5614 = vpop.f32.mrf.mxu0
    %5615 = vmatprep.mubr.f32.mxu0 0.0
    %v5616 = vand.u32 %v3485, 4294901760
    %v5617 = vsub.f32 %v3485, %v5616
    %v5618 = vand.u32 %v5617, 4294901760
    %5619 = vmatmul.mubr.f32.gmra.mxu0 %v5618
    %v5620 = vpop.f32.mrf.mxu0
    %v5621 = vadd.f32 %v5067, %v5620
    %v5622 = vpop.f32.mrf.mxu0
    %5623 = vmatprep.mubr.f32.mxu0 0.0
    %v5624 = vand.u32 %v3486, 4294901760
    %v5625 = vsub.f32 %v3486, %v5624
    %v5626 = vand.u32 %v5625, 4294901760
    %5627 = vmatmul.mubr.f32.gmra.mxu0 %v5626
    %v5628 = vpop.f32.mrf.mxu0
    %v5629 = vadd.f32 %v5074, %v5628
    %v5630 = vpop.f32.mrf.mxu0
    %5631 = vmatprep.mubr.f32.mxu0 0.0
    %v5632 = vand.u32 %v3487, 4294901760
    %v5633 = vsub.f32 %v3487, %v5632
    %v5634 = vand.u32 %v5633, 4294901760
    %5635 = vmatmul.mubr.f32.gmra.mxu0 %v5634
    %v5636 = vpop.f32.mrf.mxu0
    %v5637 = vadd.f32 %v5081, %v5636
    %v5638 = vpop.f32.mrf.mxu0
    %5639 = vmatprep.mubr.f32.mxu0 0.0
    %v5640 = vand.u32 %v3488, 4294901760
    %v5641 = vsub.f32 %v3488, %v5640
    %v5642 = vand.u32 %v5641, 4294901760
    %5643 = vmatmul.mubr.f32.gmra.mxu0 %v5642
    %v5644 = vpop.f32.mrf.mxu0
    %v5645 = vadd.f32 %v5088, %v5644
    %v5646 = vpop.f32.mrf.mxu0
    %5647 = vmatprep.mubr.f32.mxu0 0.0
    %v5648 = vand.u32 %v3489, 4294901760
    %v5649 = vsub.f32 %v3489, %v5648
    %v5650 = vand.u32 %v5649, 4294901760
    %5651 = vmatmul.mubr.f32.gmra.mxu0 %v5650
    %v5652 = vpop.f32.mrf.mxu0
    %v5653 = vadd.f32 %v5095, %v5652
    %v5654 = vpop.f32.mrf.mxu0
    %5655 = vmatprep.mubr.f32.mxu0 0.0
    %v5656 = vand.u32 %v3490, 4294901760
    %v5657 = vsub.f32 %v3490, %v5656
    %v5658 = vand.u32 %v5657, 4294901760
    %5659 = vmatmul.mubr.f32.gmra.mxu0 %v5658
    %v5660 = vpop.f32.mrf.mxu0
    %v5661 = vadd.f32 %v5102, %v5660
    %v5662 = vpop.f32.mrf.mxu0
    %5663 = vmatprep.mubr.f32.mxu0 0.0
    %v5664 = vand.u32 %v3491, 4294901760
    %v5665 = vsub.f32 %v3491, %v5664
    %v5666 = vand.u32 %v5665, 4294901760
    %5667 = vmatmul.mubr.f32.gmra.mxu0 %v5666
    %v5668 = vpop.f32.mrf.mxu0
    %v5669 = vadd.f32 %v5109, %v5668
    %v5670 = vpop.f32.mrf.mxu0
    %5671 = vmatprep.mubr.f32.mxu0 0.0
    %v5672 = vand.u32 %v3492, 4294901760
    %v5673 = vsub.f32 %v3492, %v5672
    %v5674 = vand.u32 %v5673, 4294901760
    %5675 = vmatmul.mubr.f32.gmra.mxu0 %v5674
    %v5676 = vpop.f32.mrf.mxu0
    %v5677 = vadd.f32 %v5116, %v5676
    %v5678 = vpop.f32.mrf.mxu0
    %5679 = vmatprep.mubr.f32.mxu0 0.0
    %v5680 = vand.u32 %v3493, 4294901760
    %v5681 = vsub.f32 %v3493, %v5680
    %v5682 = vand.u32 %v5681, 4294901760
    %5683 = vmatmul.mubr.f32.gmra.mxu0 %v5682
    %v5684 = vpop.f32.mrf.mxu0
    %v5685 = vadd.f32 %v5123, %v5684
    %v5686 = vpop.f32.mrf.mxu0
    %5687 = vmatprep.mubr.f32.mxu0 0.0
    %v5688 = vand.u32 %v3494, 4294901760
    %v5689 = vsub.f32 %v3494, %v5688
    %v5690 = vand.u32 %v5689, 4294901760
    %5691 = vmatmul.mubr.f32.gmra.mxu0 %v5690
    %v5692 = vpop.f32.mrf.mxu0
    %v5693 = vadd.f32 %v5130, %v5692
    %v5694 = vpop.f32.mrf.mxu0
    %5695 = vmatprep.mubr.f32.mxu0 0.0
    %v5696 = vand.u32 %v3495, 4294901760
    %v5697 = vsub.f32 %v3495, %v5696
    %v5698 = vand.u32 %v5697, 4294901760
    %5699 = vmatmul.mubr.f32.gmra.mxu0 %v5698
    %v5700 = vpop.f32.mrf.mxu0
    %v5701 = vadd.f32 %v5137, %v5700
    %v5702 = vpop.f32.mrf.mxu0
    %5703 = vmatprep.mubr.f32.mxu0 0.0
    %v5704 = vand.u32 %v3496, 4294901760
    %v5705 = vsub.f32 %v3496, %v5704
    %v5706 = vand.u32 %v5705, 4294901760
    %5707 = vmatmul.mubr.f32.gmra.mxu0 %v5706
    %v5708 = vpop.f32.mrf.mxu0
    %v5709 = vadd.f32 %v5144, %v5708
    %v5710 = vpop.f32.mrf.mxu0
    %5711 = vmatprep.mubr.f32.mxu0 0.0
    %v5712 = vand.u32 %v3497, 4294901760
    %v5713 = vsub.f32 %v3497, %v5712
    %v5714 = vand.u32 %v5713, 4294901760
    %5715 = vmatmul.mubr.f32.gmra.mxu0 %v5714
    %v5716 = vpop.f32.mrf.mxu0
    %v5717 = vadd.f32 %v5151, %v5716
    %v5718 = vpop.f32.mrf.mxu0
    %5719 = vmatprep.mubr.f32.mxu0 0.0
    %v5720 = vand.u32 %v3498, 4294901760
    %v5721 = vsub.f32 %v3498, %v5720
    %v5722 = vand.u32 %v5721, 4294901760
    %5723 = vmatmul.mubr.f32.gmra.mxu0 %v5722
    %v5724 = vpop.f32.mrf.mxu0
    %v5725 = vadd.f32 %v5158, %v5724
    %v5726 = vpop.f32.mrf.mxu0
    %5727 = vmatprep.mubr.f32.mxu0 0.0
    %v5728 = vand.u32 %v3499, 4294901760
    %v5729 = vsub.f32 %v3499, %v5728
    %v5730 = vand.u32 %v5729, 4294901760
    %5731 = vmatmul.mubr.f32.gmra.mxu0 %v5730
    %v5732 = vpop.f32.mrf.mxu0
    %v5733 = vadd.f32 %v5165, %v5732
    %v5734 = vpop.f32.mrf.mxu0
    %5735 = vmatprep.mubr.f32.mxu0 0.0
    %v5736 = vand.u32 %v3500, 4294901760
    %v5737 = vsub.f32 %v3500, %v5736
    %v5738 = vand.u32 %v5737, 4294901760
    %5739 = vmatmul.mubr.f32.gmra.mxu0 %v5738
    %v5740 = vpop.f32.mrf.mxu0
    %v5741 = vadd.f32 %v5172, %v5740
    %v5742 = vpop.f32.mrf.mxu0
    %5743 = vmatprep.mubr.f32.mxu0 0.0
    %v5744 = vand.u32 %v3501, 4294901760
    %v5745 = vsub.f32 %v3501, %v5744
    %v5746 = vand.u32 %v5745, 4294901760
    %5747 = vmatmul.mubr.f32.gmra.mxu0 %v5746
    %v5748 = vpop.f32.mrf.mxu0
    %v5749 = vadd.f32 %v5179, %v5748
    %v5750 = vpop.f32.mrf.mxu0
    %5751 = vmatprep.mubr.f32.mxu0 0.0
    %v5752 = vand.u32 %v3502, 4294901760
    %v5753 = vsub.f32 %v3502, %v5752
    %v5754 = vand.u32 %v5753, 4294901760
    %5755 = vmatmul.mubr.f32.gmra.mxu0 %v5754
    %v5756 = vpop.f32.mrf.mxu0
    %v5757 = vadd.f32 %v5186, %v5756
    %v5758 = vpop.f32.mrf.mxu0
    %5759 = vmatprep.mubr.f32.mxu0 0.0
    %v5760 = vand.u32 %v3503, 4294901760
    %v5761 = vsub.f32 %v3503, %v5760
    %v5762 = vand.u32 %v5761, 4294901760
    %5763 = vmatmul.mubr.f32.gmra.mxu0 %v5762
    %v5764 = vpop.f32.mrf.mxu0
    %v5765 = vadd.f32 %v5193, %v5764
    %v5766 = vpop.f32.mrf.mxu0
    %5767 = vmatprep.mubr.f32.mxu0 0.0
    %v5768 = vand.u32 %v3504, 4294901760
    %v5769 = vsub.f32 %v3504, %v5768
    %v5770 = vand.u32 %v5769, 4294901760
    %5771 = vmatmul.mubr.f32.gmra.mxu0 %v5770
    %v5772 = vpop.f32.mrf.mxu0
    %v5773 = vadd.f32 %v5200, %v5772
    %v5774 = vpop.f32.mrf.mxu0
    %5775 = vmatprep.mubr.f32.mxu0 0.0
    %v5776 = vand.u32 %v3505, 4294901760
    %v5777 = vsub.f32 %v3505, %v5776
    %v5778 = vand.u32 %v5777, 4294901760
    %5779 = vmatmul.mubr.f32.gmra.mxu0 %v5778
    %v5780 = vpop.f32.mrf.mxu0
    %v5781 = vadd.f32 %v5207, %v5780
    %v5782 = vpop.f32.mrf.mxu0
    %5783 = vmatprep.mubr.f32.mxu0 0.0
    %v5784 = vand.u32 %v3506, 4294901760
    %v5785 = vsub.f32 %v3506, %v5784
    %v5786 = vand.u32 %v5785, 4294901760
    %5787 = vmatmul.mubr.f32.gmra.mxu0 %v5786
    %v5788 = vpop.f32.mrf.mxu0
    %v5789 = vadd.f32 %v5214, %v5788
    %v5790 = vpop.f32.mrf.mxu0
    %5791 = vmatprep.mubr.f32.mxu0 0.0
    %v5792 = vand.u32 %v3507, 4294901760
    %v5793 = vsub.f32 %v3507, %v5792
    %v5794 = vand.u32 %v5793, 4294901760
    %5795 = vmatmul.mubr.f32.gmra.mxu0 %v5794
    %v5796 = vpop.f32.mrf.mxu0
    %v5797 = vadd.f32 %v5221, %v5796
    %v5798 = vpop.f32.mrf.mxu0
    %5799 = vmatprep.mubr.f32.mxu0 0.0
    %v5800 = vand.u32 %v3508, 4294901760
    %v5801 = vsub.f32 %v3508, %v5800
    %v5802 = vand.u32 %v5801, 4294901760
    %5803 = vmatmul.mubr.f32.gmra.mxu0 %v5802
    %v5804 = vpop.f32.mrf.mxu0
    %v5805 = vadd.f32 %v5228, %v5804
    %v5806 = vpop.f32.mrf.mxu0
    %5807 = vmatprep.mubr.f32.mxu0 0.0
    %v5808 = vand.u32 %v3509, 4294901760
    %v5809 = vsub.f32 %v3509, %v5808
    %v5810 = vand.u32 %v5809, 4294901760
    %5811 = vmatmul.mubr.f32.gmra.mxu0 %v5810
    %v5812 = vpop.f32.mrf.mxu0
    %v5813 = vadd.f32 %v5235, %v5812
    %v5814 = vpop.f32.mrf.mxu0
    %5815 = vmatprep.mubr.f32.mxu0 0.0
    %v5816 = vand.u32 %v3510, 4294901760
    %v5817 = vsub.f32 %v3510, %v5816
    %v5818 = vand.u32 %v5817, 4294901760
    %5819 = vmatmul.mubr.f32.gmra.mxu0 %v5818
    %v5820 = vpop.f32.mrf.mxu0
    %v5821 = vadd.f32 %v5242, %v5820
    %v5822 = vpop.f32.mrf.mxu0
    %5823 = vmatprep.mubr.f32.mxu0 0.0
    %v5824 = vand.u32 %v3511, 4294901760
    %v5825 = vsub.f32 %v3511, %v5824
    %v5826 = vand.u32 %v5825, 4294901760
    %5827 = vmatmul.mubr.f32.gmra.mxu0 %v5826
    %v5828 = vpop.f32.mrf.mxu0
    %v5829 = vadd.f32 %v5249, %v5828
    %v5830 = vpop.f32.mrf.mxu0
    %5831 = vmatprep.mubr.f32.mxu0 0.0
    %v5832 = vand.u32 %v3512, 4294901760
    %v5833 = vsub.f32 %v3512, %v5832
    %v5834 = vand.u32 %v5833, 4294901760
    %5835 = vmatmul.mubr.f32.gmra.mxu0 %v5834
    %v5836 = vpop.f32.mrf.mxu0
    %v5837 = vadd.f32 %v5256, %v5836
    %v5838 = vpop.f32.mrf.mxu0
    %5839 = vmatprep.mubr.f32.mxu0 0.0
    %v5840 = vand.u32 %v3513, 4294901760
    %v5841 = vsub.f32 %v3513, %v5840
    %v5842 = vand.u32 %v5841, 4294901760
    %5843 = vmatmul.mubr.f32.gmra.mxu0 %v5842
    %v5844 = vpop.f32.mrf.mxu0
    %v5845 = vadd.f32 %v5263, %v5844
    %v5846 = vpop.f32.mrf.mxu0
    %5847 = vmatprep.mubr.f32.mxu0 0.0
    %v5848 = vand.u32 %v3514, 4294901760
    %v5849 = vsub.f32 %v3514, %v5848
    %v5850 = vand.u32 %v5849, 4294901760
    %5851 = vmatmul.mubr.f32.gmra.mxu0 %v5850
    %v5852 = vpop.f32.mrf.mxu0
    %v5853 = vadd.f32 %v5270, %v5852
    %v5854 = vpop.f32.mrf.mxu0
    %5855 = vmatprep.mubr.f32.mxu0 0.0
    %v5856 = vand.u32 %v3515, 4294901760
    %v5857 = vsub.f32 %v3515, %v5856
    %v5858 = vand.u32 %v5857, 4294901760
    %5859 = vmatmul.mubr.f32.gmra.mxu0 %v5858
    %v5860 = vpop.f32.mrf.mxu0
    %v5861 = vadd.f32 %v5277, %v5860
    %v5862 = vpop.f32.mrf.mxu0
    %5863 = vmatprep.mubr.f32.mxu0 0.0
    %v5864 = vand.u32 %v3516, 4294901760
    %v5865 = vsub.f32 %v3516, %v5864
    %v5866 = vand.u32 %v5865, 4294901760
    %5867 = vmatmul.mubr.f32.gmra.mxu0 %v5866
    %v5868 = vpop.f32.mrf.mxu0
    %v5869 = vadd.f32 %v5284, %v5868
    %v5870 = vpop.f32.mrf.mxu0
    %5871 = vmatprep.mubr.f32.mxu0 0.0
    %v5872 = vand.u32 %v3517, 4294901760
    %v5873 = vsub.f32 %v3517, %v5872
    %v5874 = vand.u32 %v5873, 4294901760
    %5875 = vmatmul.mubr.f32.gmra.mxu0 %v5874
    %v5876 = vpop.f32.mrf.mxu0
    %v5877 = vadd.f32 %v5291, %v5876
    %v5878 = vpop.f32.mrf.mxu0
    %5879 = vmatprep.mubr.f32.mxu0 0.0
    %v5880 = vand.u32 %v3518, 4294901760
    %v5881 = vsub.f32 %v3518, %v5880
    %v5882 = vand.u32 %v5881, 4294901760
    %5883 = vmatmul.mubr.f32.gmra.mxu0 %v5882
    %v5884 = vpop.f32.mrf.mxu0
    %v5885 = vadd.f32 %v5298, %v5884
    %v5886 = vpop.f32.mrf.mxu0
    %5887 = vmatprep.mubr.f32.mxu0 0.0
    %v5888 = vand.u32 %v3519, 4294901760
    %v5889 = vsub.f32 %v3519, %v5888
    %v5890 = vand.u32 %v5889, 4294901760
    %5891 = vmatmul.mubr.f32.gmra.mxu0 %v5890
    %v5892 = vpop.f32.mrf.mxu0
    %v5893 = vadd.f32 %v5305, %v5892
    %v5894 = vpop.f32.mrf.mxu0
    %5895 = vmatprep.mubr.f32.mxu0 0.0
    %v5896 = vand.u32 %v3520, 4294901760
    %v5897 = vsub.f32 %v3520, %v5896
    %v5898 = vand.u32 %v5897, 4294901760
    %5899 = vmatmul.mubr.f32.gmra.mxu0 %v5898
    %v5900 = vpop.f32.mrf.mxu0
    %v5901 = vadd.f32 %v5312, %v5900
    %v5902 = vpop.f32.mrf.mxu0
    %5903 = vmatprep.mubr.f32.mxu0 0.0
    %v5904 = vand.u32 %v3521, 4294901760
    %v5905 = vsub.f32 %v3521, %v5904
    %v5906 = vand.u32 %v5905, 4294901760
    %5907 = vmatmul.mubr.f32.gmra.mxu0 %v5906
    %v5908 = vpop.f32.mrf.mxu0
    %v5909 = vadd.f32 %v5319, %v5908
    %v5910 = vpop.f32.mrf.mxu0
    %5911 = vmatprep.mubr.f32.mxu0 0.0
    %v5912 = vand.u32 %v3522, 4294901760
    %v5913 = vsub.f32 %v3522, %v5912
    %v5914 = vand.u32 %v5913, 4294901760
    %5915 = vmatmul.mubr.f32.gmra.mxu0 %v5914
    %v5916 = vpop.f32.mrf.mxu0
    %v5917 = vadd.f32 %v5326, %v5916
    %v5918 = vpop.f32.mrf.mxu0
    %5919 = vmatprep.mubr.f32.mxu0 0.0
    %v5920 = vand.u32 %v3523, 4294901760
    %v5921 = vsub.f32 %v3523, %v5920
    %v5922 = vand.u32 %v5921, 4294901760
    %5923 = vmatmul.mubr.f32.gmra.mxu0 %v5922
    %v5924 = vpop.f32.mrf.mxu0
    %v5925 = vadd.f32 %v5333, %v5924
    %v5926 = vpop.f32.mrf.mxu0
    %5927 = vmatprep.mubr.f32.mxu0 0.0
    %v5928 = vand.u32 %v3524, 4294901760
    %v5929 = vsub.f32 %v3524, %v5928
    %v5930 = vand.u32 %v5929, 4294901760
    %5931 = vmatmul.mubr.f32.gmra.mxu0 %v5930
    %v5932 = vpop.f32.mrf.mxu0
    %v5933 = vadd.f32 %v5340, %v5932
    %v5934 = vpop.f32.mrf.mxu0
    %5935 = vdwg.mxu0
    %5936 = vmatprep.subr.mxu0 0.0
    %v5937 = vand.u32 %v3540, 4294901760
    %v5938 = vsub.f32 %v3540, %v5937
    %v5939 = vand.u32 %v5938, 4294901760
    %5940 = vmatpush1.msra.mxu0 %v5939
    %5941 = vmatprep.subr.mxu0 0.0
    %v5942 = vand.u32 %v3539, 4294901760
    %v5943 = vsub.f32 %v3539, %v5942
    %v5944 = vand.u32 %v5943, 4294901760
    %5945 = vmatpush1.msra.mxu0 %v5944
    %5946 = vmatprep.subr.mxu0 0.0
    %v5947 = vand.u32 %v3538, 4294901760
    %v5948 = vsub.f32 %v3538, %v5947
    %v5949 = vand.u32 %v5948, 4294901760
    %5950 = vmatpush1.msra.mxu0 %v5949
    %5951 = vmatprep.subr.mxu0 0.0
    %v5952 = vand.u32 %v3537, 4294901760
    %v5953 = vsub.f32 %v3537, %v5952
    %v5954 = vand.u32 %v5953, 4294901760
    %5955 = vmatpush1.msra.mxu0 %v5954
    %5956 = vmatprep.subr.mxu0 0.0
    %v5957 = vand.u32 %v3536, 4294901760
    %v5958 = vsub.f32 %v3536, %v5957
    %v5959 = vand.u32 %v5958, 4294901760
    %5960 = vmatpush1.msra.mxu0 %v5959
    %5961 = vmatprep.subr.mxu0 0.0
    %v5962 = vand.u32 %v3535, 4294901760
    %v5963 = vsub.f32 %v3535, %v5962
    %v5964 = vand.u32 %v5963, 4294901760
    %5965 = vmatpush1.msra.mxu0 %v5964
    %5966 = vmatprep.subr.mxu0 0.0
    %v5967 = vand.u32 %v3534, 4294901760
    %v5968 = vsub.f32 %v3534, %v5967
    %v5969 = vand.u32 %v5968, 4294901760
    %5970 = vmatpush1.msra.mxu0 %v5969
    %5971 = vmatprep.subr.mxu0 0.0
    %v5972 = vand.u32 %v3533, 4294901760
    %v5973 = vsub.f32 %v3533, %v5972
    %v5974 = vand.u32 %v5973, 4294901760
    %5975 = vmatpush1.msra.mxu0 %v5974
    %5976 = vmatprep.subr.mxu0 0.0
    %v5977 = vand.u32 %v3532, 4294901760
    %v5978 = vsub.f32 %v3532, %v5977
    %v5979 = vand.u32 %v5978, 4294901760
    %5980 = vmatpush1.msra.mxu0 %v5979
    %5981 = vmatprep.subr.mxu0 0.0
    %v5982 = vand.u32 %v3531, 4294901760
    %v5983 = vsub.f32 %v3531, %v5982
    %v5984 = vand.u32 %v5983, 4294901760
    %5985 = vmatpush1.msra.mxu0 %v5984
    %5986 = vmatprep.subr.mxu0 0.0
    %v5987 = vand.u32 %v3530, 4294901760
    %v5988 = vsub.f32 %v3530, %v5987
    %v5989 = vand.u32 %v5988, 4294901760
    %5990 = vmatpush1.msra.mxu0 %v5989
    %5991 = vmatprep.subr.mxu0 0.0
    %v5992 = vand.u32 %v3529, 4294901760
    %v5993 = vsub.f32 %v3529, %v5992
    %v5994 = vand.u32 %v5993, 4294901760
    %5995 = vmatpush1.msra.mxu0 %v5994
    %5996 = vmatprep.subr.mxu0 0.0
    %v5997 = vand.u32 %v3528, 4294901760
    %v5998 = vsub.f32 %v3528, %v5997
    %v5999 = vand.u32 %v5998, 4294901760
    %6000 = vmatpush1.msra.mxu0 %v5999
    %6001 = vmatprep.subr.mxu0 0.0
    %v6002 = vand.u32 %v3527, 4294901760
    %v6003 = vsub.f32 %v3527, %v6002
    %v6004 = vand.u32 %v6003, 4294901760
    %6005 = vmatpush1.msra.mxu0 %v6004
    %6006 = vmatprep.subr.mxu0 0.0
    %v6007 = vand.u32 %v3526, 4294901760
    %v6008 = vsub.f32 %v3526, %v6007
    %v6009 = vand.u32 %v6008, 4294901760
    %6010 = vmatpush1.msra.mxu0 %v6009
    %6011 = vmatprep.subr.mxu0 0.0
    %v6012 = vand.u32 %v3525, 4294901760
    %v6013 = vsub.f32 %v3525, %v6012
    %v6014 = vand.u32 %v6013, 4294901760
    %6015 = vmatpush1.msra.mxu0 %v6014
    %6016 = vmatprep.subr.mxu0 0.0
    %6017 = vmatpush2.msra.mxu0 0.0
    %6018 = vmatprep.subr.mxu0 0.0
    %6019 = vmatpush2.msra.mxu0 0.0
    %6020 = vmatprep.subr.mxu0 0.0
    %6021 = vmatpush2.msra.mxu0 0.0
    %6022 = vmatprep.subr.mxu0 0.0
    %6023 = vmatpush2.msra.mxu0 0.0
    %6024 = vmatprep.subr.mxu0 0.0
    %6025 = vmatpush2.msra.mxu0 0.0
    %6026 = vmatprep.subr.mxu0 0.0
    %6027 = vmatpush2.msra.mxu0 0.0
    %6028 = vmatprep.subr.mxu0 0.0
    %6029 = vmatpush2.msra.mxu0 0.0
    %6030 = vmatprep.subr.mxu0 0.0
    %6031 = vmatpush2.msra.mxu0 0.0
    %6032 = vmatprep.subr.mxu0 0.0
    %6033 = vmatpush2.msra.mxu0 0.0
    %6034 = vmatprep.subr.mxu0 0.0
    %6035 = vmatpush2.msra.mxu0 0.0
    %6036 = vmatprep.subr.mxu0 0.0
    %6037 = vmatpush2.msra.mxu0 0.0
    %6038 = vmatprep.subr.mxu0 0.0
    %6039 = vmatpush2.msra.mxu0 0.0
    %6040 = vmatprep.subr.mxu0 0.0
    %6041 = vmatpush2.msra.mxu0 0.0
    %6042 = vmatprep.subr.mxu0 0.0
    %6043 = vmatpush2.msra.mxu0 0.0
    %6044 = vmatprep.subr.mxu0 0.0
    %6045 = vmatpush2.msra.mxu0 0.0
    %6046 = vmatprep.subr.mxu0 0.0
    %6047 = vmatpush2.msra.mxu0 0.0
    %6048 = vmatprep.mubr.f32.mxu0 0.0
    %v6049 = vand.u32 %v3461, 4294901760
    %6050 = vmatmul.mubr.f32.gmra.mxu0 %v6049
    %v6051 = vpop.f32.mrf.mxu0
    %v6052 = vadd.f32 %v5429, %v6051
    %v6053 = vpop.f32.mrf.mxu0
    %6054 = vmatprep.mubr.f32.mxu0 0.0
    %v6055 = vand.u32 %v3462, 4294901760
    %6056 = vmatmul.mubr.f32.gmra.mxu0 %v6055
    %v6057 = vpop.f32.mrf.mxu0
    %v6058 = vadd.f32 %v5437, %v6057
    %v6059 = vpop.f32.mrf.mxu0
    %6060 = vmatprep.mubr.f32.mxu0 0.0
    %v6061 = vand.u32 %v3463, 4294901760
    %6062 = vmatmul.mubr.f32.gmra.mxu0 %v6061
    %v6063 = vpop.f32.mrf.mxu0
    %v6064 = vadd.f32 %v5445, %v6063
    %v6065 = vpop.f32.mrf.mxu0
    %6066 = vmatprep.mubr.f32.mxu0 0.0
    %v6067 = vand.u32 %v3464, 4294901760
    %6068 = vmatmul.mubr.f32.gmra.mxu0 %v6067
    %v6069 = vpop.f32.mrf.mxu0
    %v6070 = vadd.f32 %v5453, %v6069
    %v6071 = vpop.f32.mrf.mxu0
    %6072 = vmatprep.mubr.f32.mxu0 0.0
    %v6073 = vand.u32 %v3465, 4294901760
    %6074 = vmatmul.mubr.f32.gmra.mxu0 %v6073
    %v6075 = vpop.f32.mrf.mxu0
    %v6076 = vadd.f32 %v5461, %v6075
    %v6077 = vpop.f32.mrf.mxu0
    %6078 = vmatprep.mubr.f32.mxu0 0.0
    %v6079 = vand.u32 %v3466, 4294901760
    %6080 = vmatmul.mubr.f32.gmra.mxu0 %v6079
    %v6081 = vpop.f32.mrf.mxu0
    %v6082 = vadd.f32 %v5469, %v6081
    %v6083 = vpop.f32.mrf.mxu0
    %6084 = vmatprep.mubr.f32.mxu0 0.0
    %v6085 = vand.u32 %v3467, 4294901760
    %6086 = vmatmul.mubr.f32.gmra.mxu0 %v6085
    %v6087 = vpop.f32.mrf.mxu0
    %v6088 = vadd.f32 %v5477, %v6087
    %v6089 = vpop.f32.mrf.mxu0
    %6090 = vmatprep.mubr.f32.mxu0 0.0
    %v6091 = vand.u32 %v3468, 4294901760
    %6092 = vmatmul.mubr.f32.gmra.mxu0 %v6091
    %v6093 = vpop.f32.mrf.mxu0
    %v6094 = vadd.f32 %v5485, %v6093
    %v6095 = vpop.f32.mrf.mxu0
    %6096 = vmatprep.mubr.f32.mxu0 0.0
    %v6097 = vand.u32 %v3469, 4294901760
    %6098 = vmatmul.mubr.f32.gmra.mxu0 %v6097
    %v6099 = vpop.f32.mrf.mxu0
    %v6100 = vadd.f32 %v5493, %v6099
    %v6101 = vpop.f32.mrf.mxu0
    %6102 = vmatprep.mubr.f32.mxu0 0.0
    %v6103 = vand.u32 %v3470, 4294901760
    %6104 = vmatmul.mubr.f32.gmra.mxu0 %v6103
    %v6105 = vpop.f32.mrf.mxu0
    %v6106 = vadd.f32 %v5501, %v6105
    %v6107 = vpop.f32.mrf.mxu0
    %6108 = vmatprep.mubr.f32.mxu0 0.0
    %v6109 = vand.u32 %v3471, 4294901760
    %6110 = vmatmul.mubr.f32.gmra.mxu0 %v6109
    %v6111 = vpop.f32.mrf.mxu0
    %v6112 = vadd.f32 %v5509, %v6111
    %v6113 = vpop.f32.mrf.mxu0
    %6114 = vmatprep.mubr.f32.mxu0 0.0
    %v6115 = vand.u32 %v3472, 4294901760
    %6116 = vmatmul.mubr.f32.gmra.mxu0 %v6115
    %v6117 = vpop.f32.mrf.mxu0
    %v6118 = vadd.f32 %v5517, %v6117
    %v6119 = vpop.f32.mrf.mxu0
    %6120 = vmatprep.mubr.f32.mxu0 0.0
    %v6121 = vand.u32 %v3473, 4294901760
    %6122 = vmatmul.mubr.f32.gmra.mxu0 %v6121
    %v6123 = vpop.f32.mrf.mxu0
    %v6124 = vadd.f32 %v5525, %v6123
    %v6125 = vpop.f32.mrf.mxu0
    %6126 = vmatprep.mubr.f32.mxu0 0.0
    %v6127 = vand.u32 %v3474, 4294901760
    %6128 = vmatmul.mubr.f32.gmra.mxu0 %v6127
    %v6129 = vpop.f32.mrf.mxu0
    %v6130 = vadd.f32 %v5533, %v6129
    %v6131 = vpop.f32.mrf.mxu0
    %6132 = vmatprep.mubr.f32.mxu0 0.0
    %v6133 = vand.u32 %v3475, 4294901760
    %6134 = vmatmul.mubr.f32.gmra.mxu0 %v6133
    %v6135 = vpop.f32.mrf.mxu0
    %v6136 = vadd.f32 %v5541, %v6135
    %v6137 = vpop.f32.mrf.mxu0
    %6138 = vmatprep.mubr.f32.mxu0 0.0
    %v6139 = vand.u32 %v3476, 4294901760
    %6140 = vmatmul.mubr.f32.gmra.mxu0 %v6139
    %v6141 = vpop.f32.mrf.mxu0
    %v6142 = vadd.f32 %v5549, %v6141
    %v6143 = vpop.f32.mrf.mxu0
    %6144 = vmatprep.mubr.f32.mxu0 0.0
    %v6145 = vand.u32 %v3477, 4294901760
    %6146 = vmatmul.mubr.f32.gmra.mxu0 %v6145
    %v6147 = vpop.f32.mrf.mxu0
    %v6148 = vadd.f32 %v5557, %v6147
    %v6149 = vpop.f32.mrf.mxu0
    %6150 = vmatprep.mubr.f32.mxu0 0.0
    %v6151 = vand.u32 %v3478, 4294901760
    %6152 = vmatmul.mubr.f32.gmra.mxu0 %v6151
    %v6153 = vpop.f32.mrf.mxu0
    %v6154 = vadd.f32 %v5565, %v6153
    %v6155 = vpop.f32.mrf.mxu0
    %6156 = vmatprep.mubr.f32.mxu0 0.0
    %v6157 = vand.u32 %v3479, 4294901760
    %6158 = vmatmul.mubr.f32.gmra.mxu0 %v6157
    %v6159 = vpop.f32.mrf.mxu0
    %v6160 = vadd.f32 %v5573, %v6159
    %v6161 = vpop.f32.mrf.mxu0
    %6162 = vmatprep.mubr.f32.mxu0 0.0
    %v6163 = vand.u32 %v3480, 4294901760
    %6164 = vmatmul.mubr.f32.gmra.mxu0 %v6163
    %v6165 = vpop.f32.mrf.mxu0
    %v6166 = vadd.f32 %v5581, %v6165
    %v6167 = vpop.f32.mrf.mxu0
    %6168 = vmatprep.mubr.f32.mxu0 0.0
    %v6169 = vand.u32 %v3481, 4294901760
    %6170 = vmatmul.mubr.f32.gmra.mxu0 %v6169
    %v6171 = vpop.f32.mrf.mxu0
    %v6172 = vadd.f32 %v5589, %v6171
    %v6173 = vpop.f32.mrf.mxu0
    %6174 = vmatprep.mubr.f32.mxu0 0.0
    %v6175 = vand.u32 %v3482, 4294901760
    %6176 = vmatmul.mubr.f32.gmra.mxu0 %v6175
    %v6177 = vpop.f32.mrf.mxu0
    %v6178 = vadd.f32 %v5597, %v6177
    %v6179 = vpop.f32.mrf.mxu0
    %6180 = vmatprep.mubr.f32.mxu0 0.0
    %v6181 = vand.u32 %v3483, 4294901760
    %6182 = vmatmul.mubr.f32.gmra.mxu0 %v6181
    %v6183 = vpop.f32.mrf.mxu0
    %v6184 = vadd.f32 %v5605, %v6183
    %v6185 = vpop.f32.mrf.mxu0
    %6186 = vmatprep.mubr.f32.mxu0 0.0
    %v6187 = vand.u32 %v3484, 4294901760
    %6188 = vmatmul.mubr.f32.gmra.mxu0 %v6187
    %v6189 = vpop.f32.mrf.mxu0
    %v6190 = vadd.f32 %v5613, %v6189
    %v6191 = vpop.f32.mrf.mxu0
    %6192 = vmatprep.mubr.f32.mxu0 0.0
    %v6193 = vand.u32 %v3485, 4294901760
    %6194 = vmatmul.mubr.f32.gmra.mxu0 %v6193
    %v6195 = vpop.f32.mrf.mxu0
    %v6196 = vadd.f32 %v5621, %v6195
    %v6197 = vpop.f32.mrf.mxu0
    %6198 = vmatprep.mubr.f32.mxu0 0.0
    %v6199 = vand.u32 %v3486, 4294901760
    %6200 = vmatmul.mubr.f32.gmra.mxu0 %v6199
    %v6201 = vpop.f32.mrf.mxu0
    %v6202 = vadd.f32 %v5629, %v6201
    %v6203 = vpop.f32.mrf.mxu0
    %6204 = vmatprep.mubr.f32.mxu0 0.0
    %v6205 = vand.u32 %v3487, 4294901760
    %6206 = vmatmul.mubr.f32.gmra.mxu0 %v6205
    %v6207 = vpop.f32.mrf.mxu0
    %v6208 = vadd.f32 %v5637, %v6207
    %v6209 = vpop.f32.mrf.mxu0
    %6210 = vmatprep.mubr.f32.mxu0 0.0
    %v6211 = vand.u32 %v3488, 4294901760
    %6212 = vmatmul.mubr.f32.gmra.mxu0 %v6211
    %v6213 = vpop.f32.mrf.mxu0
    %v6214 = vadd.f32 %v5645, %v6213
    %v6215 = vpop.f32.mrf.mxu0
    %6216 = vmatprep.mubr.f32.mxu0 0.0
    %v6217 = vand.u32 %v3489, 4294901760
    %6218 = vmatmul.mubr.f32.gmra.mxu0 %v6217
    %v6219 = vpop.f32.mrf.mxu0
    %v6220 = vadd.f32 %v5653, %v6219
    %v6221 = vpop.f32.mrf.mxu0
    %6222 = vmatprep.mubr.f32.mxu0 0.0
    %v6223 = vand.u32 %v3490, 4294901760
    %6224 = vmatmul.mubr.f32.gmra.mxu0 %v6223
    %v6225 = vpop.f32.mrf.mxu0
    %v6226 = vadd.f32 %v5661, %v6225
    %v6227 = vpop.f32.mrf.mxu0
    %6228 = vmatprep.mubr.f32.mxu0 0.0
    %v6229 = vand.u32 %v3491, 4294901760
    %6230 = vmatmul.mubr.f32.gmra.mxu0 %v6229
    %v6231 = vpop.f32.mrf.mxu0
    %v6232 = vadd.f32 %v5669, %v6231
    %v6233 = vpop.f32.mrf.mxu0
    %6234 = vmatprep.mubr.f32.mxu0 0.0
    %v6235 = vand.u32 %v3492, 4294901760
    %6236 = vmatmul.mubr.f32.gmra.mxu0 %v6235
    %v6237 = vpop.f32.mrf.mxu0
    %v6238 = vadd.f32 %v5677, %v6237
    %v6239 = vpop.f32.mrf.mxu0
    %6240 = vmatprep.mubr.f32.mxu0 0.0
    %v6241 = vand.u32 %v3493, 4294901760
    %6242 = vmatmul.mubr.f32.gmra.mxu0 %v6241
    %v6243 = vpop.f32.mrf.mxu0
    %v6244 = vadd.f32 %v5685, %v6243
    %v6245 = vpop.f32.mrf.mxu0
    %6246 = vmatprep.mubr.f32.mxu0 0.0
    %v6247 = vand.u32 %v3494, 4294901760
    %6248 = vmatmul.mubr.f32.gmra.mxu0 %v6247
    %v6249 = vpop.f32.mrf.mxu0
    %v6250 = vadd.f32 %v5693, %v6249
    %v6251 = vpop.f32.mrf.mxu0
    %6252 = vmatprep.mubr.f32.mxu0 0.0
    %v6253 = vand.u32 %v3495, 4294901760
    %6254 = vmatmul.mubr.f32.gmra.mxu0 %v6253
    %v6255 = vpop.f32.mrf.mxu0
    %v6256 = vadd.f32 %v5701, %v6255
    %v6257 = vpop.f32.mrf.mxu0
    %6258 = vmatprep.mubr.f32.mxu0 0.0
    %v6259 = vand.u32 %v3496, 4294901760
    %6260 = vmatmul.mubr.f32.gmra.mxu0 %v6259
    %v6261 = vpop.f32.mrf.mxu0
    %v6262 = vadd.f32 %v5709, %v6261
    %v6263 = vpop.f32.mrf.mxu0
    %6264 = vmatprep.mubr.f32.mxu0 0.0
    %v6265 = vand.u32 %v3497, 4294901760
    %6266 = vmatmul.mubr.f32.gmra.mxu0 %v6265
    %v6267 = vpop.f32.mrf.mxu0
    %v6268 = vadd.f32 %v5717, %v6267
    %v6269 = vpop.f32.mrf.mxu0
    %6270 = vmatprep.mubr.f32.mxu0 0.0
    %v6271 = vand.u32 %v3498, 4294901760
    %6272 = vmatmul.mubr.f32.gmra.mxu0 %v6271
    %v6273 = vpop.f32.mrf.mxu0
    %v6274 = vadd.f32 %v5725, %v6273
    %v6275 = vpop.f32.mrf.mxu0
    %6276 = vmatprep.mubr.f32.mxu0 0.0
    %v6277 = vand.u32 %v3499, 4294901760
    %6278 = vmatmul.mubr.f32.gmra.mxu0 %v6277
    %v6279 = vpop.f32.mrf.mxu0
    %v6280 = vadd.f32 %v5733, %v6279
    %v6281 = vpop.f32.mrf.mxu0
    %6282 = vmatprep.mubr.f32.mxu0 0.0
    %v6283 = vand.u32 %v3500, 4294901760
    %6284 = vmatmul.mubr.f32.gmra.mxu0 %v6283
    %v6285 = vpop.f32.mrf.mxu0
    %v6286 = vadd.f32 %v5741, %v6285
    %v6287 = vpop.f32.mrf.mxu0
    %6288 = vmatprep.mubr.f32.mxu0 0.0
    %v6289 = vand.u32 %v3501, 4294901760
    %6290 = vmatmul.mubr.f32.gmra.mxu0 %v6289
    %v6291 = vpop.f32.mrf.mxu0
    %v6292 = vadd.f32 %v5749, %v6291
    %v6293 = vpop.f32.mrf.mxu0
    %6294 = vmatprep.mubr.f32.mxu0 0.0
    %v6295 = vand.u32 %v3502, 4294901760
    %6296 = vmatmul.mubr.f32.gmra.mxu0 %v6295
    %v6297 = vpop.f32.mrf.mxu0
    %v6298 = vadd.f32 %v5757, %v6297
    %v6299 = vpop.f32.mrf.mxu0
    %6300 = vmatprep.mubr.f32.mxu0 0.0
    %v6301 = vand.u32 %v3503, 4294901760
    %6302 = vmatmul.mubr.f32.gmra.mxu0 %v6301
    %v6303 = vpop.f32.mrf.mxu0
    %v6304 = vadd.f32 %v5765, %v6303
    %v6305 = vpop.f32.mrf.mxu0
    %6306 = vmatprep.mubr.f32.mxu0 0.0
    %v6307 = vand.u32 %v3504, 4294901760
    %6308 = vmatmul.mubr.f32.gmra.mxu0 %v6307
    %v6309 = vpop.f32.mrf.mxu0
    %v6310 = vadd.f32 %v5773, %v6309
    %v6311 = vpop.f32.mrf.mxu0
    %6312 = vmatprep.mubr.f32.mxu0 0.0
    %v6313 = vand.u32 %v3505, 4294901760
    %6314 = vmatmul.mubr.f32.gmra.mxu0 %v6313
    %v6315 = vpop.f32.mrf.mxu0
    %v6316 = vadd.f32 %v5781, %v6315
    %v6317 = vpop.f32.mrf.mxu0
    %6318 = vmatprep.mubr.f32.mxu0 0.0
    %v6319 = vand.u32 %v3506, 4294901760
    %6320 = vmatmul.mubr.f32.gmra.mxu0 %v6319
    %v6321 = vpop.f32.mrf.mxu0
    %v6322 = vadd.f32 %v5789, %v6321
    %v6323 = vpop.f32.mrf.mxu0
    %6324 = vmatprep.mubr.f32.mxu0 0.0
    %v6325 = vand.u32 %v3507, 4294901760
    %6326 = vmatmul.mubr.f32.gmra.mxu0 %v6325
    %v6327 = vpop.f32.mrf.mxu0
    %v6328 = vadd.f32 %v5797, %v6327
    %v6329 = vpop.f32.mrf.mxu0
    %6330 = vmatprep.mubr.f32.mxu0 0.0
    %v6331 = vand.u32 %v3508, 4294901760
    %6332 = vmatmul.mubr.f32.gmra.mxu0 %v6331
    %v6333 = vpop.f32.mrf.mxu0
    %v6334 = vadd.f32 %v5805, %v6333
    %v6335 = vpop.f32.mrf.mxu0
    %6336 = vmatprep.mubr.f32.mxu0 0.0
    %v6337 = vand.u32 %v3509, 4294901760
    %6338 = vmatmul.mubr.f32.gmra.mxu0 %v6337
    %v6339 = vpop.f32.mrf.mxu0
    %v6340 = vadd.f32 %v5813, %v6339
    %v6341 = vpop.f32.mrf.mxu0
    %6342 = vmatprep.mubr.f32.mxu0 0.0
    %v6343 = vand.u32 %v3510, 4294901760
    %6344 = vmatmul.mubr.f32.gmra.mxu0 %v6343
    %v6345 = vpop.f32.mrf.mxu0
    %v6346 = vadd.f32 %v5821, %v6345
    %v6347 = vpop.f32.mrf.mxu0
    %6348 = vmatprep.mubr.f32.mxu0 0.0
    %v6349 = vand.u32 %v3511, 4294901760
    %6350 = vmatmul.mubr.f32.gmra.mxu0 %v6349
    %v6351 = vpop.f32.mrf.mxu0
    %v6352 = vadd.f32 %v5829, %v6351
    %v6353 = vpop.f32.mrf.mxu0
    %6354 = vmatprep.mubr.f32.mxu0 0.0
    %v6355 = vand.u32 %v3512, 4294901760
    %6356 = vmatmul.mubr.f32.gmra.mxu0 %v6355
    %v6357 = vpop.f32.mrf.mxu0
    %v6358 = vadd.f32 %v5837, %v6357
    %v6359 = vpop.f32.mrf.mxu0
    %6360 = vmatprep.mubr.f32.mxu0 0.0
    %v6361 = vand.u32 %v3513, 4294901760
    %6362 = vmatmul.mubr.f32.gmra.mxu0 %v6361
    %v6363 = vpop.f32.mrf.mxu0
    %v6364 = vadd.f32 %v5845, %v6363
    %v6365 = vpop.f32.mrf.mxu0
    %6366 = vmatprep.mubr.f32.mxu0 0.0
    %v6367 = vand.u32 %v3514, 4294901760
    %6368 = vmatmul.mubr.f32.gmra.mxu0 %v6367
    %v6369 = vpop.f32.mrf.mxu0
    %v6370 = vadd.f32 %v5853, %v6369
    %v6371 = vpop.f32.mrf.mxu0
    %6372 = vmatprep.mubr.f32.mxu0 0.0
    %v6373 = vand.u32 %v3515, 4294901760
    %6374 = vmatmul.mubr.f32.gmra.mxu0 %v6373
    %v6375 = vpop.f32.mrf.mxu0
    %v6376 = vadd.f32 %v5861, %v6375
    %v6377 = vpop.f32.mrf.mxu0
    %6378 = vmatprep.mubr.f32.mxu0 0.0
    %v6379 = vand.u32 %v3516, 4294901760
    %6380 = vmatmul.mubr.f32.gmra.mxu0 %v6379
    %v6381 = vpop.f32.mrf.mxu0
    %v6382 = vadd.f32 %v5869, %v6381
    %v6383 = vpop.f32.mrf.mxu0
    %6384 = vmatprep.mubr.f32.mxu0 0.0
    %v6385 = vand.u32 %v3517, 4294901760
    %6386 = vmatmul.mubr.f32.gmra.mxu0 %v6385
    %v6387 = vpop.f32.mrf.mxu0
    %v6388 = vadd.f32 %v5877, %v6387
    %v6389 = vpop.f32.mrf.mxu0
    %6390 = vmatprep.mubr.f32.mxu0 0.0
    %v6391 = vand.u32 %v3518, 4294901760
    %6392 = vmatmul.mubr.f32.gmra.mxu0 %v6391
    %v6393 = vpop.f32.mrf.mxu0
    %v6394 = vadd.f32 %v5885, %v6393
    %v6395 = vpop.f32.mrf.mxu0
    %6396 = vmatprep.mubr.f32.mxu0 0.0
    %v6397 = vand.u32 %v3519, 4294901760
    %6398 = vmatmul.mubr.f32.gmra.mxu0 %v6397
    %v6399 = vpop.f32.mrf.mxu0
    %v6400 = vadd.f32 %v5893, %v6399
    %v6401 = vpop.f32.mrf.mxu0
    %6402 = vmatprep.mubr.f32.mxu0 0.0
    %v6403 = vand.u32 %v3520, 4294901760
    %6404 = vmatmul.mubr.f32.gmra.mxu0 %v6403
    %v6405 = vpop.f32.mrf.mxu0
    %v6406 = vadd.f32 %v5901, %v6405
    %v6407 = vpop.f32.mrf.mxu0
    %6408 = vmatprep.mubr.f32.mxu0 0.0
    %v6409 = vand.u32 %v3521, 4294901760
    %6410 = vmatmul.mubr.f32.gmra.mxu0 %v6409
    %v6411 = vpop.f32.mrf.mxu0
    %v6412 = vadd.f32 %v5909, %v6411
    %v6413 = vpop.f32.mrf.mxu0
    %6414 = vmatprep.mubr.f32.mxu0 0.0
    %v6415 = vand.u32 %v3522, 4294901760
    %6416 = vmatmul.mubr.f32.gmra.mxu0 %v6415
    %v6417 = vpop.f32.mrf.mxu0
    %v6418 = vadd.f32 %v5917, %v6417
    %v6419 = vpop.f32.mrf.mxu0
    %6420 = vmatprep.mubr.f32.mxu0 0.0
    %v6421 = vand.u32 %v3523, 4294901760
    %6422 = vmatmul.mubr.f32.gmra.mxu0 %v6421
    %v6423 = vpop.f32.mrf.mxu0
    %v6424 = vadd.f32 %v5925, %v6423
    %v6425 = vpop.f32.mrf.mxu0
    %6426 = vmatprep.mubr.f32.mxu0 0.0
    %v6427 = vand.u32 %v3524, 4294901760
    %6428 = vmatmul.mubr.f32.gmra.mxu0 %v6427
    %v6429 = vpop.f32.mrf.mxu0
    %v6430 = vadd.f32 %v5933, %v6429
    %v6431 = vpop.f32.mrf.mxu0
    %6432 = vdwg.mxu0
    %6433 = vmatprep.subr.mxu0 0.0
    %v6434 = vand.u32 %v3540, 4294901760
    %6435 = vmatpush1.msra.mxu0 %v6434
    %6436 = vmatprep.subr.mxu0 0.0
    %v6437 = vand.u32 %v3539, 4294901760
    %6438 = vmatpush1.msra.mxu0 %v6437
    %6439 = vmatprep.subr.mxu0 0.0
    %v6440 = vand.u32 %v3538, 4294901760
    %6441 = vmatpush1.msra.mxu0 %v6440
    %6442 = vmatprep.subr.mxu0 0.0
    %v6443 = vand.u32 %v3537, 4294901760
    %6444 = vmatpush1.msra.mxu0 %v6443
    %6445 = vmatprep.subr.mxu0 0.0
    %v6446 = vand.u32 %v3536, 4294901760
    %6447 = vmatpush1.msra.mxu0 %v6446
    %6448 = vmatprep.subr.mxu0 0.0
    %v6449 = vand.u32 %v3535, 4294901760
    %6450 = vmatpush1.msra.mxu0 %v6449
    %6451 = vmatprep.subr.mxu0 0.0
    %v6452 = vand.u32 %v3534, 4294901760
    %6453 = vmatpush1.msra.mxu0 %v6452
    %6454 = vmatprep.subr.mxu0 0.0
    %v6455 = vand.u32 %v3533, 4294901760
    %6456 = vmatpush1.msra.mxu0 %v6455
    %6457 = vmatprep.subr.mxu0 0.0
    %v6458 = vand.u32 %v3532, 4294901760
    %6459 = vmatpush1.msra.mxu0 %v6458
    %6460 = vmatprep.subr.mxu0 0.0
    %v6461 = vand.u32 %v3531, 4294901760
    %6462 = vmatpush1.msra.mxu0 %v6461
    %6463 = vmatprep.subr.mxu0 0.0
    %v6464 = vand.u32 %v3530, 4294901760
    %6465 = vmatpush1.msra.mxu0 %v6464
    %6466 = vmatprep.subr.mxu0 0.0
    %v6467 = vand.u32 %v3529, 4294901760
    %6468 = vmatpush1.msra.mxu0 %v6467
    %6469 = vmatprep.subr.mxu0 0.0
    %v6470 = vand.u32 %v3528, 4294901760
    %6471 = vmatpush1.msra.mxu0 %v6470
    %6472 = vmatprep.subr.mxu0 0.0
    %v6473 = vand.u32 %v3527, 4294901760
    %6474 = vmatpush1.msra.mxu0 %v6473
    %6475 = vmatprep.subr.mxu0 0.0
    %v6476 = vand.u32 %v3526, 4294901760
    %6477 = vmatpush1.msra.mxu0 %v6476
    %6478 = vmatprep.subr.mxu0 0.0
    %v6479 = vand.u32 %v3525, 4294901760
    %6480 = vmatpush1.msra.mxu0 %v6479
    %6481 = vmatprep.subr.mxu0 0.0
    %6482 = vmatpush2.msra.mxu0 0.0
    %6483 = vmatprep.subr.mxu0 0.0
    %6484 = vmatpush2.msra.mxu0 0.0
    %6485 = vmatprep.subr.mxu0 0.0
    %6486 = vmatpush2.msra.mxu0 0.0
    %6487 = vmatprep.subr.mxu0 0.0
    %6488 = vmatpush2.msra.mxu0 0.0
    %6489 = vmatprep.subr.mxu0 0.0
    %6490 = vmatpush2.msra.mxu0 0.0
    %6491 = vmatprep.subr.mxu0 0.0
    %6492 = vmatpush2.msra.mxu0 0.0
    %6493 = vmatprep.subr.mxu0 0.0
    %6494 = vmatpush2.msra.mxu0 0.0
    %6495 = vmatprep.subr.mxu0 0.0
    %6496 = vmatpush2.msra.mxu0 0.0
    %6497 = vmatprep.subr.mxu0 0.0
    %6498 = vmatpush2.msra.mxu0 0.0
    %6499 = vmatprep.subr.mxu0 0.0
    %6500 = vmatpush2.msra.mxu0 0.0
    %6501 = vmatprep.subr.mxu0 0.0
    %6502 = vmatpush2.msra.mxu0 0.0
    %6503 = vmatprep.subr.mxu0 0.0
    %6504 = vmatpush2.msra.mxu0 0.0
    %6505 = vmatprep.subr.mxu0 0.0
    %6506 = vmatpush2.msra.mxu0 0.0
    %6507 = vmatprep.subr.mxu0 0.0
    %6508 = vmatpush2.msra.mxu0 0.0
    %6509 = vmatprep.subr.mxu0 0.0
    %6510 = vmatpush2.msra.mxu0 0.0
    %6511 = vmatprep.subr.mxu0 0.0
    %6512 = vmatpush2.msra.mxu0 0.0
    %6513 = vmatprep.mubr.f32.mxu0 0.0
    %v6514 = vand.u32 %v3461, 4294901760
    %6515 = vmatmul.mubr.f32.gmra.mxu0 %v6514
    %v6516 = vpop.f32.mrf.mxu0
    %v6517 = vadd.f32 %v6052, %v6516
    %v6518 = vpop.f32.mrf.mxu0
    %6519 = vmatprep.mubr.f32.mxu0 0.0
    %v6520 = vand.u32 %v3462, 4294901760
    %6521 = vmatmul.mubr.f32.gmra.mxu0 %v6520
    %v6522 = vpop.f32.mrf.mxu0
    %v6523 = vadd.f32 %v6058, %v6522
    %v6524 = vpop.f32.mrf.mxu0
    %6525 = vmatprep.mubr.f32.mxu0 0.0
    %v6526 = vand.u32 %v3463, 4294901760
    %6527 = vmatmul.mubr.f32.gmra.mxu0 %v6526
    %v6528 = vpop.f32.mrf.mxu0
    %v6529 = vadd.f32 %v6064, %v6528
    %v6530 = vpop.f32.mrf.mxu0
    %6531 = vmatprep.mubr.f32.mxu0 0.0
    %v6532 = vand.u32 %v3464, 4294901760
    %6533 = vmatmul.mubr.f32.gmra.mxu0 %v6532
    %v6534 = vpop.f32.mrf.mxu0
    %v6535 = vadd.f32 %v6070, %v6534
    %v6536 = vpop.f32.mrf.mxu0
    %6537 = vmatprep.mubr.f32.mxu0 0.0
    %v6538 = vand.u32 %v3465, 4294901760
    %6539 = vmatmul.mubr.f32.gmra.mxu0 %v6538
    %v6540 = vpop.f32.mrf.mxu0
    %v6541 = vadd.f32 %v6076, %v6540
    %v6542 = vpop.f32.mrf.mxu0
    %6543 = vmatprep.mubr.f32.mxu0 0.0
    %v6544 = vand.u32 %v3466, 4294901760
    %6545 = vmatmul.mubr.f32.gmra.mxu0 %v6544
    %v6546 = vpop.f32.mrf.mxu0
    %v6547 = vadd.f32 %v6082, %v6546
    %v6548 = vpop.f32.mrf.mxu0
    %6549 = vmatprep.mubr.f32.mxu0 0.0
    %v6550 = vand.u32 %v3467, 4294901760
    %6551 = vmatmul.mubr.f32.gmra.mxu0 %v6550
    %v6552 = vpop.f32.mrf.mxu0
    %v6553 = vadd.f32 %v6088, %v6552
    %v6554 = vpop.f32.mrf.mxu0
    %6555 = vmatprep.mubr.f32.mxu0 0.0
    %v6556 = vand.u32 %v3468, 4294901760
    %6557 = vmatmul.mubr.f32.gmra.mxu0 %v6556
    %v6558 = vpop.f32.mrf.mxu0
    %v6559 = vadd.f32 %v6094, %v6558
    %v6560 = vpop.f32.mrf.mxu0
    %6561 = vmatprep.mubr.f32.mxu0 0.0
    %v6562 = vand.u32 %v3469, 4294901760
    %6563 = vmatmul.mubr.f32.gmra.mxu0 %v6562
    %v6564 = vpop.f32.mrf.mxu0
    %v6565 = vadd.f32 %v6100, %v6564
    %v6566 = vpop.f32.mrf.mxu0
    %6567 = vmatprep.mubr.f32.mxu0 0.0
    %v6568 = vand.u32 %v3470, 4294901760
    %6569 = vmatmul.mubr.f32.gmra.mxu0 %v6568
    %v6570 = vpop.f32.mrf.mxu0
    %v6571 = vadd.f32 %v6106, %v6570
    %v6572 = vpop.f32.mrf.mxu0
    %6573 = vmatprep.mubr.f32.mxu0 0.0
    %v6574 = vand.u32 %v3471, 4294901760
    %6575 = vmatmul.mubr.f32.gmra.mxu0 %v6574
    %v6576 = vpop.f32.mrf.mxu0
    %v6577 = vadd.f32 %v6112, %v6576
    %v6578 = vpop.f32.mrf.mxu0
    %6579 = vmatprep.mubr.f32.mxu0 0.0
    %v6580 = vand.u32 %v3472, 4294901760
    %6581 = vmatmul.mubr.f32.gmra.mxu0 %v6580
    %v6582 = vpop.f32.mrf.mxu0
    %v6583 = vadd.f32 %v6118, %v6582
    %v6584 = vpop.f32.mrf.mxu0
    %6585 = vmatprep.mubr.f32.mxu0 0.0
    %v6586 = vand.u32 %v3473, 4294901760
    %6587 = vmatmul.mubr.f32.gmra.mxu0 %v6586
    %v6588 = vpop.f32.mrf.mxu0
    %v6589 = vadd.f32 %v6124, %v6588
    %v6590 = vpop.f32.mrf.mxu0
    %6591 = vmatprep.mubr.f32.mxu0 0.0
    %v6592 = vand.u32 %v3474, 4294901760
    %6593 = vmatmul.mubr.f32.gmra.mxu0 %v6592
    %v6594 = vpop.f32.mrf.mxu0
    %v6595 = vadd.f32 %v6130, %v6594
    %v6596 = vpop.f32.mrf.mxu0
    %6597 = vmatprep.mubr.f32.mxu0 0.0
    %v6598 = vand.u32 %v3475, 4294901760
    %6599 = vmatmul.mubr.f32.gmra.mxu0 %v6598
    %v6600 = vpop.f32.mrf.mxu0
    %v6601 = vadd.f32 %v6136, %v6600
    %v6602 = vpop.f32.mrf.mxu0
    %6603 = vmatprep.mubr.f32.mxu0 0.0
    %v6604 = vand.u32 %v3476, 4294901760
    %6605 = vmatmul.mubr.f32.gmra.mxu0 %v6604
    %v6606 = vpop.f32.mrf.mxu0
    %v6607 = vadd.f32 %v6142, %v6606
    %v6608 = vpop.f32.mrf.mxu0
    %6609 = vmatprep.mubr.f32.mxu0 0.0
    %v6610 = vand.u32 %v3477, 4294901760
    %6611 = vmatmul.mubr.f32.gmra.mxu0 %v6610
    %v6612 = vpop.f32.mrf.mxu0
    %v6613 = vadd.f32 %v6148, %v6612
    %v6614 = vpop.f32.mrf.mxu0
    %6615 = vmatprep.mubr.f32.mxu0 0.0
    %v6616 = vand.u32 %v3478, 4294901760
    %6617 = vmatmul.mubr.f32.gmra.mxu0 %v6616
    %v6618 = vpop.f32.mrf.mxu0
    %v6619 = vadd.f32 %v6154, %v6618
    %v6620 = vpop.f32.mrf.mxu0
    %6621 = vmatprep.mubr.f32.mxu0 0.0
    %v6622 = vand.u32 %v3479, 4294901760
    %6623 = vmatmul.mubr.f32.gmra.mxu0 %v6622
    %v6624 = vpop.f32.mrf.mxu0
    %v6625 = vadd.f32 %v6160, %v6624
    %v6626 = vpop.f32.mrf.mxu0
    %6627 = vmatprep.mubr.f32.mxu0 0.0
    %v6628 = vand.u32 %v3480, 4294901760
    %6629 = vmatmul.mubr.f32.gmra.mxu0 %v6628
    %v6630 = vpop.f32.mrf.mxu0
    %v6631 = vadd.f32 %v6166, %v6630
    %v6632 = vpop.f32.mrf.mxu0
    %6633 = vmatprep.mubr.f32.mxu0 0.0
    %v6634 = vand.u32 %v3481, 4294901760
    %6635 = vmatmul.mubr.f32.gmra.mxu0 %v6634
    %v6636 = vpop.f32.mrf.mxu0
    %v6637 = vadd.f32 %v6172, %v6636
    %v6638 = vpop.f32.mrf.mxu0
    %6639 = vmatprep.mubr.f32.mxu0 0.0
    %v6640 = vand.u32 %v3482, 4294901760
    %6641 = vmatmul.mubr.f32.gmra.mxu0 %v6640
    %v6642 = vpop.f32.mrf.mxu0
    %v6643 = vadd.f32 %v6178, %v6642
    %v6644 = vpop.f32.mrf.mxu0
    %6645 = vmatprep.mubr.f32.mxu0 0.0
    %v6646 = vand.u32 %v3483, 4294901760
    %6647 = vmatmul.mubr.f32.gmra.mxu0 %v6646
    %v6648 = vpop.f32.mrf.mxu0
    %v6649 = vadd.f32 %v6184, %v6648
    %v6650 = vpop.f32.mrf.mxu0
    %6651 = vmatprep.mubr.f32.mxu0 0.0
    %v6652 = vand.u32 %v3484, 4294901760
    %6653 = vmatmul.mubr.f32.gmra.mxu0 %v6652
    %v6654 = vpop.f32.mrf.mxu0
    %v6655 = vadd.f32 %v6190, %v6654
    %v6656 = vpop.f32.mrf.mxu0
    %6657 = vmatprep.mubr.f32.mxu0 0.0
    %v6658 = vand.u32 %v3485, 4294901760
    %6659 = vmatmul.mubr.f32.gmra.mxu0 %v6658
    %v6660 = vpop.f32.mrf.mxu0
    %v6661 = vadd.f32 %v6196, %v6660
    %v6662 = vpop.f32.mrf.mxu0
    %6663 = vmatprep.mubr.f32.mxu0 0.0
    %v6664 = vand.u32 %v3486, 4294901760
    %6665 = vmatmul.mubr.f32.gmra.mxu0 %v6664
    %v6666 = vpop.f32.mrf.mxu0
    %v6667 = vadd.f32 %v6202, %v6666
    %v6668 = vpop.f32.mrf.mxu0
    %6669 = vmatprep.mubr.f32.mxu0 0.0
    %v6670 = vand.u32 %v3487, 4294901760
    %6671 = vmatmul.mubr.f32.gmra.mxu0 %v6670
    %v6672 = vpop.f32.mrf.mxu0
    %v6673 = vadd.f32 %v6208, %v6672
    %v6674 = vpop.f32.mrf.mxu0
    %6675 = vmatprep.mubr.f32.mxu0 0.0
    %v6676 = vand.u32 %v3488, 4294901760
    %6677 = vmatmul.mubr.f32.gmra.mxu0 %v6676
    %v6678 = vpop.f32.mrf.mxu0
    %v6679 = vadd.f32 %v6214, %v6678
    %v6680 = vpop.f32.mrf.mxu0
    %6681 = vmatprep.mubr.f32.mxu0 0.0
    %v6682 = vand.u32 %v3489, 4294901760
    %6683 = vmatmul.mubr.f32.gmra.mxu0 %v6682
    %v6684 = vpop.f32.mrf.mxu0
    %v6685 = vadd.f32 %v6220, %v6684
    %v6686 = vpop.f32.mrf.mxu0
    %6687 = vmatprep.mubr.f32.mxu0 0.0
    %v6688 = vand.u32 %v3490, 4294901760
    %6689 = vmatmul.mubr.f32.gmra.mxu0 %v6688
    %v6690 = vpop.f32.mrf.mxu0
    %v6691 = vadd.f32 %v6226, %v6690
    %v6692 = vpop.f32.mrf.mxu0
    %6693 = vmatprep.mubr.f32.mxu0 0.0
    %v6694 = vand.u32 %v3491, 4294901760
    %6695 = vmatmul.mubr.f32.gmra.mxu0 %v6694
    %v6696 = vpop.f32.mrf.mxu0
    %v6697 = vadd.f32 %v6232, %v6696
    %v6698 = vpop.f32.mrf.mxu0
    %6699 = vmatprep.mubr.f32.mxu0 0.0
    %v6700 = vand.u32 %v3492, 4294901760
    %6701 = vmatmul.mubr.f32.gmra.mxu0 %v6700
    %v6702 = vpop.f32.mrf.mxu0
    %v6703 = vadd.f32 %v6238, %v6702
    %v6704 = vpop.f32.mrf.mxu0
    %6705 = vmatprep.mubr.f32.mxu0 0.0
    %v6706 = vand.u32 %v3493, 4294901760
    %6707 = vmatmul.mubr.f32.gmra.mxu0 %v6706
    %v6708 = vpop.f32.mrf.mxu0
    %v6709 = vadd.f32 %v6244, %v6708
    %v6710 = vpop.f32.mrf.mxu0
    %6711 = vmatprep.mubr.f32.mxu0 0.0
    %v6712 = vand.u32 %v3494, 4294901760
    %6713 = vmatmul.mubr.f32.gmra.mxu0 %v6712
    %v6714 = vpop.f32.mrf.mxu0
    %v6715 = vadd.f32 %v6250, %v6714
    %v6716 = vpop.f32.mrf.mxu0
    %6717 = vmatprep.mubr.f32.mxu0 0.0
    %v6718 = vand.u32 %v3495, 4294901760
    %6719 = vmatmul.mubr.f32.gmra.mxu0 %v6718
    %v6720 = vpop.f32.mrf.mxu0
    %v6721 = vadd.f32 %v6256, %v6720
    %v6722 = vpop.f32.mrf.mxu0
    %6723 = vmatprep.mubr.f32.mxu0 0.0
    %v6724 = vand.u32 %v3496, 4294901760
    %6725 = vmatmul.mubr.f32.gmra.mxu0 %v6724
    %v6726 = vpop.f32.mrf.mxu0
    %v6727 = vadd.f32 %v6262, %v6726
    %v6728 = vpop.f32.mrf.mxu0
    %6729 = vmatprep.mubr.f32.mxu0 0.0
    %v6730 = vand.u32 %v3497, 4294901760
    %6731 = vmatmul.mubr.f32.gmra.mxu0 %v6730
    %v6732 = vpop.f32.mrf.mxu0
    %v6733 = vadd.f32 %v6268, %v6732
    %v6734 = vpop.f32.mrf.mxu0
    %6735 = vmatprep.mubr.f32.mxu0 0.0
    %v6736 = vand.u32 %v3498, 4294901760
    %6737 = vmatmul.mubr.f32.gmra.mxu0 %v6736
    %v6738 = vpop.f32.mrf.mxu0
    %v6739 = vadd.f32 %v6274, %v6738
    %v6740 = vpop.f32.mrf.mxu0
    %6741 = vmatprep.mubr.f32.mxu0 0.0
    %v6742 = vand.u32 %v3499, 4294901760
    %6743 = vmatmul.mubr.f32.gmra.mxu0 %v6742
    %v6744 = vpop.f32.mrf.mxu0
    %v6745 = vadd.f32 %v6280, %v6744
    %v6746 = vpop.f32.mrf.mxu0
    %6747 = vmatprep.mubr.f32.mxu0 0.0
    %v6748 = vand.u32 %v3500, 4294901760
    %6749 = vmatmul.mubr.f32.gmra.mxu0 %v6748
    %v6750 = vpop.f32.mrf.mxu0
    %v6751 = vadd.f32 %v6286, %v6750
    %v6752 = vpop.f32.mrf.mxu0
    %6753 = vmatprep.mubr.f32.mxu0 0.0
    %v6754 = vand.u32 %v3501, 4294901760
    %6755 = vmatmul.mubr.f32.gmra.mxu0 %v6754
    %v6756 = vpop.f32.mrf.mxu0
    %v6757 = vadd.f32 %v6292, %v6756
    %v6758 = vpop.f32.mrf.mxu0
    %6759 = vmatprep.mubr.f32.mxu0 0.0
    %v6760 = vand.u32 %v3502, 4294901760
    %6761 = vmatmul.mubr.f32.gmra.mxu0 %v6760
    %v6762 = vpop.f32.mrf.mxu0
    %v6763 = vadd.f32 %v6298, %v6762
    %v6764 = vpop.f32.mrf.mxu0
    %6765 = vmatprep.mubr.f32.mxu0 0.0
    %v6766 = vand.u32 %v3503, 4294901760
    %6767 = vmatmul.mubr.f32.gmra.mxu0 %v6766
    %v6768 = vpop.f32.mrf.mxu0
    %v6769 = vadd.f32 %v6304, %v6768
    %v6770 = vpop.f32.mrf.mxu0
    %6771 = vmatprep.mubr.f32.mxu0 0.0
    %v6772 = vand.u32 %v3504, 4294901760
    %6773 = vmatmul.mubr.f32.gmra.mxu0 %v6772
    %v6774 = vpop.f32.mrf.mxu0
    %v6775 = vadd.f32 %v6310, %v6774
    %v6776 = vpop.f32.mrf.mxu0
    %6777 = vmatprep.mubr.f32.mxu0 0.0
    %v6778 = vand.u32 %v3505, 4294901760
    %6779 = vmatmul.mubr.f32.gmra.mxu0 %v6778
    %v6780 = vpop.f32.mrf.mxu0
    %v6781 = vadd.f32 %v6316, %v6780
    %v6782 = vpop.f32.mrf.mxu0
    %6783 = vmatprep.mubr.f32.mxu0 0.0
    %v6784 = vand.u32 %v3506, 4294901760
    %6785 = vmatmul.mubr.f32.gmra.mxu0 %v6784
    %v6786 = vpop.f32.mrf.mxu0
    %v6787 = vadd.f32 %v6322, %v6786
    %v6788 = vpop.f32.mrf.mxu0
    %6789 = vmatprep.mubr.f32.mxu0 0.0
    %v6790 = vand.u32 %v3507, 4294901760
    %6791 = vmatmul.mubr.f32.gmra.mxu0 %v6790
    %v6792 = vpop.f32.mrf.mxu0
    %v6793 = vadd.f32 %v6328, %v6792
    %v6794 = vpop.f32.mrf.mxu0
    %6795 = vmatprep.mubr.f32.mxu0 0.0
    %v6796 = vand.u32 %v3508, 4294901760
    %6797 = vmatmul.mubr.f32.gmra.mxu0 %v6796
    %v6798 = vpop.f32.mrf.mxu0
    %v6799 = vadd.f32 %v6334, %v6798
    %v6800 = vpop.f32.mrf.mxu0
    %6801 = vmatprep.mubr.f32.mxu0 0.0
    %v6802 = vand.u32 %v3509, 4294901760
    %6803 = vmatmul.mubr.f32.gmra.mxu0 %v6802
    %v6804 = vpop.f32.mrf.mxu0
    %v6805 = vadd.f32 %v6340, %v6804
    %v6806 = vpop.f32.mrf.mxu0
    %6807 = vmatprep.mubr.f32.mxu0 0.0
    %v6808 = vand.u32 %v3510, 4294901760
    %6809 = vmatmul.mubr.f32.gmra.mxu0 %v6808
    %v6810 = vpop.f32.mrf.mxu0
    %v6811 = vadd.f32 %v6346, %v6810
    %v6812 = vpop.f32.mrf.mxu0
    %6813 = vmatprep.mubr.f32.mxu0 0.0
    %v6814 = vand.u32 %v3511, 4294901760
    %6815 = vmatmul.mubr.f32.gmra.mxu0 %v6814
    %v6816 = vpop.f32.mrf.mxu0
    %v6817 = vadd.f32 %v6352, %v6816
    %v6818 = vpop.f32.mrf.mxu0
    %6819 = vmatprep.mubr.f32.mxu0 0.0
    %v6820 = vand.u32 %v3512, 4294901760
    %6821 = vmatmul.mubr.f32.gmra.mxu0 %v6820
    %v6822 = vpop.f32.mrf.mxu0
    %v6823 = vadd.f32 %v6358, %v6822
    %v6824 = vpop.f32.mrf.mxu0
    %6825 = vmatprep.mubr.f32.mxu0 0.0
    %v6826 = vand.u32 %v3513, 4294901760
    %6827 = vmatmul.mubr.f32.gmra.mxu0 %v6826
    %v6828 = vpop.f32.mrf.mxu0
    %v6829 = vadd.f32 %v6364, %v6828
    %v6830 = vpop.f32.mrf.mxu0
    %6831 = vmatprep.mubr.f32.mxu0 0.0
    %v6832 = vand.u32 %v3514, 4294901760
    %6833 = vmatmul.mubr.f32.gmra.mxu0 %v6832
    %v6834 = vpop.f32.mrf.mxu0
    %v6835 = vadd.f32 %v6370, %v6834
    %v6836 = vpop.f32.mrf.mxu0
    %6837 = vmatprep.mubr.f32.mxu0 0.0
    %v6838 = vand.u32 %v3515, 4294901760
    %6839 = vmatmul.mubr.f32.gmra.mxu0 %v6838
    %v6840 = vpop.f32.mrf.mxu0
    %v6841 = vadd.f32 %v6376, %v6840
    %v6842 = vpop.f32.mrf.mxu0
    %6843 = vmatprep.mubr.f32.mxu0 0.0
    %v6844 = vand.u32 %v3516, 4294901760
    %6845 = vmatmul.mubr.f32.gmra.mxu0 %v6844
    %v6846 = vpop.f32.mrf.mxu0
    %v6847 = vadd.f32 %v6382, %v6846
    %v6848 = vpop.f32.mrf.mxu0
    %6849 = vmatprep.mubr.f32.mxu0 0.0
    %v6850 = vand.u32 %v3517, 4294901760
    %6851 = vmatmul.mubr.f32.gmra.mxu0 %v6850
    %v6852 = vpop.f32.mrf.mxu0
    %v6853 = vadd.f32 %v6388, %v6852
    %v6854 = vpop.f32.mrf.mxu0
    %6855 = vmatprep.mubr.f32.mxu0 0.0
    %v6856 = vand.u32 %v3518, 4294901760
    %6857 = vmatmul.mubr.f32.gmra.mxu0 %v6856
    %v6858 = vpop.f32.mrf.mxu0
    %v6859 = vadd.f32 %v6394, %v6858
    %v6860 = vpop.f32.mrf.mxu0
    %6861 = vmatprep.mubr.f32.mxu0 0.0
    %v6862 = vand.u32 %v3519, 4294901760
    %6863 = vmatmul.mubr.f32.gmra.mxu0 %v6862
    %v6864 = vpop.f32.mrf.mxu0
    %v6865 = vadd.f32 %v6400, %v6864
    %v6866 = vpop.f32.mrf.mxu0
    %6867 = vmatprep.mubr.f32.mxu0 0.0
    %v6868 = vand.u32 %v3520, 4294901760
    %6869 = vmatmul.mubr.f32.gmra.mxu0 %v6868
    %v6870 = vpop.f32.mrf.mxu0
    %v6871 = vadd.f32 %v6406, %v6870
    %v6872 = vpop.f32.mrf.mxu0
    %6873 = vmatprep.mubr.f32.mxu0 0.0
    %v6874 = vand.u32 %v3521, 4294901760
    %6875 = vmatmul.mubr.f32.gmra.mxu0 %v6874
    %v6876 = vpop.f32.mrf.mxu0
    %v6877 = vadd.f32 %v6412, %v6876
    %v6878 = vpop.f32.mrf.mxu0
    %6879 = vmatprep.mubr.f32.mxu0 0.0
    %v6880 = vand.u32 %v3522, 4294901760
    %6881 = vmatmul.mubr.f32.gmra.mxu0 %v6880
    %v6882 = vpop.f32.mrf.mxu0
    %v6883 = vadd.f32 %v6418, %v6882
    %v6884 = vpop.f32.mrf.mxu0
    %6885 = vmatprep.mubr.f32.mxu0 0.0
    %v6886 = vand.u32 %v3523, 4294901760
    %6887 = vmatmul.mubr.f32.gmra.mxu0 %v6886
    %v6888 = vpop.f32.mrf.mxu0
    %v6889 = vadd.f32 %v6424, %v6888
    %v6890 = vpop.f32.mrf.mxu0
    %6891 = vmatprep.mubr.f32.mxu0 0.0
    %v6892 = vand.u32 %v3524, 4294901760
    %6893 = vmatmul.mubr.f32.gmra.mxu0 %v6892
    %v6894 = vpop.f32.mrf.mxu0
    %v6895 = vadd.f32 %v6430, %v6894
    %v6896 = vpop.f32.mrf.mxu0
    %6897 = vdwg.mxu0
    %v6898 = vmax.f32 %v6517, 0.0
    %v6899 = vmax.f32 %v6523, 0.0
    %v6900 = vmax.f32 %v6529, 0.0
    %v6901 = vmax.f32 %v6535, 0.0
    %v6902 = vmax.f32 %v6541, 0.0
    %v6903 = vmax.f32 %v6547, 0.0
    %v6904 = vmax.f32 %v6553, 0.0
    %v6905 = vmax.f32 %v6559, 0.0
    %v6906 = vmax.f32 %v6565, 0.0
    %v6907 = vmax.f32 %v6571, 0.0
    %v6908 = vmax.f32 %v6577, 0.0
    %v6909 = vmax.f32 %v6583, 0.0
    %v6910 = vmax.f32 %v6589, 0.0
    %v6911 = vmax.f32 %v6595, 0.0
    %v6912 = vmax.f32 %v6601, 0.0
    %v6913 = vmax.f32 %v6607, 0.0
    %v6914 = vmax.f32 %v6613, 0.0
    %v6915 = vmax.f32 %v6619, 0.0
    %v6916 = vmax.f32 %v6625, 0.0
    %v6917 = vmax.f32 %v6631, 0.0
    %v6918 = vmax.f32 %v6637, 0.0
    %v6919 = vmax.f32 %v6643, 0.0
    %v6920 = vmax.f32 %v6649, 0.0
    %v6921 = vmax.f32 %v6655, 0.0
    %v6922 = vmax.f32 %v6661, 0.0
    %v6923 = vmax.f32 %v6667, 0.0
    %v6924 = vmax.f32 %v6673, 0.0
    %v6925 = vmax.f32 %v6679, 0.0
    %v6926 = vmax.f32 %v6685, 0.0
    %v6927 = vmax.f32 %v6691, 0.0
    %v6928 = vmax.f32 %v6697, 0.0
    %v6929 = vmax.f32 %v6703, 0.0
    %v6930 = vmax.f32 %v6709, 0.0
    %v6931 = vmax.f32 %v6715, 0.0
    %v6932 = vmax.f32 %v6721, 0.0
    %v6933 = vmax.f32 %v6727, 0.0
    %v6934 = vmax.f32 %v6733, 0.0
    %v6935 = vmax.f32 %v6739, 0.0
    %v6936 = vmax.f32 %v6745, 0.0
    %v6937 = vmax.f32 %v6751, 0.0
    %v6938 = vmax.f32 %v6757, 0.0
    %v6939 = vmax.f32 %v6763, 0.0
    %v6940 = vmax.f32 %v6769, 0.0
    %v6941 = vmax.f32 %v6775, 0.0
    %v6942 = vmax.f32 %v6781, 0.0
    %v6943 = vmax.f32 %v6787, 0.0
    %v6944 = vmax.f32 %v6793, 0.0
    %v6945 = vmax.f32 %v6799, 0.0
    %v6946 = vmax.f32 %v6805, 0.0
    %v6947 = vmax.f32 %v6811, 0.0
    %v6948 = vmax.f32 %v6817, 0.0
    %v6949 = vmax.f32 %v6823, 0.0
    %v6950 = vmax.f32 %v6829, 0.0
    %v6951 = vmax.f32 %v6835, 0.0
    %v6952 = vmax.f32 %v6841, 0.0
    %v6953 = vmax.f32 %v6847, 0.0
    %v6954 = vmax.f32 %v6853, 0.0
    %v6955 = vmax.f32 %v6859, 0.0
    %v6956 = vmax.f32 %v6865, 0.0
    %v6957 = vmax.f32 %v6871, 0.0
    %v6958 = vmax.f32 %v6877, 0.0
    %v6959 = vmax.f32 %v6883, 0.0
    %v6960 = vmax.f32 %v6889, 0.0
    %v6961 = vmax.f32 %v6895, 0.0
    %v6962 = vld [vmem:[%s5] sm:$0xff]
    %v6963 = vld [vmem:[%s5 + $0x8] sm:$0xff]
    %v6964 = vld [vmem:[%s5 + $0x10] sm:$0xff]
    %v6965 = vld [vmem:[%s5 + $0x18] sm:$0xff]
    %v6966 = vld [vmem:[%s5 + $0x20] sm:$0xff]
    %v6967 = vld [vmem:[%s5 + $0x28] sm:$0xff]
    %v6968 = vld [vmem:[%s5 + $0x30] sm:$0xff]
    %v6969 = vld [vmem:[%s5 + $0x38] sm:$0xff]
    %v6970 = vld [vmem:[%s5 + $0x40] sm:$0xff]
    %v6971 = vld [vmem:[%s5 + $0x48] sm:$0xff]
    %v6972 = vld [vmem:[%s5 + $0x50] sm:$0xff]
    %v6973 = vld [vmem:[%s5 + $0x58] sm:$0xff]
    %v6974 = vld [vmem:[%s5 + $0x60] sm:$0xff]
    %v6975 = vld [vmem:[%s5 + $0x68] sm:$0xff]
    %v6976 = vld [vmem:[%s5 + $0x70] sm:$0xff]
    %v6977 = vld [vmem:[%s5 + $0x78] sm:$0xff]
    %v6978 = vld [vmem:[%s6] sm:$0x1]
    %v6980 = vlaneseq
    %v6981 = vshrl.u32 %v6980, 7
    %v6982 = vsub.s32 0, %v6981
    %v6983 = vrot.slane %v6978, %v6982
    %6985 = vmatprep.subr.mxu0 0.0
    %v6986 = vand.u32 %v6977, 4294901760
    %6987 = vmatpush1.msra.mxu0 %v6986
    %6988 = vmatprep.subr.mxu0 0.0
    %v6989 = vand.u32 %v6976, 4294901760
    %6990 = vmatpush1.msra.mxu0 %v6989
    %6991 = vmatprep.subr.mxu0 0.0
    %v6992 = vand.u32 %v6975, 4294901760
    %6993 = vmatpush1.msra.mxu0 %v6992
    %6994 = vmatprep.subr.mxu0 0.0
    %v6995 = vand.u32 %v6974, 4294901760
    %6996 = vmatpush1.msra.mxu0 %v6995
    %6997 = vmatprep.subr.mxu0 0.0
    %v6998 = vand.u32 %v6973, 4294901760
    %6999 = vmatpush1.msra.mxu0 %v6998
    %7000 = vmatprep.subr.mxu0 0.0
    %v7001 = vand.u32 %v6972, 4294901760
    %7002 = vmatpush1.msra.mxu0 %v7001
    %7003 = vmatprep.subr.mxu0 0.0
    %v7004 = vand.u32 %v6971, 4294901760
    %7005 = vmatpush1.msra.mxu0 %v7004
    %7006 = vmatprep.subr.mxu0 0.0
    %v7007 = vand.u32 %v6970, 4294901760
    %7008 = vmatpush1.msra.mxu0 %v7007
    %7009 = vmatprep.subr.mxu0 0.0
    %v7010 = vand.u32 %v6969, 4294901760
    %7011 = vmatpush1.msra.mxu0 %v7010
    %7012 = vmatprep.subr.mxu0 0.0
    %v7013 = vand.u32 %v6968, 4294901760
    %7014 = vmatpush1.msra.mxu0 %v7013
    %7015 = vmatprep.subr.mxu0 0.0
    %v7016 = vand.u32 %v6967, 4294901760
    %7017 = vmatpush1.msra.mxu0 %v7016
    %7018 = vmatprep.subr.mxu0 0.0
    %v7019 = vand.u32 %v6966, 4294901760
    %7020 = vmatpush1.msra.mxu0 %v7019
    %7021 = vmatprep.subr.mxu0 0.0
    %v7022 = vand.u32 %v6965, 4294901760
    %7023 = vmatpush1.msra.mxu0 %v7022
    %7024 = vmatprep.subr.mxu0 0.0
    %v7025 = vand.u32 %v6964, 4294901760
    %7026 = vmatpush1.msra.mxu0 %v7025
    %7027 = vmatprep.subr.mxu0 0.0
    %v7028 = vand.u32 %v6963, 4294901760
    %7029 = vmatpush1.msra.mxu0 %v7028
    %7030 = vmatprep.subr.mxu0 0.0
    %v7031 = vand.u32 %v6962, 4294901760
    %7032 = vmatpush1.msra.mxu0 %v7031
    %7033 = vmatprep.subr.mxu0 0.0
    %7034 = vmatpush2.msra.mxu0 0.0
    %7035 = vmatprep.subr.mxu0 0.0
    %7036 = vmatpush2.msra.mxu0 0.0
    %7037 = vmatprep.subr.mxu0 0.0
    %7038 = vmatpush2.msra.mxu0 0.0
    %7039 = vmatprep.subr.mxu0 0.0
    %7040 = vmatpush2.msra.mxu0 0.0
    %7041 = vmatprep.subr.mxu0 0.0
    %7042 = vmatpush2.msra.mxu0 0.0
    %7043 = vmatprep.subr.mxu0 0.0
    %7044 = vmatpush2.msra.mxu0 0.0
    %7045 = vmatprep.subr.mxu0 0.0
    %7046 = vmatpush2.msra.mxu0 0.0
    %7047 = vmatprep.subr.mxu0 0.0
    %7048 = vmatpush2.msra.mxu0 0.0
    %7049 = vmatprep.subr.mxu0 0.0
    %7050 = vmatpush2.msra.mxu0 0.0
    %7051 = vmatprep.subr.mxu0 0.0
    %7052 = vmatpush2.msra.mxu0 0.0
    %7053 = vmatprep.subr.mxu0 0.0
    %7054 = vmatpush2.msra.mxu0 0.0
    %7055 = vmatprep.subr.mxu0 0.0
    %7056 = vmatpush2.msra.mxu0 0.0
    %7057 = vmatprep.subr.mxu0 0.0
    %7058 = vmatpush2.msra.mxu0 0.0
    %7059 = vmatprep.subr.mxu0 0.0
    %7060 = vmatpush2.msra.mxu0 0.0
    %7061 = vmatprep.subr.mxu0 0.0
    %7062 = vmatpush2.msra.mxu0 0.0
    %7063 = vmatprep.subr.mxu0 0.0
    %7064 = vmatpush2.msra.mxu0 0.0
    %7065 = vmatprep.mubr.f32.mxu0 0.0
    %v7066 = vand.u32 %v6898, 4294901760
    %v7067 = vsub.f32 %v6898, %v7066
    %v7068 = vand.u32 %v7067, 4294901760
    %v7069 = vsub.f32 %v7067, %v7068
    %v7070 = vand.u32 %v7069, 4294901760
    %7071 = vmatmul.mubr.f32.gmra.mxu0 %v7070
    %v7072 = vpop.f32.mrf.mxu0
    %v7073 = vadd.f32 %v6983, %v7072
    %v7074 = vpop.f32.mrf.mxu0
    %7075 = vmatprep.mubr.f32.mxu0 0.0
    %v7076 = vand.u32 %v6899, 4294901760
    %v7077 = vsub.f32 %v6899, %v7076
    %v7078 = vand.u32 %v7077, 4294901760
    %v7079 = vsub.f32 %v7077, %v7078
    %v7080 = vand.u32 %v7079, 4294901760
    %7081 = vmatmul.mubr.f32.gmra.mxu0 %v7080
    %v7082 = vpop.f32.mrf.mxu0
    %v7083 = vadd.f32 %v6983, %v7082
    %v7084 = vpop.f32.mrf.mxu0
    %7085 = vmatprep.mubr.f32.mxu0 0.0
    %v7086 = vand.u32 %v6900, 4294901760
    %v7087 = vsub.f32 %v6900, %v7086
    %v7088 = vand.u32 %v7087, 4294901760
    %v7089 = vsub.f32 %v7087, %v7088
    %v7090 = vand.u32 %v7089, 4294901760
    %7091 = vmatmul.mubr.f32.gmra.mxu0 %v7090
    %v7092 = vpop.f32.mrf.mxu0
    %v7093 = vadd.f32 %v6983, %v7092
    %v7094 = vpop.f32.mrf.mxu0
    %7095 = vmatprep.mubr.f32.mxu0 0.0
    %v7096 = vand.u32 %v6901, 4294901760
    %v7097 = vsub.f32 %v6901, %v7096
    %v7098 = vand.u32 %v7097, 4294901760
    %v7099 = vsub.f32 %v7097, %v7098
    %v7100 = vand.u32 %v7099, 4294901760
    %7101 = vmatmul.mubr.f32.gmra.mxu0 %v7100
    %v7102 = vpop.f32.mrf.mxu0
    %v7103 = vadd.f32 %v6983, %v7102
    %v7104 = vpop.f32.mrf.mxu0
    %7105 = vmatprep.mubr.f32.mxu0 0.0
    %v7106 = vand.u32 %v6902, 4294901760
    %v7107 = vsub.f32 %v6902, %v7106
    %v7108 = vand.u32 %v7107, 4294901760
    %v7109 = vsub.f32 %v7107, %v7108
    %v7110 = vand.u32 %v7109, 4294901760
    %7111 = vmatmul.mubr.f32.gmra.mxu0 %v7110
    %v7112 = vpop.f32.mrf.mxu0
    %v7113 = vadd.f32 %v6983, %v7112
    %v7114 = vpop.f32.mrf.mxu0
    %7115 = vmatprep.mubr.f32.mxu0 0.0
    %v7116 = vand.u32 %v6903, 4294901760
    %v7117 = vsub.f32 %v6903, %v7116
    %v7118 = vand.u32 %v7117, 4294901760
    %v7119 = vsub.f32 %v7117, %v7118
    %v7120 = vand.u32 %v7119, 4294901760
    %7121 = vmatmul.mubr.f32.gmra.mxu0 %v7120
    %v7122 = vpop.f32.mrf.mxu0
    %v7123 = vadd.f32 %v6983, %v7122
    %v7124 = vpop.f32.mrf.mxu0
    %7125 = vmatprep.mubr.f32.mxu0 0.0
    %v7126 = vand.u32 %v6904, 4294901760
    %v7127 = vsub.f32 %v6904, %v7126
    %v7128 = vand.u32 %v7127, 4294901760
    %v7129 = vsub.f32 %v7127, %v7128
    %v7130 = vand.u32 %v7129, 4294901760
    %7131 = vmatmul.mubr.f32.gmra.mxu0 %v7130
    %v7132 = vpop.f32.mrf.mxu0
    %v7133 = vadd.f32 %v6983, %v7132
    %v7134 = vpop.f32.mrf.mxu0
    %7135 = vmatprep.mubr.f32.mxu0 0.0
    %v7136 = vand.u32 %v6905, 4294901760
    %v7137 = vsub.f32 %v6905, %v7136
    %v7138 = vand.u32 %v7137, 4294901760
    %v7139 = vsub.f32 %v7137, %v7138
    %v7140 = vand.u32 %v7139, 4294901760
    %7141 = vmatmul.mubr.f32.gmra.mxu0 %v7140
    %v7142 = vpop.f32.mrf.mxu0
    %v7143 = vadd.f32 %v6983, %v7142
    %v7144 = vpop.f32.mrf.mxu0
    %7145 = vmatprep.mubr.f32.mxu0 0.0
    %v7146 = vand.u32 %v6906, 4294901760
    %v7147 = vsub.f32 %v6906, %v7146
    %v7148 = vand.u32 %v7147, 4294901760
    %v7149 = vsub.f32 %v7147, %v7148
    %v7150 = vand.u32 %v7149, 4294901760
    %7151 = vmatmul.mubr.f32.gmra.mxu0 %v7150
    %v7152 = vpop.f32.mrf.mxu0
    %v7153 = vadd.f32 %v6983, %v7152
    %v7154 = vpop.f32.mrf.mxu0
    %7155 = vmatprep.mubr.f32.mxu0 0.0
    %v7156 = vand.u32 %v6907, 4294901760
    %v7157 = vsub.f32 %v6907, %v7156
    %v7158 = vand.u32 %v7157, 4294901760
    %v7159 = vsub.f32 %v7157, %v7158
    %v7160 = vand.u32 %v7159, 4294901760
    %7161 = vmatmul.mubr.f32.gmra.mxu0 %v7160
    %v7162 = vpop.f32.mrf.mxu0
    %v7163 = vadd.f32 %v6983, %v7162
    %v7164 = vpop.f32.mrf.mxu0
    %7165 = vmatprep.mubr.f32.mxu0 0.0
    %v7166 = vand.u32 %v6908, 4294901760
    %v7167 = vsub.f32 %v6908, %v7166
    %v7168 = vand.u32 %v7167, 4294901760
    %v7169 = vsub.f32 %v7167, %v7168
    %v7170 = vand.u32 %v7169, 4294901760
    %7171 = vmatmul.mubr.f32.gmra.mxu0 %v7170
    %v7172 = vpop.f32.mrf.mxu0
    %v7173 = vadd.f32 %v6983, %v7172
    %v7174 = vpop.f32.mrf.mxu0
    %7175 = vmatprep.mubr.f32.mxu0 0.0
    %v7176 = vand.u32 %v6909, 4294901760
    %v7177 = vsub.f32 %v6909, %v7176
    %v7178 = vand.u32 %v7177, 4294901760
    %v7179 = vsub.f32 %v7177, %v7178
    %v7180 = vand.u32 %v7179, 4294901760
    %7181 = vmatmul.mubr.f32.gmra.mxu0 %v7180
    %v7182 = vpop.f32.mrf.mxu0
    %v7183 = vadd.f32 %v6983, %v7182
    %v7184 = vpop.f32.mrf.mxu0
    %7185 = vmatprep.mubr.f32.mxu0 0.0
    %v7186 = vand.u32 %v6910, 4294901760
    %v7187 = vsub.f32 %v6910, %v7186
    %v7188 = vand.u32 %v7187, 4294901760
    %v7189 = vsub.f32 %v7187, %v7188
    %v7190 = vand.u32 %v7189, 4294901760
    %7191 = vmatmul.mubr.f32.gmra.mxu0 %v7190
    %v7192 = vpop.f32.mrf.mxu0
    %v7193 = vadd.f32 %v6983, %v7192
    %v7194 = vpop.f32.mrf.mxu0
    %7195 = vmatprep.mubr.f32.mxu0 0.0
    %v7196 = vand.u32 %v6911, 4294901760
    %v7197 = vsub.f32 %v6911, %v7196
    %v7198 = vand.u32 %v7197, 4294901760
    %v7199 = vsub.f32 %v7197, %v7198
    %v7200 = vand.u32 %v7199, 4294901760
    %7201 = vmatmul.mubr.f32.gmra.mxu0 %v7200
    %v7202 = vpop.f32.mrf.mxu0
    %v7203 = vadd.f32 %v6983, %v7202
    %v7204 = vpop.f32.mrf.mxu0
    %7205 = vmatprep.mubr.f32.mxu0 0.0
    %v7206 = vand.u32 %v6912, 4294901760
    %v7207 = vsub.f32 %v6912, %v7206
    %v7208 = vand.u32 %v7207, 4294901760
    %v7209 = vsub.f32 %v7207, %v7208
    %v7210 = vand.u32 %v7209, 4294901760
    %7211 = vmatmul.mubr.f32.gmra.mxu0 %v7210
    %v7212 = vpop.f32.mrf.mxu0
    %v7213 = vadd.f32 %v6983, %v7212
    %v7214 = vpop.f32.mrf.mxu0
    %7215 = vmatprep.mubr.f32.mxu0 0.0
    %v7216 = vand.u32 %v6913, 4294901760
    %v7217 = vsub.f32 %v6913, %v7216
    %v7218 = vand.u32 %v7217, 4294901760
    %v7219 = vsub.f32 %v7217, %v7218
    %v7220 = vand.u32 %v7219, 4294901760
    %7221 = vmatmul.mubr.f32.gmra.mxu0 %v7220
    %v7222 = vpop.f32.mrf.mxu0
    %v7223 = vadd.f32 %v6983, %v7222
    %v7224 = vpop.f32.mrf.mxu0
    %7225 = vmatprep.mubr.f32.mxu0 0.0
    %v7226 = vand.u32 %v6914, 4294901760
    %v7227 = vsub.f32 %v6914, %v7226
    %v7228 = vand.u32 %v7227, 4294901760
    %v7229 = vsub.f32 %v7227, %v7228
    %v7230 = vand.u32 %v7229, 4294901760
    %7231 = vmatmul.mubr.f32.gmra.mxu0 %v7230
    %v7232 = vpop.f32.mrf.mxu0
    %v7233 = vadd.f32 %v6983, %v7232
    %v7234 = vpop.f32.mrf.mxu0
    %7235 = vmatprep.mubr.f32.mxu0 0.0
    %v7236 = vand.u32 %v6915, 4294901760
    %v7237 = vsub.f32 %v6915, %v7236
    %v7238 = vand.u32 %v7237, 4294901760
    %v7239 = vsub.f32 %v7237, %v7238
    %v7240 = vand.u32 %v7239, 4294901760
    %7241 = vmatmul.mubr.f32.gmra.mxu0 %v7240
    %v7242 = vpop.f32.mrf.mxu0
    %v7243 = vadd.f32 %v6983, %v7242
    %v7244 = vpop.f32.mrf.mxu0
    %7245 = vmatprep.mubr.f32.mxu0 0.0
    %v7246 = vand.u32 %v6916, 4294901760
    %v7247 = vsub.f32 %v6916, %v7246
    %v7248 = vand.u32 %v7247, 4294901760
    %v7249 = vsub.f32 %v7247, %v7248
    %v7250 = vand.u32 %v7249, 4294901760
    %7251 = vmatmul.mubr.f32.gmra.mxu0 %v7250
    %v7252 = vpop.f32.mrf.mxu0
    %v7253 = vadd.f32 %v6983, %v7252
    %v7254 = vpop.f32.mrf.mxu0
    %7255 = vmatprep.mubr.f32.mxu0 0.0
    %v7256 = vand.u32 %v6917, 4294901760
    %v7257 = vsub.f32 %v6917, %v7256
    %v7258 = vand.u32 %v7257, 4294901760
    %v7259 = vsub.f32 %v7257, %v7258
    %v7260 = vand.u32 %v7259, 4294901760
    %7261 = vmatmul.mubr.f32.gmra.mxu0 %v7260
    %v7262 = vpop.f32.mrf.mxu0
    %v7263 = vadd.f32 %v6983, %v7262
    %v7264 = vpop.f32.mrf.mxu0
    %7265 = vmatprep.mubr.f32.mxu0 0.0
    %v7266 = vand.u32 %v6918, 4294901760
    %v7267 = vsub.f32 %v6918, %v7266
    %v7268 = vand.u32 %v7267, 4294901760
    %v7269 = vsub.f32 %v7267, %v7268
    %v7270 = vand.u32 %v7269, 4294901760
    %7271 = vmatmul.mubr.f32.gmra.mxu0 %v7270
    %v7272 = vpop.f32.mrf.mxu0
    %v7273 = vadd.f32 %v6983, %v7272
    %v7274 = vpop.f32.mrf.mxu0
    %7275 = vmatprep.mubr.f32.mxu0 0.0
    %v7276 = vand.u32 %v6919, 4294901760
    %v7277 = vsub.f32 %v6919, %v7276
    %v7278 = vand.u32 %v7277, 4294901760
    %v7279 = vsub.f32 %v7277, %v7278
    %v7280 = vand.u32 %v7279, 4294901760
    %7281 = vmatmul.mubr.f32.gmra.mxu0 %v7280
    %v7282 = vpop.f32.mrf.mxu0
    %v7283 = vadd.f32 %v6983, %v7282
    %v7284 = vpop.f32.mrf.mxu0
    %7285 = vmatprep.mubr.f32.mxu0 0.0
    %v7286 = vand.u32 %v6920, 4294901760
    %v7287 = vsub.f32 %v6920, %v7286
    %v7288 = vand.u32 %v7287, 4294901760
    %v7289 = vsub.f32 %v7287, %v7288
    %v7290 = vand.u32 %v7289, 4294901760
    %7291 = vmatmul.mubr.f32.gmra.mxu0 %v7290
    %v7292 = vpop.f32.mrf.mxu0
    %v7293 = vadd.f32 %v6983, %v7292
    %v7294 = vpop.f32.mrf.mxu0
    %7295 = vmatprep.mubr.f32.mxu0 0.0
    %v7296 = vand.u32 %v6921, 4294901760
    %v7297 = vsub.f32 %v6921, %v7296
    %v7298 = vand.u32 %v7297, 4294901760
    %v7299 = vsub.f32 %v7297, %v7298
    %v7300 = vand.u32 %v7299, 4294901760
    %7301 = vmatmul.mubr.f32.gmra.mxu0 %v7300
    %v7302 = vpop.f32.mrf.mxu0
    %v7303 = vadd.f32 %v6983, %v7302
    %v7304 = vpop.f32.mrf.mxu0
    %7305 = vmatprep.mubr.f32.mxu0 0.0
    %v7306 = vand.u32 %v6922, 4294901760
    %v7307 = vsub.f32 %v6922, %v7306
    %v7308 = vand.u32 %v7307, 4294901760
    %v7309 = vsub.f32 %v7307, %v7308
    %v7310 = vand.u32 %v7309, 4294901760
    %7311 = vmatmul.mubr.f32.gmra.mxu0 %v7310
    %v7312 = vpop.f32.mrf.mxu0
    %v7313 = vadd.f32 %v6983, %v7312
    %v7314 = vpop.f32.mrf.mxu0
    %7315 = vmatprep.mubr.f32.mxu0 0.0
    %v7316 = vand.u32 %v6923, 4294901760
    %v7317 = vsub.f32 %v6923, %v7316
    %v7318 = vand.u32 %v7317, 4294901760
    %v7319 = vsub.f32 %v7317, %v7318
    %v7320 = vand.u32 %v7319, 4294901760
    %7321 = vmatmul.mubr.f32.gmra.mxu0 %v7320
    %v7322 = vpop.f32.mrf.mxu0
    %v7323 = vadd.f32 %v6983, %v7322
    %v7324 = vpop.f32.mrf.mxu0
    %7325 = vmatprep.mubr.f32.mxu0 0.0
    %v7326 = vand.u32 %v6924, 4294901760
    %v7327 = vsub.f32 %v6924, %v7326
    %v7328 = vand.u32 %v7327, 4294901760
    %v7329 = vsub.f32 %v7327, %v7328
    %v7330 = vand.u32 %v7329, 4294901760
    %7331 = vmatmul.mubr.f32.gmra.mxu0 %v7330
    %v7332 = vpop.f32.mrf.mxu0
    %v7333 = vadd.f32 %v6983, %v7332
    %v7334 = vpop.f32.mrf.mxu0
    %7335 = vmatprep.mubr.f32.mxu0 0.0
    %v7336 = vand.u32 %v6925, 4294901760
    %v7337 = vsub.f32 %v6925, %v7336
    %v7338 = vand.u32 %v7337, 4294901760
    %v7339 = vsub.f32 %v7337, %v7338
    %v7340 = vand.u32 %v7339, 4294901760
    %7341 = vmatmul.mubr.f32.gmra.mxu0 %v7340
    %v7342 = vpop.f32.mrf.mxu0
    %v7343 = vadd.f32 %v6983, %v7342
    %v7344 = vpop.f32.mrf.mxu0
    %7345 = vmatprep.mubr.f32.mxu0 0.0
    %v7346 = vand.u32 %v6926, 4294901760
    %v7347 = vsub.f32 %v6926, %v7346
    %v7348 = vand.u32 %v7347, 4294901760
    %v7349 = vsub.f32 %v7347, %v7348
    %v7350 = vand.u32 %v7349, 4294901760
    %7351 = vmatmul.mubr.f32.gmra.mxu0 %v7350
    %v7352 = vpop.f32.mrf.mxu0
    %v7353 = vadd.f32 %v6983, %v7352
    %v7354 = vpop.f32.mrf.mxu0
    %7355 = vmatprep.mubr.f32.mxu0 0.0
    %v7356 = vand.u32 %v6927, 4294901760
    %v7357 = vsub.f32 %v6927, %v7356
    %v7358 = vand.u32 %v7357, 4294901760
    %v7359 = vsub.f32 %v7357, %v7358
    %v7360 = vand.u32 %v7359, 4294901760
    %7361 = vmatmul.mubr.f32.gmra.mxu0 %v7360
    %v7362 = vpop.f32.mrf.mxu0
    %v7363 = vadd.f32 %v6983, %v7362
    %v7364 = vpop.f32.mrf.mxu0
    %7365 = vmatprep.mubr.f32.mxu0 0.0
    %v7366 = vand.u32 %v6928, 4294901760
    %v7367 = vsub.f32 %v6928, %v7366
    %v7368 = vand.u32 %v7367, 4294901760
    %v7369 = vsub.f32 %v7367, %v7368
    %v7370 = vand.u32 %v7369, 4294901760
    %7371 = vmatmul.mubr.f32.gmra.mxu0 %v7370
    %v7372 = vpop.f32.mrf.mxu0
    %v7373 = vadd.f32 %v6983, %v7372
    %v7374 = vpop.f32.mrf.mxu0
    %7375 = vmatprep.mubr.f32.mxu0 0.0
    %v7376 = vand.u32 %v6929, 4294901760
    %v7377 = vsub.f32 %v6929, %v7376
    %v7378 = vand.u32 %v7377, 4294901760
    %v7379 = vsub.f32 %v7377, %v7378
    %v7380 = vand.u32 %v7379, 4294901760
    %7381 = vmatmul.mubr.f32.gmra.mxu0 %v7380
    %v7382 = vpop.f32.mrf.mxu0
    %v7383 = vadd.f32 %v6983, %v7382
    %v7384 = vpop.f32.mrf.mxu0
    %7385 = vmatprep.mubr.f32.mxu0 0.0
    %v7386 = vand.u32 %v6930, 4294901760
    %v7387 = vsub.f32 %v6930, %v7386
    %v7388 = vand.u32 %v7387, 4294901760
    %v7389 = vsub.f32 %v7387, %v7388
    %v7390 = vand.u32 %v7389, 4294901760
    %7391 = vmatmul.mubr.f32.gmra.mxu0 %v7390
    %v7392 = vpop.f32.mrf.mxu0
    %v7393 = vadd.f32 %v6983, %v7392
    %v7394 = vpop.f32.mrf.mxu0
    %7395 = vmatprep.mubr.f32.mxu0 0.0
    %v7396 = vand.u32 %v6931, 4294901760
    %v7397 = vsub.f32 %v6931, %v7396
    %v7398 = vand.u32 %v7397, 4294901760
    %v7399 = vsub.f32 %v7397, %v7398
    %v7400 = vand.u32 %v7399, 4294901760
    %7401 = vmatmul.mubr.f32.gmra.mxu0 %v7400
    %v7402 = vpop.f32.mrf.mxu0
    %v7403 = vadd.f32 %v6983, %v7402
    %v7404 = vpop.f32.mrf.mxu0
    %7405 = vmatprep.mubr.f32.mxu0 0.0
    %v7406 = vand.u32 %v6932, 4294901760
    %v7407 = vsub.f32 %v6932, %v7406
    %v7408 = vand.u32 %v7407, 4294901760
    %v7409 = vsub.f32 %v7407, %v7408
    %v7410 = vand.u32 %v7409, 4294901760
    %7411 = vmatmul.mubr.f32.gmra.mxu0 %v7410
    %v7412 = vpop.f32.mrf.mxu0
    %v7413 = vadd.f32 %v6983, %v7412
    %v7414 = vpop.f32.mrf.mxu0
    %7415 = vmatprep.mubr.f32.mxu0 0.0
    %v7416 = vand.u32 %v6933, 4294901760
    %v7417 = vsub.f32 %v6933, %v7416
    %v7418 = vand.u32 %v7417, 4294901760
    %v7419 = vsub.f32 %v7417, %v7418
    %v7420 = vand.u32 %v7419, 4294901760
    %7421 = vmatmul.mubr.f32.gmra.mxu0 %v7420
    %v7422 = vpop.f32.mrf.mxu0
    %v7423 = vadd.f32 %v6983, %v7422
    %v7424 = vpop.f32.mrf.mxu0
    %7425 = vmatprep.mubr.f32.mxu0 0.0
    %v7426 = vand.u32 %v6934, 4294901760
    %v7427 = vsub.f32 %v6934, %v7426
    %v7428 = vand.u32 %v7427, 4294901760
    %v7429 = vsub.f32 %v7427, %v7428
    %v7430 = vand.u32 %v7429, 4294901760
    %7431 = vmatmul.mubr.f32.gmra.mxu0 %v7430
    %v7432 = vpop.f32.mrf.mxu0
    %v7433 = vadd.f32 %v6983, %v7432
    %v7434 = vpop.f32.mrf.mxu0
    %7435 = vmatprep.mubr.f32.mxu0 0.0
    %v7436 = vand.u32 %v6935, 4294901760
    %v7437 = vsub.f32 %v6935, %v7436
    %v7438 = vand.u32 %v7437, 4294901760
    %v7439 = vsub.f32 %v7437, %v7438
    %v7440 = vand.u32 %v7439, 4294901760
    %7441 = vmatmul.mubr.f32.gmra.mxu0 %v7440
    %v7442 = vpop.f32.mrf.mxu0
    %v7443 = vadd.f32 %v6983, %v7442
    %v7444 = vpop.f32.mrf.mxu0
    %7445 = vmatprep.mubr.f32.mxu0 0.0
    %v7446 = vand.u32 %v6936, 4294901760
    %v7447 = vsub.f32 %v6936, %v7446
    %v7448 = vand.u32 %v7447, 4294901760
    %v7449 = vsub.f32 %v7447, %v7448
    %v7450 = vand.u32 %v7449, 4294901760
    %7451 = vmatmul.mubr.f32.gmra.mxu0 %v7450
    %v7452 = vpop.f32.mrf.mxu0
    %v7453 = vadd.f32 %v6983, %v7452
    %v7454 = vpop.f32.mrf.mxu0
    %7455 = vmatprep.mubr.f32.mxu0 0.0
    %v7456 = vand.u32 %v6937, 4294901760
    %v7457 = vsub.f32 %v6937, %v7456
    %v7458 = vand.u32 %v7457, 4294901760
    %v7459 = vsub.f32 %v7457, %v7458
    %v7460 = vand.u32 %v7459, 4294901760
    %7461 = vmatmul.mubr.f32.gmra.mxu0 %v7460
    %v7462 = vpop.f32.mrf.mxu0
    %v7463 = vadd.f32 %v6983, %v7462
    %v7464 = vpop.f32.mrf.mxu0
    %7465 = vmatprep.mubr.f32.mxu0 0.0
    %v7466 = vand.u32 %v6938, 4294901760
    %v7467 = vsub.f32 %v6938, %v7466
    %v7468 = vand.u32 %v7467, 4294901760
    %v7469 = vsub.f32 %v7467, %v7468
    %v7470 = vand.u32 %v7469, 4294901760
    %7471 = vmatmul.mubr.f32.gmra.mxu0 %v7470
    %v7472 = vpop.f32.mrf.mxu0
    %v7473 = vadd.f32 %v6983, %v7472
    %v7474 = vpop.f32.mrf.mxu0
    %7475 = vmatprep.mubr.f32.mxu0 0.0
    %v7476 = vand.u32 %v6939, 4294901760
    %v7477 = vsub.f32 %v6939, %v7476
    %v7478 = vand.u32 %v7477, 4294901760
    %v7479 = vsub.f32 %v7477, %v7478
    %v7480 = vand.u32 %v7479, 4294901760
    %7481 = vmatmul.mubr.f32.gmra.mxu0 %v7480
    %v7482 = vpop.f32.mrf.mxu0
    %v7483 = vadd.f32 %v6983, %v7482
    %v7484 = vpop.f32.mrf.mxu0
    %7485 = vmatprep.mubr.f32.mxu0 0.0
    %v7486 = vand.u32 %v6940, 4294901760
    %v7487 = vsub.f32 %v6940, %v7486
    %v7488 = vand.u32 %v7487, 4294901760
    %v7489 = vsub.f32 %v7487, %v7488
    %v7490 = vand.u32 %v7489, 4294901760
    %7491 = vmatmul.mubr.f32.gmra.mxu0 %v7490
    %v7492 = vpop.f32.mrf.mxu0
    %v7493 = vadd.f32 %v6983, %v7492
    %v7494 = vpop.f32.mrf.mxu0
    %7495 = vmatprep.mubr.f32.mxu0 0.0
    %v7496 = vand.u32 %v6941, 4294901760
    %v7497 = vsub.f32 %v6941, %v7496
    %v7498 = vand.u32 %v7497, 4294901760
    %v7499 = vsub.f32 %v7497, %v7498
    %v7500 = vand.u32 %v7499, 4294901760
    %7501 = vmatmul.mubr.f32.gmra.mxu0 %v7500
    %v7502 = vpop.f32.mrf.mxu0
    %v7503 = vadd.f32 %v6983, %v7502
    %v7504 = vpop.f32.mrf.mxu0
    %7505 = vmatprep.mubr.f32.mxu0 0.0
    %v7506 = vand.u32 %v6942, 4294901760
    %v7507 = vsub.f32 %v6942, %v7506
    %v7508 = vand.u32 %v7507, 4294901760
    %v7509 = vsub.f32 %v7507, %v7508
    %v7510 = vand.u32 %v7509, 4294901760
    %7511 = vmatmul.mubr.f32.gmra.mxu0 %v7510
    %v7512 = vpop.f32.mrf.mxu0
    %v7513 = vadd.f32 %v6983, %v7512
    %v7514 = vpop.f32.mrf.mxu0
    %7515 = vmatprep.mubr.f32.mxu0 0.0
    %v7516 = vand.u32 %v6943, 4294901760
    %v7517 = vsub.f32 %v6943, %v7516
    %v7518 = vand.u32 %v7517, 4294901760
    %v7519 = vsub.f32 %v7517, %v7518
    %v7520 = vand.u32 %v7519, 4294901760
    %7521 = vmatmul.mubr.f32.gmra.mxu0 %v7520
    %v7522 = vpop.f32.mrf.mxu0
    %v7523 = vadd.f32 %v6983, %v7522
    %v7524 = vpop.f32.mrf.mxu0
    %7525 = vmatprep.mubr.f32.mxu0 0.0
    %v7526 = vand.u32 %v6944, 4294901760
    %v7527 = vsub.f32 %v6944, %v7526
    %v7528 = vand.u32 %v7527, 4294901760
    %v7529 = vsub.f32 %v7527, %v7528
    %v7530 = vand.u32 %v7529, 4294901760
    %7531 = vmatmul.mubr.f32.gmra.mxu0 %v7530
    %v7532 = vpop.f32.mrf.mxu0
    %v7533 = vadd.f32 %v6983, %v7532
    %v7534 = vpop.f32.mrf.mxu0
    %7535 = vmatprep.mubr.f32.mxu0 0.0
    %v7536 = vand.u32 %v6945, 4294901760
    %v7537 = vsub.f32 %v6945, %v7536
    %v7538 = vand.u32 %v7537, 4294901760
    %v7539 = vsub.f32 %v7537, %v7538
    %v7540 = vand.u32 %v7539, 4294901760
    %7541 = vmatmul.mubr.f32.gmra.mxu0 %v7540
    %v7542 = vpop.f32.mrf.mxu0
    %v7543 = vadd.f32 %v6983, %v7542
    %v7544 = vpop.f32.mrf.mxu0
    %7545 = vmatprep.mubr.f32.mxu0 0.0
    %v7546 = vand.u32 %v6946, 4294901760
    %v7547 = vsub.f32 %v6946, %v7546
    %v7548 = vand.u32 %v7547, 4294901760
    %v7549 = vsub.f32 %v7547, %v7548
    %v7550 = vand.u32 %v7549, 4294901760
    %7551 = vmatmul.mubr.f32.gmra.mxu0 %v7550
    %v7552 = vpop.f32.mrf.mxu0
    %v7553 = vadd.f32 %v6983, %v7552
    %v7554 = vpop.f32.mrf.mxu0
    %7555 = vmatprep.mubr.f32.mxu0 0.0
    %v7556 = vand.u32 %v6947, 4294901760
    %v7557 = vsub.f32 %v6947, %v7556
    %v7558 = vand.u32 %v7557, 4294901760
    %v7559 = vsub.f32 %v7557, %v7558
    %v7560 = vand.u32 %v7559, 4294901760
    %7561 = vmatmul.mubr.f32.gmra.mxu0 %v7560
    %v7562 = vpop.f32.mrf.mxu0
    %v7563 = vadd.f32 %v6983, %v7562
    %v7564 = vpop.f32.mrf.mxu0
    %7565 = vmatprep.mubr.f32.mxu0 0.0
    %v7566 = vand.u32 %v6948, 4294901760
    %v7567 = vsub.f32 %v6948, %v7566
    %v7568 = vand.u32 %v7567, 4294901760
    %v7569 = vsub.f32 %v7567, %v7568
    %v7570 = vand.u32 %v7569, 4294901760
    %7571 = vmatmul.mubr.f32.gmra.mxu0 %v7570
    %v7572 = vpop.f32.mrf.mxu0
    %v7573 = vadd.f32 %v6983, %v7572
    %v7574 = vpop.f32.mrf.mxu0
    %7575 = vmatprep.mubr.f32.mxu0 0.0
    %v7576 = vand.u32 %v6949, 4294901760
    %v7577 = vsub.f32 %v6949, %v7576
    %v7578 = vand.u32 %v7577, 4294901760
    %v7579 = vsub.f32 %v7577, %v7578
    %v7580 = vand.u32 %v7579, 4294901760
    %7581 = vmatmul.mubr.f32.gmra.mxu0 %v7580
    %v7582 = vpop.f32.mrf.mxu0
    %v7583 = vadd.f32 %v6983, %v7582
    %v7584 = vpop.f32.mrf.mxu0
    %7585 = vmatprep.mubr.f32.mxu0 0.0
    %v7586 = vand.u32 %v6950, 4294901760
    %v7587 = vsub.f32 %v6950, %v7586
    %v7588 = vand.u32 %v7587, 4294901760
    %v7589 = vsub.f32 %v7587, %v7588
    %v7590 = vand.u32 %v7589, 4294901760
    %7591 = vmatmul.mubr.f32.gmra.mxu0 %v7590
    %v7592 = vpop.f32.mrf.mxu0
    %v7593 = vadd.f32 %v6983, %v7592
    %v7594 = vpop.f32.mrf.mxu0
    %7595 = vmatprep.mubr.f32.mxu0 0.0
    %v7596 = vand.u32 %v6951, 4294901760
    %v7597 = vsub.f32 %v6951, %v7596
    %v7598 = vand.u32 %v7597, 4294901760
    %v7599 = vsub.f32 %v7597, %v7598
    %v7600 = vand.u32 %v7599, 4294901760
    %7601 = vmatmul.mubr.f32.gmra.mxu0 %v7600
    %v7602 = vpop.f32.mrf.mxu0
    %v7603 = vadd.f32 %v6983, %v7602
    %v7604 = vpop.f32.mrf.mxu0
    %7605 = vmatprep.mubr.f32.mxu0 0.0
    %v7606 = vand.u32 %v6952, 4294901760
    %v7607 = vsub.f32 %v6952, %v7606
    %v7608 = vand.u32 %v7607, 4294901760
    %v7609 = vsub.f32 %v7607, %v7608
    %v7610 = vand.u32 %v7609, 4294901760
    %7611 = vmatmul.mubr.f32.gmra.mxu0 %v7610
    %v7612 = vpop.f32.mrf.mxu0
    %v7613 = vadd.f32 %v6983, %v7612
    %v7614 = vpop.f32.mrf.mxu0
    %7615 = vmatprep.mubr.f32.mxu0 0.0
    %v7616 = vand.u32 %v6953, 4294901760
    %v7617 = vsub.f32 %v6953, %v7616
    %v7618 = vand.u32 %v7617, 4294901760
    %v7619 = vsub.f32 %v7617, %v7618
    %v7620 = vand.u32 %v7619, 4294901760
    %7621 = vmatmul.mubr.f32.gmra.mxu0 %v7620
    %v7622 = vpop.f32.mrf.mxu0
    %v7623 = vadd.f32 %v6983, %v7622
    %v7624 = vpop.f32.mrf.mxu0
    %7625 = vmatprep.mubr.f32.mxu0 0.0
    %v7626 = vand.u32 %v6954, 4294901760
    %v7627 = vsub.f32 %v6954, %v7626
    %v7628 = vand.u32 %v7627, 4294901760
    %v7629 = vsub.f32 %v7627, %v7628
    %v7630 = vand.u32 %v7629, 4294901760
    %7631 = vmatmul.mubr.f32.gmra.mxu0 %v7630
    %v7632 = vpop.f32.mrf.mxu0
    %v7633 = vadd.f32 %v6983, %v7632
    %v7634 = vpop.f32.mrf.mxu0
    %7635 = vmatprep.mubr.f32.mxu0 0.0
    %v7636 = vand.u32 %v6955, 4294901760
    %v7637 = vsub.f32 %v6955, %v7636
    %v7638 = vand.u32 %v7637, 4294901760
    %v7639 = vsub.f32 %v7637, %v7638
    %v7640 = vand.u32 %v7639, 4294901760
    %7641 = vmatmul.mubr.f32.gmra.mxu0 %v7640
    %v7642 = vpop.f32.mrf.mxu0
    %v7643 = vadd.f32 %v6983, %v7642
    %v7644 = vpop.f32.mrf.mxu0
    %7645 = vmatprep.mubr.f32.mxu0 0.0
    %v7646 = vand.u32 %v6956, 4294901760
    %v7647 = vsub.f32 %v6956, %v7646
    %v7648 = vand.u32 %v7647, 4294901760
    %v7649 = vsub.f32 %v7647, %v7648
    %v7650 = vand.u32 %v7649, 4294901760
    %7651 = vmatmul.mubr.f32.gmra.mxu0 %v7650
    %v7652 = vpop.f32.mrf.mxu0
    %v7653 = vadd.f32 %v6983, %v7652
    %v7654 = vpop.f32.mrf.mxu0
    %7655 = vmatprep.mubr.f32.mxu0 0.0
    %v7656 = vand.u32 %v6957, 4294901760
    %v7657 = vsub.f32 %v6957, %v7656
    %v7658 = vand.u32 %v7657, 4294901760
    %v7659 = vsub.f32 %v7657, %v7658
    %v7660 = vand.u32 %v7659, 4294901760
    %7661 = vmatmul.mubr.f32.gmra.mxu0 %v7660
    %v7662 = vpop.f32.mrf.mxu0
    %v7663 = vadd.f32 %v6983, %v7662
    %v7664 = vpop.f32.mrf.mxu0
    %7665 = vmatprep.mubr.f32.mxu0 0.0
    %v7666 = vand.u32 %v6958, 4294901760
    %v7667 = vsub.f32 %v6958, %v7666
    %v7668 = vand.u32 %v7667, 4294901760
    %v7669 = vsub.f32 %v7667, %v7668
    %v7670 = vand.u32 %v7669, 4294901760
    %7671 = vmatmul.mubr.f32.gmra.mxu0 %v7670
    %v7672 = vpop.f32.mrf.mxu0
    %v7673 = vadd.f32 %v6983, %v7672
    %v7674 = vpop.f32.mrf.mxu0
    %7675 = vmatprep.mubr.f32.mxu0 0.0
    %v7676 = vand.u32 %v6959, 4294901760
    %v7677 = vsub.f32 %v6959, %v7676
    %v7678 = vand.u32 %v7677, 4294901760
    %v7679 = vsub.f32 %v7677, %v7678
    %v7680 = vand.u32 %v7679, 4294901760
    %7681 = vmatmul.mubr.f32.gmra.mxu0 %v7680
    %v7682 = vpop.f32.mrf.mxu0
    %v7683 = vadd.f32 %v6983, %v7682
    %v7684 = vpop.f32.mrf.mxu0
    %7685 = vmatprep.mubr.f32.mxu0 0.0
    %v7686 = vand.u32 %v6960, 4294901760
    %v7687 = vsub.f32 %v6960, %v7686
    %v7688 = vand.u32 %v7687, 4294901760
    %v7689 = vsub.f32 %v7687, %v7688
    %v7690 = vand.u32 %v7689, 4294901760
    %7691 = vmatmul.mubr.f32.gmra.mxu0 %v7690
    %v7692 = vpop.f32.mrf.mxu0
    %v7693 = vadd.f32 %v6983, %v7692
    %v7694 = vpop.f32.mrf.mxu0
    %7695 = vmatprep.mubr.f32.mxu0 0.0
    %v7696 = vand.u32 %v6961, 4294901760
    %v7697 = vsub.f32 %v6961, %v7696
    %v7698 = vand.u32 %v7697, 4294901760
    %v7699 = vsub.f32 %v7697, %v7698
    %v7700 = vand.u32 %v7699, 4294901760
    %7701 = vmatmul.mubr.f32.gmra.mxu0 %v7700
    %v7702 = vpop.f32.mrf.mxu0
    %v7703 = vadd.f32 %v6983, %v7702
    %v7704 = vpop.f32.mrf.mxu0
    %7705 = vdwg.mxu0
    %7706 = vmatprep.subr.mxu0 0.0
    %v7707 = vand.u32 %v6977, 4294901760
    %v7708 = vsub.f32 %v6977, %v7707
    %v7709 = vand.u32 %v7708, 4294901760
    %v7710 = vsub.f32 %v7708, %v7709
    %v7711 = vand.u32 %v7710, 4294901760
    %7712 = vmatpush1.msra.mxu0 %v7711
    %7713 = vmatprep.subr.mxu0 0.0
    %v7714 = vand.u32 %v6976, 4294901760
    %v7715 = vsub.f32 %v6976, %v7714
    %v7716 = vand.u32 %v7715, 4294901760
    %v7717 = vsub.f32 %v7715, %v7716
    %v7718 = vand.u32 %v7717, 4294901760
    %7719 = vmatpush1.msra.mxu0 %v7718
    %7720 = vmatprep.subr.mxu0 0.0
    %v7721 = vand.u32 %v6975, 4294901760
    %v7722 = vsub.f32 %v6975, %v7721
    %v7723 = vand.u32 %v7722, 4294901760
    %v7724 = vsub.f32 %v7722, %v7723
    %v7725 = vand.u32 %v7724, 4294901760
    %7726 = vmatpush1.msra.mxu0 %v7725
    %7727 = vmatprep.subr.mxu0 0.0
    %v7728 = vand.u32 %v6974, 4294901760
    %v7729 = vsub.f32 %v6974, %v7728
    %v7730 = vand.u32 %v7729, 4294901760
    %v7731 = vsub.f32 %v7729, %v7730
    %v7732 = vand.u32 %v7731, 4294901760
    %7733 = vmatpush1.msra.mxu0 %v7732
    %7734 = vmatprep.subr.mxu0 0.0
    %v7735 = vand.u32 %v6973, 4294901760
    %v7736 = vsub.f32 %v6973, %v7735
    %v7737 = vand.u32 %v7736, 4294901760
    %v7738 = vsub.f32 %v7736, %v7737
    %v7739 = vand.u32 %v7738, 4294901760
    %7740 = vmatpush1.msra.mxu0 %v7739
    %7741 = vmatprep.subr.mxu0 0.0
    %v7742 = vand.u32 %v6972, 4294901760
    %v7743 = vsub.f32 %v6972, %v7742
    %v7744 = vand.u32 %v7743, 4294901760
    %v7745 = vsub.f32 %v7743, %v7744
    %v7746 = vand.u32 %v7745, 4294901760
    %7747 = vmatpush1.msra.mxu0 %v7746
    %7748 = vmatprep.subr.mxu0 0.0
    %v7749 = vand.u32 %v6971, 4294901760
    %v7750 = vsub.f32 %v6971, %v7749
    %v7751 = vand.u32 %v7750, 4294901760
    %v7752 = vsub.f32 %v7750, %v7751
    %v7753 = vand.u32 %v7752, 4294901760
    %7754 = vmatpush1.msra.mxu0 %v7753
    %7755 = vmatprep.subr.mxu0 0.0
    %v7756 = vand.u32 %v6970, 4294901760
    %v7757 = vsub.f32 %v6970, %v7756
    %v7758 = vand.u32 %v7757, 4294901760
    %v7759 = vsub.f32 %v7757, %v7758
    %v7760 = vand.u32 %v7759, 4294901760
    %7761 = vmatpush1.msra.mxu0 %v7760
    %7762 = vmatprep.subr.mxu0 0.0
    %v7763 = vand.u32 %v6969, 4294901760
    %v7764 = vsub.f32 %v6969, %v7763
    %v7765 = vand.u32 %v7764, 4294901760
    %v7766 = vsub.f32 %v7764, %v7765
    %v7767 = vand.u32 %v7766, 4294901760
    %7768 = vmatpush1.msra.mxu0 %v7767
    %7769 = vmatprep.subr.mxu0 0.0
    %v7770 = vand.u32 %v6968, 4294901760
    %v7771 = vsub.f32 %v6968, %v7770
    %v7772 = vand.u32 %v7771, 4294901760
    %v7773 = vsub.f32 %v7771, %v7772
    %v7774 = vand.u32 %v7773, 4294901760
    %7775 = vmatpush1.msra.mxu0 %v7774
    %7776 = vmatprep.subr.mxu0 0.0
    %v7777 = vand.u32 %v6967, 4294901760
    %v7778 = vsub.f32 %v6967, %v7777
    %v7779 = vand.u32 %v7778, 4294901760
    %v7780 = vsub.f32 %v7778, %v7779
    %v7781 = vand.u32 %v7780, 4294901760
    %7782 = vmatpush1.msra.mxu0 %v7781
    %7783 = vmatprep.subr.mxu0 0.0
    %v7784 = vand.u32 %v6966, 4294901760
    %v7785 = vsub.f32 %v6966, %v7784
    %v7786 = vand.u32 %v7785, 4294901760
    %v7787 = vsub.f32 %v7785, %v7786
    %v7788 = vand.u32 %v7787, 4294901760
    %7789 = vmatpush1.msra.mxu0 %v7788
    %7790 = vmatprep.subr.mxu0 0.0
    %v7791 = vand.u32 %v6965, 4294901760
    %v7792 = vsub.f32 %v6965, %v7791
    %v7793 = vand.u32 %v7792, 4294901760
    %v7794 = vsub.f32 %v7792, %v7793
    %v7795 = vand.u32 %v7794, 4294901760
    %7796 = vmatpush1.msra.mxu0 %v7795
    %7797 = vmatprep.subr.mxu0 0.0
    %v7798 = vand.u32 %v6964, 4294901760
    %v7799 = vsub.f32 %v6964, %v7798
    %v7800 = vand.u32 %v7799, 4294901760
    %v7801 = vsub.f32 %v7799, %v7800
    %v7802 = vand.u32 %v7801, 4294901760
    %7803 = vmatpush1.msra.mxu0 %v7802
    %7804 = vmatprep.subr.mxu0 0.0
    %v7805 = vand.u32 %v6963, 4294901760
    %v7806 = vsub.f32 %v6963, %v7805
    %v7807 = vand.u32 %v7806, 4294901760
    %v7808 = vsub.f32 %v7806, %v7807
    %v7809 = vand.u32 %v7808, 4294901760
    %7810 = vmatpush1.msra.mxu0 %v7809
    %7811 = vmatprep.subr.mxu0 0.0
    %v7812 = vand.u32 %v6962, 4294901760
    %v7813 = vsub.f32 %v6962, %v7812
    %v7814 = vand.u32 %v7813, 4294901760
    %v7815 = vsub.f32 %v7813, %v7814
    %v7816 = vand.u32 %v7815, 4294901760
    %7817 = vmatpush1.msra.mxu0 %v7816
    %7818 = vmatprep.subr.mxu0 0.0
    %7819 = vmatpush2.msra.mxu0 0.0
    %7820 = vmatprep.subr.mxu0 0.0
    %7821 = vmatpush2.msra.mxu0 0.0
    %7822 = vmatprep.subr.mxu0 0.0
    %7823 = vmatpush2.msra.mxu0 0.0
    %7824 = vmatprep.subr.mxu0 0.0
    %7825 = vmatpush2.msra.mxu0 0.0
    %7826 = vmatprep.subr.mxu0 0.0
    %7827 = vmatpush2.msra.mxu0 0.0
    %7828 = vmatprep.subr.mxu0 0.0
    %7829 = vmatpush2.msra.mxu0 0.0
    %7830 = vmatprep.subr.mxu0 0.0
    %7831 = vmatpush2.msra.mxu0 0.0
    %7832 = vmatprep.subr.mxu0 0.0
    %7833 = vmatpush2.msra.mxu0 0.0
    %7834 = vmatprep.subr.mxu0 0.0
    %7835 = vmatpush2.msra.mxu0 0.0
    %7836 = vmatprep.subr.mxu0 0.0
    %7837 = vmatpush2.msra.mxu0 0.0
    %7838 = vmatprep.subr.mxu0 0.0
    %7839 = vmatpush2.msra.mxu0 0.0
    %7840 = vmatprep.subr.mxu0 0.0
    %7841 = vmatpush2.msra.mxu0 0.0
    %7842 = vmatprep.subr.mxu0 0.0
    %7843 = vmatpush2.msra.mxu0 0.0
    %7844 = vmatprep.subr.mxu0 0.0
    %7845 = vmatpush2.msra.mxu0 0.0
    %7846 = vmatprep.subr.mxu0 0.0
    %7847 = vmatpush2.msra.mxu0 0.0
    %7848 = vmatprep.subr.mxu0 0.0
    %7849 = vmatpush2.msra.mxu0 0.0
    %7850 = vmatprep.mubr.f32.mxu0 0.0
    %v7851 = vand.u32 %v6898, 4294901760
    %7852 = vmatmul.mubr.f32.gmra.mxu0 %v7851
    %v7853 = vpop.f32.mrf.mxu0
    %v7854 = vadd.f32 %v7073, %v7853
    %v7855 = vpop.f32.mrf.mxu0
    %7856 = vmatprep.mubr.f32.mxu0 0.0
    %v7857 = vand.u32 %v6899, 4294901760
    %7858 = vmatmul.mubr.f32.gmra.mxu0 %v7857
    %v7859 = vpop.f32.mrf.mxu0
    %v7860 = vadd.f32 %v7083, %v7859
    %v7861 = vpop.f32.mrf.mxu0
    %7862 = vmatprep.mubr.f32.mxu0 0.0
    %v7863 = vand.u32 %v6900, 4294901760
    %7864 = vmatmul.mubr.f32.gmra.mxu0 %v7863
    %v7865 = vpop.f32.mrf.mxu0
    %v7866 = vadd.f32 %v7093, %v7865
    %v7867 = vpop.f32.mrf.mxu0
    %7868 = vmatprep.mubr.f32.mxu0 0.0
    %v7869 = vand.u32 %v6901, 4294901760
    %7870 = vmatmul.mubr.f32.gmra.mxu0 %v7869
    %v7871 = vpop.f32.mrf.mxu0
    %v7872 = vadd.f32 %v7103, %v7871
    %v7873 = vpop.f32.mrf.mxu0
    %7874 = vmatprep.mubr.f32.mxu0 0.0
    %v7875 = vand.u32 %v6902, 4294901760
    %7876 = vmatmul.mubr.f32.gmra.mxu0 %v7875
    %v7877 = vpop.f32.mrf.mxu0
    %v7878 = vadd.f32 %v7113, %v7877
    %v7879 = vpop.f32.mrf.mxu0
    %7880 = vmatprep.mubr.f32.mxu0 0.0
    %v7881 = vand.u32 %v6903, 4294901760
    %7882 = vmatmul.mubr.f32.gmra.mxu0 %v7881
    %v7883 = vpop.f32.mrf.mxu0
    %v7884 = vadd.f32 %v7123, %v7883
    %v7885 = vpop.f32.mrf.mxu0
    %7886 = vmatprep.mubr.f32.mxu0 0.0
    %v7887 = vand.u32 %v6904, 4294901760
    %7888 = vmatmul.mubr.f32.gmra.mxu0 %v7887
    %v7889 = vpop.f32.mrf.mxu0
    %v7890 = vadd.f32 %v7133, %v7889
    %v7891 = vpop.f32.mrf.mxu0
    %7892 = vmatprep.mubr.f32.mxu0 0.0
    %v7893 = vand.u32 %v6905, 4294901760
    %7894 = vmatmul.mubr.f32.gmra.mxu0 %v7893
    %v7895 = vpop.f32.mrf.mxu0
    %v7896 = vadd.f32 %v7143, %v7895
    %v7897 = vpop.f32.mrf.mxu0
    %7898 = vmatprep.mubr.f32.mxu0 0.0
    %v7899 = vand.u32 %v6906, 4294901760
    %7900 = vmatmul.mubr.f32.gmra.mxu0 %v7899
    %v7901 = vpop.f32.mrf.mxu0
    %v7902 = vadd.f32 %v7153, %v7901
    %v7903 = vpop.f32.mrf.mxu0
    %7904 = vmatprep.mubr.f32.mxu0 0.0
    %v7905 = vand.u32 %v6907, 4294901760
    %7906 = vmatmul.mubr.f32.gmra.mxu0 %v7905
    %v7907 = vpop.f32.mrf.mxu0
    %v7908 = vadd.f32 %v7163, %v7907
    %v7909 = vpop.f32.mrf.mxu0
    %7910 = vmatprep.mubr.f32.mxu0 0.0
    %v7911 = vand.u32 %v6908, 4294901760
    %7912 = vmatmul.mubr.f32.gmra.mxu0 %v7911
    %v7913 = vpop.f32.mrf.mxu0
    %v7914 = vadd.f32 %v7173, %v7913
    %v7915 = vpop.f32.mrf.mxu0
    %7916 = vmatprep.mubr.f32.mxu0 0.0
    %v7917 = vand.u32 %v6909, 4294901760
    %7918 = vmatmul.mubr.f32.gmra.mxu0 %v7917
    %v7919 = vpop.f32.mrf.mxu0
    %v7920 = vadd.f32 %v7183, %v7919
    %v7921 = vpop.f32.mrf.mxu0
    %7922 = vmatprep.mubr.f32.mxu0 0.0
    %v7923 = vand.u32 %v6910, 4294901760
    %7924 = vmatmul.mubr.f32.gmra.mxu0 %v7923
    %v7925 = vpop.f32.mrf.mxu0
    %v7926 = vadd.f32 %v7193, %v7925
    %v7927 = vpop.f32.mrf.mxu0
    %7928 = vmatprep.mubr.f32.mxu0 0.0
    %v7929 = vand.u32 %v6911, 4294901760
    %7930 = vmatmul.mubr.f32.gmra.mxu0 %v7929
    %v7931 = vpop.f32.mrf.mxu0
    %v7932 = vadd.f32 %v7203, %v7931
    %v7933 = vpop.f32.mrf.mxu0
    %7934 = vmatprep.mubr.f32.mxu0 0.0
    %v7935 = vand.u32 %v6912, 4294901760
    %7936 = vmatmul.mubr.f32.gmra.mxu0 %v7935
    %v7937 = vpop.f32.mrf.mxu0
    %v7938 = vadd.f32 %v7213, %v7937
    %v7939 = vpop.f32.mrf.mxu0
    %7940 = vmatprep.mubr.f32.mxu0 0.0
    %v7941 = vand.u32 %v6913, 4294901760
    %7942 = vmatmul.mubr.f32.gmra.mxu0 %v7941
    %v7943 = vpop.f32.mrf.mxu0
    %v7944 = vadd.f32 %v7223, %v7943
    %v7945 = vpop.f32.mrf.mxu0
    %7946 = vmatprep.mubr.f32.mxu0 0.0
    %v7947 = vand.u32 %v6914, 4294901760
    %7948 = vmatmul.mubr.f32.gmra.mxu0 %v7947
    %v7949 = vpop.f32.mrf.mxu0
    %v7950 = vadd.f32 %v7233, %v7949
    %v7951 = vpop.f32.mrf.mxu0
    %7952 = vmatprep.mubr.f32.mxu0 0.0
    %v7953 = vand.u32 %v6915, 4294901760
    %7954 = vmatmul.mubr.f32.gmra.mxu0 %v7953
    %v7955 = vpop.f32.mrf.mxu0
    %v7956 = vadd.f32 %v7243, %v7955
    %v7957 = vpop.f32.mrf.mxu0
    %7958 = vmatprep.mubr.f32.mxu0 0.0
    %v7959 = vand.u32 %v6916, 4294901760
    %7960 = vmatmul.mubr.f32.gmra.mxu0 %v7959
    %v7961 = vpop.f32.mrf.mxu0
    %v7962 = vadd.f32 %v7253, %v7961
    %v7963 = vpop.f32.mrf.mxu0
    %7964 = vmatprep.mubr.f32.mxu0 0.0
    %v7965 = vand.u32 %v6917, 4294901760
    %7966 = vmatmul.mubr.f32.gmra.mxu0 %v7965
    %v7967 = vpop.f32.mrf.mxu0
    %v7968 = vadd.f32 %v7263, %v7967
    %v7969 = vpop.f32.mrf.mxu0
    %7970 = vmatprep.mubr.f32.mxu0 0.0
    %v7971 = vand.u32 %v6918, 4294901760
    %7972 = vmatmul.mubr.f32.gmra.mxu0 %v7971
    %v7973 = vpop.f32.mrf.mxu0
    %v7974 = vadd.f32 %v7273, %v7973
    %v7975 = vpop.f32.mrf.mxu0
    %7976 = vmatprep.mubr.f32.mxu0 0.0
    %v7977 = vand.u32 %v6919, 4294901760
    %7978 = vmatmul.mubr.f32.gmra.mxu0 %v7977
    %v7979 = vpop.f32.mrf.mxu0
    %v7980 = vadd.f32 %v7283, %v7979
    %v7981 = vpop.f32.mrf.mxu0
    %7982 = vmatprep.mubr.f32.mxu0 0.0
    %v7983 = vand.u32 %v6920, 4294901760
    %7984 = vmatmul.mubr.f32.gmra.mxu0 %v7983
    %v7985 = vpop.f32.mrf.mxu0
    %v7986 = vadd.f32 %v7293, %v7985
    %v7987 = vpop.f32.mrf.mxu0
    %7988 = vmatprep.mubr.f32.mxu0 0.0
    %v7989 = vand.u32 %v6921, 4294901760
    %7990 = vmatmul.mubr.f32.gmra.mxu0 %v7989
    %v7991 = vpop.f32.mrf.mxu0
    %v7992 = vadd.f32 %v7303, %v7991
    %v7993 = vpop.f32.mrf.mxu0
    %7994 = vmatprep.mubr.f32.mxu0 0.0
    %v7995 = vand.u32 %v6922, 4294901760
    %7996 = vmatmul.mubr.f32.gmra.mxu0 %v7995
    %v7997 = vpop.f32.mrf.mxu0
    %v7998 = vadd.f32 %v7313, %v7997
    %v7999 = vpop.f32.mrf.mxu0
    %8000 = vmatprep.mubr.f32.mxu0 0.0
    %v8001 = vand.u32 %v6923, 4294901760
    %8002 = vmatmul.mubr.f32.gmra.mxu0 %v8001
    %v8003 = vpop.f32.mrf.mxu0
    %v8004 = vadd.f32 %v7323, %v8003
    %v8005 = vpop.f32.mrf.mxu0
    %8006 = vmatprep.mubr.f32.mxu0 0.0
    %v8007 = vand.u32 %v6924, 4294901760
    %8008 = vmatmul.mubr.f32.gmra.mxu0 %v8007
    %v8009 = vpop.f32.mrf.mxu0
    %v8010 = vadd.f32 %v7333, %v8009
    %v8011 = vpop.f32.mrf.mxu0
    %8012 = vmatprep.mubr.f32.mxu0 0.0
    %v8013 = vand.u32 %v6925, 4294901760
    %8014 = vmatmul.mubr.f32.gmra.mxu0 %v8013
    %v8015 = vpop.f32.mrf.mxu0
    %v8016 = vadd.f32 %v7343, %v8015
    %v8017 = vpop.f32.mrf.mxu0
    %8018 = vmatprep.mubr.f32.mxu0 0.0
    %v8019 = vand.u32 %v6926, 4294901760
    %8020 = vmatmul.mubr.f32.gmra.mxu0 %v8019
    %v8021 = vpop.f32.mrf.mxu0
    %v8022 = vadd.f32 %v7353, %v8021
    %v8023 = vpop.f32.mrf.mxu0
    %8024 = vmatprep.mubr.f32.mxu0 0.0
    %v8025 = vand.u32 %v6927, 4294901760
    %8026 = vmatmul.mubr.f32.gmra.mxu0 %v8025
    %v8027 = vpop.f32.mrf.mxu0
    %v8028 = vadd.f32 %v7363, %v8027
    %v8029 = vpop.f32.mrf.mxu0
    %8030 = vmatprep.mubr.f32.mxu0 0.0
    %v8031 = vand.u32 %v6928, 4294901760
    %8032 = vmatmul.mubr.f32.gmra.mxu0 %v8031
    %v8033 = vpop.f32.mrf.mxu0
    %v8034 = vadd.f32 %v7373, %v8033
    %v8035 = vpop.f32.mrf.mxu0
    %8036 = vmatprep.mubr.f32.mxu0 0.0
    %v8037 = vand.u32 %v6929, 4294901760
    %8038 = vmatmul.mubr.f32.gmra.mxu0 %v8037
    %v8039 = vpop.f32.mrf.mxu0
    %v8040 = vadd.f32 %v7383, %v8039
    %v8041 = vpop.f32.mrf.mxu0
    %8042 = vmatprep.mubr.f32.mxu0 0.0
    %v8043 = vand.u32 %v6930, 4294901760
    %8044 = vmatmul.mubr.f32.gmra.mxu0 %v8043
    %v8045 = vpop.f32.mrf.mxu0
    %v8046 = vadd.f32 %v7393, %v8045
    %v8047 = vpop.f32.mrf.mxu0
    %8048 = vmatprep.mubr.f32.mxu0 0.0
    %v8049 = vand.u32 %v6931, 4294901760
    %8050 = vmatmul.mubr.f32.gmra.mxu0 %v8049
    %v8051 = vpop.f32.mrf.mxu0
    %v8052 = vadd.f32 %v7403, %v8051
    %v8053 = vpop.f32.mrf.mxu0
    %8054 = vmatprep.mubr.f32.mxu0 0.0
    %v8055 = vand.u32 %v6932, 4294901760
    %8056 = vmatmul.mubr.f32.gmra.mxu0 %v8055
    %v8057 = vpop.f32.mrf.mxu0
    %v8058 = vadd.f32 %v7413, %v8057
    %v8059 = vpop.f32.mrf.mxu0
    %8060 = vmatprep.mubr.f32.mxu0 0.0
    %v8061 = vand.u32 %v6933, 4294901760
    %8062 = vmatmul.mubr.f32.gmra.mxu0 %v8061
    %v8063 = vpop.f32.mrf.mxu0
    %v8064 = vadd.f32 %v7423, %v8063
    %v8065 = vpop.f32.mrf.mxu0
    %8066 = vmatprep.mubr.f32.mxu0 0.0
    %v8067 = vand.u32 %v6934, 4294901760
    %8068 = vmatmul.mubr.f32.gmra.mxu0 %v8067
    %v8069 = vpop.f32.mrf.mxu0
    %v8070 = vadd.f32 %v7433, %v8069
    %v8071 = vpop.f32.mrf.mxu0
    %8072 = vmatprep.mubr.f32.mxu0 0.0
    %v8073 = vand.u32 %v6935, 4294901760
    %8074 = vmatmul.mubr.f32.gmra.mxu0 %v8073
    %v8075 = vpop.f32.mrf.mxu0
    %v8076 = vadd.f32 %v7443, %v8075
    %v8077 = vpop.f32.mrf.mxu0
    %8078 = vmatprep.mubr.f32.mxu0 0.0
    %v8079 = vand.u32 %v6936, 4294901760
    %8080 = vmatmul.mubr.f32.gmra.mxu0 %v8079
    %v8081 = vpop.f32.mrf.mxu0
    %v8082 = vadd.f32 %v7453, %v8081
    %v8083 = vpop.f32.mrf.mxu0
    %8084 = vmatprep.mubr.f32.mxu0 0.0
    %v8085 = vand.u32 %v6937, 4294901760
    %8086 = vmatmul.mubr.f32.gmra.mxu0 %v8085
    %v8087 = vpop.f32.mrf.mxu0
    %v8088 = vadd.f32 %v7463, %v8087
    %v8089 = vpop.f32.mrf.mxu0
    %8090 = vmatprep.mubr.f32.mxu0 0.0
    %v8091 = vand.u32 %v6938, 4294901760
    %8092 = vmatmul.mubr.f32.gmra.mxu0 %v8091
    %v8093 = vpop.f32.mrf.mxu0
    %v8094 = vadd.f32 %v7473, %v8093
    %v8095 = vpop.f32.mrf.mxu0
    %8096 = vmatprep.mubr.f32.mxu0 0.0
    %v8097 = vand.u32 %v6939, 4294901760
    %8098 = vmatmul.mubr.f32.gmra.mxu0 %v8097
    %v8099 = vpop.f32.mrf.mxu0
    %v8100 = vadd.f32 %v7483, %v8099
    %v8101 = vpop.f32.mrf.mxu0
    %8102 = vmatprep.mubr.f32.mxu0 0.0
    %v8103 = vand.u32 %v6940, 4294901760
    %8104 = vmatmul.mubr.f32.gmra.mxu0 %v8103
    %v8105 = vpop.f32.mrf.mxu0
    %v8106 = vadd.f32 %v7493, %v8105
    %v8107 = vpop.f32.mrf.mxu0
    %8108 = vmatprep.mubr.f32.mxu0 0.0
    %v8109 = vand.u32 %v6941, 4294901760
    %8110 = vmatmul.mubr.f32.gmra.mxu0 %v8109
    %v8111 = vpop.f32.mrf.mxu0
    %v8112 = vadd.f32 %v7503, %v8111
    %v8113 = vpop.f32.mrf.mxu0
    %8114 = vmatprep.mubr.f32.mxu0 0.0
    %v8115 = vand.u32 %v6942, 4294901760
    %8116 = vmatmul.mubr.f32.gmra.mxu0 %v8115
    %v8117 = vpop.f32.mrf.mxu0
    %v8118 = vadd.f32 %v7513, %v8117
    %v8119 = vpop.f32.mrf.mxu0
    %8120 = vmatprep.mubr.f32.mxu0 0.0
    %v8121 = vand.u32 %v6943, 4294901760
    %8122 = vmatmul.mubr.f32.gmra.mxu0 %v8121
    %v8123 = vpop.f32.mrf.mxu0
    %v8124 = vadd.f32 %v7523, %v8123
    %v8125 = vpop.f32.mrf.mxu0
    %8126 = vmatprep.mubr.f32.mxu0 0.0
    %v8127 = vand.u32 %v6944, 4294901760
    %8128 = vmatmul.mubr.f32.gmra.mxu0 %v8127
    %v8129 = vpop.f32.mrf.mxu0
    %v8130 = vadd.f32 %v7533, %v8129
    %v8131 = vpop.f32.mrf.mxu0
    %8132 = vmatprep.mubr.f32.mxu0 0.0
    %v8133 = vand.u32 %v6945, 4294901760
    %8134 = vmatmul.mubr.f32.gmra.mxu0 %v8133
    %v8135 = vpop.f32.mrf.mxu0
    %v8136 = vadd.f32 %v7543, %v8135
    %v8137 = vpop.f32.mrf.mxu0
    %8138 = vmatprep.mubr.f32.mxu0 0.0
    %v8139 = vand.u32 %v6946, 4294901760
    %8140 = vmatmul.mubr.f32.gmra.mxu0 %v8139
    %v8141 = vpop.f32.mrf.mxu0
    %v8142 = vadd.f32 %v7553, %v8141
    %v8143 = vpop.f32.mrf.mxu0
    %8144 = vmatprep.mubr.f32.mxu0 0.0
    %v8145 = vand.u32 %v6947, 4294901760
    %8146 = vmatmul.mubr.f32.gmra.mxu0 %v8145
    %v8147 = vpop.f32.mrf.mxu0
    %v8148 = vadd.f32 %v7563, %v8147
    %v8149 = vpop.f32.mrf.mxu0
    %8150 = vmatprep.mubr.f32.mxu0 0.0
    %v8151 = vand.u32 %v6948, 4294901760
    %8152 = vmatmul.mubr.f32.gmra.mxu0 %v8151
    %v8153 = vpop.f32.mrf.mxu0
    %v8154 = vadd.f32 %v7573, %v8153
    %v8155 = vpop.f32.mrf.mxu0
    %8156 = vmatprep.mubr.f32.mxu0 0.0
    %v8157 = vand.u32 %v6949, 4294901760
    %8158 = vmatmul.mubr.f32.gmra.mxu0 %v8157
    %v8159 = vpop.f32.mrf.mxu0
    %v8160 = vadd.f32 %v7583, %v8159
    %v8161 = vpop.f32.mrf.mxu0
    %8162 = vmatprep.mubr.f32.mxu0 0.0
    %v8163 = vand.u32 %v6950, 4294901760
    %8164 = vmatmul.mubr.f32.gmra.mxu0 %v8163
    %v8165 = vpop.f32.mrf.mxu0
    %v8166 = vadd.f32 %v7593, %v8165
    %v8167 = vpop.f32.mrf.mxu0
    %8168 = vmatprep.mubr.f32.mxu0 0.0
    %v8169 = vand.u32 %v6951, 4294901760
    %8170 = vmatmul.mubr.f32.gmra.mxu0 %v8169
    %v8171 = vpop.f32.mrf.mxu0
    %v8172 = vadd.f32 %v7603, %v8171
    %v8173 = vpop.f32.mrf.mxu0
    %8174 = vmatprep.mubr.f32.mxu0 0.0
    %v8175 = vand.u32 %v6952, 4294901760
    %8176 = vmatmul.mubr.f32.gmra.mxu0 %v8175
    %v8177 = vpop.f32.mrf.mxu0
    %v8178 = vadd.f32 %v7613, %v8177
    %v8179 = vpop.f32.mrf.mxu0
    %8180 = vmatprep.mubr.f32.mxu0 0.0
    %v8181 = vand.u32 %v6953, 4294901760
    %8182 = vmatmul.mubr.f32.gmra.mxu0 %v8181
    %v8183 = vpop.f32.mrf.mxu0
    %v8184 = vadd.f32 %v7623, %v8183
    %v8185 = vpop.f32.mrf.mxu0
    %8186 = vmatprep.mubr.f32.mxu0 0.0
    %v8187 = vand.u32 %v6954, 4294901760
    %8188 = vmatmul.mubr.f32.gmra.mxu0 %v8187
    %v8189 = vpop.f32.mrf.mxu0
    %v8190 = vadd.f32 %v7633, %v8189
    %v8191 = vpop.f32.mrf.mxu0
    %8192 = vmatprep.mubr.f32.mxu0 0.0
    %v8193 = vand.u32 %v6955, 4294901760
    %8194 = vmatmul.mubr.f32.gmra.mxu0 %v8193
    %v8195 = vpop.f32.mrf.mxu0
    %v8196 = vadd.f32 %v7643, %v8195
    %v8197 = vpop.f32.mrf.mxu0
    %8198 = vmatprep.mubr.f32.mxu0 0.0
    %v8199 = vand.u32 %v6956, 4294901760
    %8200 = vmatmul.mubr.f32.gmra.mxu0 %v8199
    %v8201 = vpop.f32.mrf.mxu0
    %v8202 = vadd.f32 %v7653, %v8201
    %v8203 = vpop.f32.mrf.mxu0
    %8204 = vmatprep.mubr.f32.mxu0 0.0
    %v8205 = vand.u32 %v6957, 4294901760
    %8206 = vmatmul.mubr.f32.gmra.mxu0 %v8205
    %v8207 = vpop.f32.mrf.mxu0
    %v8208 = vadd.f32 %v7663, %v8207
    %v8209 = vpop.f32.mrf.mxu0
    %8210 = vmatprep.mubr.f32.mxu0 0.0
    %v8211 = vand.u32 %v6958, 4294901760
    %8212 = vmatmul.mubr.f32.gmra.mxu0 %v8211
    %v8213 = vpop.f32.mrf.mxu0
    %v8214 = vadd.f32 %v7673, %v8213
    %v8215 = vpop.f32.mrf.mxu0
    %8216 = vmatprep.mubr.f32.mxu0 0.0
    %v8217 = vand.u32 %v6959, 4294901760
    %8218 = vmatmul.mubr.f32.gmra.mxu0 %v8217
    %v8219 = vpop.f32.mrf.mxu0
    %v8220 = vadd.f32 %v7683, %v8219
    %v8221 = vpop.f32.mrf.mxu0
    %8222 = vmatprep.mubr.f32.mxu0 0.0
    %v8223 = vand.u32 %v6960, 4294901760
    %8224 = vmatmul.mubr.f32.gmra.mxu0 %v8223
    %v8225 = vpop.f32.mrf.mxu0
    %v8226 = vadd.f32 %v7693, %v8225
    %v8227 = vpop.f32.mrf.mxu0
    %8228 = vmatprep.mubr.f32.mxu0 0.0
    %v8229 = vand.u32 %v6961, 4294901760
    %8230 = vmatmul.mubr.f32.gmra.mxu0 %v8229
    %v8231 = vpop.f32.mrf.mxu0
    %v8232 = vadd.f32 %v7703, %v8231
    %v8233 = vpop.f32.mrf.mxu0
    %8234 = vdwg.mxu0
    %8235 = vmatprep.subr.mxu0 0.0
    %v8236 = vand.u32 %v6977, 4294901760
    %v8237 = vsub.f32 %v6977, %v8236
    %8238 = vmatpush1.msra.mxu0 %v8237
    %8239 = vmatprep.subr.mxu0 0.0
    %v8240 = vand.u32 %v6976, 4294901760
    %v8241 = vsub.f32 %v6976, %v8240
    %8242 = vmatpush1.msra.mxu0 %v8241
    %8243 = vmatprep.subr.mxu0 0.0
    %v8244 = vand.u32 %v6975, 4294901760
    %v8245 = vsub.f32 %v6975, %v8244
    %8246 = vmatpush1.msra.mxu0 %v8245
    %8247 = vmatprep.subr.mxu0 0.0
    %v8248 = vand.u32 %v6974, 4294901760
    %v8249 = vsub.f32 %v6974, %v8248
    %8250 = vmatpush1.msra.mxu0 %v8249
    %8251 = vmatprep.subr.mxu0 0.0
    %v8252 = vand.u32 %v6973, 4294901760
    %v8253 = vsub.f32 %v6973, %v8252
    %8254 = vmatpush1.msra.mxu0 %v8253
    %8255 = vmatprep.subr.mxu0 0.0
    %v8256 = vand.u32 %v6972, 4294901760
    %v8257 = vsub.f32 %v6972, %v8256
    %8258 = vmatpush1.msra.mxu0 %v8257
    %8259 = vmatprep.subr.mxu0 0.0
    %v8260 = vand.u32 %v6971, 4294901760
    %v8261 = vsub.f32 %v6971, %v8260
    %8262 = vmatpush1.msra.mxu0 %v8261
    %8263 = vmatprep.subr.mxu0 0.0
    %v8264 = vand.u32 %v6970, 4294901760
    %v8265 = vsub.f32 %v6970, %v8264
    %8266 = vmatpush1.msra.mxu0 %v8265
    %8267 = vmatprep.subr.mxu0 0.0
    %v8268 = vand.u32 %v6969, 4294901760
    %v8269 = vsub.f32 %v6969, %v8268
    %8270 = vmatpush1.msra.mxu0 %v8269
    %8271 = vmatprep.subr.mxu0 0.0
    %v8272 = vand.u32 %v6968, 4294901760
    %v8273 = vsub.f32 %v6968, %v8272
    %8274 = vmatpush1.msra.mxu0 %v8273
    %8275 = vmatprep.subr.mxu0 0.0
    %v8276 = vand.u32 %v6967, 4294901760
    %v8277 = vsub.f32 %v6967, %v8276
    %8278 = vmatpush1.msra.mxu0 %v8277
    %8279 = vmatprep.subr.mxu0 0.0
    %v8280 = vand.u32 %v6966, 4294901760
    %v8281 = vsub.f32 %v6966, %v8280
    %8282 = vmatpush1.msra.mxu0 %v8281
    %8283 = vmatprep.subr.mxu0 0.0
    %v8284 = vand.u32 %v6965, 4294901760
    %v8285 = vsub.f32 %v6965, %v8284
    %8286 = vmatpush1.msra.mxu0 %v8285
    %8287 = vmatprep.subr.mxu0 0.0
    %v8288 = vand.u32 %v6964, 4294901760
    %v8289 = vsub.f32 %v6964, %v8288
    %8290 = vmatpush1.msra.mxu0 %v8289
    %8291 = vmatprep.subr.mxu0 0.0
    %v8292 = vand.u32 %v6963, 4294901760
    %v8293 = vsub.f32 %v6963, %v8292
    %8294 = vmatpush1.msra.mxu0 %v8293
    %8295 = vmatprep.subr.mxu0 0.0
    %v8296 = vand.u32 %v6962, 4294901760
    %v8297 = vsub.f32 %v6962, %v8296
    %8298 = vmatpush1.msra.mxu0 %v8297
    %8299 = vmatprep.subr.mxu0 0.0
    %8300 = vmatpush2.msra.mxu0 0.0
    %8301 = vmatprep.subr.mxu0 0.0
    %8302 = vmatpush2.msra.mxu0 0.0
    %8303 = vmatprep.subr.mxu0 0.0
    %8304 = vmatpush2.msra.mxu0 0.0
    %8305 = vmatprep.subr.mxu0 0.0
    %8306 = vmatpush2.msra.mxu0 0.0
    %8307 = vmatprep.subr.mxu0 0.0
    %8308 = vmatpush2.msra.mxu0 0.0
    %8309 = vmatprep.subr.mxu0 0.0
    %8310 = vmatpush2.msra.mxu0 0.0
    %8311 = vmatprep.subr.mxu0 0.0
    %8312 = vmatpush2.msra.mxu0 0.0
    %8313 = vmatprep.subr.mxu0 0.0
    %8314 = vmatpush2.msra.mxu0 0.0
    %8315 = vmatprep.subr.mxu0 0.0
    %8316 = vmatpush2.msra.mxu0 0.0
    %8317 = vmatprep.subr.mxu0 0.0
    %8318 = vmatpush2.msra.mxu0 0.0
    %8319 = vmatprep.subr.mxu0 0.0
    %8320 = vmatpush2.msra.mxu0 0.0
    %8321 = vmatprep.subr.mxu0 0.0
    %8322 = vmatpush2.msra.mxu0 0.0
    %8323 = vmatprep.subr.mxu0 0.0
    %8324 = vmatpush2.msra.mxu0 0.0
    %8325 = vmatprep.subr.mxu0 0.0
    %8326 = vmatpush2.msra.mxu0 0.0
    %8327 = vmatprep.subr.mxu0 0.0
    %8328 = vmatpush2.msra.mxu0 0.0
    %8329 = vmatprep.subr.mxu0 0.0
    %8330 = vmatpush2.msra.mxu0 0.0
    %8331 = vmatprep.mubr.f32.mxu0 0.0
    %v8332 = vand.u32 %v6898, 4294901760
    %v8333 = vsub.f32 %v6898, %v8332
    %8334 = vmatmul.mubr.f32.gmra.mxu0 %v8333
    %v8335 = vpop.f32.mrf.mxu0
    %v8336 = vadd.f32 %v7854, %v8335
    %v8337 = vpop.f32.mrf.mxu0
    %8338 = vmatprep.mubr.f32.mxu0 0.0
    %v8339 = vand.u32 %v6899, 4294901760
    %v8340 = vsub.f32 %v6899, %v8339
    %8341 = vmatmul.mubr.f32.gmra.mxu0 %v8340
    %v8342 = vpop.f32.mrf.mxu0
    %v8343 = vadd.f32 %v7860, %v8342
    %v8344 = vpop.f32.mrf.mxu0
    %8345 = vmatprep.mubr.f32.mxu0 0.0
    %v8346 = vand.u32 %v6900, 4294901760
    %v8347 = vsub.f32 %v6900, %v8346
    %8348 = vmatmul.mubr.f32.gmra.mxu0 %v8347
    %v8349 = vpop.f32.mrf.mxu0
    %v8350 = vadd.f32 %v7866, %v8349
    %v8351 = vpop.f32.mrf.mxu0
    %8352 = vmatprep.mubr.f32.mxu0 0.0
    %v8353 = vand.u32 %v6901, 4294901760
    %v8354 = vsub.f32 %v6901, %v8353
    %8355 = vmatmul.mubr.f32.gmra.mxu0 %v8354
    %v8356 = vpop.f32.mrf.mxu0
    %v8357 = vadd.f32 %v7872, %v8356
    %v8358 = vpop.f32.mrf.mxu0
    %8359 = vmatprep.mubr.f32.mxu0 0.0
    %v8360 = vand.u32 %v6902, 4294901760
    %v8361 = vsub.f32 %v6902, %v8360
    %8362 = vmatmul.mubr.f32.gmra.mxu0 %v8361
    %v8363 = vpop.f32.mrf.mxu0
    %v8364 = vadd.f32 %v7878, %v8363
    %v8365 = vpop.f32.mrf.mxu0
    %8366 = vmatprep.mubr.f32.mxu0 0.0
    %v8367 = vand.u32 %v6903, 4294901760
    %v8368 = vsub.f32 %v6903, %v8367
    %8369 = vmatmul.mubr.f32.gmra.mxu0 %v8368
    %v8370 = vpop.f32.mrf.mxu0
    %v8371 = vadd.f32 %v7884, %v8370
    %v8372 = vpop.f32.mrf.mxu0
    %8373 = vmatprep.mubr.f32.mxu0 0.0
    %v8374 = vand.u32 %v6904, 4294901760
    %v8375 = vsub.f32 %v6904, %v8374
    %8376 = vmatmul.mubr.f32.gmra.mxu0 %v8375
    %v8377 = vpop.f32.mrf.mxu0
    %v8378 = vadd.f32 %v7890, %v8377
    %v8379 = vpop.f32.mrf.mxu0
    %8380 = vmatprep.mubr.f32.mxu0 0.0
    %v8381 = vand.u32 %v6905, 4294901760
    %v8382 = vsub.f32 %v6905, %v8381
    %8383 = vmatmul.mubr.f32.gmra.mxu0 %v8382
    %v8384 = vpop.f32.mrf.mxu0
    %v8385 = vadd.f32 %v7896, %v8384
    %v8386 = vpop.f32.mrf.mxu0
    %8387 = vmatprep.mubr.f32.mxu0 0.0
    %v8388 = vand.u32 %v6906, 4294901760
    %v8389 = vsub.f32 %v6906, %v8388
    %8390 = vmatmul.mubr.f32.gmra.mxu0 %v8389
    %v8391 = vpop.f32.mrf.mxu0
    %v8392 = vadd.f32 %v7902, %v8391
    %v8393 = vpop.f32.mrf.mxu0
    %8394 = vmatprep.mubr.f32.mxu0 0.0
    %v8395 = vand.u32 %v6907, 4294901760
    %v8396 = vsub.f32 %v6907, %v8395
    %8397 = vmatmul.mubr.f32.gmra.mxu0 %v8396
    %v8398 = vpop.f32.mrf.mxu0
    %v8399 = vadd.f32 %v7908, %v8398
    %v8400 = vpop.f32.mrf.mxu0
    %8401 = vmatprep.mubr.f32.mxu0 0.0
    %v8402 = vand.u32 %v6908, 4294901760
    %v8403 = vsub.f32 %v6908, %v8402
    %8404 = vmatmul.mubr.f32.gmra.mxu0 %v8403
    %v8405 = vpop.f32.mrf.mxu0
    %v8406 = vadd.f32 %v7914, %v8405
    %v8407 = vpop.f32.mrf.mxu0
    %8408 = vmatprep.mubr.f32.mxu0 0.0
    %v8409 = vand.u32 %v6909, 4294901760
    %v8410 = vsub.f32 %v6909, %v8409
    %8411 = vmatmul.mubr.f32.gmra.mxu0 %v8410
    %v8412 = vpop.f32.mrf.mxu0
    %v8413 = vadd.f32 %v7920, %v8412
    %v8414 = vpop.f32.mrf.mxu0
    %8415 = vmatprep.mubr.f32.mxu0 0.0
    %v8416 = vand.u32 %v6910, 4294901760
    %v8417 = vsub.f32 %v6910, %v8416
    %8418 = vmatmul.mubr.f32.gmra.mxu0 %v8417
    %v8419 = vpop.f32.mrf.mxu0
    %v8420 = vadd.f32 %v7926, %v8419
    %v8421 = vpop.f32.mrf.mxu0
    %8422 = vmatprep.mubr.f32.mxu0 0.0
    %v8423 = vand.u32 %v6911, 4294901760
    %v8424 = vsub.f32 %v6911, %v8423
    %8425 = vmatmul.mubr.f32.gmra.mxu0 %v8424
    %v8426 = vpop.f32.mrf.mxu0
    %v8427 = vadd.f32 %v7932, %v8426
    %v8428 = vpop.f32.mrf.mxu0
    %8429 = vmatprep.mubr.f32.mxu0 0.0
    %v8430 = vand.u32 %v6912, 4294901760
    %v8431 = vsub.f32 %v6912, %v8430
    %8432 = vmatmul.mubr.f32.gmra.mxu0 %v8431
    %v8433 = vpop.f32.mrf.mxu0
    %v8434 = vadd.f32 %v7938, %v8433
    %v8435 = vpop.f32.mrf.mxu0
    %8436 = vmatprep.mubr.f32.mxu0 0.0
    %v8437 = vand.u32 %v6913, 4294901760
    %v8438 = vsub.f32 %v6913, %v8437
    %8439 = vmatmul.mubr.f32.gmra.mxu0 %v8438
    %v8440 = vpop.f32.mrf.mxu0
    %v8441 = vadd.f32 %v7944, %v8440
    %v8442 = vpop.f32.mrf.mxu0
    %8443 = vmatprep.mubr.f32.mxu0 0.0
    %v8444 = vand.u32 %v6914, 4294901760
    %v8445 = vsub.f32 %v6914, %v8444
    %8446 = vmatmul.mubr.f32.gmra.mxu0 %v8445
    %v8447 = vpop.f32.mrf.mxu0
    %v8448 = vadd.f32 %v7950, %v8447
    %v8449 = vpop.f32.mrf.mxu0
    %8450 = vmatprep.mubr.f32.mxu0 0.0
    %v8451 = vand.u32 %v6915, 4294901760
    %v8452 = vsub.f32 %v6915, %v8451
    %8453 = vmatmul.mubr.f32.gmra.mxu0 %v8452
    %v8454 = vpop.f32.mrf.mxu0
    %v8455 = vadd.f32 %v7956, %v8454
    %v8456 = vpop.f32.mrf.mxu0
    %8457 = vmatprep.mubr.f32.mxu0 0.0
    %v8458 = vand.u32 %v6916, 4294901760
    %v8459 = vsub.f32 %v6916, %v8458
    %8460 = vmatmul.mubr.f32.gmra.mxu0 %v8459
    %v8461 = vpop.f32.mrf.mxu0
    %v8462 = vadd.f32 %v7962, %v8461
    %v8463 = vpop.f32.mrf.mxu0
    %8464 = vmatprep.mubr.f32.mxu0 0.0
    %v8465 = vand.u32 %v6917, 4294901760
    %v8466 = vsub.f32 %v6917, %v8465
    %8467 = vmatmul.mubr.f32.gmra.mxu0 %v8466
    %v8468 = vpop.f32.mrf.mxu0
    %v8469 = vadd.f32 %v7968, %v8468
    %v8470 = vpop.f32.mrf.mxu0
    %8471 = vmatprep.mubr.f32.mxu0 0.0
    %v8472 = vand.u32 %v6918, 4294901760
    %v8473 = vsub.f32 %v6918, %v8472
    %8474 = vmatmul.mubr.f32.gmra.mxu0 %v8473
    %v8475 = vpop.f32.mrf.mxu0
    %v8476 = vadd.f32 %v7974, %v8475
    %v8477 = vpop.f32.mrf.mxu0
    %8478 = vmatprep.mubr.f32.mxu0 0.0
    %v8479 = vand.u32 %v6919, 4294901760
    %v8480 = vsub.f32 %v6919, %v8479
    %8481 = vmatmul.mubr.f32.gmra.mxu0 %v8480
    %v8482 = vpop.f32.mrf.mxu0
    %v8483 = vadd.f32 %v7980, %v8482
    %v8484 = vpop.f32.mrf.mxu0
    %8485 = vmatprep.mubr.f32.mxu0 0.0
    %v8486 = vand.u32 %v6920, 4294901760
    %v8487 = vsub.f32 %v6920, %v8486
    %8488 = vmatmul.mubr.f32.gmra.mxu0 %v8487
    %v8489 = vpop.f32.mrf.mxu0
    %v8490 = vadd.f32 %v7986, %v8489
    %v8491 = vpop.f32.mrf.mxu0
    %8492 = vmatprep.mubr.f32.mxu0 0.0
    %v8493 = vand.u32 %v6921, 4294901760
    %v8494 = vsub.f32 %v6921, %v8493
    %8495 = vmatmul.mubr.f32.gmra.mxu0 %v8494
    %v8496 = vpop.f32.mrf.mxu0
    %v8497 = vadd.f32 %v7992, %v8496
    %v8498 = vpop.f32.mrf.mxu0
    %8499 = vmatprep.mubr.f32.mxu0 0.0
    %v8500 = vand.u32 %v6922, 4294901760
    %v8501 = vsub.f32 %v6922, %v8500
    %8502 = vmatmul.mubr.f32.gmra.mxu0 %v8501
    %v8503 = vpop.f32.mrf.mxu0
    %v8504 = vadd.f32 %v7998, %v8503
    %v8505 = vpop.f32.mrf.mxu0
    %8506 = vmatprep.mubr.f32.mxu0 0.0
    %v8507 = vand.u32 %v6923, 4294901760
    %v8508 = vsub.f32 %v6923, %v8507
    %8509 = vmatmul.mubr.f32.gmra.mxu0 %v8508
    %v8510 = vpop.f32.mrf.mxu0
    %v8511 = vadd.f32 %v8004, %v8510
    %v8512 = vpop.f32.mrf.mxu0
    %8513 = vmatprep.mubr.f32.mxu0 0.0
    %v8514 = vand.u32 %v6924, 4294901760
    %v8515 = vsub.f32 %v6924, %v8514
    %8516 = vmatmul.mubr.f32.gmra.mxu0 %v8515
    %v8517 = vpop.f32.mrf.mxu0
    %v8518 = vadd.f32 %v8010, %v8517
    %v8519 = vpop.f32.mrf.mxu0
    %8520 = vmatprep.mubr.f32.mxu0 0.0
    %v8521 = vand.u32 %v6925, 4294901760
    %v8522 = vsub.f32 %v6925, %v8521
    %8523 = vmatmul.mubr.f32.gmra.mxu0 %v8522
    %v8524 = vpop.f32.mrf.mxu0
    %v8525 = vadd.f32 %v8016, %v8524
    %v8526 = vpop.f32.mrf.mxu0
    %8527 = vmatprep.mubr.f32.mxu0 0.0
    %v8528 = vand.u32 %v6926, 4294901760
    %v8529 = vsub.f32 %v6926, %v8528
    %8530 = vmatmul.mubr.f32.gmra.mxu0 %v8529
    %v8531 = vpop.f32.mrf.mxu0
    %v8532 = vadd.f32 %v8022, %v8531
    %v8533 = vpop.f32.mrf.mxu0
    %8534 = vmatprep.mubr.f32.mxu0 0.0
    %v8535 = vand.u32 %v6927, 4294901760
    %v8536 = vsub.f32 %v6927, %v8535
    %8537 = vmatmul.mubr.f32.gmra.mxu0 %v8536
    %v8538 = vpop.f32.mrf.mxu0
    %v8539 = vadd.f32 %v8028, %v8538
    %v8540 = vpop.f32.mrf.mxu0
    %8541 = vmatprep.mubr.f32.mxu0 0.0
    %v8542 = vand.u32 %v6928, 4294901760
    %v8543 = vsub.f32 %v6928, %v8542
    %8544 = vmatmul.mubr.f32.gmra.mxu0 %v8543
    %v8545 = vpop.f32.mrf.mxu0
    %v8546 = vadd.f32 %v8034, %v8545
    %v8547 = vpop.f32.mrf.mxu0
    %8548 = vmatprep.mubr.f32.mxu0 0.0
    %v8549 = vand.u32 %v6929, 4294901760
    %v8550 = vsub.f32 %v6929, %v8549
    %8551 = vmatmul.mubr.f32.gmra.mxu0 %v8550
    %v8552 = vpop.f32.mrf.mxu0
    %v8553 = vadd.f32 %v8040, %v8552
    %v8554 = vpop.f32.mrf.mxu0
    %8555 = vmatprep.mubr.f32.mxu0 0.0
    %v8556 = vand.u32 %v6930, 4294901760
    %v8557 = vsub.f32 %v6930, %v8556
    %8558 = vmatmul.mubr.f32.gmra.mxu0 %v8557
    %v8559 = vpop.f32.mrf.mxu0
    %v8560 = vadd.f32 %v8046, %v8559
    %v8561 = vpop.f32.mrf.mxu0
    %8562 = vmatprep.mubr.f32.mxu0 0.0
    %v8563 = vand.u32 %v6931, 4294901760
    %v8564 = vsub.f32 %v6931, %v8563
    %8565 = vmatmul.mubr.f32.gmra.mxu0 %v8564
    %v8566 = vpop.f32.mrf.mxu0
    %v8567 = vadd.f32 %v8052, %v8566
    %v8568 = vpop.f32.mrf.mxu0
    %8569 = vmatprep.mubr.f32.mxu0 0.0
    %v8570 = vand.u32 %v6932, 4294901760
    %v8571 = vsub.f32 %v6932, %v8570
    %8572 = vmatmul.mubr.f32.gmra.mxu0 %v8571
    %v8573 = vpop.f32.mrf.mxu0
    %v8574 = vadd.f32 %v8058, %v8573
    %v8575 = vpop.f32.mrf.mxu0
    %8576 = vmatprep.mubr.f32.mxu0 0.0
    %v8577 = vand.u32 %v6933, 4294901760
    %v8578 = vsub.f32 %v6933, %v8577
    %8579 = vmatmul.mubr.f32.gmra.mxu0 %v8578
    %v8580 = vpop.f32.mrf.mxu0
    %v8581 = vadd.f32 %v8064, %v8580
    %v8582 = vpop.f32.mrf.mxu0
    %8583 = vmatprep.mubr.f32.mxu0 0.0
    %v8584 = vand.u32 %v6934, 4294901760
    %v8585 = vsub.f32 %v6934, %v8584
    %8586 = vmatmul.mubr.f32.gmra.mxu0 %v8585
    %v8587 = vpop.f32.mrf.mxu0
    %v8588 = vadd.f32 %v8070, %v8587
    %v8589 = vpop.f32.mrf.mxu0
    %8590 = vmatprep.mubr.f32.mxu0 0.0
    %v8591 = vand.u32 %v6935, 4294901760
    %v8592 = vsub.f32 %v6935, %v8591
    %8593 = vmatmul.mubr.f32.gmra.mxu0 %v8592
    %v8594 = vpop.f32.mrf.mxu0
    %v8595 = vadd.f32 %v8076, %v8594
    %v8596 = vpop.f32.mrf.mxu0
    %8597 = vmatprep.mubr.f32.mxu0 0.0
    %v8598 = vand.u32 %v6936, 4294901760
    %v8599 = vsub.f32 %v6936, %v8598
    %8600 = vmatmul.mubr.f32.gmra.mxu0 %v8599
    %v8601 = vpop.f32.mrf.mxu0
    %v8602 = vadd.f32 %v8082, %v8601
    %v8603 = vpop.f32.mrf.mxu0
    %8604 = vmatprep.mubr.f32.mxu0 0.0
    %v8605 = vand.u32 %v6937, 4294901760
    %v8606 = vsub.f32 %v6937, %v8605
    %8607 = vmatmul.mubr.f32.gmra.mxu0 %v8606
    %v8608 = vpop.f32.mrf.mxu0
    %v8609 = vadd.f32 %v8088, %v8608
    %v8610 = vpop.f32.mrf.mxu0
    %8611 = vmatprep.mubr.f32.mxu0 0.0
    %v8612 = vand.u32 %v6938, 4294901760
    %v8613 = vsub.f32 %v6938, %v8612
    %8614 = vmatmul.mubr.f32.gmra.mxu0 %v8613
    %v8615 = vpop.f32.mrf.mxu0
    %v8616 = vadd.f32 %v8094, %v8615
    %v8617 = vpop.f32.mrf.mxu0
    %8618 = vmatprep.mubr.f32.mxu0 0.0
    %v8619 = vand.u32 %v6939, 4294901760
    %v8620 = vsub.f32 %v6939, %v8619
    %8621 = vmatmul.mubr.f32.gmra.mxu0 %v8620
    %v8622 = vpop.f32.mrf.mxu0
    %v8623 = vadd.f32 %v8100, %v8622
    %v8624 = vpop.f32.mrf.mxu0
    %8625 = vmatprep.mubr.f32.mxu0 0.0
    %v8626 = vand.u32 %v6940, 4294901760
    %v8627 = vsub.f32 %v6940, %v8626
    %8628 = vmatmul.mubr.f32.gmra.mxu0 %v8627
    %v8629 = vpop.f32.mrf.mxu0
    %v8630 = vadd.f32 %v8106, %v8629
    %v8631 = vpop.f32.mrf.mxu0
    %8632 = vmatprep.mubr.f32.mxu0 0.0
    %v8633 = vand.u32 %v6941, 4294901760
    %v8634 = vsub.f32 %v6941, %v8633
    %8635 = vmatmul.mubr.f32.gmra.mxu0 %v8634
    %v8636 = vpop.f32.mrf.mxu0
    %v8637 = vadd.f32 %v8112, %v8636
    %v8638 = vpop.f32.mrf.mxu0
    %8639 = vmatprep.mubr.f32.mxu0 0.0
    %v8640 = vand.u32 %v6942, 4294901760
    %v8641 = vsub.f32 %v6942, %v8640
    %8642 = vmatmul.mubr.f32.gmra.mxu0 %v8641
    %v8643 = vpop.f32.mrf.mxu0
    %v8644 = vadd.f32 %v8118, %v8643
    %v8645 = vpop.f32.mrf.mxu0
    %8646 = vmatprep.mubr.f32.mxu0 0.0
    %v8647 = vand.u32 %v6943, 4294901760
    %v8648 = vsub.f32 %v6943, %v8647
    %8649 = vmatmul.mubr.f32.gmra.mxu0 %v8648
    %v8650 = vpop.f32.mrf.mxu0
    %v8651 = vadd.f32 %v8124, %v8650
    %v8652 = vpop.f32.mrf.mxu0
    %8653 = vmatprep.mubr.f32.mxu0 0.0
    %v8654 = vand.u32 %v6944, 4294901760
    %v8655 = vsub.f32 %v6944, %v8654
    %8656 = vmatmul.mubr.f32.gmra.mxu0 %v8655
    %v8657 = vpop.f32.mrf.mxu0
    %v8658 = vadd.f32 %v8130, %v8657
    %v8659 = vpop.f32.mrf.mxu0
    %8660 = vmatprep.mubr.f32.mxu0 0.0
    %v8661 = vand.u32 %v6945, 4294901760
    %v8662 = vsub.f32 %v6945, %v8661
    %8663 = vmatmul.mubr.f32.gmra.mxu0 %v8662
    %v8664 = vpop.f32.mrf.mxu0
    %v8665 = vadd.f32 %v8136, %v8664
    %v8666 = vpop.f32.mrf.mxu0
    %8667 = vmatprep.mubr.f32.mxu0 0.0
    %v8668 = vand.u32 %v6946, 4294901760
    %v8669 = vsub.f32 %v6946, %v8668
    %8670 = vmatmul.mubr.f32.gmra.mxu0 %v8669
    %v8671 = vpop.f32.mrf.mxu0
    %v8672 = vadd.f32 %v8142, %v8671
    %v8673 = vpop.f32.mrf.mxu0
    %8674 = vmatprep.mubr.f32.mxu0 0.0
    %v8675 = vand.u32 %v6947, 4294901760
    %v8676 = vsub.f32 %v6947, %v8675
    %8677 = vmatmul.mubr.f32.gmra.mxu0 %v8676
    %v8678 = vpop.f32.mrf.mxu0
    %v8679 = vadd.f32 %v8148, %v8678
    %v8680 = vpop.f32.mrf.mxu0
    %8681 = vmatprep.mubr.f32.mxu0 0.0
    %v8682 = vand.u32 %v6948, 4294901760
    %v8683 = vsub.f32 %v6948, %v8682
    %8684 = vmatmul.mubr.f32.gmra.mxu0 %v8683
    %v8685 = vpop.f32.mrf.mxu0
    %v8686 = vadd.f32 %v8154, %v8685
    %v8687 = vpop.f32.mrf.mxu0
    %8688 = vmatprep.mubr.f32.mxu0 0.0
    %v8689 = vand.u32 %v6949, 4294901760
    %v8690 = vsub.f32 %v6949, %v8689
    %8691 = vmatmul.mubr.f32.gmra.mxu0 %v8690
    %v8692 = vpop.f32.mrf.mxu0
    %v8693 = vadd.f32 %v8160, %v8692
    %v8694 = vpop.f32.mrf.mxu0
    %8695 = vmatprep.mubr.f32.mxu0 0.0
    %v8696 = vand.u32 %v6950, 4294901760
    %v8697 = vsub.f32 %v6950, %v8696
    %8698 = vmatmul.mubr.f32.gmra.mxu0 %v8697
    %v8699 = vpop.f32.mrf.mxu0
    %v8700 = vadd.f32 %v8166, %v8699
    %v8701 = vpop.f32.mrf.mxu0
    %8702 = vmatprep.mubr.f32.mxu0 0.0
    %v8703 = vand.u32 %v6951, 4294901760
    %v8704 = vsub.f32 %v6951, %v8703
    %8705 = vmatmul.mubr.f32.gmra.mxu0 %v8704
    %v8706 = vpop.f32.mrf.mxu0
    %v8707 = vadd.f32 %v8172, %v8706
    %v8708 = vpop.f32.mrf.mxu0
    %8709 = vmatprep.mubr.f32.mxu0 0.0
    %v8710 = vand.u32 %v6952, 4294901760
    %v8711 = vsub.f32 %v6952, %v8710
    %8712 = vmatmul.mubr.f32.gmra.mxu0 %v8711
    %v8713 = vpop.f32.mrf.mxu0
    %v8714 = vadd.f32 %v8178, %v8713
    %v8715 = vpop.f32.mrf.mxu0
    %8716 = vmatprep.mubr.f32.mxu0 0.0
    %v8717 = vand.u32 %v6953, 4294901760
    %v8718 = vsub.f32 %v6953, %v8717
    %8719 = vmatmul.mubr.f32.gmra.mxu0 %v8718
    %v8720 = vpop.f32.mrf.mxu0
    %v8721 = vadd.f32 %v8184, %v8720
    %v8722 = vpop.f32.mrf.mxu0
    %8723 = vmatprep.mubr.f32.mxu0 0.0
    %v8724 = vand.u32 %v6954, 4294901760
    %v8725 = vsub.f32 %v6954, %v8724
    %8726 = vmatmul.mubr.f32.gmra.mxu0 %v8725
    %v8727 = vpop.f32.mrf.mxu0
    %v8728 = vadd.f32 %v8190, %v8727
    %v8729 = vpop.f32.mrf.mxu0
    %8730 = vmatprep.mubr.f32.mxu0 0.0
    %v8731 = vand.u32 %v6955, 4294901760
    %v8732 = vsub.f32 %v6955, %v8731
    %8733 = vmatmul.mubr.f32.gmra.mxu0 %v8732
    %v8734 = vpop.f32.mrf.mxu0
    %v8735 = vadd.f32 %v8196, %v8734
    %v8736 = vpop.f32.mrf.mxu0
    %8737 = vmatprep.mubr.f32.mxu0 0.0
    %v8738 = vand.u32 %v6956, 4294901760
    %v8739 = vsub.f32 %v6956, %v8738
    %8740 = vmatmul.mubr.f32.gmra.mxu0 %v8739
    %v8741 = vpop.f32.mrf.mxu0
    %v8742 = vadd.f32 %v8202, %v8741
    %v8743 = vpop.f32.mrf.mxu0
    %8744 = vmatprep.mubr.f32.mxu0 0.0
    %v8745 = vand.u32 %v6957, 4294901760
    %v8746 = vsub.f32 %v6957, %v8745
    %8747 = vmatmul.mubr.f32.gmra.mxu0 %v8746
    %v8748 = vpop.f32.mrf.mxu0
    %v8749 = vadd.f32 %v8208, %v8748
    %v8750 = vpop.f32.mrf.mxu0
    %8751 = vmatprep.mubr.f32.mxu0 0.0
    %v8752 = vand.u32 %v6958, 4294901760
    %v8753 = vsub.f32 %v6958, %v8752
    %8754 = vmatmul.mubr.f32.gmra.mxu0 %v8753
    %v8755 = vpop.f32.mrf.mxu0
    %v8756 = vadd.f32 %v8214, %v8755
    %v8757 = vpop.f32.mrf.mxu0
    %8758 = vmatprep.mubr.f32.mxu0 0.0
    %v8759 = vand.u32 %v6959, 4294901760
    %v8760 = vsub.f32 %v6959, %v8759
    %8761 = vmatmul.mubr.f32.gmra.mxu0 %v8760
    %v8762 = vpop.f32.mrf.mxu0
    %v8763 = vadd.f32 %v8220, %v8762
    %v8764 = vpop.f32.mrf.mxu0
    %8765 = vmatprep.mubr.f32.mxu0 0.0
    %v8766 = vand.u32 %v6960, 4294901760
    %v8767 = vsub.f32 %v6960, %v8766
    %8768 = vmatmul.mubr.f32.gmra.mxu0 %v8767
    %v8769 = vpop.f32.mrf.mxu0
    %v8770 = vadd.f32 %v8226, %v8769
    %v8771 = vpop.f32.mrf.mxu0
    %8772 = vmatprep.mubr.f32.mxu0 0.0
    %v8773 = vand.u32 %v6961, 4294901760
    %v8774 = vsub.f32 %v6961, %v8773
    %8775 = vmatmul.mubr.f32.gmra.mxu0 %v8774
    %v8776 = vpop.f32.mrf.mxu0
    %v8777 = vadd.f32 %v8232, %v8776
    %v8778 = vpop.f32.mrf.mxu0
    %8779 = vdwg.mxu0
    %8780 = vmatprep.subr.mxu0 0.0
    %v8781 = vand.u32 %v6977, 4294901760
    %8782 = vmatpush1.msra.mxu0 %v8781
    %8783 = vmatprep.subr.mxu0 0.0
    %v8784 = vand.u32 %v6976, 4294901760
    %8785 = vmatpush1.msra.mxu0 %v8784
    %8786 = vmatprep.subr.mxu0 0.0
    %v8787 = vand.u32 %v6975, 4294901760
    %8788 = vmatpush1.msra.mxu0 %v8787
    %8789 = vmatprep.subr.mxu0 0.0
    %v8790 = vand.u32 %v6974, 4294901760
    %8791 = vmatpush1.msra.mxu0 %v8790
    %8792 = vmatprep.subr.mxu0 0.0
    %v8793 = vand.u32 %v6973, 4294901760
    %8794 = vmatpush1.msra.mxu0 %v8793
    %8795 = vmatprep.subr.mxu0 0.0
    %v8796 = vand.u32 %v6972, 4294901760
    %8797 = vmatpush1.msra.mxu0 %v8796
    %8798 = vmatprep.subr.mxu0 0.0
    %v8799 = vand.u32 %v6971, 4294901760
    %8800 = vmatpush1.msra.mxu0 %v8799
    %8801 = vmatprep.subr.mxu0 0.0
    %v8802 = vand.u32 %v6970, 4294901760
    %8803 = vmatpush1.msra.mxu0 %v8802
    %8804 = vmatprep.subr.mxu0 0.0
    %v8805 = vand.u32 %v6969, 4294901760
    %8806 = vmatpush1.msra.mxu0 %v8805
    %8807 = vmatprep.subr.mxu0 0.0
    %v8808 = vand.u32 %v6968, 4294901760
    %8809 = vmatpush1.msra.mxu0 %v8808
    %8810 = vmatprep.subr.mxu0 0.0
    %v8811 = vand.u32 %v6967, 4294901760
    %8812 = vmatpush1.msra.mxu0 %v8811
    %8813 = vmatprep.subr.mxu0 0.0
    %v8814 = vand.u32 %v6966, 4294901760
    %8815 = vmatpush1.msra.mxu0 %v8814
    %8816 = vmatprep.subr.mxu0 0.0
    %v8817 = vand.u32 %v6965, 4294901760
    %8818 = vmatpush1.msra.mxu0 %v8817
    %8819 = vmatprep.subr.mxu0 0.0
    %v8820 = vand.u32 %v6964, 4294901760
    %8821 = vmatpush1.msra.mxu0 %v8820
    %8822 = vmatprep.subr.mxu0 0.0
    %v8823 = vand.u32 %v6963, 4294901760
    %8824 = vmatpush1.msra.mxu0 %v8823
    %8825 = vmatprep.subr.mxu0 0.0
    %v8826 = vand.u32 %v6962, 4294901760
    %8827 = vmatpush1.msra.mxu0 %v8826
    %8828 = vmatprep.subr.mxu0 0.0
    %8829 = vmatpush2.msra.mxu0 0.0
    %8830 = vmatprep.subr.mxu0 0.0
    %8831 = vmatpush2.msra.mxu0 0.0
    %8832 = vmatprep.subr.mxu0 0.0
    %8833 = vmatpush2.msra.mxu0 0.0
    %8834 = vmatprep.subr.mxu0 0.0
    %8835 = vmatpush2.msra.mxu0 0.0
    %8836 = vmatprep.subr.mxu0 0.0
    %8837 = vmatpush2.msra.mxu0 0.0
    %8838 = vmatprep.subr.mxu0 0.0
    %8839 = vmatpush2.msra.mxu0 0.0
    %8840 = vmatprep.subr.mxu0 0.0
    %8841 = vmatpush2.msra.mxu0 0.0
    %8842 = vmatprep.subr.mxu0 0.0
    %8843 = vmatpush2.msra.mxu0 0.0
    %8844 = vmatprep.subr.mxu0 0.0
    %8845 = vmatpush2.msra.mxu0 0.0
    %8846 = vmatprep.subr.mxu0 0.0
    %8847 = vmatpush2.msra.mxu0 0.0
    %8848 = vmatprep.subr.mxu0 0.0
    %8849 = vmatpush2.msra.mxu0 0.0
    %8850 = vmatprep.subr.mxu0 0.0
    %8851 = vmatpush2.msra.mxu0 0.0
    %8852 = vmatprep.subr.mxu0 0.0
    %8853 = vmatpush2.msra.mxu0 0.0
    %8854 = vmatprep.subr.mxu0 0.0
    %8855 = vmatpush2.msra.mxu0 0.0
    %8856 = vmatprep.subr.mxu0 0.0
    %8857 = vmatpush2.msra.mxu0 0.0
    %8858 = vmatprep.subr.mxu0 0.0
    %8859 = vmatpush2.msra.mxu0 0.0
    %8860 = vmatprep.mubr.f32.mxu0 0.0
    %v8861 = vand.u32 %v6898, 4294901760
    %v8862 = vsub.f32 %v6898, %v8861
    %v8863 = vand.u32 %v8862, 4294901760
    %8864 = vmatmul.mubr.f32.gmra.mxu0 %v8863
    %v8865 = vpop.f32.mrf.mxu0
    %v8866 = vadd.f32 %v8336, %v8865
    %v8867 = vpop.f32.mrf.mxu0
    %8868 = vmatprep.mubr.f32.mxu0 0.0
    %v8869 = vand.u32 %v6899, 4294901760
    %v8870 = vsub.f32 %v6899, %v8869
    %v8871 = vand.u32 %v8870, 4294901760
    %8872 = vmatmul.mubr.f32.gmra.mxu0 %v8871
    %v8873 = vpop.f32.mrf.mxu0
    %v8874 = vadd.f32 %v8343, %v8873
    %v8875 = vpop.f32.mrf.mxu0
    %8876 = vmatprep.mubr.f32.mxu0 0.0
    %v8877 = vand.u32 %v6900, 4294901760
    %v8878 = vsub.f32 %v6900, %v8877
    %v8879 = vand.u32 %v8878, 4294901760
    %8880 = vmatmul.mubr.f32.gmra.mxu0 %v8879
    %v8881 = vpop.f32.mrf.mxu0
    %v8882 = vadd.f32 %v8350, %v8881
    %v8883 = vpop.f32.mrf.mxu0
    %8884 = vmatprep.mubr.f32.mxu0 0.0
    %v8885 = vand.u32 %v6901, 4294901760
    %v8886 = vsub.f32 %v6901, %v8885
    %v8887 = vand.u32 %v8886, 4294901760
    %8888 = vmatmul.mubr.f32.gmra.mxu0 %v8887
    %v8889 = vpop.f32.mrf.mxu0
    %v8890 = vadd.f32 %v8357, %v8889
    %v8891 = vpop.f32.mrf.mxu0
    %8892 = vmatprep.mubr.f32.mxu0 0.0
    %v8893 = vand.u32 %v6902, 4294901760
    %v8894 = vsub.f32 %v6902, %v8893
    %v8895 = vand.u32 %v8894, 4294901760
    %8896 = vmatmul.mubr.f32.gmra.mxu0 %v8895
    %v8897 = vpop.f32.mrf.mxu0
    %v8898 = vadd.f32 %v8364, %v8897
    %v8899 = vpop.f32.mrf.mxu0
    %8900 = vmatprep.mubr.f32.mxu0 0.0
    %v8901 = vand.u32 %v6903, 4294901760
    %v8902 = vsub.f32 %v6903, %v8901
    %v8903 = vand.u32 %v8902, 4294901760
    %8904 = vmatmul.mubr.f32.gmra.mxu0 %v8903
    %v8905 = vpop.f32.mrf.mxu0
    %v8906 = vadd.f32 %v8371, %v8905
    %v8907 = vpop.f32.mrf.mxu0
    %8908 = vmatprep.mubr.f32.mxu0 0.0
    %v8909 = vand.u32 %v6904, 4294901760
    %v8910 = vsub.f32 %v6904, %v8909
    %v8911 = vand.u32 %v8910, 4294901760
    %8912 = vmatmul.mubr.f32.gmra.mxu0 %v8911
    %v8913 = vpop.f32.mrf.mxu0
    %v8914 = vadd.f32 %v8378, %v8913
    %v8915 = vpop.f32.mrf.mxu0
    %8916 = vmatprep.mubr.f32.mxu0 0.0
    %v8917 = vand.u32 %v6905, 4294901760
    %v8918 = vsub.f32 %v6905, %v8917
    %v8919 = vand.u32 %v8918, 4294901760
    %8920 = vmatmul.mubr.f32.gmra.mxu0 %v8919
    %v8921 = vpop.f32.mrf.mxu0
    %v8922 = vadd.f32 %v8385, %v8921
    %v8923 = vpop.f32.mrf.mxu0
    %8924 = vmatprep.mubr.f32.mxu0 0.0
    %v8925 = vand.u32 %v6906, 4294901760
    %v8926 = vsub.f32 %v6906, %v8925
    %v8927 = vand.u32 %v8926, 4294901760
    %8928 = vmatmul.mubr.f32.gmra.mxu0 %v8927
    %v8929 = vpop.f32.mrf.mxu0
    %v8930 = vadd.f32 %v8392, %v8929
    %v8931 = vpop.f32.mrf.mxu0
    %8932 = vmatprep.mubr.f32.mxu0 0.0
    %v8933 = vand.u32 %v6907, 4294901760
    %v8934 = vsub.f32 %v6907, %v8933
    %v8935 = vand.u32 %v8934, 4294901760
    %8936 = vmatmul.mubr.f32.gmra.mxu0 %v8935
    %v8937 = vpop.f32.mrf.mxu0
    %v8938 = vadd.f32 %v8399, %v8937
    %v8939 = vpop.f32.mrf.mxu0
    %8940 = vmatprep.mubr.f32.mxu0 0.0
    %v8941 = vand.u32 %v6908, 4294901760
    %v8942 = vsub.f32 %v6908, %v8941
    %v8943 = vand.u32 %v8942, 4294901760
    %8944 = vmatmul.mubr.f32.gmra.mxu0 %v8943
    %v8945 = vpop.f32.mrf.mxu0
    %v8946 = vadd.f32 %v8406, %v8945
    %v8947 = vpop.f32.mrf.mxu0
    %8948 = vmatprep.mubr.f32.mxu0 0.0
    %v8949 = vand.u32 %v6909, 4294901760
    %v8950 = vsub.f32 %v6909, %v8949
    %v8951 = vand.u32 %v8950, 4294901760
    %8952 = vmatmul.mubr.f32.gmra.mxu0 %v8951
    %v8953 = vpop.f32.mrf.mxu0
    %v8954 = vadd.f32 %v8413, %v8953
    %v8955 = vpop.f32.mrf.mxu0
    %8956 = vmatprep.mubr.f32.mxu0 0.0
    %v8957 = vand.u32 %v6910, 4294901760
    %v8958 = vsub.f32 %v6910, %v8957
    %v8959 = vand.u32 %v8958, 4294901760
    %8960 = vmatmul.mubr.f32.gmra.mxu0 %v8959
    %v8961 = vpop.f32.mrf.mxu0
    %v8962 = vadd.f32 %v8420, %v8961
    %v8963 = vpop.f32.mrf.mxu0
    %8964 = vmatprep.mubr.f32.mxu0 0.0
    %v8965 = vand.u32 %v6911, 4294901760
    %v8966 = vsub.f32 %v6911, %v8965
    %v8967 = vand.u32 %v8966, 4294901760
    %8968 = vmatmul.mubr.f32.gmra.mxu0 %v8967
    %v8969 = vpop.f32.mrf.mxu0
    %v8970 = vadd.f32 %v8427, %v8969
    %v8971 = vpop.f32.mrf.mxu0
    %8972 = vmatprep.mubr.f32.mxu0 0.0
    %v8973 = vand.u32 %v6912, 4294901760
    %v8974 = vsub.f32 %v6912, %v8973
    %v8975 = vand.u32 %v8974, 4294901760
    %8976 = vmatmul.mubr.f32.gmra.mxu0 %v8975
    %v8977 = vpop.f32.mrf.mxu0
    %v8978 = vadd.f32 %v8434, %v8977
    %v8979 = vpop.f32.mrf.mxu0
    %8980 = vmatprep.mubr.f32.mxu0 0.0
    %v8981 = vand.u32 %v6913, 4294901760
    %v8982 = vsub.f32 %v6913, %v8981
    %v8983 = vand.u32 %v8982, 4294901760
    %8984 = vmatmul.mubr.f32.gmra.mxu0 %v8983
    %v8985 = vpop.f32.mrf.mxu0
    %v8986 = vadd.f32 %v8441, %v8985
    %v8987 = vpop.f32.mrf.mxu0
    %8988 = vmatprep.mubr.f32.mxu0 0.0
    %v8989 = vand.u32 %v6914, 4294901760
    %v8990 = vsub.f32 %v6914, %v8989
    %v8991 = vand.u32 %v8990, 4294901760
    %8992 = vmatmul.mubr.f32.gmra.mxu0 %v8991
    %v8993 = vpop.f32.mrf.mxu0
    %v8994 = vadd.f32 %v8448, %v8993
    %v8995 = vpop.f32.mrf.mxu0
    %8996 = vmatprep.mubr.f32.mxu0 0.0
    %v8997 = vand.u32 %v6915, 4294901760
    %v8998 = vsub.f32 %v6915, %v8997
    %v8999 = vand.u32 %v8998, 4294901760
    %9000 = vmatmul.mubr.f32.gmra.mxu0 %v8999
    %v9001 = vpop.f32.mrf.mxu0
    %v9002 = vadd.f32 %v8455, %v9001
    %v9003 = vpop.f32.mrf.mxu0
    %9004 = vmatprep.mubr.f32.mxu0 0.0
    %v9005 = vand.u32 %v6916, 4294901760
    %v9006 = vsub.f32 %v6916, %v9005
    %v9007 = vand.u32 %v9006, 4294901760
    %9008 = vmatmul.mubr.f32.gmra.mxu0 %v9007
    %v9009 = vpop.f32.mrf.mxu0
    %v9010 = vadd.f32 %v8462, %v9009
    %v9011 = vpop.f32.mrf.mxu0
    %9012 = vmatprep.mubr.f32.mxu0 0.0
    %v9013 = vand.u32 %v6917, 4294901760
    %v9014 = vsub.f32 %v6917, %v9013
    %v9015 = vand.u32 %v9014, 4294901760
    %9016 = vmatmul.mubr.f32.gmra.mxu0 %v9015
    %v9017 = vpop.f32.mrf.mxu0
    %v9018 = vadd.f32 %v8469, %v9017
    %v9019 = vpop.f32.mrf.mxu0
    %9020 = vmatprep.mubr.f32.mxu0 0.0
    %v9021 = vand.u32 %v6918, 4294901760
    %v9022 = vsub.f32 %v6918, %v9021
    %v9023 = vand.u32 %v9022, 4294901760
    %9024 = vmatmul.mubr.f32.gmra.mxu0 %v9023
    %v9025 = vpop.f32.mrf.mxu0
    %v9026 = vadd.f32 %v8476, %v9025
    %v9027 = vpop.f32.mrf.mxu0
    %9028 = vmatprep.mubr.f32.mxu0 0.0
    %v9029 = vand.u32 %v6919, 4294901760
    %v9030 = vsub.f32 %v6919, %v9029
    %v9031 = vand.u32 %v9030, 4294901760
    %9032 = vmatmul.mubr.f32.gmra.mxu0 %v9031
    %v9033 = vpop.f32.mrf.mxu0
    %v9034 = vadd.f32 %v8483, %v9033
    %v9035 = vpop.f32.mrf.mxu0
    %9036 = vmatprep.mubr.f32.mxu0 0.0
    %v9037 = vand.u32 %v6920, 4294901760
    %v9038 = vsub.f32 %v6920, %v9037
    %v9039 = vand.u32 %v9038, 4294901760
    %9040 = vmatmul.mubr.f32.gmra.mxu0 %v9039
    %v9041 = vpop.f32.mrf.mxu0
    %v9042 = vadd.f32 %v8490, %v9041
    %v9043 = vpop.f32.mrf.mxu0
    %9044 = vmatprep.mubr.f32.mxu0 0.0
    %v9045 = vand.u32 %v6921, 4294901760
    %v9046 = vsub.f32 %v6921, %v9045
    %v9047 = vand.u32 %v9046, 4294901760
    %9048 = vmatmul.mubr.f32.gmra.mxu0 %v9047
    %v9049 = vpop.f32.mrf.mxu0
    %v9050 = vadd.f32 %v8497, %v9049
    %v9051 = vpop.f32.mrf.mxu0
    %9052 = vmatprep.mubr.f32.mxu0 0.0
    %v9053 = vand.u32 %v6922, 4294901760
    %v9054 = vsub.f32 %v6922, %v9053
    %v9055 = vand.u32 %v9054, 4294901760
    %9056 = vmatmul.mubr.f32.gmra.mxu0 %v9055
    %v9057 = vpop.f32.mrf.mxu0
    %v9058 = vadd.f32 %v8504, %v9057
    %v9059 = vpop.f32.mrf.mxu0
    %9060 = vmatprep.mubr.f32.mxu0 0.0
    %v9061 = vand.u32 %v6923, 4294901760
    %v9062 = vsub.f32 %v6923, %v9061
    %v9063 = vand.u32 %v9062, 4294901760
    %9064 = vmatmul.mubr.f32.gmra.mxu0 %v9063
    %v9065 = vpop.f32.mrf.mxu0
    %v9066 = vadd.f32 %v8511, %v9065
    %v9067 = vpop.f32.mrf.mxu0
    %9068 = vmatprep.mubr.f32.mxu0 0.0
    %v9069 = vand.u32 %v6924, 4294901760
    %v9070 = vsub.f32 %v6924, %v9069
    %v9071 = vand.u32 %v9070, 4294901760
    %9072 = vmatmul.mubr.f32.gmra.mxu0 %v9071
    %v9073 = vpop.f32.mrf.mxu0
    %v9074 = vadd.f32 %v8518, %v9073
    %v9075 = vpop.f32.mrf.mxu0
    %9076 = vmatprep.mubr.f32.mxu0 0.0
    %v9077 = vand.u32 %v6925, 4294901760
    %v9078 = vsub.f32 %v6925, %v9077
    %v9079 = vand.u32 %v9078, 4294901760
    %9080 = vmatmul.mubr.f32.gmra.mxu0 %v9079
    %v9081 = vpop.f32.mrf.mxu0
    %v9082 = vadd.f32 %v8525, %v9081
    %v9083 = vpop.f32.mrf.mxu0
    %9084 = vmatprep.mubr.f32.mxu0 0.0
    %v9085 = vand.u32 %v6926, 4294901760
    %v9086 = vsub.f32 %v6926, %v9085
    %v9087 = vand.u32 %v9086, 4294901760
    %9088 = vmatmul.mubr.f32.gmra.mxu0 %v9087
    %v9089 = vpop.f32.mrf.mxu0
    %v9090 = vadd.f32 %v8532, %v9089
    %v9091 = vpop.f32.mrf.mxu0
    %9092 = vmatprep.mubr.f32.mxu0 0.0
    %v9093 = vand.u32 %v6927, 4294901760
    %v9094 = vsub.f32 %v6927, %v9093
    %v9095 = vand.u32 %v9094, 4294901760
    %9096 = vmatmul.mubr.f32.gmra.mxu0 %v9095
    %v9097 = vpop.f32.mrf.mxu0
    %v9098 = vadd.f32 %v8539, %v9097
    %v9099 = vpop.f32.mrf.mxu0
    %9100 = vmatprep.mubr.f32.mxu0 0.0
    %v9101 = vand.u32 %v6928, 4294901760
    %v9102 = vsub.f32 %v6928, %v9101
    %v9103 = vand.u32 %v9102, 4294901760
    %9104 = vmatmul.mubr.f32.gmra.mxu0 %v9103
    %v9105 = vpop.f32.mrf.mxu0
    %v9106 = vadd.f32 %v8546, %v9105
    %v9107 = vpop.f32.mrf.mxu0
    %9108 = vmatprep.mubr.f32.mxu0 0.0
    %v9109 = vand.u32 %v6929, 4294901760
    %v9110 = vsub.f32 %v6929, %v9109
    %v9111 = vand.u32 %v9110, 4294901760
    %9112 = vmatmul.mubr.f32.gmra.mxu0 %v9111
    %v9113 = vpop.f32.mrf.mxu0
    %v9114 = vadd.f32 %v8553, %v9113
    %v9115 = vpop.f32.mrf.mxu0
    %9116 = vmatprep.mubr.f32.mxu0 0.0
    %v9117 = vand.u32 %v6930, 4294901760
    %v9118 = vsub.f32 %v6930, %v9117
    %v9119 = vand.u32 %v9118, 4294901760
    %9120 = vmatmul.mubr.f32.gmra.mxu0 %v9119
    %v9121 = vpop.f32.mrf.mxu0
    %v9122 = vadd.f32 %v8560, %v9121
    %v9123 = vpop.f32.mrf.mxu0
    %9124 = vmatprep.mubr.f32.mxu0 0.0
    %v9125 = vand.u32 %v6931, 4294901760
    %v9126 = vsub.f32 %v6931, %v9125
    %v9127 = vand.u32 %v9126, 4294901760
    %9128 = vmatmul.mubr.f32.gmra.mxu0 %v9127
    %v9129 = vpop.f32.mrf.mxu0
    %v9130 = vadd.f32 %v8567, %v9129
    %v9131 = vpop.f32.mrf.mxu0
    %9132 = vmatprep.mubr.f32.mxu0 0.0
    %v9133 = vand.u32 %v6932, 4294901760
    %v9134 = vsub.f32 %v6932, %v9133
    %v9135 = vand.u32 %v9134, 4294901760
    %9136 = vmatmul.mubr.f32.gmra.mxu0 %v9135
    %v9137 = vpop.f32.mrf.mxu0
    %v9138 = vadd.f32 %v8574, %v9137
    %v9139 = vpop.f32.mrf.mxu0
    %9140 = vmatprep.mubr.f32.mxu0 0.0
    %v9141 = vand.u32 %v6933, 4294901760
    %v9142 = vsub.f32 %v6933, %v9141
    %v9143 = vand.u32 %v9142, 4294901760
    %9144 = vmatmul.mubr.f32.gmra.mxu0 %v9143
    %v9145 = vpop.f32.mrf.mxu0
    %v9146 = vadd.f32 %v8581, %v9145
    %v9147 = vpop.f32.mrf.mxu0
    %9148 = vmatprep.mubr.f32.mxu0 0.0
    %v9149 = vand.u32 %v6934, 4294901760
    %v9150 = vsub.f32 %v6934, %v9149
    %v9151 = vand.u32 %v9150, 4294901760
    %9152 = vmatmul.mubr.f32.gmra.mxu0 %v9151
    %v9153 = vpop.f32.mrf.mxu0
    %v9154 = vadd.f32 %v8588, %v9153
    %v9155 = vpop.f32.mrf.mxu0
    %9156 = vmatprep.mubr.f32.mxu0 0.0
    %v9157 = vand.u32 %v6935, 4294901760
    %v9158 = vsub.f32 %v6935, %v9157
    %v9159 = vand.u32 %v9158, 4294901760
    %9160 = vmatmul.mubr.f32.gmra.mxu0 %v9159
    %v9161 = vpop.f32.mrf.mxu0
    %v9162 = vadd.f32 %v8595, %v9161
    %v9163 = vpop.f32.mrf.mxu0
    %9164 = vmatprep.mubr.f32.mxu0 0.0
    %v9165 = vand.u32 %v6936, 4294901760
    %v9166 = vsub.f32 %v6936, %v9165
    %v9167 = vand.u32 %v9166, 4294901760
    %9168 = vmatmul.mubr.f32.gmra.mxu0 %v9167
    %v9169 = vpop.f32.mrf.mxu0
    %v9170 = vadd.f32 %v8602, %v9169
    %v9171 = vpop.f32.mrf.mxu0
    %9172 = vmatprep.mubr.f32.mxu0 0.0
    %v9173 = vand.u32 %v6937, 4294901760
    %v9174 = vsub.f32 %v6937, %v9173
    %v9175 = vand.u32 %v9174, 4294901760
    %9176 = vmatmul.mubr.f32.gmra.mxu0 %v9175
    %v9177 = vpop.f32.mrf.mxu0
    %v9178 = vadd.f32 %v8609, %v9177
    %v9179 = vpop.f32.mrf.mxu0
    %9180 = vmatprep.mubr.f32.mxu0 0.0
    %v9181 = vand.u32 %v6938, 4294901760
    %v9182 = vsub.f32 %v6938, %v9181
    %v9183 = vand.u32 %v9182, 4294901760
    %9184 = vmatmul.mubr.f32.gmra.mxu0 %v9183
    %v9185 = vpop.f32.mrf.mxu0
    %v9186 = vadd.f32 %v8616, %v9185
    %v9187 = vpop.f32.mrf.mxu0
    %9188 = vmatprep.mubr.f32.mxu0 0.0
    %v9189 = vand.u32 %v6939, 4294901760
    %v9190 = vsub.f32 %v6939, %v9189
    %v9191 = vand.u32 %v9190, 4294901760
    %9192 = vmatmul.mubr.f32.gmra.mxu0 %v9191
    %v9193 = vpop.f32.mrf.mxu0
    %v9194 = vadd.f32 %v8623, %v9193
    %v9195 = vpop.f32.mrf.mxu0
    %9196 = vmatprep.mubr.f32.mxu0 0.0
    %v9197 = vand.u32 %v6940, 4294901760
    %v9198 = vsub.f32 %v6940, %v9197
    %v9199 = vand.u32 %v9198, 4294901760
    %9200 = vmatmul.mubr.f32.gmra.mxu0 %v9199
    %v9201 = vpop.f32.mrf.mxu0
    %v9202 = vadd.f32 %v8630, %v9201
    %v9203 = vpop.f32.mrf.mxu0
    %9204 = vmatprep.mubr.f32.mxu0 0.0
    %v9205 = vand.u32 %v6941, 4294901760
    %v9206 = vsub.f32 %v6941, %v9205
    %v9207 = vand.u32 %v9206, 4294901760
    %9208 = vmatmul.mubr.f32.gmra.mxu0 %v9207
    %v9209 = vpop.f32.mrf.mxu0
    %v9210 = vadd.f32 %v8637, %v9209
    %v9211 = vpop.f32.mrf.mxu0
    %9212 = vmatprep.mubr.f32.mxu0 0.0
    %v9213 = vand.u32 %v6942, 4294901760
    %v9214 = vsub.f32 %v6942, %v9213
    %v9215 = vand.u32 %v9214, 4294901760
    %9216 = vmatmul.mubr.f32.gmra.mxu0 %v9215
    %v9217 = vpop.f32.mrf.mxu0
    %v9218 = vadd.f32 %v8644, %v9217
    %v9219 = vpop.f32.mrf.mxu0
    %9220 = vmatprep.mubr.f32.mxu0 0.0
    %v9221 = vand.u32 %v6943, 4294901760
    %v9222 = vsub.f32 %v6943, %v9221
    %v9223 = vand.u32 %v9222, 4294901760
    %9224 = vmatmul.mubr.f32.gmra.mxu0 %v9223
    %v9225 = vpop.f32.mrf.mxu0
    %v9226 = vadd.f32 %v8651, %v9225
    %v9227 = vpop.f32.mrf.mxu0
    %9228 = vmatprep.mubr.f32.mxu0 0.0
    %v9229 = vand.u32 %v6944, 4294901760
    %v9230 = vsub.f32 %v6944, %v9229
    %v9231 = vand.u32 %v9230, 4294901760
    %9232 = vmatmul.mubr.f32.gmra.mxu0 %v9231
    %v9233 = vpop.f32.mrf.mxu0
    %v9234 = vadd.f32 %v8658, %v9233
    %v9235 = vpop.f32.mrf.mxu0
    %9236 = vmatprep.mubr.f32.mxu0 0.0
    %v9237 = vand.u32 %v6945, 4294901760
    %v9238 = vsub.f32 %v6945, %v9237
    %v9239 = vand.u32 %v9238, 4294901760
    %9240 = vmatmul.mubr.f32.gmra.mxu0 %v9239
    %v9241 = vpop.f32.mrf.mxu0
    %v9242 = vadd.f32 %v8665, %v9241
    %v9243 = vpop.f32.mrf.mxu0
    %9244 = vmatprep.mubr.f32.mxu0 0.0
    %v9245 = vand.u32 %v6946, 4294901760
    %v9246 = vsub.f32 %v6946, %v9245
    %v9247 = vand.u32 %v9246, 4294901760
    %9248 = vmatmul.mubr.f32.gmra.mxu0 %v9247
    %v9249 = vpop.f32.mrf.mxu0
    %v9250 = vadd.f32 %v8672, %v9249
    %v9251 = vpop.f32.mrf.mxu0
    %9252 = vmatprep.mubr.f32.mxu0 0.0
    %v9253 = vand.u32 %v6947, 4294901760
    %v9254 = vsub.f32 %v6947, %v9253
    %v9255 = vand.u32 %v9254, 4294901760
    %9256 = vmatmul.mubr.f32.gmra.mxu0 %v9255
    %v9257 = vpop.f32.mrf.mxu0
    %v9258 = vadd.f32 %v8679, %v9257
    %v9259 = vpop.f32.mrf.mxu0
    %9260 = vmatprep.mubr.f32.mxu0 0.0
    %v9261 = vand.u32 %v6948, 4294901760
    %v9262 = vsub.f32 %v6948, %v9261
    %v9263 = vand.u32 %v9262, 4294901760
    %9264 = vmatmul.mubr.f32.gmra.mxu0 %v9263
    %v9265 = vpop.f32.mrf.mxu0
    %v9266 = vadd.f32 %v8686, %v9265
    %v9267 = vpop.f32.mrf.mxu0
    %9268 = vmatprep.mubr.f32.mxu0 0.0
    %v9269 = vand.u32 %v6949, 4294901760
    %v9270 = vsub.f32 %v6949, %v9269
    %v9271 = vand.u32 %v9270, 4294901760
    %9272 = vmatmul.mubr.f32.gmra.mxu0 %v9271
    %v9273 = vpop.f32.mrf.mxu0
    %v9274 = vadd.f32 %v8693, %v9273
    %v9275 = vpop.f32.mrf.mxu0
    %9276 = vmatprep.mubr.f32.mxu0 0.0
    %v9277 = vand.u32 %v6950, 4294901760
    %v9278 = vsub.f32 %v6950, %v9277
    %v9279 = vand.u32 %v9278, 4294901760
    %9280 = vmatmul.mubr.f32.gmra.mxu0 %v9279
    %v9281 = vpop.f32.mrf.mxu0
    %v9282 = vadd.f32 %v8700, %v9281
    %v9283 = vpop.f32.mrf.mxu0
    %9284 = vmatprep.mubr.f32.mxu0 0.0
    %v9285 = vand.u32 %v6951, 4294901760
    %v9286 = vsub.f32 %v6951, %v9285
    %v9287 = vand.u32 %v9286, 4294901760
    %9288 = vmatmul.mubr.f32.gmra.mxu0 %v9287
    %v9289 = vpop.f32.mrf.mxu0
    %v9290 = vadd.f32 %v8707, %v9289
    %v9291 = vpop.f32.mrf.mxu0
    %9292 = vmatprep.mubr.f32.mxu0 0.0
    %v9293 = vand.u32 %v6952, 4294901760
    %v9294 = vsub.f32 %v6952, %v9293
    %v9295 = vand.u32 %v9294, 4294901760
    %9296 = vmatmul.mubr.f32.gmra.mxu0 %v9295
    %v9297 = vpop.f32.mrf.mxu0
    %v9298 = vadd.f32 %v8714, %v9297
    %v9299 = vpop.f32.mrf.mxu0
    %9300 = vmatprep.mubr.f32.mxu0 0.0
    %v9301 = vand.u32 %v6953, 4294901760
    %v9302 = vsub.f32 %v6953, %v9301
    %v9303 = vand.u32 %v9302, 4294901760
    %9304 = vmatmul.mubr.f32.gmra.mxu0 %v9303
    %v9305 = vpop.f32.mrf.mxu0
    %v9306 = vadd.f32 %v8721, %v9305
    %v9307 = vpop.f32.mrf.mxu0
    %9308 = vmatprep.mubr.f32.mxu0 0.0
    %v9309 = vand.u32 %v6954, 4294901760
    %v9310 = vsub.f32 %v6954, %v9309
    %v9311 = vand.u32 %v9310, 4294901760
    %9312 = vmatmul.mubr.f32.gmra.mxu0 %v9311
    %v9313 = vpop.f32.mrf.mxu0
    %v9314 = vadd.f32 %v8728, %v9313
    %v9315 = vpop.f32.mrf.mxu0
    %9316 = vmatprep.mubr.f32.mxu0 0.0
    %v9317 = vand.u32 %v6955, 4294901760
    %v9318 = vsub.f32 %v6955, %v9317
    %v9319 = vand.u32 %v9318, 4294901760
    %9320 = vmatmul.mubr.f32.gmra.mxu0 %v9319
    %v9321 = vpop.f32.mrf.mxu0
    %v9322 = vadd.f32 %v8735, %v9321
    %v9323 = vpop.f32.mrf.mxu0
    %9324 = vmatprep.mubr.f32.mxu0 0.0
    %v9325 = vand.u32 %v6956, 4294901760
    %v9326 = vsub.f32 %v6956, %v9325
    %v9327 = vand.u32 %v9326, 4294901760
    %9328 = vmatmul.mubr.f32.gmra.mxu0 %v9327
    %v9329 = vpop.f32.mrf.mxu0
    %v9330 = vadd.f32 %v8742, %v9329
    %v9331 = vpop.f32.mrf.mxu0
    %9332 = vmatprep.mubr.f32.mxu0 0.0
    %v9333 = vand.u32 %v6957, 4294901760
    %v9334 = vsub.f32 %v6957, %v9333
    %v9335 = vand.u32 %v9334, 4294901760
    %9336 = vmatmul.mubr.f32.gmra.mxu0 %v9335
    %v9337 = vpop.f32.mrf.mxu0
    %v9338 = vadd.f32 %v8749, %v9337
    %v9339 = vpop.f32.mrf.mxu0
    %9340 = vmatprep.mubr.f32.mxu0 0.0
    %v9341 = vand.u32 %v6958, 4294901760
    %v9342 = vsub.f32 %v6958, %v9341
    %v9343 = vand.u32 %v9342, 4294901760
    %9344 = vmatmul.mubr.f32.gmra.mxu0 %v9343
    %v9345 = vpop.f32.mrf.mxu0
    %v9346 = vadd.f32 %v8756, %v9345
    %v9347 = vpop.f32.mrf.mxu0
    %9348 = vmatprep.mubr.f32.mxu0 0.0
    %v9349 = vand.u32 %v6959, 4294901760
    %v9350 = vsub.f32 %v6959, %v9349
    %v9351 = vand.u32 %v9350, 4294901760
    %9352 = vmatmul.mubr.f32.gmra.mxu0 %v9351
    %v9353 = vpop.f32.mrf.mxu0
    %v9354 = vadd.f32 %v8763, %v9353
    %v9355 = vpop.f32.mrf.mxu0
    %9356 = vmatprep.mubr.f32.mxu0 0.0
    %v9357 = vand.u32 %v6960, 4294901760
    %v9358 = vsub.f32 %v6960, %v9357
    %v9359 = vand.u32 %v9358, 4294901760
    %9360 = vmatmul.mubr.f32.gmra.mxu0 %v9359
    %v9361 = vpop.f32.mrf.mxu0
    %v9362 = vadd.f32 %v8770, %v9361
    %v9363 = vpop.f32.mrf.mxu0
    %9364 = vmatprep.mubr.f32.mxu0 0.0
    %v9365 = vand.u32 %v6961, 4294901760
    %v9366 = vsub.f32 %v6961, %v9365
    %v9367 = vand.u32 %v9366, 4294901760
    %9368 = vmatmul.mubr.f32.gmra.mxu0 %v9367
    %v9369 = vpop.f32.mrf.mxu0
    %v9370 = vadd.f32 %v8777, %v9369
    %v9371 = vpop.f32.mrf.mxu0
    %9372 = vdwg.mxu0
    %9373 = vmatprep.subr.mxu0 0.0
    %v9374 = vand.u32 %v6977, 4294901760
    %v9375 = vsub.f32 %v6977, %v9374
    %v9376 = vand.u32 %v9375, 4294901760
    %9377 = vmatpush1.msra.mxu0 %v9376
    %9378 = vmatprep.subr.mxu0 0.0
    %v9379 = vand.u32 %v6976, 4294901760
    %v9380 = vsub.f32 %v6976, %v9379
    %v9381 = vand.u32 %v9380, 4294901760
    %9382 = vmatpush1.msra.mxu0 %v9381
    %9383 = vmatprep.subr.mxu0 0.0
    %v9384 = vand.u32 %v6975, 4294901760
    %v9385 = vsub.f32 %v6975, %v9384
    %v9386 = vand.u32 %v9385, 4294901760
    %9387 = vmatpush1.msra.mxu0 %v9386
    %9388 = vmatprep.subr.mxu0 0.0
    %v9389 = vand.u32 %v6974, 4294901760
    %v9390 = vsub.f32 %v6974, %v9389
    %v9391 = vand.u32 %v9390, 4294901760
    %9392 = vmatpush1.msra.mxu0 %v9391
    %9393 = vmatprep.subr.mxu0 0.0
    %v9394 = vand.u32 %v6973, 4294901760
    %v9395 = vsub.f32 %v6973, %v9394
    %v9396 = vand.u32 %v9395, 4294901760
    %9397 = vmatpush1.msra.mxu0 %v9396
    %9398 = vmatprep.subr.mxu0 0.0
    %v9399 = vand.u32 %v6972, 4294901760
    %v9400 = vsub.f32 %v6972, %v9399
    %v9401 = vand.u32 %v9400, 4294901760
    %9402 = vmatpush1.msra.mxu0 %v9401
    %9403 = vmatprep.subr.mxu0 0.0
    %v9404 = vand.u32 %v6971, 4294901760
    %v9405 = vsub.f32 %v6971, %v9404
    %v9406 = vand.u32 %v9405, 4294901760
    %9407 = vmatpush1.msra.mxu0 %v9406
    %9408 = vmatprep.subr.mxu0 0.0
    %v9409 = vand.u32 %v6970, 4294901760
    %v9410 = vsub.f32 %v6970, %v9409
    %v9411 = vand.u32 %v9410, 4294901760
    %9412 = vmatpush1.msra.mxu0 %v9411
    %9413 = vmatprep.subr.mxu0 0.0
    %v9414 = vand.u32 %v6969, 4294901760
    %v9415 = vsub.f32 %v6969, %v9414
    %v9416 = vand.u32 %v9415, 4294901760
    %9417 = vmatpush1.msra.mxu0 %v9416
    %9418 = vmatprep.subr.mxu0 0.0
    %v9419 = vand.u32 %v6968, 4294901760
    %v9420 = vsub.f32 %v6968, %v9419
    %v9421 = vand.u32 %v9420, 4294901760
    %9422 = vmatpush1.msra.mxu0 %v9421
    %9423 = vmatprep.subr.mxu0 0.0
    %v9424 = vand.u32 %v6967, 4294901760
    %v9425 = vsub.f32 %v6967, %v9424
    %v9426 = vand.u32 %v9425, 4294901760
    %9427 = vmatpush1.msra.mxu0 %v9426
    %9428 = vmatprep.subr.mxu0 0.0
    %v9429 = vand.u32 %v6966, 4294901760
    %v9430 = vsub.f32 %v6966, %v9429
    %v9431 = vand.u32 %v9430, 4294901760
    %9432 = vmatpush1.msra.mxu0 %v9431
    %9433 = vmatprep.subr.mxu0 0.0
    %v9434 = vand.u32 %v6965, 4294901760
    %v9435 = vsub.f32 %v6965, %v9434
    %v9436 = vand.u32 %v9435, 4294901760
    %9437 = vmatpush1.msra.mxu0 %v9436
    %9438 = vmatprep.subr.mxu0 0.0
    %v9439 = vand.u32 %v6964, 4294901760
    %v9440 = vsub.f32 %v6964, %v9439
    %v9441 = vand.u32 %v9440, 4294901760
    %9442 = vmatpush1.msra.mxu0 %v9441
    %9443 = vmatprep.subr.mxu0 0.0
    %v9444 = vand.u32 %v6963, 4294901760
    %v9445 = vsub.f32 %v6963, %v9444
    %v9446 = vand.u32 %v9445, 4294901760
    %9447 = vmatpush1.msra.mxu0 %v9446
    %9448 = vmatprep.subr.mxu0 0.0
    %v9449 = vand.u32 %v6962, 4294901760
    %v9450 = vsub.f32 %v6962, %v9449
    %v9451 = vand.u32 %v9450, 4294901760
    %9452 = vmatpush1.msra.mxu0 %v9451
    %9453 = vmatprep.subr.mxu0 0.0
    %9454 = vmatpush2.msra.mxu0 0.0
    %9455 = vmatprep.subr.mxu0 0.0
    %9456 = vmatpush2.msra.mxu0 0.0
    %9457 = vmatprep.subr.mxu0 0.0
    %9458 = vmatpush2.msra.mxu0 0.0
    %9459 = vmatprep.subr.mxu0 0.0
    %9460 = vmatpush2.msra.mxu0 0.0
    %9461 = vmatprep.subr.mxu0 0.0
    %9462 = vmatpush2.msra.mxu0 0.0
    %9463 = vmatprep.subr.mxu0 0.0
    %9464 = vmatpush2.msra.mxu0 0.0
    %9465 = vmatprep.subr.mxu0 0.0
    %9466 = vmatpush2.msra.mxu0 0.0
    %9467 = vmatprep.subr.mxu0 0.0
    %9468 = vmatpush2.msra.mxu0 0.0
    %9469 = vmatprep.subr.mxu0 0.0
    %9470 = vmatpush2.msra.mxu0 0.0
    %9471 = vmatprep.subr.mxu0 0.0
    %9472 = vmatpush2.msra.mxu0 0.0
    %9473 = vmatprep.subr.mxu0 0.0
    %9474 = vmatpush2.msra.mxu0 0.0
    %9475 = vmatprep.subr.mxu0 0.0
    %9476 = vmatpush2.msra.mxu0 0.0
    %9477 = vmatprep.subr.mxu0 0.0
    %9478 = vmatpush2.msra.mxu0 0.0
    %9479 = vmatprep.subr.mxu0 0.0
    %9480 = vmatpush2.msra.mxu0 0.0
    %9481 = vmatprep.subr.mxu0 0.0
    %9482 = vmatpush2.msra.mxu0 0.0
    %9483 = vmatprep.subr.mxu0 0.0
    %9484 = vmatpush2.msra.mxu0 0.0
    %9485 = vmatprep.mubr.f32.mxu0 0.0
    %v9486 = vand.u32 %v6898, 4294901760
    %9487 = vmatmul.mubr.f32.gmra.mxu0 %v9486
    %v9488 = vpop.f32.mrf.mxu0
    %v9489 = vadd.f32 %v8866, %v9488
    %v9490 = vpop.f32.mrf.mxu0
    %9491 = vmatprep.mubr.f32.mxu0 0.0
    %v9492 = vand.u32 %v6899, 4294901760
    %9493 = vmatmul.mubr.f32.gmra.mxu0 %v9492
    %v9494 = vpop.f32.mrf.mxu0
    %v9495 = vadd.f32 %v8874, %v9494
    %v9496 = vpop.f32.mrf.mxu0
    %9497 = vmatprep.mubr.f32.mxu0 0.0
    %v9498 = vand.u32 %v6900, 4294901760
    %9499 = vmatmul.mubr.f32.gmra.mxu0 %v9498
    %v9500 = vpop.f32.mrf.mxu0
    %v9501 = vadd.f32 %v8882, %v9500
    %v9502 = vpop.f32.mrf.mxu0
    %9503 = vmatprep.mubr.f32.mxu0 0.0
    %v9504 = vand.u32 %v6901, 4294901760
    %9505 = vmatmul.mubr.f32.gmra.mxu0 %v9504
    %v9506 = vpop.f32.mrf.mxu0
    %v9507 = vadd.f32 %v8890, %v9506
    %v9508 = vpop.f32.mrf.mxu0
    %9509 = vmatprep.mubr.f32.mxu0 0.0
    %v9510 = vand.u32 %v6902, 4294901760
    %9511 = vmatmul.mubr.f32.gmra.mxu0 %v9510
    %v9512 = vpop.f32.mrf.mxu0
    %v9513 = vadd.f32 %v8898, %v9512
    %v9514 = vpop.f32.mrf.mxu0
    %9515 = vmatprep.mubr.f32.mxu0 0.0
    %v9516 = vand.u32 %v6903, 4294901760
    %9517 = vmatmul.mubr.f32.gmra.mxu0 %v9516
    %v9518 = vpop.f32.mrf.mxu0
    %v9519 = vadd.f32 %v8906, %v9518
    %v9520 = vpop.f32.mrf.mxu0
    %9521 = vmatprep.mubr.f32.mxu0 0.0
    %v9522 = vand.u32 %v6904, 4294901760
    %9523 = vmatmul.mubr.f32.gmra.mxu0 %v9522
    %v9524 = vpop.f32.mrf.mxu0
    %v9525 = vadd.f32 %v8914, %v9524
    %v9526 = vpop.f32.mrf.mxu0
    %9527 = vmatprep.mubr.f32.mxu0 0.0
    %v9528 = vand.u32 %v6905, 4294901760
    %9529 = vmatmul.mubr.f32.gmra.mxu0 %v9528
    %v9530 = vpop.f32.mrf.mxu0
    %v9531 = vadd.f32 %v8922, %v9530
    %v9532 = vpop.f32.mrf.mxu0
    %9533 = vmatprep.mubr.f32.mxu0 0.0
    %v9534 = vand.u32 %v6906, 4294901760
    %9535 = vmatmul.mubr.f32.gmra.mxu0 %v9534
    %v9536 = vpop.f32.mrf.mxu0
    %v9537 = vadd.f32 %v8930, %v9536
    %v9538 = vpop.f32.mrf.mxu0
    %9539 = vmatprep.mubr.f32.mxu0 0.0
    %v9540 = vand.u32 %v6907, 4294901760
    %9541 = vmatmul.mubr.f32.gmra.mxu0 %v9540
    %v9542 = vpop.f32.mrf.mxu0
    %v9543 = vadd.f32 %v8938, %v9542
    %v9544 = vpop.f32.mrf.mxu0
    %9545 = vmatprep.mubr.f32.mxu0 0.0
    %v9546 = vand.u32 %v6908, 4294901760
    %9547 = vmatmul.mubr.f32.gmra.mxu0 %v9546
    %v9548 = vpop.f32.mrf.mxu0
    %v9549 = vadd.f32 %v8946, %v9548
    %v9550 = vpop.f32.mrf.mxu0
    %9551 = vmatprep.mubr.f32.mxu0 0.0
    %v9552 = vand.u32 %v6909, 4294901760
    %9553 = vmatmul.mubr.f32.gmra.mxu0 %v9552
    %v9554 = vpop.f32.mrf.mxu0
    %v9555 = vadd.f32 %v8954, %v9554
    %v9556 = vpop.f32.mrf.mxu0
    %9557 = vmatprep.mubr.f32.mxu0 0.0
    %v9558 = vand.u32 %v6910, 4294901760
    %9559 = vmatmul.mubr.f32.gmra.mxu0 %v9558
    %v9560 = vpop.f32.mrf.mxu0
    %v9561 = vadd.f32 %v8962, %v9560
    %v9562 = vpop.f32.mrf.mxu0
    %9563 = vmatprep.mubr.f32.mxu0 0.0
    %v9564 = vand.u32 %v6911, 4294901760
    %9565 = vmatmul.mubr.f32.gmra.mxu0 %v9564
    %v9566 = vpop.f32.mrf.mxu0
    %v9567 = vadd.f32 %v8970, %v9566
    %v9568 = vpop.f32.mrf.mxu0
    %9569 = vmatprep.mubr.f32.mxu0 0.0
    %v9570 = vand.u32 %v6912, 4294901760
    %9571 = vmatmul.mubr.f32.gmra.mxu0 %v9570
    %v9572 = vpop.f32.mrf.mxu0
    %v9573 = vadd.f32 %v8978, %v9572
    %v9574 = vpop.f32.mrf.mxu0
    %9575 = vmatprep.mubr.f32.mxu0 0.0
    %v9576 = vand.u32 %v6913, 4294901760
    %9577 = vmatmul.mubr.f32.gmra.mxu0 %v9576
    %v9578 = vpop.f32.mrf.mxu0
    %v9579 = vadd.f32 %v8986, %v9578
    %v9580 = vpop.f32.mrf.mxu0
    %9581 = vmatprep.mubr.f32.mxu0 0.0
    %v9582 = vand.u32 %v6914, 4294901760
    %9583 = vmatmul.mubr.f32.gmra.mxu0 %v9582
    %v9584 = vpop.f32.mrf.mxu0
    %v9585 = vadd.f32 %v8994, %v9584
    %v9586 = vpop.f32.mrf.mxu0
    %9587 = vmatprep.mubr.f32.mxu0 0.0
    %v9588 = vand.u32 %v6915, 4294901760
    %9589 = vmatmul.mubr.f32.gmra.mxu0 %v9588
    %v9590 = vpop.f32.mrf.mxu0
    %v9591 = vadd.f32 %v9002, %v9590
    %v9592 = vpop.f32.mrf.mxu0
    %9593 = vmatprep.mubr.f32.mxu0 0.0
    %v9594 = vand.u32 %v6916, 4294901760
    %9595 = vmatmul.mubr.f32.gmra.mxu0 %v9594
    %v9596 = vpop.f32.mrf.mxu0
    %v9597 = vadd.f32 %v9010, %v9596
    %v9598 = vpop.f32.mrf.mxu0
    %9599 = vmatprep.mubr.f32.mxu0 0.0
    %v9600 = vand.u32 %v6917, 4294901760
    %9601 = vmatmul.mubr.f32.gmra.mxu0 %v9600
    %v9602 = vpop.f32.mrf.mxu0
    %v9603 = vadd.f32 %v9018, %v9602
    %v9604 = vpop.f32.mrf.mxu0
    %9605 = vmatprep.mubr.f32.mxu0 0.0
    %v9606 = vand.u32 %v6918, 4294901760
    %9607 = vmatmul.mubr.f32.gmra.mxu0 %v9606
    %v9608 = vpop.f32.mrf.mxu0
    %v9609 = vadd.f32 %v9026, %v9608
    %v9610 = vpop.f32.mrf.mxu0
    %9611 = vmatprep.mubr.f32.mxu0 0.0
    %v9612 = vand.u32 %v6919, 4294901760
    %9613 = vmatmul.mubr.f32.gmra.mxu0 %v9612
    %v9614 = vpop.f32.mrf.mxu0
    %v9615 = vadd.f32 %v9034, %v9614
    %v9616 = vpop.f32.mrf.mxu0
    %9617 = vmatprep.mubr.f32.mxu0 0.0
    %v9618 = vand.u32 %v6920, 4294901760
    %9619 = vmatmul.mubr.f32.gmra.mxu0 %v9618
    %v9620 = vpop.f32.mrf.mxu0
    %v9621 = vadd.f32 %v9042, %v9620
    %v9622 = vpop.f32.mrf.mxu0
    %9623 = vmatprep.mubr.f32.mxu0 0.0
    %v9624 = vand.u32 %v6921, 4294901760
    %9625 = vmatmul.mubr.f32.gmra.mxu0 %v9624
    %v9626 = vpop.f32.mrf.mxu0
    %v9627 = vadd.f32 %v9050, %v9626
    %v9628 = vpop.f32.mrf.mxu0
    %9629 = vmatprep.mubr.f32.mxu0 0.0
    %v9630 = vand.u32 %v6922, 4294901760
    %9631 = vmatmul.mubr.f32.gmra.mxu0 %v9630
    %v9632 = vpop.f32.mrf.mxu0
    %v9633 = vadd.f32 %v9058, %v9632
    %v9634 = vpop.f32.mrf.mxu0
    %9635 = vmatprep.mubr.f32.mxu0 0.0
    %v9636 = vand.u32 %v6923, 4294901760
    %9637 = vmatmul.mubr.f32.gmra.mxu0 %v9636
    %v9638 = vpop.f32.mrf.mxu0
    %v9639 = vadd.f32 %v9066, %v9638
    %v9640 = vpop.f32.mrf.mxu0
    %9641 = vmatprep.mubr.f32.mxu0 0.0
    %v9642 = vand.u32 %v6924, 4294901760
    %9643 = vmatmul.mubr.f32.gmra.mxu0 %v9642
    %v9644 = vpop.f32.mrf.mxu0
    %v9645 = vadd.f32 %v9074, %v9644
    %v9646 = vpop.f32.mrf.mxu0
    %9647 = vmatprep.mubr.f32.mxu0 0.0
    %v9648 = vand.u32 %v6925, 4294901760
    %9649 = vmatmul.mubr.f32.gmra.mxu0 %v9648
    %v9650 = vpop.f32.mrf.mxu0
    %v9651 = vadd.f32 %v9082, %v9650
    %v9652 = vpop.f32.mrf.mxu0
    %9653 = vmatprep.mubr.f32.mxu0 0.0
    %v9654 = vand.u32 %v6926, 4294901760
    %9655 = vmatmul.mubr.f32.gmra.mxu0 %v9654
    %v9656 = vpop.f32.mrf.mxu0
    %v9657 = vadd.f32 %v9090, %v9656
    %v9658 = vpop.f32.mrf.mxu0
    %9659 = vmatprep.mubr.f32.mxu0 0.0
    %v9660 = vand.u32 %v6927, 4294901760
    %9661 = vmatmul.mubr.f32.gmra.mxu0 %v9660
    %v9662 = vpop.f32.mrf.mxu0
    %v9663 = vadd.f32 %v9098, %v9662
    %v9664 = vpop.f32.mrf.mxu0
    %9665 = vmatprep.mubr.f32.mxu0 0.0
    %v9666 = vand.u32 %v6928, 4294901760
    %9667 = vmatmul.mubr.f32.gmra.mxu0 %v9666
    %v9668 = vpop.f32.mrf.mxu0
    %v9669 = vadd.f32 %v9106, %v9668
    %v9670 = vpop.f32.mrf.mxu0
    %9671 = vmatprep.mubr.f32.mxu0 0.0
    %v9672 = vand.u32 %v6929, 4294901760
    %9673 = vmatmul.mubr.f32.gmra.mxu0 %v9672
    %v9674 = vpop.f32.mrf.mxu0
    %v9675 = vadd.f32 %v9114, %v9674
    %v9676 = vpop.f32.mrf.mxu0
    %9677 = vmatprep.mubr.f32.mxu0 0.0
    %v9678 = vand.u32 %v6930, 4294901760
    %9679 = vmatmul.mubr.f32.gmra.mxu0 %v9678
    %v9680 = vpop.f32.mrf.mxu0
    %v9681 = vadd.f32 %v9122, %v9680
    %v9682 = vpop.f32.mrf.mxu0
    %9683 = vmatprep.mubr.f32.mxu0 0.0
    %v9684 = vand.u32 %v6931, 4294901760
    %9685 = vmatmul.mubr.f32.gmra.mxu0 %v9684
    %v9686 = vpop.f32.mrf.mxu0
    %v9687 = vadd.f32 %v9130, %v9686
    %v9688 = vpop.f32.mrf.mxu0
    %9689 = vmatprep.mubr.f32.mxu0 0.0
    %v9690 = vand.u32 %v6932, 4294901760
    %9691 = vmatmul.mubr.f32.gmra.mxu0 %v9690
    %v9692 = vpop.f32.mrf.mxu0
    %v9693 = vadd.f32 %v9138, %v9692
    %v9694 = vpop.f32.mrf.mxu0
    %9695 = vmatprep.mubr.f32.mxu0 0.0
    %v9696 = vand.u32 %v6933, 4294901760
    %9697 = vmatmul.mubr.f32.gmra.mxu0 %v9696
    %v9698 = vpop.f32.mrf.mxu0
    %v9699 = vadd.f32 %v9146, %v9698
    %v9700 = vpop.f32.mrf.mxu0
    %9701 = vmatprep.mubr.f32.mxu0 0.0
    %v9702 = vand.u32 %v6934, 4294901760
    %9703 = vmatmul.mubr.f32.gmra.mxu0 %v9702
    %v9704 = vpop.f32.mrf.mxu0
    %v9705 = vadd.f32 %v9154, %v9704
    %v9706 = vpop.f32.mrf.mxu0
    %9707 = vmatprep.mubr.f32.mxu0 0.0
    %v9708 = vand.u32 %v6935, 4294901760
    %9709 = vmatmul.mubr.f32.gmra.mxu0 %v9708
    %v9710 = vpop.f32.mrf.mxu0
    %v9711 = vadd.f32 %v9162, %v9710
    %v9712 = vpop.f32.mrf.mxu0
    %9713 = vmatprep.mubr.f32.mxu0 0.0
    %v9714 = vand.u32 %v6936, 4294901760
    %9715 = vmatmul.mubr.f32.gmra.mxu0 %v9714
    %v9716 = vpop.f32.mrf.mxu0
    %v9717 = vadd.f32 %v9170, %v9716
    %v9718 = vpop.f32.mrf.mxu0
    %9719 = vmatprep.mubr.f32.mxu0 0.0
    %v9720 = vand.u32 %v6937, 4294901760
    %9721 = vmatmul.mubr.f32.gmra.mxu0 %v9720
    %v9722 = vpop.f32.mrf.mxu0
    %v9723 = vadd.f32 %v9178, %v9722
    %v9724 = vpop.f32.mrf.mxu0
    %9725 = vmatprep.mubr.f32.mxu0 0.0
    %v9726 = vand.u32 %v6938, 4294901760
    %9727 = vmatmul.mubr.f32.gmra.mxu0 %v9726
    %v9728 = vpop.f32.mrf.mxu0
    %v9729 = vadd.f32 %v9186, %v9728
    %v9730 = vpop.f32.mrf.mxu0
    %9731 = vmatprep.mubr.f32.mxu0 0.0
    %v9732 = vand.u32 %v6939, 4294901760
    %9733 = vmatmul.mubr.f32.gmra.mxu0 %v9732
    %v9734 = vpop.f32.mrf.mxu0
    %v9735 = vadd.f32 %v9194, %v9734
    %v9736 = vpop.f32.mrf.mxu0
    %9737 = vmatprep.mubr.f32.mxu0 0.0
    %v9738 = vand.u32 %v6940, 4294901760
    %9739 = vmatmul.mubr.f32.gmra.mxu0 %v9738
    %v9740 = vpop.f32.mrf.mxu0
    %v9741 = vadd.f32 %v9202, %v9740
    %v9742 = vpop.f32.mrf.mxu0
    %9743 = vmatprep.mubr.f32.mxu0 0.0
    %v9744 = vand.u32 %v6941, 4294901760
    %9745 = vmatmul.mubr.f32.gmra.mxu0 %v9744
    %v9746 = vpop.f32.mrf.mxu0
    %v9747 = vadd.f32 %v9210, %v9746
    %v9748 = vpop.f32.mrf.mxu0
    %9749 = vmatprep.mubr.f32.mxu0 0.0
    %v9750 = vand.u32 %v6942, 4294901760
    %9751 = vmatmul.mubr.f32.gmra.mxu0 %v9750
    %v9752 = vpop.f32.mrf.mxu0
    %v9753 = vadd.f32 %v9218, %v9752
    %v9754 = vpop.f32.mrf.mxu0
    %9755 = vmatprep.mubr.f32.mxu0 0.0
    %v9756 = vand.u32 %v6943, 4294901760
    %9757 = vmatmul.mubr.f32.gmra.mxu0 %v9756
    %v9758 = vpop.f32.mrf.mxu0
    %v9759 = vadd.f32 %v9226, %v9758
    %v9760 = vpop.f32.mrf.mxu0
    %9761 = vmatprep.mubr.f32.mxu0 0.0
    %v9762 = vand.u32 %v6944, 4294901760
    %9763 = vmatmul.mubr.f32.gmra.mxu0 %v9762
    %v9764 = vpop.f32.mrf.mxu0
    %v9765 = vadd.f32 %v9234, %v9764
    %v9766 = vpop.f32.mrf.mxu0
    %9767 = vmatprep.mubr.f32.mxu0 0.0
    %v9768 = vand.u32 %v6945, 4294901760
    %9769 = vmatmul.mubr.f32.gmra.mxu0 %v9768
    %v9770 = vpop.f32.mrf.mxu0
    %v9771 = vadd.f32 %v9242, %v9770
    %v9772 = vpop.f32.mrf.mxu0
    %9773 = vmatprep.mubr.f32.mxu0 0.0
    %v9774 = vand.u32 %v6946, 4294901760
    %9775 = vmatmul.mubr.f32.gmra.mxu0 %v9774
    %v9776 = vpop.f32.mrf.mxu0
    %v9777 = vadd.f32 %v9250, %v9776
    %v9778 = vpop.f32.mrf.mxu0
    %9779 = vmatprep.mubr.f32.mxu0 0.0
    %v9780 = vand.u32 %v6947, 4294901760
    %9781 = vmatmul.mubr.f32.gmra.mxu0 %v9780
    %v9782 = vpop.f32.mrf.mxu0
    %v9783 = vadd.f32 %v9258, %v9782
    %v9784 = vpop.f32.mrf.mxu0
    %9785 = vmatprep.mubr.f32.mxu0 0.0
    %v9786 = vand.u32 %v6948, 4294901760
    %9787 = vmatmul.mubr.f32.gmra.mxu0 %v9786
    %v9788 = vpop.f32.mrf.mxu0
    %v9789 = vadd.f32 %v9266, %v9788
    %v9790 = vpop.f32.mrf.mxu0
    %9791 = vmatprep.mubr.f32.mxu0 0.0
    %v9792 = vand.u32 %v6949, 4294901760
    %9793 = vmatmul.mubr.f32.gmra.mxu0 %v9792
    %v9794 = vpop.f32.mrf.mxu0
    %v9795 = vadd.f32 %v9274, %v9794
    %v9796 = vpop.f32.mrf.mxu0
    %9797 = vmatprep.mubr.f32.mxu0 0.0
    %v9798 = vand.u32 %v6950, 4294901760
    %9799 = vmatmul.mubr.f32.gmra.mxu0 %v9798
    %v9800 = vpop.f32.mrf.mxu0
    %v9801 = vadd.f32 %v9282, %v9800
    %v9802 = vpop.f32.mrf.mxu0
    %9803 = vmatprep.mubr.f32.mxu0 0.0
    %v9804 = vand.u32 %v6951, 4294901760
    %9805 = vmatmul.mubr.f32.gmra.mxu0 %v9804
    %v9806 = vpop.f32.mrf.mxu0
    %v9807 = vadd.f32 %v9290, %v9806
    %v9808 = vpop.f32.mrf.mxu0
    %9809 = vmatprep.mubr.f32.mxu0 0.0
    %v9810 = vand.u32 %v6952, 4294901760
    %9811 = vmatmul.mubr.f32.gmra.mxu0 %v9810
    %v9812 = vpop.f32.mrf.mxu0
    %v9813 = vadd.f32 %v9298, %v9812
    %v9814 = vpop.f32.mrf.mxu0
    %9815 = vmatprep.mubr.f32.mxu0 0.0
    %v9816 = vand.u32 %v6953, 4294901760
    %9817 = vmatmul.mubr.f32.gmra.mxu0 %v9816
    %v9818 = vpop.f32.mrf.mxu0
    %v9819 = vadd.f32 %v9306, %v9818
    %v9820 = vpop.f32.mrf.mxu0
    %9821 = vmatprep.mubr.f32.mxu0 0.0
    %v9822 = vand.u32 %v6954, 4294901760
    %9823 = vmatmul.mubr.f32.gmra.mxu0 %v9822
    %v9824 = vpop.f32.mrf.mxu0
    %v9825 = vadd.f32 %v9314, %v9824
    %v9826 = vpop.f32.mrf.mxu0
    %9827 = vmatprep.mubr.f32.mxu0 0.0
    %v9828 = vand.u32 %v6955, 4294901760
    %9829 = vmatmul.mubr.f32.gmra.mxu0 %v9828
    %v9830 = vpop.f32.mrf.mxu0
    %v9831 = vadd.f32 %v9322, %v9830
    %v9832 = vpop.f32.mrf.mxu0
    %9833 = vmatprep.mubr.f32.mxu0 0.0
    %v9834 = vand.u32 %v6956, 4294901760
    %9835 = vmatmul.mubr.f32.gmra.mxu0 %v9834
    %v9836 = vpop.f32.mrf.mxu0
    %v9837 = vadd.f32 %v9330, %v9836
    %v9838 = vpop.f32.mrf.mxu0
    %9839 = vmatprep.mubr.f32.mxu0 0.0
    %v9840 = vand.u32 %v6957, 4294901760
    %9841 = vmatmul.mubr.f32.gmra.mxu0 %v9840
    %v9842 = vpop.f32.mrf.mxu0
    %v9843 = vadd.f32 %v9338, %v9842
    %v9844 = vpop.f32.mrf.mxu0
    %9845 = vmatprep.mubr.f32.mxu0 0.0
    %v9846 = vand.u32 %v6958, 4294901760
    %9847 = vmatmul.mubr.f32.gmra.mxu0 %v9846
    %v9848 = vpop.f32.mrf.mxu0
    %v9849 = vadd.f32 %v9346, %v9848
    %v9850 = vpop.f32.mrf.mxu0
    %9851 = vmatprep.mubr.f32.mxu0 0.0
    %v9852 = vand.u32 %v6959, 4294901760
    %9853 = vmatmul.mubr.f32.gmra.mxu0 %v9852
    %v9854 = vpop.f32.mrf.mxu0
    %v9855 = vadd.f32 %v9354, %v9854
    %v9856 = vpop.f32.mrf.mxu0
    %9857 = vmatprep.mubr.f32.mxu0 0.0
    %v9858 = vand.u32 %v6960, 4294901760
    %9859 = vmatmul.mubr.f32.gmra.mxu0 %v9858
    %v9860 = vpop.f32.mrf.mxu0
    %v9861 = vadd.f32 %v9362, %v9860
    %v9862 = vpop.f32.mrf.mxu0
    %9863 = vmatprep.mubr.f32.mxu0 0.0
    %v9864 = vand.u32 %v6961, 4294901760
    %9865 = vmatmul.mubr.f32.gmra.mxu0 %v9864
    %v9866 = vpop.f32.mrf.mxu0
    %v9867 = vadd.f32 %v9370, %v9866
    %v9868 = vpop.f32.mrf.mxu0
    %9869 = vdwg.mxu0
    %9870 = vmatprep.subr.mxu0 0.0
    %v9871 = vand.u32 %v6977, 4294901760
    %9872 = vmatpush1.msra.mxu0 %v9871
    %9873 = vmatprep.subr.mxu0 0.0
    %v9874 = vand.u32 %v6976, 4294901760
    %9875 = vmatpush1.msra.mxu0 %v9874
    %9876 = vmatprep.subr.mxu0 0.0
    %v9877 = vand.u32 %v6975, 4294901760
    %9878 = vmatpush1.msra.mxu0 %v9877
    %9879 = vmatprep.subr.mxu0 0.0
    %v9880 = vand.u32 %v6974, 4294901760
    %9881 = vmatpush1.msra.mxu0 %v9880
    %9882 = vmatprep.subr.mxu0 0.0
    %v9883 = vand.u32 %v6973, 4294901760
    %9884 = vmatpush1.msra.mxu0 %v9883
    %9885 = vmatprep.subr.mxu0 0.0
    %v9886 = vand.u32 %v6972, 4294901760
    %9887 = vmatpush1.msra.mxu0 %v9886
    %9888 = vmatprep.subr.mxu0 0.0
    %v9889 = vand.u32 %v6971, 4294901760
    %9890 = vmatpush1.msra.mxu0 %v9889
    %9891 = vmatprep.subr.mxu0 0.0
    %v9892 = vand.u32 %v6970, 4294901760
    %9893 = vmatpush1.msra.mxu0 %v9892
    %9894 = vmatprep.subr.mxu0 0.0
    %v9895 = vand.u32 %v6969, 4294901760
    %9896 = vmatpush1.msra.mxu0 %v9895
    %9897 = vmatprep.subr.mxu0 0.0
    %v9898 = vand.u32 %v6968, 4294901760
    %9899 = vmatpush1.msra.mxu0 %v9898
    %9900 = vmatprep.subr.mxu0 0.0
    %v9901 = vand.u32 %v6967, 4294901760
    %9902 = vmatpush1.msra.mxu0 %v9901
    %9903 = vmatprep.subr.mxu0 0.0
    %v9904 = vand.u32 %v6966, 4294901760
    %9905 = vmatpush1.msra.mxu0 %v9904
    %9906 = vmatprep.subr.mxu0 0.0
    %v9907 = vand.u32 %v6965, 4294901760
    %9908 = vmatpush1.msra.mxu0 %v9907
    %9909 = vmatprep.subr.mxu0 0.0
    %v9910 = vand.u32 %v6964, 4294901760
    %9911 = vmatpush1.msra.mxu0 %v9910
    %9912 = vmatprep.subr.mxu0 0.0
    %v9913 = vand.u32 %v6963, 4294901760
    %9914 = vmatpush1.msra.mxu0 %v9913
    %9915 = vmatprep.subr.mxu0 0.0
    %v9916 = vand.u32 %v6962, 4294901760
    %9917 = vmatpush1.msra.mxu0 %v9916
    %9918 = vmatprep.subr.mxu0 0.0
    %9919 = vmatpush2.msra.mxu0 0.0
    %9920 = vmatprep.subr.mxu0 0.0
    %9921 = vmatpush2.msra.mxu0 0.0
    %9922 = vmatprep.subr.mxu0 0.0
    %9923 = vmatpush2.msra.mxu0 0.0
    %9924 = vmatprep.subr.mxu0 0.0
    %9925 = vmatpush2.msra.mxu0 0.0
    %9926 = vmatprep.subr.mxu0 0.0
    %9927 = vmatpush2.msra.mxu0 0.0
    %9928 = vmatprep.subr.mxu0 0.0
    %9929 = vmatpush2.msra.mxu0 0.0
    %9930 = vmatprep.subr.mxu0 0.0
    %9931 = vmatpush2.msra.mxu0 0.0
    %9932 = vmatprep.subr.mxu0 0.0
    %9933 = vmatpush2.msra.mxu0 0.0
    %9934 = vmatprep.subr.mxu0 0.0
    %9935 = vmatpush2.msra.mxu0 0.0
    %9936 = vmatprep.subr.mxu0 0.0
    %9937 = vmatpush2.msra.mxu0 0.0
    %9938 = vmatprep.subr.mxu0 0.0
    %9939 = vmatpush2.msra.mxu0 0.0
    %9940 = vmatprep.subr.mxu0 0.0
    %9941 = vmatpush2.msra.mxu0 0.0
    %9942 = vmatprep.subr.mxu0 0.0
    %9943 = vmatpush2.msra.mxu0 0.0
    %9944 = vmatprep.subr.mxu0 0.0
    %9945 = vmatpush2.msra.mxu0 0.0
    %9946 = vmatprep.subr.mxu0 0.0
    %9947 = vmatpush2.msra.mxu0 0.0
    %9948 = vmatprep.subr.mxu0 0.0
    %9949 = vmatpush2.msra.mxu0 0.0
    %9950 = vmatprep.mubr.f32.mxu0 0.0
    %v9951 = vand.u32 %v6898, 4294901760
    %9952 = vmatmul.mubr.f32.gmra.mxu0 %v9951
    %v9953 = vpop.f32.mrf.mxu0
    %v9954 = vadd.f32 %v9489, %v9953
    %v9955 = vpop.f32.mrf.mxu0
    %9956 = vmatprep.mubr.f32.mxu0 0.0
    %v9957 = vand.u32 %v6899, 4294901760
    %9958 = vmatmul.mubr.f32.gmra.mxu0 %v9957
    %v9959 = vpop.f32.mrf.mxu0
    %v9960 = vadd.f32 %v9495, %v9959
    %v9961 = vpop.f32.mrf.mxu0
    %9962 = vmatprep.mubr.f32.mxu0 0.0
    %v9963 = vand.u32 %v6900, 4294901760
    %9964 = vmatmul.mubr.f32.gmra.mxu0 %v9963
    %v9965 = vpop.f32.mrf.mxu0
    %v9966 = vadd.f32 %v9501, %v9965
    %v9967 = vpop.f32.mrf.mxu0
    %9968 = vmatprep.mubr.f32.mxu0 0.0
    %v9969 = vand.u32 %v6901, 4294901760
    %9970 = vmatmul.mubr.f32.gmra.mxu0 %v9969
    %v9971 = vpop.f32.mrf.mxu0
    %v9972 = vadd.f32 %v9507, %v9971
    %v9973 = vpop.f32.mrf.mxu0
    %9974 = vmatprep.mubr.f32.mxu0 0.0
    %v9975 = vand.u32 %v6902, 4294901760
    %9976 = vmatmul.mubr.f32.gmra.mxu0 %v9975
    %v9977 = vpop.f32.mrf.mxu0
    %v9978 = vadd.f32 %v9513, %v9977
    %v9979 = vpop.f32.mrf.mxu0
    %9980 = vmatprep.mubr.f32.mxu0 0.0
    %v9981 = vand.u32 %v6903, 4294901760
    %9982 = vmatmul.mubr.f32.gmra.mxu0 %v9981
    %v9983 = vpop.f32.mrf.mxu0
    %v9984 = vadd.f32 %v9519, %v9983
    %v9985 = vpop.f32.mrf.mxu0
    %9986 = vmatprep.mubr.f32.mxu0 0.0
    %v9987 = vand.u32 %v6904, 4294901760
    %9988 = vmatmul.mubr.f32.gmra.mxu0 %v9987
    %v9989 = vpop.f32.mrf.mxu0
    %v9990 = vadd.f32 %v9525, %v9989
    %v9991 = vpop.f32.mrf.mxu0
    %9992 = vmatprep.mubr.f32.mxu0 0.0
    %v9993 = vand.u32 %v6905, 4294901760
    %9994 = vmatmul.mubr.f32.gmra.mxu0 %v9993
    %v9995 = vpop.f32.mrf.mxu0
    %v9996 = vadd.f32 %v9531, %v9995
    %v9997 = vpop.f32.mrf.mxu0
    %9998 = vmatprep.mubr.f32.mxu0 0.0
    %v9999 = vand.u32 %v6906, 4294901760
    %10000 = vmatmul.mubr.f32.gmra.mxu0 %v9999
    %v10001 = vpop.f32.mrf.mxu0
    %v10002 = vadd.f32 %v9537, %v10001
    %v10003 = vpop.f32.mrf.mxu0
    %10004 = vmatprep.mubr.f32.mxu0 0.0
    %v10005 = vand.u32 %v6907, 4294901760
    %10006 = vmatmul.mubr.f32.gmra.mxu0 %v10005
    %v10007 = vpop.f32.mrf.mxu0
    %v10008 = vadd.f32 %v9543, %v10007
    %v10009 = vpop.f32.mrf.mxu0
    %10010 = vmatprep.mubr.f32.mxu0 0.0
    %v10011 = vand.u32 %v6908, 4294901760
    %10012 = vmatmul.mubr.f32.gmra.mxu0 %v10011
    %v10013 = vpop.f32.mrf.mxu0
    %v10014 = vadd.f32 %v9549, %v10013
    %v10015 = vpop.f32.mrf.mxu0
    %10016 = vmatprep.mubr.f32.mxu0 0.0
    %v10017 = vand.u32 %v6909, 4294901760
    %10018 = vmatmul.mubr.f32.gmra.mxu0 %v10017
    %v10019 = vpop.f32.mrf.mxu0
    %v10020 = vadd.f32 %v9555, %v10019
    %v10021 = vpop.f32.mrf.mxu0
    %10022 = vmatprep.mubr.f32.mxu0 0.0
    %v10023 = vand.u32 %v6910, 4294901760
    %10024 = vmatmul.mubr.f32.gmra.mxu0 %v10023
    %v10025 = vpop.f32.mrf.mxu0
    %v10026 = vadd.f32 %v9561, %v10025
    %v10027 = vpop.f32.mrf.mxu0
    %10028 = vmatprep.mubr.f32.mxu0 0.0
    %v10029 = vand.u32 %v6911, 4294901760
    %10030 = vmatmul.mubr.f32.gmra.mxu0 %v10029
    %v10031 = vpop.f32.mrf.mxu0
    %v10032 = vadd.f32 %v9567, %v10031
    %v10033 = vpop.f32.mrf.mxu0
    %10034 = vmatprep.mubr.f32.mxu0 0.0
    %v10035 = vand.u32 %v6912, 4294901760
    %10036 = vmatmul.mubr.f32.gmra.mxu0 %v10035
    %v10037 = vpop.f32.mrf.mxu0
    %v10038 = vadd.f32 %v9573, %v10037
    %v10039 = vpop.f32.mrf.mxu0
    %10040 = vmatprep.mubr.f32.mxu0 0.0
    %v10041 = vand.u32 %v6913, 4294901760
    %10042 = vmatmul.mubr.f32.gmra.mxu0 %v10041
    %v10043 = vpop.f32.mrf.mxu0
    %v10044 = vadd.f32 %v9579, %v10043
    %v10045 = vpop.f32.mrf.mxu0
    %10046 = vmatprep.mubr.f32.mxu0 0.0
    %v10047 = vand.u32 %v6914, 4294901760
    %10048 = vmatmul.mubr.f32.gmra.mxu0 %v10047
    %v10049 = vpop.f32.mrf.mxu0
    %v10050 = vadd.f32 %v9585, %v10049
    %v10051 = vpop.f32.mrf.mxu0
    %10052 = vmatprep.mubr.f32.mxu0 0.0
    %v10053 = vand.u32 %v6915, 4294901760
    %10054 = vmatmul.mubr.f32.gmra.mxu0 %v10053
    %v10055 = vpop.f32.mrf.mxu0
    %v10056 = vadd.f32 %v9591, %v10055
    %v10057 = vpop.f32.mrf.mxu0
    %10058 = vmatprep.mubr.f32.mxu0 0.0
    %v10059 = vand.u32 %v6916, 4294901760
    %10060 = vmatmul.mubr.f32.gmra.mxu0 %v10059
    %v10061 = vpop.f32.mrf.mxu0
    %v10062 = vadd.f32 %v9597, %v10061
    %v10063 = vpop.f32.mrf.mxu0
    %10064 = vmatprep.mubr.f32.mxu0 0.0
    %v10065 = vand.u32 %v6917, 4294901760
    %10066 = vmatmul.mubr.f32.gmra.mxu0 %v10065
    %v10067 = vpop.f32.mrf.mxu0
    %v10068 = vadd.f32 %v9603, %v10067
    %v10069 = vpop.f32.mrf.mxu0
    %10070 = vmatprep.mubr.f32.mxu0 0.0
    %v10071 = vand.u32 %v6918, 4294901760
    %10072 = vmatmul.mubr.f32.gmra.mxu0 %v10071
    %v10073 = vpop.f32.mrf.mxu0
    %v10074 = vadd.f32 %v9609, %v10073
    %v10075 = vpop.f32.mrf.mxu0
    %10076 = vmatprep.mubr.f32.mxu0 0.0
    %v10077 = vand.u32 %v6919, 4294901760
    %10078 = vmatmul.mubr.f32.gmra.mxu0 %v10077
    %v10079 = vpop.f32.mrf.mxu0
    %v10080 = vadd.f32 %v9615, %v10079
    %v10081 = vpop.f32.mrf.mxu0
    %10082 = vmatprep.mubr.f32.mxu0 0.0
    %v10083 = vand.u32 %v6920, 4294901760
    %10084 = vmatmul.mubr.f32.gmra.mxu0 %v10083
    %v10085 = vpop.f32.mrf.mxu0
    %v10086 = vadd.f32 %v9621, %v10085
    %v10087 = vpop.f32.mrf.mxu0
    %10088 = vmatprep.mubr.f32.mxu0 0.0
    %v10089 = vand.u32 %v6921, 4294901760
    %10090 = vmatmul.mubr.f32.gmra.mxu0 %v10089
    %v10091 = vpop.f32.mrf.mxu0
    %v10092 = vadd.f32 %v9627, %v10091
    %v10093 = vpop.f32.mrf.mxu0
    %10094 = vmatprep.mubr.f32.mxu0 0.0
    %v10095 = vand.u32 %v6922, 4294901760
    %10096 = vmatmul.mubr.f32.gmra.mxu0 %v10095
    %v10097 = vpop.f32.mrf.mxu0
    %v10098 = vadd.f32 %v9633, %v10097
    %v10099 = vpop.f32.mrf.mxu0
    %10100 = vmatprep.mubr.f32.mxu0 0.0
    %v10101 = vand.u32 %v6923, 4294901760
    %10102 = vmatmul.mubr.f32.gmra.mxu0 %v10101
    %v10103 = vpop.f32.mrf.mxu0
    %v10104 = vadd.f32 %v9639, %v10103
    %v10105 = vpop.f32.mrf.mxu0
    %10106 = vmatprep.mubr.f32.mxu0 0.0
    %v10107 = vand.u32 %v6924, 4294901760
    %10108 = vmatmul.mubr.f32.gmra.mxu0 %v10107
    %v10109 = vpop.f32.mrf.mxu0
    %v10110 = vadd.f32 %v9645, %v10109
    %v10111 = vpop.f32.mrf.mxu0
    %10112 = vmatprep.mubr.f32.mxu0 0.0
    %v10113 = vand.u32 %v6925, 4294901760
    %10114 = vmatmul.mubr.f32.gmra.mxu0 %v10113
    %v10115 = vpop.f32.mrf.mxu0
    %v10116 = vadd.f32 %v9651, %v10115
    %v10117 = vpop.f32.mrf.mxu0
    %10118 = vmatprep.mubr.f32.mxu0 0.0
    %v10119 = vand.u32 %v6926, 4294901760
    %10120 = vmatmul.mubr.f32.gmra.mxu0 %v10119
    %v10121 = vpop.f32.mrf.mxu0
    %v10122 = vadd.f32 %v9657, %v10121
    %v10123 = vpop.f32.mrf.mxu0
    %10124 = vmatprep.mubr.f32.mxu0 0.0
    %v10125 = vand.u32 %v6927, 4294901760
    %10126 = vmatmul.mubr.f32.gmra.mxu0 %v10125
    %v10127 = vpop.f32.mrf.mxu0
    %v10128 = vadd.f32 %v9663, %v10127
    %v10129 = vpop.f32.mrf.mxu0
    %10130 = vmatprep.mubr.f32.mxu0 0.0
    %v10131 = vand.u32 %v6928, 4294901760
    %10132 = vmatmul.mubr.f32.gmra.mxu0 %v10131
    %v10133 = vpop.f32.mrf.mxu0
    %v10134 = vadd.f32 %v9669, %v10133
    %v10135 = vpop.f32.mrf.mxu0
    %10136 = vmatprep.mubr.f32.mxu0 0.0
    %v10137 = vand.u32 %v6929, 4294901760
    %10138 = vmatmul.mubr.f32.gmra.mxu0 %v10137
    %v10139 = vpop.f32.mrf.mxu0
    %v10140 = vadd.f32 %v9675, %v10139
    %v10141 = vpop.f32.mrf.mxu0
    %10142 = vmatprep.mubr.f32.mxu0 0.0
    %v10143 = vand.u32 %v6930, 4294901760
    %10144 = vmatmul.mubr.f32.gmra.mxu0 %v10143
    %v10145 = vpop.f32.mrf.mxu0
    %v10146 = vadd.f32 %v9681, %v10145
    %v10147 = vpop.f32.mrf.mxu0
    %10148 = vmatprep.mubr.f32.mxu0 0.0
    %v10149 = vand.u32 %v6931, 4294901760
    %10150 = vmatmul.mubr.f32.gmra.mxu0 %v10149
    %v10151 = vpop.f32.mrf.mxu0
    %v10152 = vadd.f32 %v9687, %v10151
    %v10153 = vpop.f32.mrf.mxu0
    %10154 = vmatprep.mubr.f32.mxu0 0.0
    %v10155 = vand.u32 %v6932, 4294901760
    %10156 = vmatmul.mubr.f32.gmra.mxu0 %v10155
    %v10157 = vpop.f32.mrf.mxu0
    %v10158 = vadd.f32 %v9693, %v10157
    %v10159 = vpop.f32.mrf.mxu0
    %10160 = vmatprep.mubr.f32.mxu0 0.0
    %v10161 = vand.u32 %v6933, 4294901760
    %10162 = vmatmul.mubr.f32.gmra.mxu0 %v10161
    %v10163 = vpop.f32.mrf.mxu0
    %v10164 = vadd.f32 %v9699, %v10163
    %v10165 = vpop.f32.mrf.mxu0
    %10166 = vmatprep.mubr.f32.mxu0 0.0
    %v10167 = vand.u32 %v6934, 4294901760
    %10168 = vmatmul.mubr.f32.gmra.mxu0 %v10167
    %v10169 = vpop.f32.mrf.mxu0
    %v10170 = vadd.f32 %v9705, %v10169
    %v10171 = vpop.f32.mrf.mxu0
    %10172 = vmatprep.mubr.f32.mxu0 0.0
    %v10173 = vand.u32 %v6935, 4294901760
    %10174 = vmatmul.mubr.f32.gmra.mxu0 %v10173
    %v10175 = vpop.f32.mrf.mxu0
    %v10176 = vadd.f32 %v9711, %v10175
    %v10177 = vpop.f32.mrf.mxu0
    %10178 = vmatprep.mubr.f32.mxu0 0.0
    %v10179 = vand.u32 %v6936, 4294901760
    %10180 = vmatmul.mubr.f32.gmra.mxu0 %v10179
    %v10181 = vpop.f32.mrf.mxu0
    %v10182 = vadd.f32 %v9717, %v10181
    %v10183 = vpop.f32.mrf.mxu0
    %10184 = vmatprep.mubr.f32.mxu0 0.0
    %v10185 = vand.u32 %v6937, 4294901760
    %10186 = vmatmul.mubr.f32.gmra.mxu0 %v10185
    %v10187 = vpop.f32.mrf.mxu0
    %v10188 = vadd.f32 %v9723, %v10187
    %v10189 = vpop.f32.mrf.mxu0
    %10190 = vmatprep.mubr.f32.mxu0 0.0
    %v10191 = vand.u32 %v6938, 4294901760
    %10192 = vmatmul.mubr.f32.gmra.mxu0 %v10191
    %v10193 = vpop.f32.mrf.mxu0
    %v10194 = vadd.f32 %v9729, %v10193
    %v10195 = vpop.f32.mrf.mxu0
    %10196 = vmatprep.mubr.f32.mxu0 0.0
    %v10197 = vand.u32 %v6939, 4294901760
    %10198 = vmatmul.mubr.f32.gmra.mxu0 %v10197
    %v10199 = vpop.f32.mrf.mxu0
    %v10200 = vadd.f32 %v9735, %v10199
    %v10201 = vpop.f32.mrf.mxu0
    %10202 = vmatprep.mubr.f32.mxu0 0.0
    %v10203 = vand.u32 %v6940, 4294901760
    %10204 = vmatmul.mubr.f32.gmra.mxu0 %v10203
    %v10205 = vpop.f32.mrf.mxu0
    %v10206 = vadd.f32 %v9741, %v10205
    %v10207 = vpop.f32.mrf.mxu0
    %10208 = vmatprep.mubr.f32.mxu0 0.0
    %v10209 = vand.u32 %v6941, 4294901760
    %10210 = vmatmul.mubr.f32.gmra.mxu0 %v10209
    %v10211 = vpop.f32.mrf.mxu0
    %v10212 = vadd.f32 %v9747, %v10211
    %v10213 = vpop.f32.mrf.mxu0
    %10214 = vmatprep.mubr.f32.mxu0 0.0
    %v10215 = vand.u32 %v6942, 4294901760
    %10216 = vmatmul.mubr.f32.gmra.mxu0 %v10215
    %v10217 = vpop.f32.mrf.mxu0
    %v10218 = vadd.f32 %v9753, %v10217
    %v10219 = vpop.f32.mrf.mxu0
    %10220 = vmatprep.mubr.f32.mxu0 0.0
    %v10221 = vand.u32 %v6943, 4294901760
    %10222 = vmatmul.mubr.f32.gmra.mxu0 %v10221
    %v10223 = vpop.f32.mrf.mxu0
    %v10224 = vadd.f32 %v9759, %v10223
    %v10225 = vpop.f32.mrf.mxu0
    %10226 = vmatprep.mubr.f32.mxu0 0.0
    %v10227 = vand.u32 %v6944, 4294901760
    %10228 = vmatmul.mubr.f32.gmra.mxu0 %v10227
    %v10229 = vpop.f32.mrf.mxu0
    %v10230 = vadd.f32 %v9765, %v10229
    %v10231 = vpop.f32.mrf.mxu0
    %10232 = vmatprep.mubr.f32.mxu0 0.0
    %v10233 = vand.u32 %v6945, 4294901760
    %10234 = vmatmul.mubr.f32.gmra.mxu0 %v10233
    %v10235 = vpop.f32.mrf.mxu0
    %v10236 = vadd.f32 %v9771, %v10235
    %v10237 = vpop.f32.mrf.mxu0
    %10238 = vmatprep.mubr.f32.mxu0 0.0
    %v10239 = vand.u32 %v6946, 4294901760
    %10240 = vmatmul.mubr.f32.gmra.mxu0 %v10239
    %v10241 = vpop.f32.mrf.mxu0
    %v10242 = vadd.f32 %v9777, %v10241
    %v10243 = vpop.f32.mrf.mxu0
    %10244 = vmatprep.mubr.f32.mxu0 0.0
    %v10245 = vand.u32 %v6947, 4294901760
    %10246 = vmatmul.mubr.f32.gmra.mxu0 %v10245
    %v10247 = vpop.f32.mrf.mxu0
    %v10248 = vadd.f32 %v9783, %v10247
    %v10249 = vpop.f32.mrf.mxu0
    %10250 = vmatprep.mubr.f32.mxu0 0.0
    %v10251 = vand.u32 %v6948, 4294901760
    %10252 = vmatmul.mubr.f32.gmra.mxu0 %v10251
    %v10253 = vpop.f32.mrf.mxu0
    %v10254 = vadd.f32 %v9789, %v10253
    %v10255 = vpop.f32.mrf.mxu0
    %10256 = vmatprep.mubr.f32.mxu0 0.0
    %v10257 = vand.u32 %v6949, 4294901760
    %10258 = vmatmul.mubr.f32.gmra.mxu0 %v10257
    %v10259 = vpop.f32.mrf.mxu0
    %v10260 = vadd.f32 %v9795, %v10259
    %v10261 = vpop.f32.mrf.mxu0
    %10262 = vmatprep.mubr.f32.mxu0 0.0
    %v10263 = vand.u32 %v6950, 4294901760
    %10264 = vmatmul.mubr.f32.gmra.mxu0 %v10263
    %v10265 = vpop.f32.mrf.mxu0
    %v10266 = vadd.f32 %v9801, %v10265
    %v10267 = vpop.f32.mrf.mxu0
    %10268 = vmatprep.mubr.f32.mxu0 0.0
    %v10269 = vand.u32 %v6951, 4294901760
    %10270 = vmatmul.mubr.f32.gmra.mxu0 %v10269
    %v10271 = vpop.f32.mrf.mxu0
    %v10272 = vadd.f32 %v9807, %v10271
    %v10273 = vpop.f32.mrf.mxu0
    %10274 = vmatprep.mubr.f32.mxu0 0.0
    %v10275 = vand.u32 %v6952, 4294901760
    %10276 = vmatmul.mubr.f32.gmra.mxu0 %v10275
    %v10277 = vpop.f32.mrf.mxu0
    %v10278 = vadd.f32 %v9813, %v10277
    %v10279 = vpop.f32.mrf.mxu0
    %10280 = vmatprep.mubr.f32.mxu0 0.0
    %v10281 = vand.u32 %v6953, 4294901760
    %10282 = vmatmul.mubr.f32.gmra.mxu0 %v10281
    %v10283 = vpop.f32.mrf.mxu0
    %v10284 = vadd.f32 %v9819, %v10283
    %v10285 = vpop.f32.mrf.mxu0
    %10286 = vmatprep.mubr.f32.mxu0 0.0
    %v10287 = vand.u32 %v6954, 4294901760
    %10288 = vmatmul.mubr.f32.gmra.mxu0 %v10287
    %v10289 = vpop.f32.mrf.mxu0
    %v10290 = vadd.f32 %v9825, %v10289
    %v10291 = vpop.f32.mrf.mxu0
    %10292 = vmatprep.mubr.f32.mxu0 0.0
    %v10293 = vand.u32 %v6955, 4294901760
    %10294 = vmatmul.mubr.f32.gmra.mxu0 %v10293
    %v10295 = vpop.f32.mrf.mxu0
    %v10296 = vadd.f32 %v9831, %v10295
    %v10297 = vpop.f32.mrf.mxu0
    %10298 = vmatprep.mubr.f32.mxu0 0.0
    %v10299 = vand.u32 %v6956, 4294901760
    %10300 = vmatmul.mubr.f32.gmra.mxu0 %v10299
    %v10301 = vpop.f32.mrf.mxu0
    %v10302 = vadd.f32 %v9837, %v10301
    %v10303 = vpop.f32.mrf.mxu0
    %10304 = vmatprep.mubr.f32.mxu0 0.0
    %v10305 = vand.u32 %v6957, 4294901760
    %10306 = vmatmul.mubr.f32.gmra.mxu0 %v10305
    %v10307 = vpop.f32.mrf.mxu0
    %v10308 = vadd.f32 %v9843, %v10307
    %v10309 = vpop.f32.mrf.mxu0
    %10310 = vmatprep.mubr.f32.mxu0 0.0
    %v10311 = vand.u32 %v6958, 4294901760
    %10312 = vmatmul.mubr.f32.gmra.mxu0 %v10311
    %v10313 = vpop.f32.mrf.mxu0
    %v10314 = vadd.f32 %v9849, %v10313
    %v10315 = vpop.f32.mrf.mxu0
    %10316 = vmatprep.mubr.f32.mxu0 0.0
    %v10317 = vand.u32 %v6959, 4294901760
    %10318 = vmatmul.mubr.f32.gmra.mxu0 %v10317
    %v10319 = vpop.f32.mrf.mxu0
    %v10320 = vadd.f32 %v9855, %v10319
    %v10321 = vpop.f32.mrf.mxu0
    %10322 = vmatprep.mubr.f32.mxu0 0.0
    %v10323 = vand.u32 %v6960, 4294901760
    %10324 = vmatmul.mubr.f32.gmra.mxu0 %v10323
    %v10325 = vpop.f32.mrf.mxu0
    %v10326 = vadd.f32 %v9861, %v10325
    %v10327 = vpop.f32.mrf.mxu0
    %10328 = vmatprep.mubr.f32.mxu0 0.0
    %v10329 = vand.u32 %v6961, 4294901760
    %10330 = vmatmul.mubr.f32.gmra.mxu0 %v10329
    %v10331 = vpop.f32.mrf.mxu0
    %v10332 = vadd.f32 %v9867, %v10331
    %v10333 = vpop.f32.mrf.mxu0
    %10334 = vdwg.mxu0
    %10335 = vst [vmem:[#allocation2] sm:$0xff] %v9954
    %10336 = vst [vmem:[#allocation2 + $0x8] sm:$0xff] %v9960
    %10337 = vst [vmem:[#allocation2 + $0x10] sm:$0xff] %v9966
    %10338 = vst [vmem:[#allocation2 + $0x18] sm:$0xff] %v9972
    %10339 = vst [vmem:[#allocation2 + $0x20] sm:$0xff] %v9978
    %10340 = vst [vmem:[#allocation2 + $0x28] sm:$0xff] %v9984
    %10341 = vst [vmem:[#allocation2 + $0x30] sm:$0xff] %v9990
    %10342 = vst [vmem:[#allocation2 + $0x38] sm:$0xff] %v9996
    %10343 = vst [vmem:[#allocation2 + $0x40] sm:$0xff] %v10002
    %10344 = vst [vmem:[#allocation2 + $0x48] sm:$0xff] %v10008
    %10345 = vst [vmem:[#allocation2 + $0x50] sm:$0xff] %v10014
    %10346 = vst [vmem:[#allocation2 + $0x58] sm:$0xff] %v10020
    %10347 = vst [vmem:[#allocation2 + $0x60] sm:$0xff] %v10026
    %10348 = vst [vmem:[#allocation2 + $0x68] sm:$0xff] %v10032
    %10349 = vst [vmem:[#allocation2 + $0x70] sm:$0xff] %v10038
    %10350 = vst [vmem:[#allocation2 + $0x78] sm:$0xff] %v10044
    %10351 = vst [vmem:[#allocation2 + $0x80] sm:$0xff] %v10050
    %10352 = vst [vmem:[#allocation2 + $0x88] sm:$0xff] %v10056
    %10353 = vst [vmem:[#allocation2 + $0x90] sm:$0xff] %v10062
    %10354 = vst [vmem:[#allocation2 + $0x98] sm:$0xff] %v10068
    %10355 = vst [vmem:[#allocation2 + $0xa0] sm:$0xff] %v10074
    %10356 = vst [vmem:[#allocation2 + $0xa8] sm:$0xff] %v10080
    %10357 = vst [vmem:[#allocation2 + $0xb0] sm:$0xff] %v10086
    %10358 = vst [vmem:[#allocation2 + $0xb8] sm:$0xff] %v10092
    %10359 = vst [vmem:[#allocation2 + $0xc0] sm:$0xff] %v10098
    %10360 = vst [vmem:[#allocation2 + $0xc8] sm:$0xff] %v10104
    %10361 = vst [vmem:[#allocation2 + $0xd0] sm:$0xff] %v10110
    %10362 = vst [vmem:[#allocation2 + $0xd8] sm:$0xff] %v10116
    %10363 = vst [vmem:[#allocation2 + $0xe0] sm:$0xff] %v10122
    %10364 = vst [vmem:[#allocation2 + $0xe8] sm:$0xff] %v10128
    %10365 = vst [vmem:[#allocation2 + $0xf0] sm:$0xff] %v10134
    %10366 = vst [vmem:[#allocation2 + $0xf8] sm:$0xff] %v10140
    %10367 = vst [vmem:[#allocation2 + $0x100] sm:$0xff] %v10146
    %10368 = vst [vmem:[#allocation2 + $0x108] sm:$0xff] %v10152
    %10369 = vst [vmem:[#allocation2 + $0x110] sm:$0xff] %v10158
    %10370 = vst [vmem:[#allocation2 + $0x118] sm:$0xff] %v10164
    %10371 = vst [vmem:[#allocation2 + $0x120] sm:$0xff] %v10170
    %10372 = vst [vmem:[#allocation2 + $0x128] sm:$0xff] %v10176
    %10373 = vst [vmem:[#allocation2 + $0x130] sm:$0xff] %v10182
    %10374 = vst [vmem:[#allocation2 + $0x138] sm:$0xff] %v10188
    %10375 = vst [vmem:[#allocation2 + $0x140] sm:$0xff] %v10194
    %10376 = vst [vmem:[#allocation2 + $0x148] sm:$0xff] %v10200
    %10377 = vst [vmem:[#allocation2 + $0x150] sm:$0xff] %v10206
    %10378 = vst [vmem:[#allocation2 + $0x158] sm:$0xff] %v10212
    %10379 = vst [vmem:[#allocation2 + $0x160] sm:$0xff] %v10218
    %10380 = vst [vmem:[#allocation2 + $0x168] sm:$0xff] %v10224
    %10381 = vst [vmem:[#allocation2 + $0x170] sm:$0xff] %v10230
    %10382 = vst [vmem:[#allocation2 + $0x178] sm:$0xff] %v10236
    %10383 = vst [vmem:[#allocation2 + $0x180] sm:$0xff] %v10242
    %10384 = vst [vmem:[#allocation2 + $0x188] sm:$0xff] %v10248
    %10385 = vst [vmem:[#allocation2 + $0x190] sm:$0xff] %v10254
    %10386 = vst [vmem:[#allocation2 + $0x198] sm:$0xff] %v10260
    %10387 = vst [vmem:[#allocation2 + $0x1a0] sm:$0xff] %v10266
    %10388 = vst [vmem:[#allocation2 + $0x1a8] sm:$0xff] %v10272
    %10389 = vst [vmem:[#allocation2 + $0x1b0] sm:$0xff] %v10278
    %10390 = vst [vmem:[#allocation2 + $0x1b8] sm:$0xff] %v10284
    %10391 = vst [vmem:[#allocation2 + $0x1c0] sm:$0xff] %v10290
    %10392 = vst [vmem:[#allocation2 + $0x1c8] sm:$0xff] %v10296
    %10393 = vst [vmem:[#allocation2 + $0x1d0] sm:$0xff] %v10302
    %10394 = vst [vmem:[#allocation2 + $0x1d8] sm:$0xff] %v10308
    %10395 = vst [vmem:[#allocation2 + $0x1e0] sm:$0xff] %v10314
    %10396 = vst [vmem:[#allocation2 + $0x1e8] sm:$0xff] %v10320
    %10397 = vst [vmem:[#allocation2 + $0x1f0] sm:$0xff] %v10326
    %10398 = vst [vmem:[#allocation2 + $0x1f8] sm:$0xff] %v10332
    // Predicated region
    $region30: #{tpu_custom_call.1} parent=1 // pred_check
      _
    $region31: #{tpu_custom_call.1} parent=1 // pred_check_branch
      %10400 = sbr.rel (0) target = $region33
    $region32: #{tpu_custom_call.1} parent=1 // pred_region
      %s10402 = ssub.s32 8192, 8192
      %10403 = vsyncadd [#allocation3], %s10402
      %s10404 = sshll.u32 [#allocation2], 4
      %s10405 = int_to_ptr.vmem [resolvable:$true] %s10404
      %10410 = dma.vmem_to_hbm [thread:$0]  %s10405, 8192, %s7, [#allocation3], 128, 128, 8
    $region33: #{tpu_custom_call.1} parent=1 // pred_fallthru
      _
    // Predicated region
    $region34: #{tpu_custom_call.1} parent=1 // pred_check
      _
    $region35: #{tpu_custom_call.1} parent=1 // pred_check_branch
      %10412 = sbr.rel (0) target = $region37
    $region36: #{tpu_custom_call.1} parent=1 // pred_region
      %10413 = dma.done [#allocation3], 8192
    $region37: #{tpu_custom_call.1} parent=1 // pred_fallthru
      _
    %10414 = vsyncpa [#allocation3], 1

</llo_original>
